<compile_context>
chip_gen: v5e
topology: v5e:2x2
jax: 0.10.0
libtpu: 0.0.40
codegen_flags: <defaults>
</compile_context>

<pallas_src>
import functools

import jax
import jax.numpy as jnp
from jax.experimental import pallas as pl
from jax.experimental.pallas import tpu as pltpu

# Shrunk versions of the module constants (original: 32, 24) so the demo runs fast.
SMALL_X = 8                       # smallest_img_dim_x
SMALL_Y = 4                       # smallest_img_dim_y
LATENT = 8                        # latent_dim
FLAT = 80 * SMALL_X * SMALL_Y     # nn.Linear output features
IMG_H = 8 * SMALL_X               # three 2x bilinear upsamples
IMG_W = 8 * SMALL_Y

MXU_DTYPE = jnp.bfloat16          # MXU input dtype; accumulation stays float32


def _round_up(x, m):
    return (x + m - 1) // m * m


# --------------------------- linear + tanh kernel ---------------------------
def _linear_tanh_kernel(x_ref, w_ref, b_ref, o_ref):
    acc = jnp.dot(x_ref[...], w_ref[...], preferred_element_type=jnp.float32)
    acc = acc + b_ref[...]
    o_ref[...] = jnp.tanh(acc).astype(o_ref.dtype)


def linear_tanh(z, w, b):
    """tanh(z @ w + b), single-block GEMM (tiny problem: keep grid = 1)."""
    B, K = z.shape
    N = w.shape[1]
    Mp = max(8, _round_up(B, 8))
    zp = jnp.pad(z, ((0, Mp - B), (0, 0))).astype(MXU_DTYPE)

    out = pl.pallas_call(
        _linear_tanh_kernel,
        out_shape=jax.ShapeDtypeStruct((Mp, N), jnp.bfloat16),
        grid_spec=pltpu.PrefetchScalarGridSpec(
            num_scalar_prefetch=0,
            grid=(1,),
            in_specs=[
                pl.BlockSpec((Mp, K), lambda i: (0, 0)),
                pl.BlockSpec((K, N), lambda i: (0, 0)),
                pl.BlockSpec((1, N), lambda i: (0, 0)),
            ],
            out_specs=pl.BlockSpec((Mp, N), lambda i: (0, 0)),
        ),
        compiler_params=pltpu.CompilerParams(
            dimension_semantics=("arbitrary",)),
    )(zp, w.astype(MXU_DTYPE), b.reshape(1, N).astype(jnp.float32))
    return out[:B]


# -------------------- fused (im2col + matmul + bias + act) conv --------------------
def _conv3x3_kernel(x_ref, w_ref, b_ref, o_ref, *, wp, q_len, n_cout, activation):
    # x_ref : (Cp, Lf)        bf16  — zero-padded slab for ONE batch, flattened
    # w_ref : (9, Coutp, Cp)  bf16  — per-tap weight matrices
    # b_ref : (Coutp, 1)      f32
    # o_ref : (n_cout, q_len)
    acc = None
    t = 0
    for kh in range(3):
        for kw in range(3):
            # Static shifted window of the padded flat slab for this tap.
            start = (kh + 1) * wp + (kw - 1)
            xs = x_ref[:, start:start + q_len]                     # (Cp, Q) bf16
            contrib = jnp.dot(w_ref[t], xs,
                              preferred_element_type=jnp.float32)  # (Coutp, Q) f32
            acc = contrib if acc is None else acc + contrib
            t += 1
    acc = acc + b_ref[...]
    if activation == "tanh":
        acc = jnp.tanh(acc)
    o_ref[...] = acc[:n_cout].astype(o_ref.dtype)


def conv3x3_fused(x, w, b, *, activation, out_dtype):
    """nn.Conv2d(k=3, s=1, p=1) on (B, C, H, W) bf16 activations.

    The spatial padding, channel padding (to a bf16-friendly multiple of 16)
    and flattening are ONE jnp.pad + free reshape; the 3x3 patch gather happens
    inside the kernel on the VMEM-resident slab (no im2col materialization)."""
    B, C, H, W = x.shape
    Cout = w.shape[0]
    Cp = _round_up(C, 16)
    Coutp = _round_up(Cout, 16)
    Wp = W + 2                      # width padded by (1, 1)
    Lf = (H + 4) * Wp               # height padded by (2, 2) -> guard rows for tap spill
    Q = H * Wp                      # conv computed on all Wp columns; pad cols sliced off

    # single pad op: channel pad + height (2,2) + width (1,1); reshape is free.
    xpad = jnp.pad(x.astype(MXU_DTYPE),
                   ((0, 0), (0, Cp - C), (2, 2), (1, 1))).reshape(B, Cp, Lf)

    # weights: (Cout, C, 3, 3) -> (9, Coutp, Cp), taps major.
    w9 = jnp.transpose(w, (2, 3, 0, 1)).reshape(9, Cout, C)
    w9 = jnp.pad(w9, ((0, 0), (0, Coutp - Cout), (0, Cp - C))).astype(MXU_DTYPE)
    b2 = jnp.pad(b, (0, Coutp - Cout)).reshape(Coutp, 1).astype(jnp.float32)

    out = pl.pallas_call(
        functools.partial(_conv3x3_kernel, wp=Wp, q_len=Q, n_cout=Cout,
                          activation=activation),
        out_shape=jax.ShapeDtypeStruct((B, Cout, Q), out_dtype),
        grid_spec=pltpu.PrefetchScalarGridSpec(
            num_scalar_prefetch=0,
            grid=(B,),                                   # one image per grid step
            in_specs=[
                pl.BlockSpec((None, Cp, Lf), lambda bb: (bb, 0, 0)),
                pl.BlockSpec((9, Coutp, Cp), lambda bb: (0, 0, 0)),
                pl.BlockSpec((Coutp, 1), lambda bb: (0, 0)),
            ],
            out_specs=pl.BlockSpec((None, Cout, Q), lambda bb: (bb, 0, 0)),
        ),
        compiler_params=pltpu.CompilerParams(
            dimension_semantics=("parallel",)),          # one image per TC on v7x
    )(xpad, w9, b2)

    # drop the two pad columns per row -> (B, Cout, H, W)
    return out.reshape(B, Cout, H, Wp)[:, :, :, 1:W + 1]


def upsample2x_bilinear(x):
    # matches nn.Upsample(scale_factor=2, mode='bilinear') (align_corners=False)
    # TODO(synk): fold the fixed 2x bilinear weights into the conv tap gather to
    # remove this HBM roundtrip entirely; kept as a bf16 jax.image.resize pass.
    B, C, H, W = x.shape
    return jax.image.resize(x, (B, C, 2 * H, 2 * W), method="bilinear").astype(x.dtype)


# ---------------- parameters (matching nn.Linear / nn.Conv2d default init) ----------------
def init_params(key):
    keys = iter(jax.random.split(key, 16))

    def lin(in_f, out_f):
        bound = 1.0 / jnp.sqrt(jnp.float32(in_f))
        w = jax.random.uniform(next(keys), (in_f, out_f), jnp.float32, -bound, bound)
        b = jax.random.uniform(next(keys), (out_f,), jnp.float32, -bound, bound)
        return w, b

    def conv(cout, cin, k=3):
        bound = 1.0 / jnp.sqrt(jnp.float32(cin * k * k))
        w = jax.random.uniform(next(keys), (cout, cin, k, k), jnp.float32, -bound, bound)
        b = jax.random.uniform(next(keys), (cout,), jnp.float32, -bound, bound)
        return w, b

    return {
        "linear": lin(LATENT, FLAT),
        "de_conv1": conv(40, 80),
        "de_conv2": conv(20, 40),
        "de_conv3": conv(1, 20),
    }


# ---------------- DecoderA forward ----------------
def decoder_a_forward(params, z):
    B = z.shape[0]
    # x = tanh(linear(x)) ; bf16 output
    h = linear_tanh(z, *params["linear"])
    # .view(-1, 80, SMALL_X, SMALL_Y) — stays in torch (B, C, H, W) layout.
    h = h.reshape(B, 80, SMALL_X, SMALL_Y)
    # x = tanh(de_conv1(upsample(x)))
    h = conv3x3_fused(upsample2x_bilinear(h), *params["de_conv1"],
                      activation="tanh", out_dtype=jnp.bfloat16)
    # x = tanh(de_conv2(upsample(x)))
    h = conv3x3_fused(upsample2x_bilinear(h), *params["de_conv2"],
                      activation="tanh", out_dtype=jnp.bfloat16)
    # x = de_conv3(upsample(x))  — final layer kept f32
    h = conv3x3_fused(upsample2x_bilinear(h), *params["de_conv3"],
                      activation=None, out_dtype=jnp.float32)
    return h                                   # (B, 1, 8*SMALL_X, 8*SMALL_Y)


if __name__ == "__main__":
    key = jax.random.PRNGKey(0)
    pkey, xkey = jax.random.split(key)
    params = init_params(pkey)
    x = jax.random.normal(xkey, (2, LATENT), jnp.float32)

    out = jax.jit(decoder_a_forward)(params, x)
    jax.block_until_ready(out)

    assert out.shape == (2, 1, IMG_H, IMG_W), out.shape
    assert bool(jnp.all(jnp.isfinite(out)))
    print("KERNEL_OK")
</pallas_src>

<mosaic_0001>
module attributes {stable_mosaic.version = 11 : i64} {
  func.func @_linear_tanh_kernel(%arg0: i32, %arg1: memref<8x8xbf16, #tpu.memory_space<vmem>>, %arg2: memref<8x2560xbf16, #tpu.memory_space<vmem>>, %arg3: memref<1x2560xf32, #tpu.memory_space<vmem>>, %arg4: memref<8x2560xbf16, #tpu.memory_space<vmem>>) attributes {dimension_semantics = [#tpu.dimension_semantics<arbitrary>], iteration_bounds = array<i64: 1>, scalar_prefetch = 0 : i64, scratch_operands = 0 : i64, tpu.core_type = #tpu.core_type<tc>, window_params = [{pipeline_mode = #tpu.pipeline_mode<synchronous>, transform_indices = @transform_0, window_bounds = array<i64: 8, 8>}, {pipeline_mode = #tpu.pipeline_mode<synchronous>, transform_indices = @transform_1, window_bounds = array<i64: 8, 2560>}, {pipeline_mode = #tpu.pipeline_mode<synchronous>, transform_indices = @transform_2, window_bounds = array<i64: 1, 2560>}, {pipeline_mode = #tpu.pipeline_mode<synchronous>, transform_indices = @transform_3, window_bounds = array<i64: 8, 2560>}]} {
    %c0 = arith.constant 0 : index
    %c0_0 = arith.constant 0 : index
    %0 = vector.load %arg1[%c0, %c0_0] : memref<8x8xbf16, #tpu.memory_space<vmem>>, vector<8x8xbf16>
    %c0_1 = arith.constant 0 : index
    %c0_2 = arith.constant 0 : index
    %1 = vector.load %arg2[%c0_1, %c0_2] : memref<8x2560xbf16, #tpu.memory_space<vmem>>, vector<8x2560xbf16>
    %cst = arith.constant dense<0.000000e+00> : vector<8x2560xf32>
    %2 = tpu.matmul %0, %1, %cst {dimension_numbers = #tpu.dot_dimension_numbers<[1], [0], [0], [1], [0, 0, 1, 1], [], []>} : vector<8x8xbf16>, vector<8x2560xbf16>, vector<8x2560xf32> -> vector<8x2560xf32>
    %c0_3 = arith.constant 0 : index
    %c0_4 = arith.constant 0 : index
    %3 = vector.load %arg3[%c0_3, %c0_4] : memref<1x2560xf32, #tpu.memory_space<vmem>>, vector<1x2560xf32>
    %4 = vector.broadcast %3 : vector<1x2560xf32> to vector<8x2560xf32>
    %5 = arith.addf %2, %4 : vector<8x2560xf32>
    %6 = math.tanh %5 : vector<8x2560xf32>
    %7 = arith.truncf %6 : vector<8x2560xf32> to vector<8x2560xbf16>
    %c0_5 = arith.constant 0 : index
    %c0_6 = arith.constant 0 : index
    %8 = vector.load %arg4[%c0_5, %c0_6] : memref<8x2560xbf16, #tpu.memory_space<vmem>>, vector<8x2560xbf16>
    tpu.vector_store %arg4[%c0_5, %c0_6], %7 {strides = array<i32>} : memref<8x2560xbf16, #tpu.memory_space<vmem>>, vector<8x2560xbf16>,
    return
  }
  func.func @transform_0(%arg0: i32) -> (i32, i32) {
    %c0_i32 = arith.constant 0 : i32
    %c0_i32_0 = arith.constant 0 : i32
    %c0_i32_1 = arith.constant 0 : i32
    return %c0_i32, %c0_i32_0 : i32, i32
  }
  func.func @transform_1(%arg0: i32) -> (i32, i32) {
    %c0_i32 = arith.constant 0 : i32
    %c0_i32_0 = arith.constant 0 : i32
    %c0_i32_1 = arith.constant 0 : i32
    return %c0_i32, %c0_i32_0 : i32, i32
  }
  func.func @transform_2(%arg0: i32) -> (i32, i32) {
    %c0_i32 = arith.constant 0 : i32
    %c0_i32_0 = arith.constant 0 : i32
    %c0_i32_1 = arith.constant 0 : i32
    return %c0_i32, %c0_i32_0 : i32, i32
  }
  func.func @transform_3(%arg0: i32) -> (i32, i32) {
    %c0_i32 = arith.constant 0 : i32
    %c0_i32_0 = arith.constant 0 : i32
    %c0_i32_1 = arith.constant 0 : i32
    return %c0_i32, %c0_i32_0 : i32, i32
  }
}

module attributes {stable_mosaic.version = 11 : i64} {
  func.func @_conv3x3_kernel(%arg0: i32, %arg1: memref<1x80x200xbf16, #tpu.memory_space<vmem>>, %arg2: memref<9x48x80xbf16, #tpu.memory_space<vmem>>, %arg3: memref<48x1xf32, #tpu.memory_space<vmem>>, %arg4: memref<1x40x160xbf16, #tpu.memory_space<vmem>>) attributes {dimension_semantics = [#tpu.dimension_semantics<parallel>], iteration_bounds = array<i64: 2>, scalar_prefetch = 0 : i64, scratch_operands = 0 : i64, tpu.core_type = #tpu.core_type<tc>, window_params = [{transform_indices = @transform_0, window_bounds = array<i64: 1, 80, 200>}, {pipeline_mode = #tpu.pipeline_mode<synchronous>, transform_indices = @transform_1, window_bounds = array<i64: 9, 48, 80>}, {pipeline_mode = #tpu.pipeline_mode<synchronous>, transform_indices = @transform_2, window_bounds = array<i64: 48, 1>}, {transform_indices = @transform_3, window_bounds = array<i64: 1, 40, 160>}]} {
    %c0 = arith.constant 0 : index
    %c0_0 = arith.constant 0 : index
    %c9 = arith.constant 9 : index
    %0 = vector.load %arg1[%c0, %c0_0, %c9] : memref<1x80x200xbf16, #tpu.memory_space<vmem>>, vector<1x80x160xbf16>
    %1 = vector.shape_cast %0 : vector<1x80x160xbf16> to vector<80x160xbf16>
    %c0_1 = arith.constant 0 : index
    %c0_2 = arith.constant 0 : index
    %c0_3 = arith.constant 0 : index
    %2 = vector.load %arg2[%c0_1, %c0_2, %c0_3] : memref<9x48x80xbf16, #tpu.memory_space<vmem>>, vector<1x48x80xbf16>
    %3 = vector.shape_cast %2 : vector<1x48x80xbf16> to vector<48x80xbf16>
    %cst = arith.constant dense<0.000000e+00> : vector<48x160xf32>
    %4 = tpu.matmul %3, %1, %cst {dimension_numbers = #tpu.dot_dimension_numbers<[1], [0], [0], [1], [0, 0, 1, 1], [], []>} : vector<48x80xbf16>, vector<80x160xbf16>, vector<48x160xf32> -> vector<48x160xf32>
    %c0_4 = arith.constant 0 : index
    %c0_5 = arith.constant 0 : index
    %c10 = arith.constant 10 : index
    %5 = vector.load %arg1[%c0_4, %c0_5, %c10] : memref<1x80x200xbf16, #tpu.memory_space<vmem>>, vector<1x80x160xbf16>
    %6 = vector.shape_cast %5 : vector<1x80x160xbf16> to vector<80x160xbf16>
    %c1 = arith.constant 1 : index
    %c0_6 = arith.constant 0 : index
    %c0_7 = arith.constant 0 : index
    %7 = vector.load %arg2[%c1, %c0_6, %c0_7] : memref<9x48x80xbf16, #tpu.memory_space<vmem>>, vector<1x48x80xbf16>
    %8 = vector.shape_cast %7 : vector<1x48x80xbf16> to vector<48x80xbf16>
    %cst_8 = arith.constant dense<0.000000e+00> : vector<48x160xf32>
    %9 = tpu.matmul %8, %6, %cst_8 {dimension_numbers = #tpu.dot_dimension_numbers<[1], [0], [0], [1], [0, 0, 1, 1], [], []>} : vector<48x80xbf16>, vector<80x160xbf16>, vector<48x160xf32> -> vector<48x160xf32>
    %10 = arith.addf %4, %9 : vector<48x160xf32>
    %c0_9 = arith.constant 0 : index
    %c0_10 = arith.constant 0 : index
    %c11 = arith.constant 11 : index
    %11 = vector.load %arg1[%c0_9, %c0_10, %c11] : memref<1x80x200xbf16, #tpu.memory_space<vmem>>, vector<1x80x160xbf16>
    %12 = vector.shape_cast %11 : vector<1x80x160xbf16> to vector<80x160xbf16>
    %c2 = arith.constant 2 : index
    %c0_11 = arith.constant 0 : index
    %c0_12 = arith.constant 0 : index
    %13 = vector.load %arg2[%c2, %c0_11, %c0_12] : memref<9x48x80xbf16, #tpu.memory_space<vmem>>, vector<1x48x80xbf16>
    %14 = vector.shape_cast %13 : vector<1x48x80xbf16> to vector<48x80xbf16>
    %cst_13 = arith.constant dense<0.000000e+00> : vector<48x160xf32>
    %15 = tpu.matmul %14, %12, %cst_13 {dimension_numbers = #tpu.dot_dimension_numbers<[1], [0], [0], [1], [0, 0, 1, 1], [], []>} : vector<48x80xbf16>, vector<80x160xbf16>, vector<48x160xf32> -> vector<48x160xf32>
    %16 = arith.addf %10, %15 : vector<48x160xf32>
    %c0_14 = arith.constant 0 : index
    %c0_15 = arith.constant 0 : index
    %c19 = arith.constant 19 : index
    %17 = vector.load %arg1[%c0_14, %c0_15, %c19] : memref<1x80x200xbf16, #tpu.memory_space<vmem>>, vector<1x80x160xbf16>
    %18 = vector.shape_cast %17 : vector<1x80x160xbf16> to vector<80x160xbf16>
    %c3 = arith.constant 3 : index
    %c0_16 = arith.constant 0 : index
    %c0_17 = arith.constant 0 : index
    %19 = vector.load %arg2[%c3, %c0_16, %c0_17] : memref<9x48x80xbf16, #tpu.memory_space<vmem>>, vector<1x48x80xbf16>
    %20 = vector.shape_cast %19 : vector<1x48x80xbf16> to vector<48x80xbf16>
    %cst_18 = arith.constant dense<0.000000e+00> : vector<48x160xf32>
    %21 = tpu.matmul %20, %18, %cst_18 {dimension_numbers = #tpu.dot_dimension_numbers<[1], [0], [0], [1], [0, 0, 1, 1], [], []>} : vector<48x80xbf16>, vector<80x160xbf16>, vector<48x160xf32> -> vector<48x160xf32>
    %22 = arith.addf %16, %21 : vector<48x160xf32>
    %c0_19 = arith.constant 0 : index
    %c0_20 = arith.constant 0 : index
    %c20 = arith.constant 20 : index
    %23 = vector.load %arg1[%c0_19, %c0_20, %c20] : memref<1x80x200xbf16, #tpu.memory_space<vmem>>, vector<1x80x160xbf16>
    %24 = vector.shape_cast %23 : vector<1x80x160xbf16> to vector<80x160xbf16>
    %c4 = arith.constant 4 : index
    %c0_21 = arith.constant 0 : index
    %c0_22 = arith.constant 0 : index
    %25 = vector.load %arg2[%c4, %c0_21, %c0_22] : memref<9x48x80xbf16, #tpu.memory_space<vmem>>, vector<1x48x80xbf16>
    %26 = vector.shape_cast %25 : vector<1x48x80xbf16> to vector<48x80xbf16>
    %cst_23 = arith.constant dense<0.000000e+00> : vector<48x160xf32>
    %27 = tpu.matmul %26, %24, %cst_23 {dimension_numbers = #tpu.dot_dimension_numbers<[1], [0], [0], [1], [0, 0, 1, 1], [], []>} : vector<48x80xbf16>, vector<80x160xbf16>, vector<48x160xf32> -> vector<48x160xf32>
    %28 = arith.addf %22, %27 : vector<48x160xf32>
    %c0_24 = arith.constant 0 : index
    %c0_25 = arith.constant 0 : index
    %c21 = arith.constant 21 : index
    %29 = vector.load %arg1[%c0_24, %c0_25, %c21] : memref<1x80x200xbf16, #tpu.memory_space<vmem>>, vector<1x80x160xbf16>
    %30 = vector.shape_cast %29 : vector<1x80x160xbf16> to vector<80x160xbf16>
    %c5 = arith.constant 5 : index
    %c0_26 = arith.constant 0 : index
    %c0_27 = arith.constant 0 : index
    %31 = vector.load %arg2[%c5, %c0_26, %c0_27] : memref<9x48x80xbf16, #tpu.memory_space<vmem>>, vector<1x48x80xbf16>
    %32 = vector.shape_cast %31 : vector<1x48x80xbf16> to vector<48x80xbf16>
    %cst_28 = arith.constant dense<0.000000e+00> : vector<48x160xf32>
    %33 = tpu.matmul %32, %30, %cst_28 {dimension_numbers = #tpu.dot_dimension_numbers<[1], [0], [0], [1], [0, 0, 1, 1], [], []>} : vector<48x80xbf16>, vector<80x160xbf16>, vector<48x160xf32> -> vector<48x160xf32>
    %34 = arith.addf %28, %33 : vector<48x160xf32>
    %c0_29 = arith.constant 0 : index
    %c0_30 = arith.constant 0 : index
    %c29 = arith.constant 29 : index
    %35 = vector.load %arg1[%c0_29, %c0_30, %c29] : memref<1x80x200xbf16, #tpu.memory_space<vmem>>, vector<1x80x160xbf16>
    %36 = vector.shape_cast %35 : vector<1x80x160xbf16> to vector<80x160xbf16>
    %c6 = arith.constant 6 : index
    %c0_31 = arith.constant 0 : index
    %c0_32 = arith.constant 0 : index
    %37 = vector.load %arg2[%c6, %c0_31, %c0_32] : memref<9x48x80xbf16, #tpu.memory_space<vmem>>, vector<1x48x80xbf16>
    %38 = vector.shape_cast %37 : vector<1x48x80xbf16> to vector<48x80xbf16>
    %cst_33 = arith.constant dense<0.000000e+00> : vector<48x160xf32>
    %39 = tpu.matmul %38, %36, %cst_33 {dimension_numbers = #tpu.dot_dimension_numbers<[1], [0], [0], [1], [0, 0, 1, 1], [], []>} : vector<48x80xbf16>, vector<80x160xbf16>, vector<48x160xf32> -> vector<48x160xf32>
    %40 = arith.addf %34, %39 : vector<48x160xf32>
    %c0_34 = arith.constant 0 : index
    %c0_35 = arith.constant 0 : index
    %c30 = arith.constant 30 : index
    %41 = vector.load %arg1[%c0_34, %c0_35, %c30] : memref<1x80x200xbf16, #tpu.memory_space<vmem>>, vector<1x80x160xbf16>
    %42 = vector.shape_cast %41 : vector<1x80x160xbf16> to vector<80x160xbf16>
    %c7 = arith.constant 7 : index
    %c0_36 = arith.constant 0 : index
    %c0_37 = arith.constant 0 : index
    %43 = vector.load %arg2[%c7, %c0_36, %c0_37] : memref<9x48x80xbf16, #tpu.memory_space<vmem>>, vector<1x48x80xbf16>
    %44 = vector.shape_cast %43 : vector<1x48x80xbf16> to vector<48x80xbf16>
    %cst_38 = arith.constant dense<0.000000e+00> : vector<48x160xf32>
    %45 = tpu.matmul %44, %42, %cst_38 {dimension_numbers = #tpu.dot_dimension_numbers<[1], [0], [0], [1], [0, 0, 1, 1], [], []>} : vector<48x80xbf16>, vector<80x160xbf16>, vector<48x160xf32> -> vector<48x160xf32>
    %46 = arith.addf %40, %45 : vector<48x160xf32>
    %c0_39 = arith.constant 0 : index
    %c0_40 = arith.constant 0 : index
    %c31 = arith.constant 31 : index
    %47 = vector.load %arg1[%c0_39, %c0_40, %c31] : memref<1x80x200xbf16, #tpu.memory_space<vmem>>, vector<1x80x160xbf16>
    %48 = vector.shape_cast %47 : vector<1x80x160xbf16> to vector<80x160xbf16>
    %c8 = arith.constant 8 : index
    %c0_41 = arith.constant 0 : index
    %c0_42 = arith.constant 0 : index
    %49 = vector.load %arg2[%c8, %c0_41, %c0_42] : memref<9x48x80xbf16, #tpu.memory_space<vmem>>, vector<1x48x80xbf16>
    %50 = vector.shape_cast %49 : vector<1x48x80xbf16> to vector<48x80xbf16>
    %cst_43 = arith.constant dense<0.000000e+00> : vector<48x160xf32>
    %51 = tpu.matmul %50, %48, %cst_43 {dimension_numbers = #tpu.dot_dimension_numbers<[1], [0], [0], [1], [0, 0, 1, 1], [], []>} : vector<48x80xbf16>, vector<80x160xbf16>, vector<48x160xf32> -> vector<48x160xf32>
    %52 = arith.addf %46, %51 : vector<48x160xf32>
    %c0_44 = arith.constant 0 : index
    %c0_45 = arith.constant 0 : index
    %53 = vector.load %arg3[%c0_44, %c0_45] : memref<48x1xf32, #tpu.memory_space<vmem>>, vector<48x1xf32>
    %54 = vector.broadcast %53 : vector<48x1xf32> to vector<48x160xf32>
    %55 = arith.addf %52, %54 : vector<48x160xf32>
    %56 = math.tanh %55 : vector<48x160xf32>
    %57 = vector.extract_strided_slice %56 {offsets = [0, 0], sizes = [40, 160], strides = [1, 1]} : vector<48x160xf32> to vector<40x160xf32>
    %58 = arith.truncf %57 : vector<40x160xf32> to vector<40x160xbf16>
    %c0_46 = arith.constant 0 : index
    %c0_47 = arith.constant 0 : index
    %c0_48 = arith.constant 0 : index
    %59 = vector.load %arg4[%c0_46, %c0_47, %c0_48] : memref<1x40x160xbf16, #tpu.memory_space<vmem>>, vector<1x40x160xbf16>
    %60 = vector.shape_cast %59 : vector<1x40x160xbf16> to vector<40x160xbf16>
    %61 = vector.shape_cast %58 : vector<40x160xbf16> to vector<1x40x160xbf16>
    tpu.vector_store %arg4[%c0_46, %c0_47, %c0_48], %61 {strides = array<i32>} : memref<1x40x160xbf16, #tpu.memory_space<vmem>>, vector<1x40x160xbf16>,
    return
  }
  func.func @transform_0(%arg0: i32) -> (i32, i32, i32) {
    %c0_i32 = arith.constant 0 : i32
    %c0_i32_0 = arith.constant 0 : i32
    %c0_i32_1 = arith.constant 0 : i32
    return %arg0, %c0_i32, %c0_i32_0 : i32, i32, i32
  }
  func.func @transform_1(%arg0: i32) -> (i32, i32, i32) {
    %c0_i32 = arith.constant 0 : i32
    %c0_i32_0 = arith.constant 0 : i32
    %c0_i32_1 = arith.constant 0 : i32
    %c0_i32_2 = arith.constant 0 : i32
    return %c0_i32, %c0_i32_0, %c0_i32_1 : i32, i32, i32
  }
  func.func @transform_2(%arg0: i32) -> (i32, i32) {
    %c0_i32 = arith.constant 0 : i32
    %c0_i32_0 = arith.constant 0 : i32
    %c0_i32_1 = arith.constant 0 : i32
    return %c0_i32, %c0_i32_0 : i32, i32
  }
  func.func @transform_3(%arg0: i32) -> (i32, i32, i32) {
    %c0_i32 = arith.constant 0 : i32
    %c0_i32_0 = arith.constant 0 : i32
    %c0_i32_1 = arith.constant 0 : i32
    return %arg0, %c0_i32, %c0_i32_0 : i32, i32, i32
  }
}

module attributes {stable_mosaic.version = 11 : i64} {
  func.func @_conv3x3_kernel(%arg0: i32, %arg1: memref<1x48x648xbf16, #tpu.memory_space<vmem>>, %arg2: memref<9x32x48xbf16, #tpu.memory_space<vmem>>, %arg3: memref<32x1xf32, #tpu.memory_space<vmem>>, %arg4: memref<1x20x576xbf16, #tpu.memory_space<vmem>>) attributes {dimension_semantics = [#tpu.dimension_semantics<parallel>], iteration_bounds = array<i64: 2>, scalar_prefetch = 0 : i64, scratch_operands = 0 : i64, tpu.core_type = #tpu.core_type<tc>, window_params = [{transform_indices = @transform_0, window_bounds = array<i64: 1, 48, 648>}, {pipeline_mode = #tpu.pipeline_mode<synchronous>, transform_indices = @transform_1, window_bounds = array<i64: 9, 32, 48>}, {pipeline_mode = #tpu.pipeline_mode<synchronous>, transform_indices = @transform_2, window_bounds = array<i64: 32, 1>}, {transform_indices = @transform_3, window_bounds = array<i64: 1, 20, 576>}]} {
    %c0 = arith.constant 0 : index
    %c0_0 = arith.constant 0 : index
    %c17 = arith.constant 17 : index
    %0 = vector.load %arg1[%c0, %c0_0, %c17] : memref<1x48x648xbf16, #tpu.memory_space<vmem>>, vector<1x48x576xbf16>
    %1 = vector.shape_cast %0 : vector<1x48x576xbf16> to vector<48x576xbf16>
    %c0_1 = arith.constant 0 : index
    %c0_2 = arith.constant 0 : index
    %c0_3 = arith.constant 0 : index
    %2 = vector.load %arg2[%c0_1, %c0_2, %c0_3] : memref<9x32x48xbf16, #tpu.memory_space<vmem>>, vector<1x32x48xbf16>
    %3 = vector.shape_cast %2 : vector<1x32x48xbf16> to vector<32x48xbf16>
    %cst = arith.constant dense<0.000000e+00> : vector<32x576xf32>
    %4 = tpu.matmul %3, %1, %cst {dimension_numbers = #tpu.dot_dimension_numbers<[1], [0], [0], [1], [0, 0, 1, 1], [], []>} : vector<32x48xbf16>, vector<48x576xbf16>, vector<32x576xf32> -> vector<32x576xf32>
    %c0_4 = arith.constant 0 : index
    %c0_5 = arith.constant 0 : index
    %c18 = arith.constant 18 : index
    %5 = vector.load %arg1[%c0_4, %c0_5, %c18] : memref<1x48x648xbf16, #tpu.memory_space<vmem>>, vector<1x48x576xbf16>
    %6 = vector.shape_cast %5 : vector<1x48x576xbf16> to vector<48x576xbf16>
    %c1 = arith.constant 1 : index
    %c0_6 = arith.constant 0 : index
    %c0_7 = arith.constant 0 : index
    %7 = vector.load %arg2[%c1, %c0_6, %c0_7] : memref<9x32x48xbf16, #tpu.memory_space<vmem>>, vector<1x32x48xbf16>
    %8 = vector.shape_cast %7 : vector<1x32x48xbf16> to vector<32x48xbf16>
    %cst_8 = arith.constant dense<0.000000e+00> : vector<32x576xf32>
    %9 = tpu.matmul %8, %6, %cst_8 {dimension_numbers = #tpu.dot_dimension_numbers<[1], [0], [0], [1], [0, 0, 1, 1], [], []>} : vector<32x48xbf16>, vector<48x576xbf16>, vector<32x576xf32> -> vector<32x576xf32>
    %10 = arith.addf %4, %9 : vector<32x576xf32>
    %c0_9 = arith.constant 0 : index
    %c0_10 = arith.constant 0 : index
    %c19 = arith.constant 19 : index
    %11 = vector.load %arg1[%c0_9, %c0_10, %c19] : memref<1x48x648xbf16, #tpu.memory_space<vmem>>, vector<1x48x576xbf16>
    %12 = vector.shape_cast %11 : vector<1x48x576xbf16> to vector<48x576xbf16>
    %c2 = arith.constant 2 : index
    %c0_11 = arith.constant 0 : index
    %c0_12 = arith.constant 0 : index
    %13 = vector.load %arg2[%c2, %c0_11, %c0_12] : memref<9x32x48xbf16, #tpu.memory_space<vmem>>, vector<1x32x48xbf16>
    %14 = vector.shape_cast %13 : vector<1x32x48xbf16> to vector<32x48xbf16>
    %cst_13 = arith.constant dense<0.000000e+00> : vector<32x576xf32>
    %15 = tpu.matmul %14, %12, %cst_13 {dimension_numbers = #tpu.dot_dimension_numbers<[1], [0], [0], [1], [0, 0, 1, 1], [], []>} : vector<32x48xbf16>, vector<48x576xbf16>, vector<32x576xf32> -> vector<32x576xf32>
    %16 = arith.addf %10, %15 : vector<32x576xf32>
    %c0_14 = arith.constant 0 : index
    %c0_15 = arith.constant 0 : index
    %c35 = arith.constant 35 : index
    %17 = vector.load %arg1[%c0_14, %c0_15, %c35] : memref<1x48x648xbf16, #tpu.memory_space<vmem>>, vector<1x48x576xbf16>
    %18 = vector.shape_cast %17 : vector<1x48x576xbf16> to vector<48x576xbf16>
    %c3 = arith.constant 3 : index
    %c0_16 = arith.constant 0 : index
    %c0_17 = arith.constant 0 : index
    %19 = vector.load %arg2[%c3, %c0_16, %c0_17] : memref<9x32x48xbf16, #tpu.memory_space<vmem>>, vector<1x32x48xbf16>
    %20 = vector.shape_cast %19 : vector<1x32x48xbf16> to vector<32x48xbf16>
    %cst_18 = arith.constant dense<0.000000e+00> : vector<32x576xf32>
    %21 = tpu.matmul %20, %18, %cst_18 {dimension_numbers = #tpu.dot_dimension_numbers<[1], [0], [0], [1], [0, 0, 1, 1], [], []>} : vector<32x48xbf16>, vector<48x576xbf16>, vector<32x576xf32> -> vector<32x576xf32>
    %22 = arith.addf %16, %21 : vector<32x576xf32>
    %c0_19 = arith.constant 0 : index
    %c0_20 = arith.constant 0 : index
    %c36 = arith.constant 36 : index
    %23 = vector.load %arg1[%c0_19, %c0_20, %c36] : memref<1x48x648xbf16, #tpu.memory_space<vmem>>, vector<1x48x576xbf16>
    %24 = vector.shape_cast %23 : vector<1x48x576xbf16> to vector<48x576xbf16>
    %c4 = arith.constant 4 : index
    %c0_21 = arith.constant 0 : index
    %c0_22 = arith.constant 0 : index
    %25 = vector.load %arg2[%c4, %c0_21, %c0_22] : memref<9x32x48xbf16, #tpu.memory_space<vmem>>, vector<1x32x48xbf16>
    %26 = vector.shape_cast %25 : vector<1x32x48xbf16> to vector<32x48xbf16>
    %cst_23 = arith.constant dense<0.000000e+00> : vector<32x576xf32>
    %27 = tpu.matmul %26, %24, %cst_23 {dimension_numbers = #tpu.dot_dimension_numbers<[1], [0], [0], [1], [0, 0, 1, 1], [], []>} : vector<32x48xbf16>, vector<48x576xbf16>, vector<32x576xf32> -> vector<32x576xf32>
    %28 = arith.addf %22, %27 : vector<32x576xf32>
    %c0_24 = arith.constant 0 : index
    %c0_25 = arith.constant 0 : index
    %c37 = arith.constant 37 : index
    %29 = vector.load %arg1[%c0_24, %c0_25, %c37] : memref<1x48x648xbf16, #tpu.memory_space<vmem>>, vector<1x48x576xbf16>
    %30 = vector.shape_cast %29 : vector<1x48x576xbf16> to vector<48x576xbf16>
    %c5 = arith.constant 5 : index
    %c0_26 = arith.constant 0 : index
    %c0_27 = arith.constant 0 : index
    %31 = vector.load %arg2[%c5, %c0_26, %c0_27] : memref<9x32x48xbf16, #tpu.memory_space<vmem>>, vector<1x32x48xbf16>
    %32 = vector.shape_cast %31 : vector<1x32x48xbf16> to vector<32x48xbf16>
    %cst_28 = arith.constant dense<0.000000e+00> : vector<32x576xf32>
    %33 = tpu.matmul %32, %30, %cst_28 {dimension_numbers = #tpu.dot_dimension_numbers<[1], [0], [0], [1], [0, 0, 1, 1], [], []>} : vector<32x48xbf16>, vector<48x576xbf16>, vector<32x576xf32> -> vector<32x576xf32>
    %34 = arith.addf %28, %33 : vector<32x576xf32>
    %c0_29 = arith.constant 0 : index
    %c0_30 = arith.constant 0 : index
    %c53 = arith.constant 53 : index
    %35 = vector.load %arg1[%c0_29, %c0_30, %c53] : memref<1x48x648xbf16, #tpu.memory_space<vmem>>, vector<1x48x576xbf16>
    %36 = vector.shape_cast %35 : vector<1x48x576xbf16> to vector<48x576xbf16>
    %c6 = arith.constant 6 : index
    %c0_31 = arith.constant 0 : index
    %c0_32 = arith.constant 0 : index
    %37 = vector.load %arg2[%c6, %c0_31, %c0_32] : memref<9x32x48xbf16, #tpu.memory_space<vmem>>, vector<1x32x48xbf16>
    %38 = vector.shape_cast %37 : vector<1x32x48xbf16> to vector<32x48xbf16>
    %cst_33 = arith.constant dense<0.000000e+00> : vector<32x576xf32>
    %39 = tpu.matmul %38, %36, %cst_33 {dimension_numbers = #tpu.dot_dimension_numbers<[1], [0], [0], [1], [0, 0, 1, 1], [], []>} : vector<32x48xbf16>, vector<48x576xbf16>, vector<32x576xf32> -> vector<32x576xf32>
    %40 = arith.addf %34, %39 : vector<32x576xf32>
    %c0_34 = arith.constant 0 : index
    %c0_35 = arith.constant 0 : index
    %c54 = arith.constant 54 : index
    %41 = vector.load %arg1[%c0_34, %c0_35, %c54] : memref<1x48x648xbf16, #tpu.memory_space<vmem>>, vector<1x48x576xbf16>
    %42 = vector.shape_cast %41 : vector<1x48x576xbf16> to vector<48x576xbf16>
    %c7 = arith.constant 7 : index
    %c0_36 = arith.constant 0 : index
    %c0_37 = arith.constant 0 : index
    %43 = vector.load %arg2[%c7, %c0_36, %c0_37] : memref<9x32x48xbf16, #tpu.memory_space<vmem>>, vector<1x32x48xbf16>
    %44 = vector.shape_cast %43 : vector<1x32x48xbf16> to vector<32x48xbf16>
    %cst_38 = arith.constant dense<0.000000e+00> : vector<32x576xf32>
    %45 = tpu.matmul %44, %42, %cst_38 {dimension_numbers = #tpu.dot_dimension_numbers<[1], [0], [0], [1], [0, 0, 1, 1], [], []>} : vector<32x48xbf16>, vector<48x576xbf16>, vector<32x576xf32> -> vector<32x576xf32>
    %46 = arith.addf %40, %45 : vector<32x576xf32>
    %c0_39 = arith.constant 0 : index
    %c0_40 = arith.constant 0 : index
    %c55 = arith.constant 55 : index
    %47 = vector.load %arg1[%c0_39, %c0_40, %c55] : memref<1x48x648xbf16, #tpu.memory_space<vmem>>, vector<1x48x576xbf16>
    %48 = vector.shape_cast %47 : vector<1x48x576xbf16> to vector<48x576xbf16>
    %c8 = arith.constant 8 : index
    %c0_41 = arith.constant 0 : index
    %c0_42 = arith.constant 0 : index
    %49 = vector.load %arg2[%c8, %c0_41, %c0_42] : memref<9x32x48xbf16, #tpu.memory_space<vmem>>, vector<1x32x48xbf16>
    %50 = vector.shape_cast %49 : vector<1x32x48xbf16> to vector<32x48xbf16>
    %cst_43 = arith.constant dense<0.000000e+00> : vector<32x576xf32>
    %51 = tpu.matmul %50, %48, %cst_43 {dimension_numbers = #tpu.dot_dimension_numbers<[1], [0], [0], [1], [0, 0, 1, 1], [], []>} : vector<32x48xbf16>, vector<48x576xbf16>, vector<32x576xf32> -> vector<32x576xf32>
    %52 = arith.addf %46, %51 : vector<32x576xf32>
    %c0_44 = arith.constant 0 : index
    %c0_45 = arith.constant 0 : index
    %53 = vector.load %arg3[%c0_44, %c0_45] : memref<32x1xf32, #tpu.memory_space<vmem>>, vector<32x1xf32>
    %54 = vector.broadcast %53 : vector<32x1xf32> to vector<32x576xf32>
    %55 = arith.addf %52, %54 : vector<32x576xf32>
    %56 = math.tanh %55 : vector<32x576xf32>
    %57 = vector.extract_strided_slice %56 {offsets = [0, 0], sizes = [20, 576], strides = [1, 1]} : vector<32x576xf32> to vector<20x576xf32>
    %58 = arith.truncf %57 : vector<20x576xf32> to vector<20x576xbf16>
    %c0_46 = arith.constant 0 : index
    %c0_47 = arith.constant 0 : index
    %c0_48 = arith.constant 0 : index
    %59 = vector.load %arg4[%c0_46, %c0_47, %c0_48] : memref<1x20x576xbf16, #tpu.memory_space<vmem>>, vector<1x20x576xbf16>
    %60 = vector.shape_cast %59 : vector<1x20x576xbf16> to vector<20x576xbf16>
    %61 = vector.shape_cast %58 : vector<20x576xbf16> to vector<1x20x576xbf16>
    tpu.vector_store %arg4[%c0_46, %c0_47, %c0_48], %61 {strides = array<i32>} : memref<1x20x576xbf16, #tpu.memory_space<vmem>>, vector<1x20x576xbf16>,
    return
  }
  func.func @transform_0(%arg0: i32) -> (i32, i32, i32) {
    %c0_i32 = arith.constant 0 : i32
    %c0_i32_0 = arith.constant 0 : i32
    %c0_i32_1 = arith.constant 0 : i32
    return %arg0, %c0_i32, %c0_i32_0 : i32, i32, i32
  }
  func.func @transform_1(%arg0: i32) -> (i32, i32, i32) {
    %c0_i32 = arith.constant 0 : i32
    %c0_i32_0 = arith.constant 0 : i32
    %c0_i32_1 = arith.constant 0 : i32
    %c0_i32_2 = arith.constant 0 : i32
    return %c0_i32, %c0_i32_0, %c0_i32_1 : i32, i32, i32
  }
  func.func @transform_2(%arg0: i32) -> (i32, i32) {
    %c0_i32 = arith.constant 0 : i32
    %c0_i32_0 = arith.constant 0 : i32
    %c0_i32_1 = arith.constant 0 : i32
    return %c0_i32, %c0_i32_0 : i32, i32
  }
  func.func @transform_3(%arg0: i32) -> (i32, i32, i32) {
    %c0_i32 = arith.constant 0 : i32
    %c0_i32_0 = arith.constant 0 : i32
    %c0_i32_1 = arith.constant 0 : i32
    return %arg0, %c0_i32, %c0_i32_0 : i32, i32, i32
  }
}

module attributes {stable_mosaic.version = 11 : i64} {
  func.func @_conv3x3_kernel(%arg0: i32, %arg1: memref<1x32x2312xbf16, #tpu.memory_space<vmem>>, %arg2: memref<9x16x32xbf16, #tpu.memory_space<vmem>>, %arg3: memref<16x1xf32, #tpu.memory_space<vmem>>, %arg4: memref<1x1x2176xf32, #tpu.memory_space<vmem>>) attributes {dimension_semantics = [#tpu.dimension_semantics<parallel>], iteration_bounds = array<i64: 2>, scalar_prefetch = 0 : i64, scratch_operands = 0 : i64, tpu.core_type = #tpu.core_type<tc>, window_params = [{transform_indices = @transform_0, window_bounds = array<i64: 1, 32, 2312>}, {pipeline_mode = #tpu.pipeline_mode<synchronous>, transform_indices = @transform_1, window_bounds = array<i64: 9, 16, 32>}, {pipeline_mode = #tpu.pipeline_mode<synchronous>, transform_indices = @transform_2, window_bounds = array<i64: 16, 1>}, {transform_indices = @transform_3, window_bounds = array<i64: 1, 1, 2176>}]} {
    %c0 = arith.constant 0 : index
    %c0_0 = arith.constant 0 : index
    %c33 = arith.constant 33 : index
    %0 = vector.load %arg1[%c0, %c0_0, %c33] : memref<1x32x2312xbf16, #tpu.memory_space<vmem>>, vector<1x32x2176xbf16>
    %1 = vector.shape_cast %0 : vector<1x32x2176xbf16> to vector<32x2176xbf16>
    %c0_1 = arith.constant 0 : index
    %c0_2 = arith.constant 0 : index
    %c0_3 = arith.constant 0 : index
    %2 = vector.load %arg2[%c0_1, %c0_2, %c0_3] : memref<9x16x32xbf16, #tpu.memory_space<vmem>>, vector<1x16x32xbf16>
    %3 = vector.shape_cast %2 : vector<1x16x32xbf16> to vector<16x32xbf16>
    %cst = arith.constant dense<0.000000e+00> : vector<16x2176xf32>
    %4 = tpu.matmul %3, %1, %cst {dimension_numbers = #tpu.dot_dimension_numbers<[1], [0], [0], [1], [0, 0, 1, 1], [], []>} : vector<16x32xbf16>, vector<32x2176xbf16>, vector<16x2176xf32> -> vector<16x2176xf32>
    %c0_4 = arith.constant 0 : index
    %c0_5 = arith.constant 0 : index
    %c34 = arith.constant 34 : index
    %5 = vector.load %arg1[%c0_4, %c0_5, %c34] : memref<1x32x2312xbf16, #tpu.memory_space<vmem>>, vector<1x32x2176xbf16>
    %6 = vector.shape_cast %5 : vector<1x32x2176xbf16> to vector<32x2176xbf16>
    %c1 = arith.constant 1 : index
    %c0_6 = arith.constant 0 : index
    %c0_7 = arith.constant 0 : index
    %7 = vector.load %arg2[%c1, %c0_6, %c0_7] : memref<9x16x32xbf16, #tpu.memory_space<vmem>>, vector<1x16x32xbf16>
    %8 = vector.shape_cast %7 : vector<1x16x32xbf16> to vector<16x32xbf16>
    %cst_8 = arith.constant dense<0.000000e+00> : vector<16x2176xf32>
    %9 = tpu.matmul %8, %6, %cst_8 {dimension_numbers = #tpu.dot_dimension_numbers<[1], [0], [0], [1], [0, 0, 1, 1], [], []>} : vector<16x32xbf16>, vector<32x2176xbf16>, vector<16x2176xf32> -> vector<16x2176xf32>
    %10 = arith.addf %4, %9 : vector<16x2176xf32>
    %c0_9 = arith.constant 0 : index
    %c0_10 = arith.constant 0 : index
    %c35 = arith.constant 35 : index
    %11 = vector.load %arg1[%c0_9, %c0_10, %c35] : memref<1x32x2312xbf16, #tpu.memory_space<vmem>>, vector<1x32x2176xbf16>
    %12 = vector.shape_cast %11 : vector<1x32x2176xbf16> to vector<32x2176xbf16>
    %c2 = arith.constant 2 : index
    %c0_11 = arith.constant 0 : index
    %c0_12 = arith.constant 0 : index
    %13 = vector.load %arg2[%c2, %c0_11, %c0_12] : memref<9x16x32xbf16, #tpu.memory_space<vmem>>, vector<1x16x32xbf16>
    %14 = vector.shape_cast %13 : vector<1x16x32xbf16> to vector<16x32xbf16>
    %cst_13 = arith.constant dense<0.000000e+00> : vector<16x2176xf32>
    %15 = tpu.matmul %14, %12, %cst_13 {dimension_numbers = #tpu.dot_dimension_numbers<[1], [0], [0], [1], [0, 0, 1, 1], [], []>} : vector<16x32xbf16>, vector<32x2176xbf16>, vector<16x2176xf32> -> vector<16x2176xf32>
    %16 = arith.addf %10, %15 : vector<16x2176xf32>
    %c0_14 = arith.constant 0 : index
    %c0_15 = arith.constant 0 : index
    %c67 = arith.constant 67 : index
    %17 = vector.load %arg1[%c0_14, %c0_15, %c67] : memref<1x32x2312xbf16, #tpu.memory_space<vmem>>, vector<1x32x2176xbf16>
    %18 = vector.shape_cast %17 : vector<1x32x2176xbf16> to vector<32x2176xbf16>
    %c3 = arith.constant 3 : index
    %c0_16 = arith.constant 0 : index
    %c0_17 = arith.constant 0 : index
    %19 = vector.load %arg2[%c3, %c0_16, %c0_17] : memref<9x16x32xbf16, #tpu.memory_space<vmem>>, vector<1x16x32xbf16>
    %20 = vector.shape_cast %19 : vector<1x16x32xbf16> to vector<16x32xbf16>
    %cst_18 = arith.constant dense<0.000000e+00> : vector<16x2176xf32>
    %21 = tpu.matmul %20, %18, %cst_18 {dimension_numbers = #tpu.dot_dimension_numbers<[1], [0], [0], [1], [0, 0, 1, 1], [], []>} : vector<16x32xbf16>, vector<32x2176xbf16>, vector<16x2176xf32> -> vector<16x2176xf32>
    %22 = arith.addf %16, %21 : vector<16x2176xf32>
    %c0_19 = arith.constant 0 : index
    %c0_20 = arith.constant 0 : index
    %c68 = arith.constant 68 : index
    %23 = vector.load %arg1[%c0_19, %c0_20, %c68] : memref<1x32x2312xbf16, #tpu.memory_space<vmem>>, vector<1x32x2176xbf16>
    %24 = vector.shape_cast %23 : vector<1x32x2176xbf16> to vector<32x2176xbf16>
    %c4 = arith.constant 4 : index
    %c0_21 = arith.constant 0 : index
    %c0_22 = arith.constant 0 : index
    %25 = vector.load %arg2[%c4, %c0_21, %c0_22] : memref<9x16x32xbf16, #tpu.memory_space<vmem>>, vector<1x16x32xbf16>
    %26 = vector.shape_cast %25 : vector<1x16x32xbf16> to vector<16x32xbf16>
    %cst_23 = arith.constant dense<0.000000e+00> : vector<16x2176xf32>
    %27 = tpu.matmul %26, %24, %cst_23 {dimension_numbers = #tpu.dot_dimension_numbers<[1], [0], [0], [1], [0, 0, 1, 1], [], []>} : vector<16x32xbf16>, vector<32x2176xbf16>, vector<16x2176xf32> -> vector<16x2176xf32>
    %28 = arith.addf %22, %27 : vector<16x2176xf32>
    %c0_24 = arith.constant 0 : index
    %c0_25 = arith.constant 0 : index
    %c69 = arith.constant 69 : index
    %29 = vector.load %arg1[%c0_24, %c0_25, %c69] : memref<1x32x2312xbf16, #tpu.memory_space<vmem>>, vector<1x32x2176xbf16>
    %30 = vector.shape_cast %29 : vector<1x32x2176xbf16> to vector<32x2176xbf16>
    %c5 = arith.constant 5 : index
    %c0_26 = arith.constant 0 : index
    %c0_27 = arith.constant 0 : index
    %31 = vector.load %arg2[%c5, %c0_26, %c0_27] : memref<9x16x32xbf16, #tpu.memory_space<vmem>>, vector<1x16x32xbf16>
    %32 = vector.shape_cast %31 : vector<1x16x32xbf16> to vector<16x32xbf16>
    %cst_28 = arith.constant dense<0.000000e+00> : vector<16x2176xf32>
    %33 = tpu.matmul %32, %30, %cst_28 {dimension_numbers = #tpu.dot_dimension_numbers<[1], [0], [0], [1], [0, 0, 1, 1], [], []>} : vector<16x32xbf16>, vector<32x2176xbf16>, vector<16x2176xf32> -> vector<16x2176xf32>
    %34 = arith.addf %28, %33 : vector<16x2176xf32>
    %c0_29 = arith.constant 0 : index
    %c0_30 = arith.constant 0 : index
    %c101 = arith.constant 101 : index
    %35 = vector.load %arg1[%c0_29, %c0_30, %c101] : memref<1x32x2312xbf16, #tpu.memory_space<vmem>>, vector<1x32x2176xbf16>
    %36 = vector.shape_cast %35 : vector<1x32x2176xbf16> to vector<32x2176xbf16>
    %c6 = arith.constant 6 : index
    %c0_31 = arith.constant 0 : index
    %c0_32 = arith.constant 0 : index
    %37 = vector.load %arg2[%c6, %c0_31, %c0_32] : memref<9x16x32xbf16, #tpu.memory_space<vmem>>, vector<1x16x32xbf16>
    %38 = vector.shape_cast %37 : vector<1x16x32xbf16> to vector<16x32xbf16>
    %cst_33 = arith.constant dense<0.000000e+00> : vector<16x2176xf32>
    %39 = tpu.matmul %38, %36, %cst_33 {dimension_numbers = #tpu.dot_dimension_numbers<[1], [0], [0], [1], [0, 0, 1, 1], [], []>} : vector<16x32xbf16>, vector<32x2176xbf16>, vector<16x2176xf32> -> vector<16x2176xf32>
    %40 = arith.addf %34, %39 : vector<16x2176xf32>
    %c0_34 = arith.constant 0 : index
    %c0_35 = arith.constant 0 : index
    %c102 = arith.constant 102 : index
    %41 = vector.load %arg1[%c0_34, %c0_35, %c102] : memref<1x32x2312xbf16, #tpu.memory_space<vmem>>, vector<1x32x2176xbf16>
    %42 = vector.shape_cast %41 : vector<1x32x2176xbf16> to vector<32x2176xbf16>
    %c7 = arith.constant 7 : index
    %c0_36 = arith.constant 0 : index
    %c0_37 = arith.constant 0 : index
    %43 = vector.load %arg2[%c7, %c0_36, %c0_37] : memref<9x16x32xbf16, #tpu.memory_space<vmem>>, vector<1x16x32xbf16>
    %44 = vector.shape_cast %43 : vector<1x16x32xbf16> to vector<16x32xbf16>
    %cst_38 = arith.constant dense<0.000000e+00> : vector<16x2176xf32>
    %45 = tpu.matmul %44, %42, %cst_38 {dimension_numbers = #tpu.dot_dimension_numbers<[1], [0], [0], [1], [0, 0, 1, 1], [], []>} : vector<16x32xbf16>, vector<32x2176xbf16>, vector<16x2176xf32> -> vector<16x2176xf32>
    %46 = arith.addf %40, %45 : vector<16x2176xf32>
    %c0_39 = arith.constant 0 : index
    %c0_40 = arith.constant 0 : index
    %c103 = arith.constant 103 : index
    %47 = vector.load %arg1[%c0_39, %c0_40, %c103] : memref<1x32x2312xbf16, #tpu.memory_space<vmem>>, vector<1x32x2176xbf16>
    %48 = vector.shape_cast %47 : vector<1x32x2176xbf16> to vector<32x2176xbf16>
    %c8 = arith.constant 8 : index
    %c0_41 = arith.constant 0 : index
    %c0_42 = arith.constant 0 : index
    %49 = vector.load %arg2[%c8, %c0_41, %c0_42] : memref<9x16x32xbf16, #tpu.memory_space<vmem>>, vector<1x16x32xbf16>
    %50 = vector.shape_cast %49 : vector<1x16x32xbf16> to vector<16x32xbf16>
    %cst_43 = arith.constant dense<0.000000e+00> : vector<16x2176xf32>
    %51 = tpu.matmul %50, %48, %cst_43 {dimension_numbers = #tpu.dot_dimension_numbers<[1], [0], [0], [1], [0, 0, 1, 1], [], []>} : vector<16x32xbf16>, vector<32x2176xbf16>, vector<16x2176xf32> -> vector<16x2176xf32>
    %52 = arith.addf %46, %51 : vector<16x2176xf32>
    %c0_44 = arith.constant 0 : index
    %c0_45 = arith.constant 0 : index
    %53 = vector.load %arg3[%c0_44, %c0_45] : memref<16x1xf32, #tpu.memory_space<vmem>>, vector<16x1xf32>
    %54 = vector.broadcast %53 : vector<16x1xf32> to vector<16x2176xf32>
    %55 = arith.addf %52, %54 : vector<16x2176xf32>
    %56 = vector.extract_strided_slice %55 {offsets = [0, 0], sizes = [1, 2176], strides = [1, 1]} : vector<16x2176xf32> to vector<1x2176xf32>
    %c0_46 = arith.constant 0 : index
    %c0_47 = arith.constant 0 : index
    %c0_48 = arith.constant 0 : index
    %57 = vector.load %arg4[%c0_46, %c0_47, %c0_48] : memref<1x1x2176xf32, #tpu.memory_space<vmem>>, vector<1x1x2176xf32>
    %58 = vector.shape_cast %57 : vector<1x1x2176xf32> to vector<1x2176xf32>
    %59 = vector.shape_cast %56 : vector<1x2176xf32> to vector<1x1x2176xf32>
    tpu.vector_store %arg4[%c0_46, %c0_47, %c0_48], %59 {strides = array<i32>} : memref<1x1x2176xf32, #tpu.memory_space<vmem>>, vector<1x1x2176xf32>,
    return
  }
  func.func @transform_0(%arg0: i32) -> (i32, i32, i32) {
    %c0_i32 = arith.constant 0 : i32
    %c0_i32_0 = arith.constant 0 : i32
    %c0_i32_1 = arith.constant 0 : i32
    return %arg0, %c0_i32, %c0_i32_0 : i32, i32, i32
  }
  func.func @transform_1(%arg0: i32) -> (i32, i32, i32) {
    %c0_i32 = arith.constant 0 : i32
    %c0_i32_0 = arith.constant 0 : i32
    %c0_i32_1 = arith.constant 0 : i32
    %c0_i32_2 = arith.constant 0 : i32
    return %c0_i32, %c0_i32_0, %c0_i32_1 : i32, i32, i32
  }
  func.func @transform_2(%arg0: i32) -> (i32, i32) {
    %c0_i32 = arith.constant 0 : i32
    %c0_i32_0 = arith.constant 0 : i32
    %c0_i32_1 = arith.constant 0 : i32
    return %c0_i32, %c0_i32_0 : i32, i32
  }
  func.func @transform_3(%arg0: i32) -> (i32, i32, i32) {
    %c0_i32 = arith.constant 0 : i32
    %c0_i32_0 = arith.constant 0 : i32
    %c0_i32_1 = arith.constant 0 : i32
    return %arg0, %c0_i32, %c0_i32_0 : i32, i32, i32
  }
}

</mosaic_0001>

<llo_original>
// kernel: decoder_a_forward.4
$region0: #{decoder_a_forward.4}
  #allocation0 [shape = 'u32[]', space=smem, size = 0x4, offset = 0x4, fixed_abs, tag = 'smem constant byte address 0x4 - core index']
  #allocation1 [shape = 'u32[72,128]{1,0:T(1,128)}', space=vmem, size = 0x9000, scoped, tag = 'internal scratch']
  %s0 = inlined_call_operand.vmem [shape: bf16[8,8], index: 0, kind: input, shape index: {}]
  %s1 = inlined_call_operand.vmem [shape: bf16[8,2560], index: 1, kind: input, shape index: {}]
  %s2 = inlined_call_operand.vmem [shape: f32[1,2560], index: 2, kind: input, shape index: {}]
  %s3 = inlined_call_operand.vmem [shape: bf16[8,2560], index: 3, kind: output, shape index: {}]
  %s4 = sld [smem:[#allocation0]]
  $region22: #{decoder_a_forward.4} parent=0
    _
  %s6 = ssub.s32 1, %s4
  %s7 = scalar_select 0, %s6, %s4
  // Predicated region
  $region2: #{decoder_a_forward.4} parent=0 // pred_check
    _
  $region3: #{decoder_a_forward.4} parent=0 // pred_check_branch
    %9 = sbr.rel (0) target = $region5
  $region4: #{decoder_a_forward.4} parent=0 // pred_region
    _
  $region5: #{decoder_a_forward.4} parent=0 // pred_fallthru
    _
  // Predicated region
  $region6: #{decoder_a_forward.4} parent=0 // pred_check
    _
  $region7: #{decoder_a_forward.4} parent=0 // pred_check_branch
    %11 = sbr.rel (0) target = $region9
  $region8: #{decoder_a_forward.4} parent=0 // pred_region
    _
  $region9: #{decoder_a_forward.4} parent=0 // pred_fallthru
    _
  // Predicated region
  $region10: #{decoder_a_forward.4} parent=0 // pred_check
    _
  $region11: #{decoder_a_forward.4} parent=0 // pred_check_branch
    %13 = sbr.rel (0) target = $region13
  $region12: #{decoder_a_forward.4} parent=0 // pred_region
    _
  $region13: #{decoder_a_forward.4} parent=0 // pred_fallthru
    _
  %v15 = vld [vmem:[%s0] sm:$0xf]
  %v16 = vld [vmem:[%s1] sm:$0xff]
  %v17 = vld [vmem:[%s1 + $0x8] sm:$0xff]
  %v18 = vld [vmem:[%s1 + $0x10] sm:$0xff]
  %v19 = vld [vmem:[%s1 + $0x18] sm:$0xff]
  %v20 = vld [vmem:[%s1 + $0x20] sm:$0xff]
  %v21 = vld [vmem:[%s1 + $0x28] sm:$0xff]
  %v22 = vld [vmem:[%s1 + $0x30] sm:$0xff]
  %v23 = vld [vmem:[%s1 + $0x38] sm:$0xff]
  %v24 = vld [vmem:[%s1 + $0x40] sm:$0xff]
  %v25 = vld [vmem:[%s1 + $0x48] sm:$0xff]
  %v26 = vld [vmem:[%s2] sm:$0xff]
  %v27 = vld [vmem:[%s2 + $0x8] sm:$0xff]
  %v28 = vld [vmem:[%s2 + $0x10] sm:$0xf]
  %v32 = vperm.slane %v26, 0
  %v33 = vperm.slane %v26, 1
  %v34 = vperm.slane %v26, 2
  %v35 = vperm.slane %v26, 3
  %v36 = vperm.slane %v26, 4
  %v37 = vperm.slane %v26, 5
  %v38 = vperm.slane %v26, 6
  %v39 = vperm.slane %v26, 7
  %v40 = vperm.slane %v27, 0
  %v41 = vperm.slane %v27, 1
  %v42 = vperm.slane %v27, 2
  %v43 = vperm.slane %v27, 3
  %v44 = vperm.slane %v27, 4
  %v45 = vperm.slane %v27, 5
  %v46 = vperm.slane %v27, 6
  %v47 = vperm.slane %v27, 7
  %v48 = vperm.slane %v28, 0
  %v49 = vperm.slane %v28, 1
  %v50 = vperm.slane %v28, 2
  %v51 = vperm.slane %v28, 3
  %v82 = vunpack.c.l.b16 %v16
  %v83 = vunpack.c.h.b16 %v16
  %v84 = vunpack.c.l.b16 %v17
  %v85 = vunpack.c.h.b16 %v17
  %v86 = vunpack.c.l.b16 %v18
  %v87 = vunpack.c.h.b16 %v18
  %v88 = vunpack.c.l.b16 %v19
  %v89 = vunpack.c.h.b16 %v19
  %v90 = vunpack.c.l.b16 %v20
  %v91 = vunpack.c.h.b16 %v20
  %v92 = vunpack.c.l.b16 %v21
  %v93 = vunpack.c.h.b16 %v21
  %v94 = vunpack.c.l.b16 %v22
  %v95 = vunpack.c.h.b16 %v22
  %v96 = vunpack.c.l.b16 %v23
  %v97 = vunpack.c.h.b16 %v23
  %v98 = vunpack.c.l.b16 %v24
  %v99 = vunpack.c.h.b16 %v24
  %v100 = vunpack.c.l.b16 %v25
  %v101 = vunpack.c.h.b16 %v25
  %v102 = vpack.c.b16 %v82, %v82
  %v103 = vpack.c.b16 %v83, %v83
  %v104 = vpack.c.b16 %v84, %v84
  %v105 = vpack.c.b16 %v85, %v85
  %v106 = vpack.c.b16 %v86, %v86
  %v107 = vpack.c.b16 %v87, %v87
  %v108 = vpack.c.b16 %v88, %v88
  %v109 = vpack.c.b16 %v89, %v89
  %v110 = vpack.c.b16 %v90, %v90
  %v111 = vpack.c.b16 %v91, %v91
  %v112 = vpack.c.b16 %v92, %v92
  %v113 = vpack.c.b16 %v93, %v93
  %v114 = vpack.c.b16 %v94, %v94
  %v115 = vpack.c.b16 %v95, %v95
  %v116 = vpack.c.b16 %v96, %v96
  %v117 = vpack.c.b16 %v97, %v97
  %v118 = vpack.c.b16 %v98, %v98
  %v119 = vpack.c.b16 %v99, %v99
  %v120 = vpack.c.b16 %v100, %v100
  %v121 = vpack.c.b16 %v101, %v101
  %vm122 = vcmask 64512
  %v124 = vsel %vm122, %v15, 0
  %vm126 = vcmask 1043456
  %v128 = vsel %vm126, %v102, 0
  %v131 = vsel %vm126, %v103, 0
  %v134 = vsel %vm126, %v104, 0
  %v137 = vsel %vm126, %v105, 0
  %v140 = vsel %vm126, %v106, 0
  %v143 = vsel %vm126, %v107, 0
  %v146 = vsel %vm126, %v108, 0
  %v149 = vsel %vm126, %v109, 0
  %v152 = vsel %vm126, %v110, 0
  %v155 = vsel %vm126, %v111, 0
  %v158 = vsel %vm126, %v112, 0
  %v161 = vsel %vm126, %v113, 0
  %v164 = vsel %vm126, %v114, 0
  %v167 = vsel %vm126, %v115, 0
  %v170 = vsel %vm126, %v116, 0
  %v173 = vsel %vm126, %v117, 0
  %v176 = vsel %vm126, %v118, 0
  %v179 = vsel %vm126, %v119, 0
  %v182 = vsel %vm126, %v120, 0
  %v185 = vsel %vm126, %v121, 0
  %187 = vmatpush.bf16.msra.mxu0 0
  %188 = vmatpush.bf16.msra.mxu0 0
  %189 = vmatpush.bf16.msra.mxu0 0
  %190 = vmatpush.bf16.msra.mxu0 0
  %191 = vmatpush.bf16.msra.mxu0 0
  %192 = vmatpush.bf16.msra.mxu0 0
  %193 = vmatpush.bf16.msra.mxu0 0
  %194 = vmatpush.bf16.msra.mxu0 %v128
  %195 = vmatmul.bf16.gmra.mxu0 %v124
  %v196 = vpop.f32.mrf.mxu0
  %v197 = vadd.f32 %v32, %v196
  %v198 = vpop.f32.mrf.mxu0
  %199 = vdwg.mxu0
  %200 = vmatpush.bf16.msra.mxu0 0
  %201 = vmatpush.bf16.msra.mxu0 0
  %202 = vmatpush.bf16.msra.mxu0 0
  %203 = vmatpush.bf16.msra.mxu0 0
  %204 = vmatpush.bf16.msra.mxu0 0
  %205 = vmatpush.bf16.msra.mxu0 0
  %206 = vmatpush.bf16.msra.mxu0 0
  %207 = vmatpush.bf16.msra.mxu0 %v131
  %208 = vmatmul.bf16.gmra.mxu0 %v124
  %v209 = vpop.f32.mrf.mxu0
  %v210 = vadd.f32 %v33, %v209
  %v211 = vpop.f32.mrf.mxu0
  %212 = vdwg.mxu0
  %213 = vmatpush.bf16.msra.mxu0 0
  %214 = vmatpush.bf16.msra.mxu0 0
  %215 = vmatpush.bf16.msra.mxu0 0
  %216 = vmatpush.bf16.msra.mxu0 0
  %217 = vmatpush.bf16.msra.mxu0 0
  %218 = vmatpush.bf16.msra.mxu0 0
  %219 = vmatpush.bf16.msra.mxu0 0
  %220 = vmatpush.bf16.msra.mxu0 %v134
  %221 = vmatmul.bf16.gmra.mxu0 %v124
  %v222 = vpop.f32.mrf.mxu0
  %v223 = vadd.f32 %v34, %v222
  %v224 = vpop.f32.mrf.mxu0
  %225 = vdwg.mxu0
  %226 = vmatpush.bf16.msra.mxu0 0
  %227 = vmatpush.bf16.msra.mxu0 0
  %228 = vmatpush.bf16.msra.mxu0 0
  %229 = vmatpush.bf16.msra.mxu0 0
  %230 = vmatpush.bf16.msra.mxu0 0
  %231 = vmatpush.bf16.msra.mxu0 0
  %232 = vmatpush.bf16.msra.mxu0 0
  %233 = vmatpush.bf16.msra.mxu0 %v137
  %234 = vmatmul.bf16.gmra.mxu0 %v124
  %v235 = vpop.f32.mrf.mxu0
  %v236 = vadd.f32 %v35, %v235
  %v237 = vpop.f32.mrf.mxu0
  %238 = vdwg.mxu0
  %239 = vmatpush.bf16.msra.mxu0 0
  %240 = vmatpush.bf16.msra.mxu0 0
  %241 = vmatpush.bf16.msra.mxu0 0
  %242 = vmatpush.bf16.msra.mxu0 0
  %243 = vmatpush.bf16.msra.mxu0 0
  %244 = vmatpush.bf16.msra.mxu0 0
  %245 = vmatpush.bf16.msra.mxu0 0
  %246 = vmatpush.bf16.msra.mxu0 %v140
  %247 = vmatmul.bf16.gmra.mxu0 %v124
  %v248 = vpop.f32.mrf.mxu0
  %v249 = vadd.f32 %v36, %v248
  %v250 = vpop.f32.mrf.mxu0
  %251 = vdwg.mxu0
  %252 = vmatpush.bf16.msra.mxu0 0
  %253 = vmatpush.bf16.msra.mxu0 0
  %254 = vmatpush.bf16.msra.mxu0 0
  %255 = vmatpush.bf16.msra.mxu0 0
  %256 = vmatpush.bf16.msra.mxu0 0
  %257 = vmatpush.bf16.msra.mxu0 0
  %258 = vmatpush.bf16.msra.mxu0 0
  %259 = vmatpush.bf16.msra.mxu0 %v143
  %260 = vmatmul.bf16.gmra.mxu0 %v124
  %v261 = vpop.f32.mrf.mxu0
  %v262 = vadd.f32 %v37, %v261
  %v263 = vpop.f32.mrf.mxu0
  %264 = vdwg.mxu0
  %265 = vmatpush.bf16.msra.mxu0 0
  %266 = vmatpush.bf16.msra.mxu0 0
  %267 = vmatpush.bf16.msra.mxu0 0
  %268 = vmatpush.bf16.msra.mxu0 0
  %269 = vmatpush.bf16.msra.mxu0 0
  %270 = vmatpush.bf16.msra.mxu0 0
  %271 = vmatpush.bf16.msra.mxu0 0
  %272 = vmatpush.bf16.msra.mxu0 %v146
  %273 = vmatmul.bf16.gmra.mxu0 %v124
  %v274 = vpop.f32.mrf.mxu0
  %v275 = vadd.f32 %v38, %v274
  %v276 = vpop.f32.mrf.mxu0
  %277 = vdwg.mxu0
  %278 = vmatpush.bf16.msra.mxu0 0
  %279 = vmatpush.bf16.msra.mxu0 0
  %280 = vmatpush.bf16.msra.mxu0 0
  %281 = vmatpush.bf16.msra.mxu0 0
  %282 = vmatpush.bf16.msra.mxu0 0
  %283 = vmatpush.bf16.msra.mxu0 0
  %284 = vmatpush.bf16.msra.mxu0 0
  %285 = vmatpush.bf16.msra.mxu0 %v149
  %286 = vmatmul.bf16.gmra.mxu0 %v124
  %v287 = vpop.f32.mrf.mxu0
  %v288 = vadd.f32 %v39, %v287
  %v289 = vpop.f32.mrf.mxu0
  %290 = vdwg.mxu0
  %291 = vmatpush.bf16.msra.mxu0 0
  %292 = vmatpush.bf16.msra.mxu0 0
  %293 = vmatpush.bf16.msra.mxu0 0
  %294 = vmatpush.bf16.msra.mxu0 0
  %295 = vmatpush.bf16.msra.mxu0 0
  %296 = vmatpush.bf16.msra.mxu0 0
  %297 = vmatpush.bf16.msra.mxu0 0
  %298 = vmatpush.bf16.msra.mxu0 %v152
  %299 = vmatmul.bf16.gmra.mxu0 %v124
  %v300 = vpop.f32.mrf.mxu0
  %v301 = vadd.f32 %v40, %v300
  %v302 = vpop.f32.mrf.mxu0
  %303 = vdwg.mxu0
  %304 = vmatpush.bf16.msra.mxu0 0
  %305 = vmatpush.bf16.msra.mxu0 0
  %306 = vmatpush.bf16.msra.mxu0 0
  %307 = vmatpush.bf16.msra.mxu0 0
  %308 = vmatpush.bf16.msra.mxu0 0
  %309 = vmatpush.bf16.msra.mxu0 0
  %310 = vmatpush.bf16.msra.mxu0 0
  %311 = vmatpush.bf16.msra.mxu0 %v155
  %312 = vmatmul.bf16.gmra.mxu0 %v124
  %v313 = vpop.f32.mrf.mxu0
  %v314 = vadd.f32 %v41, %v313
  %v315 = vpop.f32.mrf.mxu0
  %316 = vdwg.mxu0
  %317 = vmatpush.bf16.msra.mxu0 0
  %318 = vmatpush.bf16.msra.mxu0 0
  %319 = vmatpush.bf16.msra.mxu0 0
  %320 = vmatpush.bf16.msra.mxu0 0
  %321 = vmatpush.bf16.msra.mxu0 0
  %322 = vmatpush.bf16.msra.mxu0 0
  %323 = vmatpush.bf16.msra.mxu0 0
  %324 = vmatpush.bf16.msra.mxu0 %v158
  %325 = vmatmul.bf16.gmra.mxu0 %v124
  %v326 = vpop.f32.mrf.mxu0
  %v327 = vadd.f32 %v42, %v326
  %v328 = vpop.f32.mrf.mxu0
  %329 = vdwg.mxu0
  %330 = vmatpush.bf16.msra.mxu0 0
  %331 = vmatpush.bf16.msra.mxu0 0
  %332 = vmatpush.bf16.msra.mxu0 0
  %333 = vmatpush.bf16.msra.mxu0 0
  %334 = vmatpush.bf16.msra.mxu0 0
  %335 = vmatpush.bf16.msra.mxu0 0
  %336 = vmatpush.bf16.msra.mxu0 0
  %337 = vmatpush.bf16.msra.mxu0 %v161
  %338 = vmatmul.bf16.gmra.mxu0 %v124
  %v339 = vpop.f32.mrf.mxu0
  %v340 = vadd.f32 %v43, %v339
  %v341 = vpop.f32.mrf.mxu0
  %342 = vdwg.mxu0
  %343 = vmatpush.bf16.msra.mxu0 0
  %344 = vmatpush.bf16.msra.mxu0 0
  %345 = vmatpush.bf16.msra.mxu0 0
  %346 = vmatpush.bf16.msra.mxu0 0
  %347 = vmatpush.bf16.msra.mxu0 0
  %348 = vmatpush.bf16.msra.mxu0 0
  %349 = vmatpush.bf16.msra.mxu0 0
  %350 = vmatpush.bf16.msra.mxu0 %v164
  %351 = vmatmul.bf16.gmra.mxu0 %v124
  %v352 = vpop.f32.mrf.mxu0
  %v353 = vadd.f32 %v44, %v352
  %v354 = vpop.f32.mrf.mxu0
  %355 = vdwg.mxu0
  %356 = vmatpush.bf16.msra.mxu0 0
  %357 = vmatpush.bf16.msra.mxu0 0
  %358 = vmatpush.bf16.msra.mxu0 0
  %359 = vmatpush.bf16.msra.mxu0 0
  %360 = vmatpush.bf16.msra.mxu0 0
  %361 = vmatpush.bf16.msra.mxu0 0
  %362 = vmatpush.bf16.msra.mxu0 0
  %363 = vmatpush.bf16.msra.mxu0 %v167
  %364 = vmatmul.bf16.gmra.mxu0 %v124
  %v365 = vpop.f32.mrf.mxu0
  %v366 = vadd.f32 %v45, %v365
  %v367 = vpop.f32.mrf.mxu0
  %368 = vdwg.mxu0
  %369 = vmatpush.bf16.msra.mxu0 0
  %370 = vmatpush.bf16.msra.mxu0 0
  %371 = vmatpush.bf16.msra.mxu0 0
  %372 = vmatpush.bf16.msra.mxu0 0
  %373 = vmatpush.bf16.msra.mxu0 0
  %374 = vmatpush.bf16.msra.mxu0 0
  %375 = vmatpush.bf16.msra.mxu0 0
  %376 = vmatpush.bf16.msra.mxu0 %v170
  %377 = vmatmul.bf16.gmra.mxu0 %v124
  %v378 = vpop.f32.mrf.mxu0
  %v379 = vadd.f32 %v46, %v378
  %v380 = vpop.f32.mrf.mxu0
  %381 = vdwg.mxu0
  %382 = vmatpush.bf16.msra.mxu0 0
  %383 = vmatpush.bf16.msra.mxu0 0
  %384 = vmatpush.bf16.msra.mxu0 0
  %385 = vmatpush.bf16.msra.mxu0 0
  %386 = vmatpush.bf16.msra.mxu0 0
  %387 = vmatpush.bf16.msra.mxu0 0
  %388 = vmatpush.bf16.msra.mxu0 0
  %389 = vmatpush.bf16.msra.mxu0 %v173
  %390 = vmatmul.bf16.gmra.mxu0 %v124
  %v391 = vpop.f32.mrf.mxu0
  %v392 = vadd.f32 %v47, %v391
  %v393 = vpop.f32.mrf.mxu0
  %394 = vdwg.mxu0
  %395 = vmatpush.bf16.msra.mxu0 0
  %396 = vmatpush.bf16.msra.mxu0 0
  %397 = vmatpush.bf16.msra.mxu0 0
  %398 = vmatpush.bf16.msra.mxu0 0
  %399 = vmatpush.bf16.msra.mxu0 0
  %400 = vmatpush.bf16.msra.mxu0 0
  %401 = vmatpush.bf16.msra.mxu0 0
  %402 = vmatpush.bf16.msra.mxu0 %v176
  %403 = vmatmul.bf16.gmra.mxu0 %v124
  %v404 = vpop.f32.mrf.mxu0
  %v405 = vadd.f32 %v48, %v404
  %v406 = vpop.f32.mrf.mxu0
  %407 = vdwg.mxu0
  %408 = vmatpush.bf16.msra.mxu0 0
  %409 = vmatpush.bf16.msra.mxu0 0
  %410 = vmatpush.bf16.msra.mxu0 0
  %411 = vmatpush.bf16.msra.mxu0 0
  %412 = vmatpush.bf16.msra.mxu0 0
  %413 = vmatpush.bf16.msra.mxu0 0
  %414 = vmatpush.bf16.msra.mxu0 0
  %415 = vmatpush.bf16.msra.mxu0 %v179
  %416 = vmatmul.bf16.gmra.mxu0 %v124
  %v417 = vpop.f32.mrf.mxu0
  %v418 = vadd.f32 %v49, %v417
  %v419 = vpop.f32.mrf.mxu0
  %420 = vdwg.mxu0
  %421 = vmatpush.bf16.msra.mxu0 0
  %422 = vmatpush.bf16.msra.mxu0 0
  %423 = vmatpush.bf16.msra.mxu0 0
  %424 = vmatpush.bf16.msra.mxu0 0
  %425 = vmatpush.bf16.msra.mxu0 0
  %426 = vmatpush.bf16.msra.mxu0 0
  %427 = vmatpush.bf16.msra.mxu0 0
  %428 = vmatpush.bf16.msra.mxu0 %v182
  %429 = vmatmul.bf16.gmra.mxu0 %v124
  %v430 = vpop.f32.mrf.mxu0
  %v431 = vadd.f32 %v50, %v430
  %v432 = vpop.f32.mrf.mxu0
  %433 = vdwg.mxu0
  %434 = vmatpush.bf16.msra.mxu0 0
  %435 = vmatpush.bf16.msra.mxu0 0
  %436 = vmatpush.bf16.msra.mxu0 0
  %437 = vmatpush.bf16.msra.mxu0 0
  %438 = vmatpush.bf16.msra.mxu0 0
  %439 = vmatpush.bf16.msra.mxu0 0
  %440 = vmatpush.bf16.msra.mxu0 0
  %441 = vmatpush.bf16.msra.mxu0 %v185
  %442 = vmatmul.bf16.gmra.mxu0 %v124
  %v443 = vpop.f32.mrf.mxu0
  %v444 = vadd.f32 %v51, %v443
  %v445 = vpop.f32.mrf.mxu0
  %446 = vdwg.mxu0
  %v447 = vtanh.pop %v197
  %v448 = vtanh.pop %v210
  %v449 = vtanh.pop %v223
  %v450 = vtanh.pop %v236
  %v451 = vtanh.pop %v249
  %v452 = vtanh.pop %v262
  %v453 = vtanh.pop %v275
  %v454 = vtanh.pop %v288
  %v455 = vtanh.pop %v301
  %v456 = vtanh.pop %v314
  %v457 = vtanh.pop %v327
  %v458 = vtanh.pop %v340
  %v459 = vtanh.pop %v353
  %v460 = vtanh.pop %v366
  %v461 = vtanh.pop %v379
  %v462 = vtanh.pop %v392
  %v463 = vtanh.pop %v405
  %v464 = vtanh.pop %v418
  %v465 = vtanh.pop %v431
  %v466 = vtanh.pop %v444
  %v467 = vpack.c.bf16 %v448, %v447
  %v468 = vpack.c.bf16 %v450, %v449
  %v469 = vpack.c.bf16 %v452, %v451
  %v470 = vpack.c.bf16 %v454, %v453
  %v471 = vpack.c.bf16 %v456, %v455
  %v472 = vpack.c.bf16 %v458, %v457
  %v473 = vpack.c.bf16 %v460, %v459
  %v474 = vpack.c.bf16 %v462, %v461
  %v475 = vpack.c.bf16 %v464, %v463
  %v476 = vpack.c.bf16 %v466, %v465
  %477 = vst [vmem:[%s3] sm:$0xff] %v467
  %478 = vst [vmem:[%s3 + $0x8] sm:$0xff] %v468
  %479 = vst [vmem:[%s3 + $0x10] sm:$0xff] %v469
  %480 = vst [vmem:[%s3 + $0x18] sm:$0xff] %v470
  %481 = vst [vmem:[%s3 + $0x20] sm:$0xff] %v471
  %482 = vst [vmem:[%s3 + $0x28] sm:$0xff] %v472
  %483 = vst [vmem:[%s3 + $0x30] sm:$0xff] %v473
  %484 = vst [vmem:[%s3 + $0x38] sm:$0xff] %v474
  %485 = vst [vmem:[%s3 + $0x40] sm:$0xff] %v475
  %486 = vst [vmem:[%s3 + $0x48] sm:$0xff] %v476
  // Predicated region
  $region14: #{decoder_a_forward.4} parent=0 // pred_check
    _
  $region15: #{decoder_a_forward.4} parent=0 // pred_check_branch
    %488 = sbr.rel (0) target = $region17
  $region16: #{decoder_a_forward.4} parent=0 // pred_region
    _
  $region17: #{decoder_a_forward.4} parent=0 // pred_fallthru
    _
  // Predicated region
  $region18: #{decoder_a_forward.4} parent=0 // pred_check
    _
  $region19: #{decoder_a_forward.4} parent=0 // pred_check_branch
    %490 = sbr.rel (0) target = $region21
  $region20: #{decoder_a_forward.4} parent=0 // pred_region
    _
  $region21: #{decoder_a_forward.4} parent=0 // pred_fallthru
    _

// kernel: decoder_a_forward.5
$region0: #{decoder_a_forward.5}
  #allocation0 [shape = 'u32[]', space=smem, size = 0x4, offset = 0x4, fixed_abs, tag = 'smem constant byte address 0x4 - core index']
  #allocation1 [shape = 'u32[72,128]{1,0:T(1,128)}', space=vmem, size = 0x9000, scoped, tag = 'internal scratch']
  %s0 = inlined_call_operand.vmem [shape: bf16[2,80,200], index: 0, kind: input, shape index: {}]
  %s1 = inlined_call_operand.vmem [shape: bf16[9,48,80], index: 1, kind: input, shape index: {}]
  %s2 = inlined_call_operand.vmem [shape: f32[48,1], index: 2, kind: input, shape index: {}]
  %s3 = inlined_call_operand.vmem [shape: bf16[2,40,160], index: 3, kind: output, shape index: {}]
  %s4 = sld [smem:[#allocation0]]
  $region45: #{decoder_a_forward.5} parent=0
    _
  %s6 = ssub.s32 1, %s4
  %s7 = scalar_select 0, %s6, %s4
  loop: start=0, step=1, limit=4
  $region2: #{decoder_a_forward.5} parent=0 // loop_pre_header
    _
  $region3: #{decoder_a_forward.5} parent=0 // loop_header
    %s9 = sphi 0, %s13
    %p10 = scmp.ge.s32.totalorder %s9, 4
    %s19 = sphi 0, %s21
    %s22 = sphi 0, %s19
    %s23 = sphi 0, %s22
    %s39 = sphi 0, %s23
    %s43 = sphi 0, %s43
    %s45 = sphi 0, %s43
    %s46 = sphi 0, %s45
    %s60 = sphi 0, %s46
    %s64 = sphi 0, %s64
    %s66 = sphi 0, %s64
    %s67 = sphi 0, %s66
    %s81 = sphi 0, %s67
    %s87 = sphi 0, %s89
    %s90 = sphi 0, %s87
    %s91 = sphi 0, %s90
    %s107 = sphi 0, %s91
  $region4: #{decoder_a_forward.5} parent=0 // loop_header_branch
    %12 = sbr.rel (%p10) target = $region8
  $region5: #{decoder_a_forward.5} parent=0 // loop_body
    %s14 = ssub.s32 %s9, 1
    %s15 = ssub.s32 %s9, 2
    %s16 = sadd.s32 %s9, 1
    %s17 = ssub.s32 %s9, %s16
    %p18 = scmp.eq.s32.totalorder %s17, 0
    %s20 = sadd.s32 %s19, 1
    %s21 = scalar_select %p18, %s19, %s20
    %p24 = pneg %p18
    %p25 = scmp.eq.s32.totalorder %s9, 1
    %p26 = por %p24, %p25
    %p27 = scmp.ne.s32.totalorder %s19, %s22
    %p28 = scmp.eq.s32.totalorder %s9, 0
    %p29 = por %p27, %p28
    %p30 = scmp.ne.s32.totalorder %s19, %s22
    %p31 = scmp.eq.s32.totalorder %s14, 1
    %p32 = por %p30, %p31
    %p33 = scmp.ne.s32.totalorder %s22, %s23
    %p34 = scmp.eq.s32.totalorder %s14, 0
    %p35 = por %p33, %p34
    %p36 = scmp.ne.s32.totalorder %s22, %s23
    %p37 = scmp.eq.s32.totalorder %s15, 1
    %p38 = por %p36, %p37
    %p40 = scmp.ne.s32.totalorder %s23, %s39
    %p41 = scmp.eq.s32.totalorder %s15, 0
    %p42 = por %p40, %p41
    %s44 = sadd.s32 %s43, 1
    %p47 = scmp.eq.s32.totalorder %s9, 1
    %p48 = scmp.ne.s32.totalorder %s43, %s45
    %p49 = scmp.eq.s32.totalorder %s9, 0
    %p50 = por %p48, %p49
    %p51 = scmp.ne.s32.totalorder %s43, %s45
    %p52 = scmp.eq.s32.totalorder %s14, 1
    %p53 = por %p51, %p52
    %p54 = scmp.ne.s32.totalorder %s45, %s46
    %p55 = scmp.eq.s32.totalorder %s14, 0
    %p56 = por %p54, %p55
    %p57 = scmp.ne.s32.totalorder %s45, %s46
    %p58 = scmp.eq.s32.totalorder %s15, 1
    %p59 = por %p57, %p58
    %p61 = scmp.ne.s32.totalorder %s46, %s60
    %p62 = scmp.eq.s32.totalorder %s15, 0
    %p63 = por %p61, %p62
    %s65 = sadd.s32 %s64, 1
    %p68 = scmp.eq.s32.totalorder %s9, 1
    %p69 = scmp.ne.s32.totalorder %s64, %s66
    %p70 = scmp.eq.s32.totalorder %s9, 0
    %p71 = por %p69, %p70
    %p72 = scmp.ne.s32.totalorder %s64, %s66
    %p73 = scmp.eq.s32.totalorder %s14, 1
    %p74 = por %p72, %p73
    %p75 = scmp.ne.s32.totalorder %s66, %s67
    %p76 = scmp.eq.s32.totalorder %s14, 0
    %p77 = por %p75, %p76
    %p78 = scmp.ne.s32.totalorder %s66, %s67
    %p79 = scmp.eq.s32.totalorder %s15, 1
    %p80 = por %p78, %p79
    %p82 = scmp.ne.s32.totalorder %s67, %s81
    %p83 = scmp.eq.s32.totalorder %s15, 0
    %p84 = por %p82, %p83
    %s85 = ssub.s32 %s9, %s16
    %p86 = scmp.eq.s32.totalorder %s85, 0
    %s88 = sadd.s32 %s87, 1
    %s89 = scalar_select %p86, %s87, %s88
    %p92 = pneg %p86
    %p93 = scmp.eq.s32.totalorder %s9, 1
    %p94 = por %p92, %p93
    %p95 = scmp.ne.s32.totalorder %s87, %s90
    %p96 = scmp.eq.s32.totalorder %s9, 0
    %p97 = por %p95, %p96
    %p98 = scmp.ne.s32.totalorder %s87, %s90
    %p99 = scmp.eq.s32.totalorder %s14, 1
    %p100 = por %p98, %p99
    %p101 = scmp.ne.s32.totalorder %s90, %s91
    %p102 = scmp.eq.s32.totalorder %s14, 0
    %p103 = por %p101, %p102
    %p104 = scmp.ne.s32.totalorder %s90, %s91
    %p105 = scmp.eq.s32.totalorder %s15, 1
    %p106 = por %p104, %p105
    %p108 = scmp.ne.s32.totalorder %s91, %s107
    %p109 = scmp.eq.s32.totalorder %s15, 0
    %p110 = por %p108, %p109
    %p111 = scmp.le.s32.totalorder 1, %s9
    %p112 = scmp.lt.s32.totalorder %s9, 3
    %p113 = pnand %p111, %p112
    %p114 = pneg %p113
    // Predicated region
    $region9: #{decoder_a_forward.5} parent=5 // pred_check
      _
    $region10: #{decoder_a_forward.5} parent=5 // pred_check_branch
      %116 = sbr.rel (%p113) target = $region12
    $region11: #{decoder_a_forward.5} parent=5 // pred_region
      %s117 = ssub.s32 %s9, 1
      // Predicated region
      $region13: #{decoder_a_forward.5} parent=11 // pred_check
        %p118 = pneg %p56
      $region14: #{decoder_a_forward.5} parent=11 // pred_check_branch
        %120 = sbr.rel (%p118) target = $region16
      $region15: #{decoder_a_forward.5} parent=11 // pred_region
        _
      $region16: #{decoder_a_forward.5} parent=11 // pred_fallthru
        _
      // Predicated region
      $region17: #{decoder_a_forward.5} parent=11 // pred_check
        %p121 = pneg %p77
      $region18: #{decoder_a_forward.5} parent=11 // pred_check_branch
        %123 = sbr.rel (%p121) target = $region20
      $region19: #{decoder_a_forward.5} parent=11 // pred_region
        _
      $region20: #{decoder_a_forward.5} parent=11 // pred_fallthru
        _
    $region12: #{decoder_a_forward.5} parent=5 // pred_fallthru
      _
    %p124 = scmp.lt.s32.totalorder %s9, 2
    // Predicated region
    $region21: #{decoder_a_forward.5} parent=5 // pred_check
      %p125 = pneg %p124
    $region22: #{decoder_a_forward.5} parent=5 // pred_check_branch
      %127 = sbr.rel (%p125) target = $region24
    $region23: #{decoder_a_forward.5} parent=5 // pred_region
      // Predicated region
      $region25: #{decoder_a_forward.5} parent=23 // pred_check
        %p128 = pneg %p29
      $region26: #{decoder_a_forward.5} parent=23 // pred_check_branch
        %130 = sbr.rel (%p128) target = $region28
      $region27: #{decoder_a_forward.5} parent=23 // pred_region
        %p131 = scmp.lt.s32.totalorder %s9, 1
        %s132 = scalar_select %p131, %s9, 1
        %s133 = smul.addr %s132, 20
        %s134 = smul.addr %s133, 4
        %s135 = scalar_lea.vmem %s0, %s134
      $region28: #{decoder_a_forward.5} parent=23 // pred_fallthru
        _
    $region24: #{decoder_a_forward.5} parent=5 // pred_fallthru
      _
    %p136 = scmp.le.s32.totalorder 1, %s9
    %p137 = scmp.lt.s32.totalorder %s9, 3
    %p138 = pnand %p136, %p137
    %p139 = pneg %p138
    // Predicated region
    $region29: #{decoder_a_forward.5} parent=5 // pred_check
      _
    $region30: #{decoder_a_forward.5} parent=5 // pred_check_branch
      %141 = sbr.rel (%p138) target = $region32
    $region31: #{decoder_a_forward.5} parent=5 // pred_region
      %s142 = ssub.s32 %s9, 1
      %p143 = scmp.lt.s32.totalorder %s14, 1
      %s144 = scalar_select %p143, %s14, 1
      %s145 = smul.addr %s144, 20
      %s146 = smul.addr %s145, 4
      %s147 = scalar_lea.vmem %s0, %s146
      %p148 = pneg %p35
      %p149 = pneg %p32
      %p150 = pneg %p56
      %p151 = pneg %p53
      %p152 = pneg %p77
      %p153 = pneg %p74
      %p154 = pneg %p103
      %p155 = pneg %p100
      %p156 = scmp.lt.s32.totalorder %s14, 1
      %s157 = scalar_select %p156, %s14, 1
      %s158 = smul.addr %s157, 10
      %s159 = smul.addr %s158, 4
      %s160 = scalar_lea.vmem %s3, %s159
      %p161 = scmp.lt.s32.totalorder %s14, 1
      %s162 = scalar_select %p161, %s14, 1
      %s163 = smul.addr %s162, 20
      %s164 = smul.addr %s163, 4
      %s165 = scalar_lea.vmem %s0, %s164
      %p166 = scmp.lt.s32.totalorder %s14, 1
      %s167 = scalar_select %p166, %s14, 1
      %s168 = smul.addr %s167, 10
      %s169 = smul.addr %s168, 4
      %s170 = scalar_lea.vmem %s3, %s169
      %v172 = vld [vmem:[%s165] sm:$0xff]
      %v173 = vld [vmem:[%s165 + $0x8] sm:$0xff]
      %v174 = vld [vmem:[%s165 + $0x10] sm:$0xff]
      %v175 = vld [vmem:[%s165 + $0x18] sm:$0xff]
      %v176 = vld [vmem:[%s165 + $0x20] sm:$0xff]
      %v177 = vld [vmem:[%s165 + $0x28] sm:$0xff]
      %v178 = vld [vmem:[%s165 + $0x30] sm:$0xff]
      %v179 = vld [vmem:[%s165 + $0x38] sm:$0xff]
      %v180 = vld [vmem:[%s165 + $0x40] sm:$0xff]
      %v181 = vld [vmem:[%s165 + $0x48] sm:$0xff]
      %v182 = vld [vmem:[%s1] sm:$0xf]
      %v183 = vld [vmem:[%s1 + $0x4] sm:$0xf]
      %v184 = vld [vmem:[%s1 + $0x8] sm:$0xf]
      %v185 = vld [vmem:[%s1 + $0xc] sm:$0xf]
      %v186 = vld [vmem:[%s1 + $0x10] sm:$0xf]
      %v187 = vld [vmem:[%s1 + $0x14] sm:$0xf]
      %s188 = scalar_lea.vmem %s1, 24
      %v189 = vld [vmem:[%s188] sm:$0xf]
      %v190 = vld [vmem:[%s188 + $0x4] sm:$0xf]
      %v191 = vld [vmem:[%s188 + $0x8] sm:$0xf]
      %v192 = vld [vmem:[%s188 + $0xc] sm:$0xf]
      %v193 = vld [vmem:[%s188 + $0x10] sm:$0xf]
      %v194 = vld [vmem:[%s188 + $0x14] sm:$0xf]
      %v201 = vunpack.c.l.b16 %v189
      %v202 = vunpack.c.l.b16 %v190
      %v203 = vunpack.c.l.b16 %v191
      %v204 = vunpack.c.l.b16 %v192
      %v205 = vunpack.c.l.b16 %v193
      %v206 = vunpack.c.l.b16 %v194
      %v207 = vpack.c.b16 %v202, %v201
      %v208 = vpack.c.b16 %v204, %v203
      %v209 = vpack.c.b16 %v206, %v205
      %v220 = vunpack.c.l.b16 %v172
      %v221 = vunpack.c.h.b16 %v172
      %v222 = vunpack.c.l.b16 %v173
      %v223 = vunpack.c.h.b16 %v173
      %v224 = vunpack.c.l.b16 %v174
      %v225 = vunpack.c.h.b16 %v174
      %v226 = vunpack.c.l.b16 %v175
      %v227 = vunpack.c.h.b16 %v175
      %v228 = vunpack.c.l.b16 %v176
      %v229 = vunpack.c.h.b16 %v176
      %v230 = vunpack.c.l.b16 %v177
      %v231 = vunpack.c.h.b16 %v177
      %v232 = vunpack.c.l.b16 %v178
      %v233 = vunpack.c.h.b16 %v178
      %v234 = vunpack.c.l.b16 %v179
      %v235 = vunpack.c.h.b16 %v179
      %v236 = vunpack.c.l.b16 %v180
      %v237 = vunpack.c.h.b16 %v180
      %v238 = vunpack.c.l.b16 %v181
      %v239 = vunpack.c.h.b16 %v181
      %v240 = vpack.c.b16 %v222, %v220
      %v241 = vpack.c.b16 %v223, %v221
      %v242 = vpack.c.b16 %v226, %v224
      %v243 = vpack.c.b16 %v227, %v225
      %v244 = vpack.c.b16 %v230, %v228
      %v245 = vpack.c.b16 %v231, %v229
      %v246 = vpack.c.b16 %v234, %v232
      %v247 = vpack.c.b16 %v235, %v233
      %v248 = vpack.c.b16 %v238, %v236
      %v249 = vpack.c.b16 %v239, %v237
      %250 = vrot.lane.b32.xlu0 %v240, 118
      %v251 = vpop.permute.xlu0 %250
      %252 = vrot.lane.b32.xlu0 %v241, 118
      %v253 = vpop.permute.xlu0 %252
      %254 = vrot.lane.b32.xlu0 %v242, 118
      %v255 = vpop.permute.xlu0 %254
      %256 = vrot.lane.b32.xlu0 %v243, 118
      %v257 = vpop.permute.xlu0 %256
      %258 = vrot.lane.b32.xlu0 %v244, 118
      %v259 = vpop.permute.xlu0 %258
      %260 = vrot.lane.b32.xlu0 %v245, 118
      %v261 = vpop.permute.xlu0 %260
      %262 = vrot.lane.b32.xlu0 %v246, 118
      %v263 = vpop.permute.xlu0 %262
      %264 = vrot.lane.b32.xlu0 %v247, 118
      %v265 = vpop.permute.xlu0 %264
      %266 = vrot.lane.b32.xlu0 %v248, 118
      %v267 = vpop.permute.xlu0 %266
      %268 = vrot.lane.b32.xlu0 %v249, 118
      %v269 = vpop.permute.xlu0 %268
      %vm270 = vcmask 965632
      %v271 = vsel %vm270, %v251, %v253
      %v272 = vsel %vm270, %v255, %v257
      %v273 = vsel %vm270, %v259, %v261
      %v274 = vsel %vm270, %v263, %v265
      %v275 = vsel %vm270, %v267, %v269
      %vm286 = vcmask 654336
      %v288 = vsel %vm286, %v207, 0
      %v291 = vsel %vm286, %v208, 0
      %v294 = vsel %vm286, %v209, 0
      %296 = vmatpush.bf16.msra.mxu0 0
      %297 = vmatpush.bf16.msra.mxu0 0
      %298 = vmatpush.bf16.msra.mxu0 0
      %299 = vmatpush.bf16.msra.mxu0 %v275
      %300 = vmatpush.bf16.msra.mxu0 %v274
      %301 = vmatpush.bf16.msra.mxu0 %v273
      %302 = vmatpush.bf16.msra.mxu0 %v272
      %303 = vmatpush.bf16.msra.mxu0 %v271
      %304 = vmatmul.bf16.gmra.mxu0 %v288
      %v305 = vpop.f32.mrf.mxu0
      %v306 = vadd.f32 0.0, %v305
      %v307 = vpop.f32.mrf.mxu0
      %v308 = vadd.f32 0.0, %v307
      %309 = vmatmul.bf16.gmra.mxu0 %v291
      %v310 = vpop.f32.mrf.mxu0
      %v311 = vadd.f32 0.0, %v310
      %v312 = vpop.f32.mrf.mxu0
      %v313 = vadd.f32 0.0, %v312
      %314 = vmatmul.bf16.gmra.mxu0 %v294
      %v315 = vpop.f32.mrf.mxu0
      %v316 = vadd.f32 0.0, %v315
      %v317 = vpop.f32.mrf.mxu0
      %318 = vdwg.mxu0
      %319 = vmatpush.bf16.msra.mxu0 0
      %320 = vmatpush.bf16.msra.mxu0 0
      %321 = vmatpush.bf16.msra.mxu0 0
      %322 = vmatpush.bf16.msra.mxu0 %v269
      %323 = vmatpush.bf16.msra.mxu0 %v265
      %324 = vmatpush.bf16.msra.mxu0 %v261
      %325 = vmatpush.bf16.msra.mxu0 %v257
      %326 = vmatpush.bf16.msra.mxu0 %v253
      %327 = vmatmul.bf16.gmra.mxu0 %v288
      %v328 = vpop.f32.mrf.mxu0
      %v329 = vadd.f32 0.0, %v328
      %v330 = vpop.f32.mrf.mxu0
      %v331 = vadd.f32 0.0, %v330
      %332 = vmatmul.bf16.gmra.mxu0 %v291
      %v333 = vpop.f32.mrf.mxu0
      %v334 = vadd.f32 0.0, %v333
      %v335 = vpop.f32.mrf.mxu0
      %v336 = vadd.f32 0.0, %v335
      %337 = vmatmul.bf16.gmra.mxu0 %v294
      %v338 = vpop.f32.mrf.mxu0
      %v339 = vadd.f32 0.0, %v338
      %v340 = vpop.f32.mrf.mxu0
      %341 = vdwg.mxu0
      %v348 = vunpack.c.l.b16 %v182
      %v349 = vunpack.c.l.b16 %v183
      %v350 = vunpack.c.l.b16 %v184
      %v351 = vunpack.c.l.b16 %v185
      %v352 = vunpack.c.l.b16 %v186
      %v353 = vunpack.c.l.b16 %v187
      %v354 = vpack.c.b16 %v349, %v348
      %v355 = vpack.c.b16 %v351, %v350
      %v356 = vpack.c.b16 %v353, %v352
      %357 = vrot.lane.b32.xlu0 %v240, 119
      %v358 = vpop.permute.xlu0 %357
      %359 = vrot.lane.b32.xlu0 %v241, 119
      %v360 = vpop.permute.xlu0 %359
      %361 = vrot.lane.b32.xlu0 %v242, 119
      %v362 = vpop.permute.xlu0 %361
      %363 = vrot.lane.b32.xlu0 %v243, 119
      %v364 = vpop.permute.xlu0 %363
      %365 = vrot.lane.b32.xlu0 %v244, 119
      %v366 = vpop.permute.xlu0 %365
      %367 = vrot.lane.b32.xlu0 %v245, 119
      %v368 = vpop.permute.xlu0 %367
      %369 = vrot.lane.b32.xlu0 %v246, 119
      %v370 = vpop.permute.xlu0 %369
      %371 = vrot.lane.b32.xlu0 %v247, 119
      %v372 = vpop.permute.xlu0 %371
      %373 = vrot.lane.b32.xlu0 %v248, 119
      %v374 = vpop.permute.xlu0 %373
      %375 = vrot.lane.b32.xlu0 %v249, 119
      %v376 = vpop.permute.xlu0 %375
      %vm377 = vcmask 973824
      %v378 = vsel %vm377, %v358, %v360
      %v379 = vsel %vm377, %v362, %v364
      %v380 = vsel %vm377, %v366, %v368
      %v381 = vsel %vm377, %v370, %v372
      %v382 = vsel %vm377, %v374, %v376
      %v394 = vsel %vm286, %v354, 0
      %v397 = vsel %vm286, %v355, 0
      %v400 = vsel %vm286, %v356, 0
      %402 = vmatpush.bf16.msra.mxu0 0
      %403 = vmatpush.bf16.msra.mxu0 0
      %404 = vmatpush.bf16.msra.mxu0 0
      %405 = vmatpush.bf16.msra.mxu0 %v382
      %406 = vmatpush.bf16.msra.mxu0 %v381
      %407 = vmatpush.bf16.msra.mxu0 %v380
      %408 = vmatpush.bf16.msra.mxu0 %v379
      %409 = vmatpush.bf16.msra.mxu0 %v378
      %410 = vmatmul.bf16.gmra.mxu0 %v394
      %v411 = vpop.f32.mrf.mxu0
      %v412 = vadd.f32 %v306, %v411
      %v413 = vpop.f32.mrf.mxu0
      %v414 = vadd.f32 %v308, %v413
      %415 = vmatmul.bf16.gmra.mxu0 %v397
      %v416 = vpop.f32.mrf.mxu0
      %v417 = vadd.f32 %v311, %v416
      %v418 = vpop.f32.mrf.mxu0
      %v419 = vadd.f32 %v313, %v418
      %420 = vmatmul.bf16.gmra.mxu0 %v400
      %v421 = vpop.f32.mrf.mxu0
      %v422 = vadd.f32 %v316, %v421
      %v423 = vpop.f32.mrf.mxu0
      %424 = vdwg.mxu0
      %425 = vmatpush.bf16.msra.mxu0 0
      %426 = vmatpush.bf16.msra.mxu0 0
      %427 = vmatpush.bf16.msra.mxu0 0
      %428 = vmatpush.bf16.msra.mxu0 %v376
      %429 = vmatpush.bf16.msra.mxu0 %v372
      %430 = vmatpush.bf16.msra.mxu0 %v368
      %431 = vmatpush.bf16.msra.mxu0 %v364
      %432 = vmatpush.bf16.msra.mxu0 %v360
      %433 = vmatmul.bf16.gmra.mxu0 %v394
      %v434 = vpop.f32.mrf.mxu0
      %v435 = vadd.f32 %v329, %v434
      %v436 = vpop.f32.mrf.mxu0
      %v437 = vadd.f32 %v331, %v436
      %438 = vmatmul.bf16.gmra.mxu0 %v397
      %v439 = vpop.f32.mrf.mxu0
      %v440 = vadd.f32 %v334, %v439
      %v441 = vpop.f32.mrf.mxu0
      %v442 = vadd.f32 %v336, %v441
      %443 = vmatmul.bf16.gmra.mxu0 %v400
      %v444 = vpop.f32.mrf.mxu0
      %v445 = vadd.f32 %v339, %v444
      %v446 = vpop.f32.mrf.mxu0
      %447 = vdwg.mxu0
      %s448 = scalar_lea.vmem %s1, 48
      %v449 = vld [vmem:[%s448] sm:$0xf]
      %v450 = vld [vmem:[%s448 + $0x4] sm:$0xf]
      %v451 = vld [vmem:[%s448 + $0x8] sm:$0xf]
      %v452 = vld [vmem:[%s448 + $0xc] sm:$0xf]
      %v453 = vld [vmem:[%s448 + $0x10] sm:$0xf]
      %v454 = vld [vmem:[%s448 + $0x14] sm:$0xf]
      %v461 = vunpack.c.l.b16 %v449
      %v462 = vunpack.c.l.b16 %v450
      %v463 = vunpack.c.l.b16 %v451
      %v464 = vunpack.c.l.b16 %v452
      %v465 = vunpack.c.l.b16 %v453
      %v466 = vunpack.c.l.b16 %v454
      %v467 = vpack.c.b16 %v462, %v461
      %v468 = vpack.c.b16 %v464, %v463
      %v469 = vpack.c.b16 %v466, %v465
      %470 = vrot.lane.b32.xlu0 %v240, 117
      %v471 = vpop.permute.xlu0 %470
      %472 = vrot.lane.b32.xlu0 %v241, 117
      %v473 = vpop.permute.xlu0 %472
      %474 = vrot.lane.b32.xlu0 %v242, 117
      %v475 = vpop.permute.xlu0 %474
      %476 = vrot.lane.b32.xlu0 %v243, 117
      %v477 = vpop.permute.xlu0 %476
      %478 = vrot.lane.b32.xlu0 %v244, 117
      %v479 = vpop.permute.xlu0 %478
      %480 = vrot.lane.b32.xlu0 %v245, 117
      %v481 = vpop.permute.xlu0 %480
      %482 = vrot.lane.b32.xlu0 %v246, 117
      %v483 = vpop.permute.xlu0 %482
      %484 = vrot.lane.b32.xlu0 %v247, 117
      %v485 = vpop.permute.xlu0 %484
      %486 = vrot.lane.b32.xlu0 %v248, 117
      %v487 = vpop.permute.xlu0 %486
      %488 = vrot.lane.b32.xlu0 %v249, 117
      %v489 = vpop.permute.xlu0 %488
      %vm490 = vcmask 957440
      %v491 = vsel %vm490, %v471, %v473
      %v492 = vsel %vm490, %v475, %v477
      %v493 = vsel %vm490, %v479, %v481
      %v494 = vsel %vm490, %v483, %v485
      %v495 = vsel %vm490, %v487, %v489
      %v507 = vsel %vm286, %v467, 0
      %v510 = vsel %vm286, %v468, 0
      %v513 = vsel %vm286, %v469, 0
      %515 = vmatpush.bf16.msra.mxu0 0
      %516 = vmatpush.bf16.msra.mxu0 0
      %517 = vmatpush.bf16.msra.mxu0 0
      %518 = vmatpush.bf16.msra.mxu0 %v495
      %519 = vmatpush.bf16.msra.mxu0 %v494
      %520 = vmatpush.bf16.msra.mxu0 %v493
      %521 = vmatpush.bf16.msra.mxu0 %v492
      %522 = vmatpush.bf16.msra.mxu0 %v491
      %523 = vmatmul.bf16.gmra.mxu0 %v507
      %v524 = vpop.f32.mrf.mxu0
      %v525 = vadd.f32 0.0, %v524
      %v526 = vpop.f32.mrf.mxu0
      %v527 = vadd.f32 0.0, %v526
      %528 = vmatmul.bf16.gmra.mxu0 %v510
      %v529 = vpop.f32.mrf.mxu0
      %v530 = vadd.f32 0.0, %v529
      %v531 = vpop.f32.mrf.mxu0
      %v532 = vadd.f32 0.0, %v531
      %533 = vmatmul.bf16.gmra.mxu0 %v513
      %v534 = vpop.f32.mrf.mxu0
      %v535 = vadd.f32 0.0, %v534
      %v536 = vpop.f32.mrf.mxu0
      %537 = vdwg.mxu0
      %538 = vmatpush.bf16.msra.mxu0 0
      %539 = vmatpush.bf16.msra.mxu0 0
      %540 = vmatpush.bf16.msra.mxu0 0
      %541 = vmatpush.bf16.msra.mxu0 %v489
      %542 = vmatpush.bf16.msra.mxu0 %v485
      %543 = vmatpush.bf16.msra.mxu0 %v481
      %544 = vmatpush.bf16.msra.mxu0 %v477
      %545 = vmatpush.bf16.msra.mxu0 %v473
      %546 = vmatmul.bf16.gmra.mxu0 %v507
      %v547 = vpop.f32.mrf.mxu0
      %v548 = vadd.f32 0.0, %v547
      %v549 = vpop.f32.mrf.mxu0
      %v550 = vadd.f32 0.0, %v549
      %551 = vmatmul.bf16.gmra.mxu0 %v510
      %v552 = vpop.f32.mrf.mxu0
      %v553 = vadd.f32 0.0, %v552
      %v554 = vpop.f32.mrf.mxu0
      %v555 = vadd.f32 0.0, %v554
      %556 = vmatmul.bf16.gmra.mxu0 %v513
      %v557 = vpop.f32.mrf.mxu0
      %v558 = vadd.f32 0.0, %v557
      %v559 = vpop.f32.mrf.mxu0
      %560 = vdwg.mxu0
      %v561 = vadd.f32 %v412, %v525
      %v562 = vadd.f32 %v435, %v548
      %v563 = vadd.f32 %v414, %v527
      %v564 = vadd.f32 %v437, %v550
      %v565 = vadd.f32 %v417, %v530
      %v566 = vadd.f32 %v440, %v553
      %v567 = vadd.f32 %v419, %v532
      %v568 = vadd.f32 %v442, %v555
      %v569 = vadd.f32 %v422, %v535
      %v570 = vadd.f32 %v445, %v558
      %s571 = scalar_lea.vmem %s1, 72
      %v572 = vld [vmem:[%s571] sm:$0xf]
      %v573 = vld [vmem:[%s571 + $0x4] sm:$0xf]
      %v574 = vld [vmem:[%s571 + $0x8] sm:$0xf]
      %v575 = vld [vmem:[%s571 + $0xc] sm:$0xf]
      %v576 = vld [vmem:[%s571 + $0x10] sm:$0xf]
      %v577 = vld [vmem:[%s571 + $0x14] sm:$0xf]
      %v584 = vunpack.c.l.b16 %v572
      %v585 = vunpack.c.l.b16 %v573
      %v586 = vunpack.c.l.b16 %v574
      %v587 = vunpack.c.l.b16 %v575
      %v588 = vunpack.c.l.b16 %v576
      %v589 = vunpack.c.l.b16 %v577
      %v590 = vpack.c.b16 %v585, %v584
      %v591 = vpack.c.b16 %v587, %v586
      %v592 = vpack.c.b16 %v589, %v588
      %593 = vrot.lane.b32.xlu0 %v240, 109
      %v594 = vpop.permute.xlu0 %593
      %595 = vrot.lane.b32.xlu0 %v241, 109
      %v596 = vpop.permute.xlu0 %595
      %597 = vrot.lane.b32.xlu0 %v242, 109
      %v598 = vpop.permute.xlu0 %597
      %599 = vrot.lane.b32.xlu0 %v243, 109
      %v600 = vpop.permute.xlu0 %599
      %601 = vrot.lane.b32.xlu0 %v244, 109
      %v602 = vpop.permute.xlu0 %601
      %603 = vrot.lane.b32.xlu0 %v245, 109
      %v604 = vpop.permute.xlu0 %603
      %605 = vrot.lane.b32.xlu0 %v246, 109
      %v606 = vpop.permute.xlu0 %605
      %607 = vrot.lane.b32.xlu0 %v247, 109
      %v608 = vpop.permute.xlu0 %607
      %609 = vrot.lane.b32.xlu0 %v248, 109
      %v610 = vpop.permute.xlu0 %609
      %611 = vrot.lane.b32.xlu0 %v249, 109
      %v612 = vpop.permute.xlu0 %611
      %vm613 = vcmask 891904
      %v614 = vsel %vm613, %v594, %v596
      %v615 = vsel %vm613, %v598, %v600
      %v616 = vsel %vm613, %v602, %v604
      %v617 = vsel %vm613, %v606, %v608
      %v618 = vsel %vm613, %v610, %v612
      %v630 = vsel %vm286, %v590, 0
      %v633 = vsel %vm286, %v591, 0
      %v636 = vsel %vm286, %v592, 0
      %638 = vmatpush.bf16.msra.mxu0 0
      %639 = vmatpush.bf16.msra.mxu0 0
      %640 = vmatpush.bf16.msra.mxu0 0
      %641 = vmatpush.bf16.msra.mxu0 %v618
      %642 = vmatpush.bf16.msra.mxu0 %v617
      %643 = vmatpush.bf16.msra.mxu0 %v616
      %644 = vmatpush.bf16.msra.mxu0 %v615
      %645 = vmatpush.bf16.msra.mxu0 %v614
      %646 = vmatmul.bf16.gmra.mxu0 %v630
      %v647 = vpop.f32.mrf.mxu0
      %v648 = vadd.f32 0.0, %v647
      %v649 = vpop.f32.mrf.mxu0
      %v650 = vadd.f32 0.0, %v649
      %651 = vmatmul.bf16.gmra.mxu0 %v633
      %v652 = vpop.f32.mrf.mxu0
      %v653 = vadd.f32 0.0, %v652
      %v654 = vpop.f32.mrf.mxu0
      %v655 = vadd.f32 0.0, %v654
      %656 = vmatmul.bf16.gmra.mxu0 %v636
      %v657 = vpop.f32.mrf.mxu0
      %v658 = vadd.f32 0.0, %v657
      %v659 = vpop.f32.mrf.mxu0
      %660 = vdwg.mxu0
      %661 = vmatpush.bf16.msra.mxu0 0
      %662 = vmatpush.bf16.msra.mxu0 0
      %663 = vmatpush.bf16.msra.mxu0 0
      %664 = vmatpush.bf16.msra.mxu0 %v612
      %665 = vmatpush.bf16.msra.mxu0 %v608
      %666 = vmatpush.bf16.msra.mxu0 %v604
      %667 = vmatpush.bf16.msra.mxu0 %v600
      %668 = vmatpush.bf16.msra.mxu0 %v596
      %669 = vmatmul.bf16.gmra.mxu0 %v630
      %v670 = vpop.f32.mrf.mxu0
      %v671 = vadd.f32 0.0, %v670
      %v672 = vpop.f32.mrf.mxu0
      %v673 = vadd.f32 0.0, %v672
      %674 = vmatmul.bf16.gmra.mxu0 %v633
      %v675 = vpop.f32.mrf.mxu0
      %v676 = vadd.f32 0.0, %v675
      %v677 = vpop.f32.mrf.mxu0
      %v678 = vadd.f32 0.0, %v677
      %679 = vmatmul.bf16.gmra.mxu0 %v636
      %v680 = vpop.f32.mrf.mxu0
      %v681 = vadd.f32 0.0, %v680
      %v682 = vpop.f32.mrf.mxu0
      %683 = vdwg.mxu0
      %v684 = vadd.f32 %v561, %v648
      %v685 = vadd.f32 %v562, %v671
      %v686 = vadd.f32 %v563, %v650
      %v687 = vadd.f32 %v564, %v673
      %v688 = vadd.f32 %v565, %v653
      %v689 = vadd.f32 %v566, %v676
      %v690 = vadd.f32 %v567, %v655
      %v691 = vadd.f32 %v568, %v678
      %v692 = vadd.f32 %v569, %v658
      %v693 = vadd.f32 %v570, %v681
      %s694 = scalar_lea.vmem %s1, 96
      %v695 = vld [vmem:[%s694] sm:$0xf]
      %v696 = vld [vmem:[%s694 + $0x4] sm:$0xf]
      %v697 = vld [vmem:[%s694 + $0x8] sm:$0xf]
      %v698 = vld [vmem:[%s694 + $0xc] sm:$0xf]
      %v699 = vld [vmem:[%s694 + $0x10] sm:$0xf]
      %v700 = vld [vmem:[%s694 + $0x14] sm:$0xf]
      %v707 = vunpack.c.l.b16 %v695
      %v708 = vunpack.c.l.b16 %v696
      %v709 = vunpack.c.l.b16 %v697
      %v710 = vunpack.c.l.b16 %v698
      %v711 = vunpack.c.l.b16 %v699
      %v712 = vunpack.c.l.b16 %v700
      %v713 = vpack.c.b16 %v708, %v707
      %v714 = vpack.c.b16 %v710, %v709
      %v715 = vpack.c.b16 %v712, %v711
      %716 = vrot.lane.b32.xlu0 %v240, 108
      %v717 = vpop.permute.xlu0 %716
      %718 = vrot.lane.b32.xlu0 %v241, 108
      %v719 = vpop.permute.xlu0 %718
      %720 = vrot.lane.b32.xlu0 %v242, 108
      %v721 = vpop.permute.xlu0 %720
      %722 = vrot.lane.b32.xlu0 %v243, 108
      %v723 = vpop.permute.xlu0 %722
      %724 = vrot.lane.b32.xlu0 %v244, 108
      %v725 = vpop.permute.xlu0 %724
      %726 = vrot.lane.b32.xlu0 %v245, 108
      %v727 = vpop.permute.xlu0 %726
      %728 = vrot.lane.b32.xlu0 %v246, 108
      %v729 = vpop.permute.xlu0 %728
      %730 = vrot.lane.b32.xlu0 %v247, 108
      %v731 = vpop.permute.xlu0 %730
      %732 = vrot.lane.b32.xlu0 %v248, 108
      %v733 = vpop.permute.xlu0 %732
      %734 = vrot.lane.b32.xlu0 %v249, 108
      %v735 = vpop.permute.xlu0 %734
      %vm736 = vcmask 883712
      %v737 = vsel %vm736, %v717, %v719
      %v738 = vsel %vm736, %v721, %v723
      %v739 = vsel %vm736, %v725, %v727
      %v740 = vsel %vm736, %v729, %v731
      %v741 = vsel %vm736, %v733, %v735
      %v753 = vsel %vm286, %v713, 0
      %v756 = vsel %vm286, %v714, 0
      %v759 = vsel %vm286, %v715, 0
      %761 = vmatpush.bf16.msra.mxu0 0
      %762 = vmatpush.bf16.msra.mxu0 0
      %763 = vmatpush.bf16.msra.mxu0 0
      %764 = vmatpush.bf16.msra.mxu0 %v741
      %765 = vmatpush.bf16.msra.mxu0 %v740
      %766 = vmatpush.bf16.msra.mxu0 %v739
      %767 = vmatpush.bf16.msra.mxu0 %v738
      %768 = vmatpush.bf16.msra.mxu0 %v737
      %769 = vmatmul.bf16.gmra.mxu0 %v753
      %v770 = vpop.f32.mrf.mxu0
      %v771 = vadd.f32 0.0, %v770
      %v772 = vpop.f32.mrf.mxu0
      %v773 = vadd.f32 0.0, %v772
      %774 = vmatmul.bf16.gmra.mxu0 %v756
      %v775 = vpop.f32.mrf.mxu0
      %v776 = vadd.f32 0.0, %v775
      %v777 = vpop.f32.mrf.mxu0
      %v778 = vadd.f32 0.0, %v777
      %779 = vmatmul.bf16.gmra.mxu0 %v759
      %v780 = vpop.f32.mrf.mxu0
      %v781 = vadd.f32 0.0, %v780
      %v782 = vpop.f32.mrf.mxu0
      %783 = vdwg.mxu0
      %784 = vmatpush.bf16.msra.mxu0 0
      %785 = vmatpush.bf16.msra.mxu0 0
      %786 = vmatpush.bf16.msra.mxu0 0
      %787 = vmatpush.bf16.msra.mxu0 %v735
      %788 = vmatpush.bf16.msra.mxu0 %v731
      %789 = vmatpush.bf16.msra.mxu0 %v727
      %790 = vmatpush.bf16.msra.mxu0 %v723
      %791 = vmatpush.bf16.msra.mxu0 %v719
      %792 = vmatmul.bf16.gmra.mxu0 %v753
      %v793 = vpop.f32.mrf.mxu0
      %v794 = vadd.f32 0.0, %v793
      %v795 = vpop.f32.mrf.mxu0
      %v796 = vadd.f32 0.0, %v795
      %797 = vmatmul.bf16.gmra.mxu0 %v756
      %v798 = vpop.f32.mrf.mxu0
      %v799 = vadd.f32 0.0, %v798
      %v800 = vpop.f32.mrf.mxu0
      %v801 = vadd.f32 0.0, %v800
      %802 = vmatmul.bf16.gmra.mxu0 %v759
      %v803 = vpop.f32.mrf.mxu0
      %v804 = vadd.f32 0.0, %v803
      %v805 = vpop.f32.mrf.mxu0
      %806 = vdwg.mxu0
      %v807 = vadd.f32 %v684, %v771
      %v808 = vadd.f32 %v685, %v794
      %v809 = vadd.f32 %v686, %v773
      %v810 = vadd.f32 %v687, %v796
      %v811 = vadd.f32 %v688, %v776
      %v812 = vadd.f32 %v689, %v799
      %v813 = vadd.f32 %v690, %v778
      %v814 = vadd.f32 %v691, %v801
      %v815 = vadd.f32 %v692, %v781
      %v816 = vadd.f32 %v693, %v804
      %s817 = scalar_lea.vmem %s1, 120
      %v818 = vld [vmem:[%s817] sm:$0xf]
      %v819 = vld [vmem:[%s817 + $0x4] sm:$0xf]
      %v820 = vld [vmem:[%s817 + $0x8] sm:$0xf]
      %v821 = vld [vmem:[%s817 + $0xc] sm:$0xf]
      %v822 = vld [vmem:[%s817 + $0x10] sm:$0xf]
      %v823 = vld [vmem:[%s817 + $0x14] sm:$0xf]
      %v830 = vunpack.c.l.b16 %v818
      %v831 = vunpack.c.l.b16 %v819
      %v832 = vunpack.c.l.b16 %v820
      %v833 = vunpack.c.l.b16 %v821
      %v834 = vunpack.c.l.b16 %v822
      %v835 = vunpack.c.l.b16 %v823
      %v836 = vpack.c.b16 %v831, %v830
      %v837 = vpack.c.b16 %v833, %v832
      %v838 = vpack.c.b16 %v835, %v834
      %839 = vrot.lane.b32.xlu0 %v240, 107
      %v840 = vpop.permute.xlu0 %839
      %841 = vrot.lane.b32.xlu0 %v241, 107
      %v842 = vpop.permute.xlu0 %841
      %843 = vrot.lane.b32.xlu0 %v242, 107
      %v844 = vpop.permute.xlu0 %843
      %845 = vrot.lane.b32.xlu0 %v243, 107
      %v846 = vpop.permute.xlu0 %845
      %847 = vrot.lane.b32.xlu0 %v244, 107
      %v848 = vpop.permute.xlu0 %847
      %849 = vrot.lane.b32.xlu0 %v245, 107
      %v850 = vpop.permute.xlu0 %849
      %851 = vrot.lane.b32.xlu0 %v246, 107
      %v852 = vpop.permute.xlu0 %851
      %853 = vrot.lane.b32.xlu0 %v247, 107
      %v854 = vpop.permute.xlu0 %853
      %855 = vrot.lane.b32.xlu0 %v248, 107
      %v856 = vpop.permute.xlu0 %855
      %857 = vrot.lane.b32.xlu0 %v249, 107
      %v858 = vpop.permute.xlu0 %857
      %vm859 = vcmask 875520
      %v860 = vsel %vm859, %v840, %v842
      %v861 = vsel %vm859, %v844, %v846
      %v862 = vsel %vm859, %v848, %v850
      %v863 = vsel %vm859, %v852, %v854
      %v864 = vsel %vm859, %v856, %v858
      %v876 = vsel %vm286, %v836, 0
      %v879 = vsel %vm286, %v837, 0
      %v882 = vsel %vm286, %v838, 0
      %884 = vmatpush.bf16.msra.mxu0 0
      %885 = vmatpush.bf16.msra.mxu0 0
      %886 = vmatpush.bf16.msra.mxu0 0
      %887 = vmatpush.bf16.msra.mxu0 %v864
      %888 = vmatpush.bf16.msra.mxu0 %v863
      %889 = vmatpush.bf16.msra.mxu0 %v862
      %890 = vmatpush.bf16.msra.mxu0 %v861
      %891 = vmatpush.bf16.msra.mxu0 %v860
      %892 = vmatmul.bf16.gmra.mxu0 %v876
      %v893 = vpop.f32.mrf.mxu0
      %v894 = vadd.f32 0.0, %v893
      %v895 = vpop.f32.mrf.mxu0
      %v896 = vadd.f32 0.0, %v895
      %897 = vmatmul.bf16.gmra.mxu0 %v879
      %v898 = vpop.f32.mrf.mxu0
      %v899 = vadd.f32 0.0, %v898
      %v900 = vpop.f32.mrf.mxu0
      %v901 = vadd.f32 0.0, %v900
      %902 = vmatmul.bf16.gmra.mxu0 %v882
      %v903 = vpop.f32.mrf.mxu0
      %v904 = vadd.f32 0.0, %v903
      %v905 = vpop.f32.mrf.mxu0
      %906 = vdwg.mxu0
      %907 = vmatpush.bf16.msra.mxu0 0
      %908 = vmatpush.bf16.msra.mxu0 0
      %909 = vmatpush.bf16.msra.mxu0 0
      %910 = vmatpush.bf16.msra.mxu0 %v858
      %911 = vmatpush.bf16.msra.mxu0 %v854
      %912 = vmatpush.bf16.msra.mxu0 %v850
      %913 = vmatpush.bf16.msra.mxu0 %v846
      %914 = vmatpush.bf16.msra.mxu0 %v842
      %915 = vmatmul.bf16.gmra.mxu0 %v876
      %v916 = vpop.f32.mrf.mxu0
      %v917 = vadd.f32 0.0, %v916
      %v918 = vpop.f32.mrf.mxu0
      %v919 = vadd.f32 0.0, %v918
      %920 = vmatmul.bf16.gmra.mxu0 %v879
      %v921 = vpop.f32.mrf.mxu0
      %v922 = vadd.f32 0.0, %v921
      %v923 = vpop.f32.mrf.mxu0
      %v924 = vadd.f32 0.0, %v923
      %925 = vmatmul.bf16.gmra.mxu0 %v882
      %v926 = vpop.f32.mrf.mxu0
      %v927 = vadd.f32 0.0, %v926
      %v928 = vpop.f32.mrf.mxu0
      %929 = vdwg.mxu0
      %v930 = vadd.f32 %v807, %v894
      %v931 = vadd.f32 %v808, %v917
      %v932 = vadd.f32 %v809, %v896
      %v933 = vadd.f32 %v810, %v919
      %v934 = vadd.f32 %v811, %v899
      %v935 = vadd.f32 %v812, %v922
      %v936 = vadd.f32 %v813, %v901
      %v937 = vadd.f32 %v814, %v924
      %v938 = vadd.f32 %v815, %v904
      %v939 = vadd.f32 %v816, %v927
      %s940 = scalar_lea.vmem %s1, 144
      %v941 = vld [vmem:[%s940] sm:$0xf]
      %v942 = vld [vmem:[%s940 + $0x4] sm:$0xf]
      %v943 = vld [vmem:[%s940 + $0x8] sm:$0xf]
      %v944 = vld [vmem:[%s940 + $0xc] sm:$0xf]
      %v945 = vld [vmem:[%s940 + $0x10] sm:$0xf]
      %v946 = vld [vmem:[%s940 + $0x14] sm:$0xf]
      %v953 = vunpack.c.l.b16 %v941
      %v954 = vunpack.c.l.b16 %v942
      %v955 = vunpack.c.l.b16 %v943
      %v956 = vunpack.c.l.b16 %v944
      %v957 = vunpack.c.l.b16 %v945
      %v958 = vunpack.c.l.b16 %v946
      %v959 = vpack.c.b16 %v954, %v953
      %v960 = vpack.c.b16 %v956, %v955
      %v961 = vpack.c.b16 %v958, %v957
      %962 = vrot.lane.b32.xlu0 %v240, 99
      %v963 = vpop.permute.xlu0 %962
      %964 = vrot.lane.b32.xlu0 %v241, 99
      %v965 = vpop.permute.xlu0 %964
      %966 = vrot.lane.b32.xlu0 %v242, 99
      %v967 = vpop.permute.xlu0 %966
      %968 = vrot.lane.b32.xlu0 %v243, 99
      %v969 = vpop.permute.xlu0 %968
      %970 = vrot.lane.b32.xlu0 %v244, 99
      %v971 = vpop.permute.xlu0 %970
      %972 = vrot.lane.b32.xlu0 %v245, 99
      %v973 = vpop.permute.xlu0 %972
      %974 = vrot.lane.b32.xlu0 %v246, 99
      %v975 = vpop.permute.xlu0 %974
      %976 = vrot.lane.b32.xlu0 %v247, 99
      %v977 = vpop.permute.xlu0 %976
      %978 = vrot.lane.b32.xlu0 %v248, 99
      %v979 = vpop.permute.xlu0 %978
      %980 = vrot.lane.b32.xlu0 %v249, 99
      %v981 = vpop.permute.xlu0 %980
      %vm982 = vcmask 809984
      %v983 = vsel %vm982, %v963, %v965
      %v984 = vsel %vm982, %v967, %v969
      %v985 = vsel %vm982, %v971, %v973
      %v986 = vsel %vm982, %v975, %v977
      %v987 = vsel %vm982, %v979, %v981
      %v999 = vsel %vm286, %v959, 0
      %v1002 = vsel %vm286, %v960, 0
      %v1005 = vsel %vm286, %v961, 0
      %1007 = vmatpush.bf16.msra.mxu0 0
      %1008 = vmatpush.bf16.msra.mxu0 0
      %1009 = vmatpush.bf16.msra.mxu0 0
      %1010 = vmatpush.bf16.msra.mxu0 %v987
      %1011 = vmatpush.bf16.msra.mxu0 %v986
      %1012 = vmatpush.bf16.msra.mxu0 %v985
      %1013 = vmatpush.bf16.msra.mxu0 %v984
      %1014 = vmatpush.bf16.msra.mxu0 %v983
      %1015 = vmatmul.bf16.gmra.mxu0 %v999
      %v1016 = vpop.f32.mrf.mxu0
      %v1017 = vadd.f32 0.0, %v1016
      %v1018 = vpop.f32.mrf.mxu0
      %v1019 = vadd.f32 0.0, %v1018
      %1020 = vmatmul.bf16.gmra.mxu0 %v1002
      %v1021 = vpop.f32.mrf.mxu0
      %v1022 = vadd.f32 0.0, %v1021
      %v1023 = vpop.f32.mrf.mxu0
      %v1024 = vadd.f32 0.0, %v1023
      %1025 = vmatmul.bf16.gmra.mxu0 %v1005
      %v1026 = vpop.f32.mrf.mxu0
      %v1027 = vadd.f32 0.0, %v1026
      %v1028 = vpop.f32.mrf.mxu0
      %1029 = vdwg.mxu0
      %1030 = vmatpush.bf16.msra.mxu0 0
      %1031 = vmatpush.bf16.msra.mxu0 0
      %1032 = vmatpush.bf16.msra.mxu0 0
      %1033 = vmatpush.bf16.msra.mxu0 %v981
      %1034 = vmatpush.bf16.msra.mxu0 %v977
      %1035 = vmatpush.bf16.msra.mxu0 %v973
      %1036 = vmatpush.bf16.msra.mxu0 %v969
      %1037 = vmatpush.bf16.msra.mxu0 %v965
      %1038 = vmatmul.bf16.gmra.mxu0 %v999
      %v1039 = vpop.f32.mrf.mxu0
      %v1040 = vadd.f32 0.0, %v1039
      %v1041 = vpop.f32.mrf.mxu0
      %v1042 = vadd.f32 0.0, %v1041
      %1043 = vmatmul.bf16.gmra.mxu0 %v1002
      %v1044 = vpop.f32.mrf.mxu0
      %v1045 = vadd.f32 0.0, %v1044
      %v1046 = vpop.f32.mrf.mxu0
      %v1047 = vadd.f32 0.0, %v1046
      %1048 = vmatmul.bf16.gmra.mxu0 %v1005
      %v1049 = vpop.f32.mrf.mxu0
      %v1050 = vadd.f32 0.0, %v1049
      %v1051 = vpop.f32.mrf.mxu0
      %1052 = vdwg.mxu0
      %v1053 = vadd.f32 %v930, %v1017
      %v1054 = vadd.f32 %v931, %v1040
      %v1055 = vadd.f32 %v932, %v1019
      %v1056 = vadd.f32 %v933, %v1042
      %v1057 = vadd.f32 %v934, %v1022
      %v1058 = vadd.f32 %v935, %v1045
      %v1059 = vadd.f32 %v936, %v1024
      %v1060 = vadd.f32 %v937, %v1047
      %v1061 = vadd.f32 %v938, %v1027
      %v1062 = vadd.f32 %v939, %v1050
      %s1063 = scalar_lea.vmem %s1, 168
      %v1064 = vld [vmem:[%s1063] sm:$0xf]
      %v1065 = vld [vmem:[%s1063 + $0x4] sm:$0xf]
      %v1066 = vld [vmem:[%s1063 + $0x8] sm:$0xf]
      %v1067 = vld [vmem:[%s1063 + $0xc] sm:$0xf]
      %v1068 = vld [vmem:[%s1063 + $0x10] sm:$0xf]
      %v1069 = vld [vmem:[%s1063 + $0x14] sm:$0xf]
      %v1076 = vunpack.c.l.b16 %v1064
      %v1077 = vunpack.c.l.b16 %v1065
      %v1078 = vunpack.c.l.b16 %v1066
      %v1079 = vunpack.c.l.b16 %v1067
      %v1080 = vunpack.c.l.b16 %v1068
      %v1081 = vunpack.c.l.b16 %v1069
      %v1082 = vpack.c.b16 %v1077, %v1076
      %v1083 = vpack.c.b16 %v1079, %v1078
      %v1084 = vpack.c.b16 %v1081, %v1080
      %1085 = vrot.lane.b32.xlu0 %v240, 98
      %v1086 = vpop.permute.xlu0 %1085
      %1087 = vrot.lane.b32.xlu0 %v241, 98
      %v1088 = vpop.permute.xlu0 %1087
      %1089 = vrot.lane.b32.xlu0 %v242, 98
      %v1090 = vpop.permute.xlu0 %1089
      %1091 = vrot.lane.b32.xlu0 %v243, 98
      %v1092 = vpop.permute.xlu0 %1091
      %1093 = vrot.lane.b32.xlu0 %v244, 98
      %v1094 = vpop.permute.xlu0 %1093
      %1095 = vrot.lane.b32.xlu0 %v245, 98
      %v1096 = vpop.permute.xlu0 %1095
      %1097 = vrot.lane.b32.xlu0 %v246, 98
      %v1098 = vpop.permute.xlu0 %1097
      %1099 = vrot.lane.b32.xlu0 %v247, 98
      %v1100 = vpop.permute.xlu0 %1099
      %1101 = vrot.lane.b32.xlu0 %v248, 98
      %v1102 = vpop.permute.xlu0 %1101
      %1103 = vrot.lane.b32.xlu0 %v249, 98
      %v1104 = vpop.permute.xlu0 %1103
      %vm1105 = vcmask 801792
      %v1106 = vsel %vm1105, %v1086, %v1088
      %v1107 = vsel %vm1105, %v1090, %v1092
      %v1108 = vsel %vm1105, %v1094, %v1096
      %v1109 = vsel %vm1105, %v1098, %v1100
      %v1110 = vsel %vm1105, %v1102, %v1104
      %v1122 = vsel %vm286, %v1082, 0
      %v1125 = vsel %vm286, %v1083, 0
      %v1128 = vsel %vm286, %v1084, 0
      %1130 = vmatpush.bf16.msra.mxu0 0
      %1131 = vmatpush.bf16.msra.mxu0 0
      %1132 = vmatpush.bf16.msra.mxu0 0
      %1133 = vmatpush.bf16.msra.mxu0 %v1110
      %1134 = vmatpush.bf16.msra.mxu0 %v1109
      %1135 = vmatpush.bf16.msra.mxu0 %v1108
      %1136 = vmatpush.bf16.msra.mxu0 %v1107
      %1137 = vmatpush.bf16.msra.mxu0 %v1106
      %1138 = vmatmul.bf16.gmra.mxu0 %v1122
      %v1139 = vpop.f32.mrf.mxu0
      %v1140 = vadd.f32 0.0, %v1139
      %v1141 = vpop.f32.mrf.mxu0
      %v1142 = vadd.f32 0.0, %v1141
      %1143 = vmatmul.bf16.gmra.mxu0 %v1125
      %v1144 = vpop.f32.mrf.mxu0
      %v1145 = vadd.f32 0.0, %v1144
      %v1146 = vpop.f32.mrf.mxu0
      %v1147 = vadd.f32 0.0, %v1146
      %1148 = vmatmul.bf16.gmra.mxu0 %v1128
      %v1149 = vpop.f32.mrf.mxu0
      %v1150 = vadd.f32 0.0, %v1149
      %v1151 = vpop.f32.mrf.mxu0
      %1152 = vdwg.mxu0
      %1153 = vmatpush.bf16.msra.mxu0 0
      %1154 = vmatpush.bf16.msra.mxu0 0
      %1155 = vmatpush.bf16.msra.mxu0 0
      %1156 = vmatpush.bf16.msra.mxu0 %v1104
      %1157 = vmatpush.bf16.msra.mxu0 %v1100
      %1158 = vmatpush.bf16.msra.mxu0 %v1096
      %1159 = vmatpush.bf16.msra.mxu0 %v1092
      %1160 = vmatpush.bf16.msra.mxu0 %v1088
      %1161 = vmatmul.bf16.gmra.mxu0 %v1122
      %v1162 = vpop.f32.mrf.mxu0
      %v1163 = vadd.f32 0.0, %v1162
      %v1164 = vpop.f32.mrf.mxu0
      %v1165 = vadd.f32 0.0, %v1164
      %1166 = vmatmul.bf16.gmra.mxu0 %v1125
      %v1167 = vpop.f32.mrf.mxu0
      %v1168 = vadd.f32 0.0, %v1167
      %v1169 = vpop.f32.mrf.mxu0
      %v1170 = vadd.f32 0.0, %v1169
      %1171 = vmatmul.bf16.gmra.mxu0 %v1128
      %v1172 = vpop.f32.mrf.mxu0
      %v1173 = vadd.f32 0.0, %v1172
      %v1174 = vpop.f32.mrf.mxu0
      %1175 = vdwg.mxu0
      %v1176 = vadd.f32 %v1053, %v1140
      %v1177 = vadd.f32 %v1054, %v1163
      %v1178 = vadd.f32 %v1055, %v1142
      %v1179 = vadd.f32 %v1056, %v1165
      %v1180 = vadd.f32 %v1057, %v1145
      %v1181 = vadd.f32 %v1058, %v1168
      %v1182 = vadd.f32 %v1059, %v1147
      %v1183 = vadd.f32 %v1060, %v1170
      %v1184 = vadd.f32 %v1061, %v1150
      %v1185 = vadd.f32 %v1062, %v1173
      %s1186 = scalar_lea.vmem %s1, 192
      %v1187 = vld [vmem:[%s1186] sm:$0xf]
      %v1188 = vld [vmem:[%s1186 + $0x4] sm:$0xf]
      %v1189 = vld [vmem:[%s1186 + $0x8] sm:$0xf]
      %v1190 = vld [vmem:[%s1186 + $0xc] sm:$0xf]
      %v1191 = vld [vmem:[%s1186 + $0x10] sm:$0xf]
      %v1192 = vld [vmem:[%s1186 + $0x14] sm:$0xf]
      %v1199 = vunpack.c.l.b16 %v1187
      %v1200 = vunpack.c.l.b16 %v1188
      %v1201 = vunpack.c.l.b16 %v1189
      %v1202 = vunpack.c.l.b16 %v1190
      %v1203 = vunpack.c.l.b16 %v1191
      %v1204 = vunpack.c.l.b16 %v1192
      %v1205 = vpack.c.b16 %v1200, %v1199
      %v1206 = vpack.c.b16 %v1202, %v1201
      %v1207 = vpack.c.b16 %v1204, %v1203
      %1208 = vrot.lane.b32.xlu0 %v240, 97
      %v1209 = vpop.permute.xlu0 %1208
      %1210 = vrot.lane.b32.xlu0 %v241, 97
      %v1211 = vpop.permute.xlu0 %1210
      %1212 = vrot.lane.b32.xlu0 %v242, 97
      %v1213 = vpop.permute.xlu0 %1212
      %1214 = vrot.lane.b32.xlu0 %v243, 97
      %v1215 = vpop.permute.xlu0 %1214
      %1216 = vrot.lane.b32.xlu0 %v244, 97
      %v1217 = vpop.permute.xlu0 %1216
      %1218 = vrot.lane.b32.xlu0 %v245, 97
      %v1219 = vpop.permute.xlu0 %1218
      %1220 = vrot.lane.b32.xlu0 %v246, 97
      %v1221 = vpop.permute.xlu0 %1220
      %1222 = vrot.lane.b32.xlu0 %v247, 97
      %v1223 = vpop.permute.xlu0 %1222
      %1224 = vrot.lane.b32.xlu0 %v248, 97
      %v1225 = vpop.permute.xlu0 %1224
      %1226 = vrot.lane.b32.xlu0 %v249, 97
      %v1227 = vpop.permute.xlu0 %1226
      %vm1228 = vcmask 793600
      %v1229 = vsel %vm1228, %v1209, %v1211
      %v1230 = vsel %vm1228, %v1213, %v1215
      %v1231 = vsel %vm1228, %v1217, %v1219
      %v1232 = vsel %vm1228, %v1221, %v1223
      %v1233 = vsel %vm1228, %v1225, %v1227
      %v1245 = vsel %vm286, %v1205, 0
      %v1248 = vsel %vm286, %v1206, 0
      %v1251 = vsel %vm286, %v1207, 0
      %1253 = vmatpush.bf16.msra.mxu0 0
      %1254 = vmatpush.bf16.msra.mxu0 0
      %1255 = vmatpush.bf16.msra.mxu0 0
      %1256 = vmatpush.bf16.msra.mxu0 %v1233
      %1257 = vmatpush.bf16.msra.mxu0 %v1232
      %1258 = vmatpush.bf16.msra.mxu0 %v1231
      %1259 = vmatpush.bf16.msra.mxu0 %v1230
      %1260 = vmatpush.bf16.msra.mxu0 %v1229
      %1261 = vmatmul.bf16.gmra.mxu0 %v1245
      %v1262 = vpop.f32.mrf.mxu0
      %v1263 = vadd.f32 0.0, %v1262
      %v1264 = vpop.f32.mrf.mxu0
      %v1265 = vadd.f32 0.0, %v1264
      %1266 = vmatmul.bf16.gmra.mxu0 %v1248
      %v1267 = vpop.f32.mrf.mxu0
      %v1268 = vadd.f32 0.0, %v1267
      %v1269 = vpop.f32.mrf.mxu0
      %v1270 = vadd.f32 0.0, %v1269
      %1271 = vmatmul.bf16.gmra.mxu0 %v1251
      %v1272 = vpop.f32.mrf.mxu0
      %v1273 = vadd.f32 0.0, %v1272
      %v1274 = vpop.f32.mrf.mxu0
      %1275 = vdwg.mxu0
      %1276 = vmatpush.bf16.msra.mxu0 0
      %1277 = vmatpush.bf16.msra.mxu0 0
      %1278 = vmatpush.bf16.msra.mxu0 0
      %1279 = vmatpush.bf16.msra.mxu0 %v1227
      %1280 = vmatpush.bf16.msra.mxu0 %v1223
      %1281 = vmatpush.bf16.msra.mxu0 %v1219
      %1282 = vmatpush.bf16.msra.mxu0 %v1215
      %1283 = vmatpush.bf16.msra.mxu0 %v1211
      %1284 = vmatmul.bf16.gmra.mxu0 %v1245
      %v1285 = vpop.f32.mrf.mxu0
      %v1286 = vadd.f32 0.0, %v1285
      %v1287 = vpop.f32.mrf.mxu0
      %v1288 = vadd.f32 0.0, %v1287
      %1289 = vmatmul.bf16.gmra.mxu0 %v1248
      %v1290 = vpop.f32.mrf.mxu0
      %v1291 = vadd.f32 0.0, %v1290
      %v1292 = vpop.f32.mrf.mxu0
      %v1293 = vadd.f32 0.0, %v1292
      %1294 = vmatmul.bf16.gmra.mxu0 %v1251
      %v1295 = vpop.f32.mrf.mxu0
      %v1296 = vadd.f32 0.0, %v1295
      %v1297 = vpop.f32.mrf.mxu0
      %1298 = vdwg.mxu0
      %v1299 = vadd.f32 %v1176, %v1263
      %v1300 = vadd.f32 %v1177, %v1286
      %v1301 = vadd.f32 %v1178, %v1265
      %v1302 = vadd.f32 %v1179, %v1288
      %v1303 = vadd.f32 %v1180, %v1268
      %v1304 = vadd.f32 %v1181, %v1291
      %v1305 = vadd.f32 %v1182, %v1270
      %v1306 = vadd.f32 %v1183, %v1293
      %v1307 = vadd.f32 %v1184, %v1273
      %v1308 = vadd.f32 %v1185, %v1296
      %v1309 = vld [vmem:[%s2] sm:$0xff]
      %v1310 = vld [vmem:[%s2 + $0x8] sm:$0xff]
      %v1311 = vld [vmem:[%s2 + $0x10] sm:$0xff]
      %v1312 = vld [vmem:[%s2 + $0x18] sm:$0xff]
      %v1313 = vld [vmem:[%s2 + $0x20] sm:$0xff]
      %1315 = vset.pattern.permute.xlu0 0
      %1316 = vperm.xlu0 %1315, %v1309
      %v1317 = vpop.permute.xlu0 %1316
      %1320 = vset.pattern.permute.xlu0 0
      %1321 = vperm.xlu0 %1320, %v1310
      %v1322 = vpop.permute.xlu0 %1321
      %1325 = vset.pattern.permute.xlu0 0
      %1326 = vperm.xlu0 %1325, %v1311
      %v1327 = vpop.permute.xlu0 %1326
      %1330 = vset.pattern.permute.xlu0 0
      %1331 = vperm.xlu0 %1330, %v1312
      %v1332 = vpop.permute.xlu0 %1331
      %1335 = vset.pattern.permute.xlu0 0
      %1336 = vperm.xlu0 %1335, %v1313
      %v1337 = vpop.permute.xlu0 %1336
      %v1339 = vadd.f32 %v1299, %v1317
      %v1340 = vadd.f32 %v1300, %v1317
      %v1341 = vadd.f32 %v1301, %v1322
      %v1342 = vadd.f32 %v1302, %v1322
      %v1343 = vadd.f32 %v1303, %v1327
      %v1344 = vadd.f32 %v1304, %v1327
      %v1345 = vadd.f32 %v1305, %v1332
      %v1346 = vadd.f32 %v1306, %v1332
      %v1347 = vadd.f32 %v1307, %v1337
      %v1348 = vadd.f32 %v1308, %v1337
      %v1349 = vtanh.pop %v1339
      %v1350 = vtanh.pop %v1340
      %v1351 = vtanh.pop %v1341
      %v1352 = vtanh.pop %v1342
      %v1353 = vtanh.pop %v1343
      %v1354 = vtanh.pop %v1344
      %v1355 = vtanh.pop %v1345
      %v1356 = vtanh.pop %v1346
      %v1357 = vtanh.pop %v1347
      %v1358 = vtanh.pop %v1348
      %v1359 = vpack.c.bf16 %v1350, %v1349
      %v1360 = vpack.c.bf16 %v1352, %v1351
      %v1361 = vpack.c.bf16 %v1354, %v1353
      %v1362 = vpack.c.bf16 %v1356, %v1355
      %v1363 = vpack.c.bf16 %v1358, %v1357
      %vm1364 = vcmask 1043456
      %vm1365 = vcmask 261124
      %vm1366 = vmor %vm1365, %vm1364
      %1367 = vst.msk [vmem:[%s170] sm:$0xff] %vm1366, %v1359
      %1368 = vst.msk [vmem:[%s170 + $0x8] sm:$0xff] %vm1366, %v1360
      %1369 = vst.msk [vmem:[%s170 + $0x10] sm:$0xff] %vm1366, %v1361
      %1370 = vst.msk [vmem:[%s170 + $0x18] sm:$0xff] %vm1366, %v1362
      %1371 = vst.msk [vmem:[%s170 + $0x20] sm:$0xff] %vm1366, %v1363
      %p1372 = scmp.lt.s32.totalorder %s14, 1
      %s1373 = scalar_select %p1372, %s14, 1
      %s1374 = smul.addr %s1373, 10
      %s1375 = smul.addr %s1374, 4
      %s1376 = scalar_lea.vmem %s3, %s1375
      // Predicated region
      $region33: #{decoder_a_forward.5} parent=31 // pred_check
        %p1377 = pneg %p100
      $region34: #{decoder_a_forward.5} parent=31 // pred_check_branch
        %1379 = sbr.rel (%p1377) target = $region36
      $region35: #{decoder_a_forward.5} parent=31 // pred_region
        _
      $region36: #{decoder_a_forward.5} parent=31 // pred_fallthru
        _
    $region32: #{decoder_a_forward.5} parent=5 // pred_fallthru
      _
    %p1380 = scmp.le.s32.totalorder 2, %s9
    // Predicated region
    $region37: #{decoder_a_forward.5} parent=5 // pred_check
      %p1381 = pneg %p1380
    $region38: #{decoder_a_forward.5} parent=5 // pred_check_branch
      %1383 = sbr.rel (%p1381) target = $region40
    $region39: #{decoder_a_forward.5} parent=5 // pred_region
      %s1384 = ssub.s32 %s9, 2
      // Predicated region
      $region41: #{decoder_a_forward.5} parent=39 // pred_check
        %p1385 = pneg %p106
      $region42: #{decoder_a_forward.5} parent=39 // pred_check_branch
        %1387 = sbr.rel (%p1385) target = $region44
      $region43: #{decoder_a_forward.5} parent=39 // pred_region
        %p1388 = scmp.lt.s32.totalorder %s15, 1
        %s1389 = scalar_select %p1388, %s15, 1
        %s1390 = smul.addr %s1389, 10
        %s1391 = smul.addr %s1390, 4
        %s1392 = scalar_lea.vmem %s3, %s1391
      $region44: #{decoder_a_forward.5} parent=39 // pred_fallthru
        _
    $region40: #{decoder_a_forward.5} parent=5 // pred_fallthru
      _
  $region6: #{decoder_a_forward.5} parent=0 // loop_footer
    %s13 = sadd.s32 1, %s9
  $region7: #{decoder_a_forward.5} parent=0 // loop_footer_branch
    %8 = sbr.rel target = $region3
  $region8: #{decoder_a_forward.5} parent=0 // loop_exit
    _

// kernel: decoder_a_forward.6
$region0: #{decoder_a_forward.6}
  #allocation0 [shape = 'u32[]', space=smem, size = 0x4, offset = 0x4, fixed_abs, tag = 'smem constant byte address 0x4 - core index']
  #allocation1 [shape = 'u32[72,128]{1,0:T(1,128)}', space=vmem, size = 0x9000, scoped, tag = 'internal scratch']
  %s0 = inlined_call_operand.vmem [shape: bf16[2,48,648], index: 0, kind: input, shape index: {}]
  %s1 = inlined_call_operand.vmem [shape: bf16[9,32,48], index: 1, kind: input, shape index: {}]
  %s2 = inlined_call_operand.vmem [shape: f32[32,1], index: 2, kind: input, shape index: {}]
  %s3 = inlined_call_operand.vmem [shape: bf16[2,20,576], index: 3, kind: output, shape index: {}]
  %s4 = sld [smem:[#allocation0]]
  $region45: #{decoder_a_forward.6} parent=0
    _
  %s6 = ssub.s32 1, %s4
  %s7 = scalar_select 0, %s6, %s4
  loop: start=0, step=1, limit=4
  $region2: #{decoder_a_forward.6} parent=0 // loop_pre_header
    _
  $region3: #{decoder_a_forward.6} parent=0 // loop_header
    %s9 = sphi 0, %s13
    %p10 = scmp.ge.s32.totalorder %s9, 4
    %s19 = sphi 0, %s21
    %s22 = sphi 0, %s19
    %s23 = sphi 0, %s22
    %s39 = sphi 0, %s23
    %s43 = sphi 0, %s43
    %s45 = sphi 0, %s43
    %s46 = sphi 0, %s45
    %s60 = sphi 0, %s46
    %s64 = sphi 0, %s64
    %s66 = sphi 0, %s64
    %s67 = sphi 0, %s66
    %s81 = sphi 0, %s67
    %s87 = sphi 0, %s89
    %s90 = sphi 0, %s87
    %s91 = sphi 0, %s90
    %s107 = sphi 0, %s91
  $region4: #{decoder_a_forward.6} parent=0 // loop_header_branch
    %12 = sbr.rel (%p10) target = $region8
  $region5: #{decoder_a_forward.6} parent=0 // loop_body
    %s14 = ssub.s32 %s9, 1
    %s15 = ssub.s32 %s9, 2
    %s16 = sadd.s32 %s9, 1
    %s17 = ssub.s32 %s9, %s16
    %p18 = scmp.eq.s32.totalorder %s17, 0
    %s20 = sadd.s32 %s19, 1
    %s21 = scalar_select %p18, %s19, %s20
    %p24 = pneg %p18
    %p25 = scmp.eq.s32.totalorder %s9, 1
    %p26 = por %p24, %p25
    %p27 = scmp.ne.s32.totalorder %s19, %s22
    %p28 = scmp.eq.s32.totalorder %s9, 0
    %p29 = por %p27, %p28
    %p30 = scmp.ne.s32.totalorder %s19, %s22
    %p31 = scmp.eq.s32.totalorder %s14, 1
    %p32 = por %p30, %p31
    %p33 = scmp.ne.s32.totalorder %s22, %s23
    %p34 = scmp.eq.s32.totalorder %s14, 0
    %p35 = por %p33, %p34
    %p36 = scmp.ne.s32.totalorder %s22, %s23
    %p37 = scmp.eq.s32.totalorder %s15, 1
    %p38 = por %p36, %p37
    %p40 = scmp.ne.s32.totalorder %s23, %s39
    %p41 = scmp.eq.s32.totalorder %s15, 0
    %p42 = por %p40, %p41
    %s44 = sadd.s32 %s43, 1
    %p47 = scmp.eq.s32.totalorder %s9, 1
    %p48 = scmp.ne.s32.totalorder %s43, %s45
    %p49 = scmp.eq.s32.totalorder %s9, 0
    %p50 = por %p48, %p49
    %p51 = scmp.ne.s32.totalorder %s43, %s45
    %p52 = scmp.eq.s32.totalorder %s14, 1
    %p53 = por %p51, %p52
    %p54 = scmp.ne.s32.totalorder %s45, %s46
    %p55 = scmp.eq.s32.totalorder %s14, 0
    %p56 = por %p54, %p55
    %p57 = scmp.ne.s32.totalorder %s45, %s46
    %p58 = scmp.eq.s32.totalorder %s15, 1
    %p59 = por %p57, %p58
    %p61 = scmp.ne.s32.totalorder %s46, %s60
    %p62 = scmp.eq.s32.totalorder %s15, 0
    %p63 = por %p61, %p62
    %s65 = sadd.s32 %s64, 1
    %p68 = scmp.eq.s32.totalorder %s9, 1
    %p69 = scmp.ne.s32.totalorder %s64, %s66
    %p70 = scmp.eq.s32.totalorder %s9, 0
    %p71 = por %p69, %p70
    %p72 = scmp.ne.s32.totalorder %s64, %s66
    %p73 = scmp.eq.s32.totalorder %s14, 1
    %p74 = por %p72, %p73
    %p75 = scmp.ne.s32.totalorder %s66, %s67
    %p76 = scmp.eq.s32.totalorder %s14, 0
    %p77 = por %p75, %p76
    %p78 = scmp.ne.s32.totalorder %s66, %s67
    %p79 = scmp.eq.s32.totalorder %s15, 1
    %p80 = por %p78, %p79
    %p82 = scmp.ne.s32.totalorder %s67, %s81
    %p83 = scmp.eq.s32.totalorder %s15, 0
    %p84 = por %p82, %p83
    %s85 = ssub.s32 %s9, %s16
    %p86 = scmp.eq.s32.totalorder %s85, 0
    %s88 = sadd.s32 %s87, 1
    %s89 = scalar_select %p86, %s87, %s88
    %p92 = pneg %p86
    %p93 = scmp.eq.s32.totalorder %s9, 1
    %p94 = por %p92, %p93
    %p95 = scmp.ne.s32.totalorder %s87, %s90
    %p96 = scmp.eq.s32.totalorder %s9, 0
    %p97 = por %p95, %p96
    %p98 = scmp.ne.s32.totalorder %s87, %s90
    %p99 = scmp.eq.s32.totalorder %s14, 1
    %p100 = por %p98, %p99
    %p101 = scmp.ne.s32.totalorder %s90, %s91
    %p102 = scmp.eq.s32.totalorder %s14, 0
    %p103 = por %p101, %p102
    %p104 = scmp.ne.s32.totalorder %s90, %s91
    %p105 = scmp.eq.s32.totalorder %s15, 1
    %p106 = por %p104, %p105
    %p108 = scmp.ne.s32.totalorder %s91, %s107
    %p109 = scmp.eq.s32.totalorder %s15, 0
    %p110 = por %p108, %p109
    %p111 = scmp.le.s32.totalorder 1, %s9
    %p112 = scmp.lt.s32.totalorder %s9, 3
    %p113 = pnand %p111, %p112
    %p114 = pneg %p113
    // Predicated region
    $region9: #{decoder_a_forward.6} parent=5 // pred_check
      _
    $region10: #{decoder_a_forward.6} parent=5 // pred_check_branch
      %116 = sbr.rel (%p113) target = $region12
    $region11: #{decoder_a_forward.6} parent=5 // pred_region
      %s117 = ssub.s32 %s9, 1
      // Predicated region
      $region13: #{decoder_a_forward.6} parent=11 // pred_check
        %p118 = pneg %p56
      $region14: #{decoder_a_forward.6} parent=11 // pred_check_branch
        %120 = sbr.rel (%p118) target = $region16
      $region15: #{decoder_a_forward.6} parent=11 // pred_region
        _
      $region16: #{decoder_a_forward.6} parent=11 // pred_fallthru
        _
      // Predicated region
      $region17: #{decoder_a_forward.6} parent=11 // pred_check
        %p121 = pneg %p77
      $region18: #{decoder_a_forward.6} parent=11 // pred_check_branch
        %123 = sbr.rel (%p121) target = $region20
      $region19: #{decoder_a_forward.6} parent=11 // pred_region
        _
      $region20: #{decoder_a_forward.6} parent=11 // pred_fallthru
        _
    $region12: #{decoder_a_forward.6} parent=5 // pred_fallthru
      _
    %p124 = scmp.lt.s32.totalorder %s9, 2
    // Predicated region
    $region21: #{decoder_a_forward.6} parent=5 // pred_check
      %p125 = pneg %p124
    $region22: #{decoder_a_forward.6} parent=5 // pred_check_branch
      %127 = sbr.rel (%p125) target = $region24
    $region23: #{decoder_a_forward.6} parent=5 // pred_region
      // Predicated region
      $region25: #{decoder_a_forward.6} parent=23 // pred_check
        %p128 = pneg %p29
      $region26: #{decoder_a_forward.6} parent=23 // pred_check_branch
        %130 = sbr.rel (%p128) target = $region28
      $region27: #{decoder_a_forward.6} parent=23 // pred_region
        %p131 = scmp.lt.s32.totalorder %s9, 1
        %s132 = scalar_select %p131, %s9, 1
        %s133 = smul.addr %s132, 36
        %s134 = smul.addr %s133, 4
        %s135 = scalar_lea.vmem %s0, %s134
      $region28: #{decoder_a_forward.6} parent=23 // pred_fallthru
        _
    $region24: #{decoder_a_forward.6} parent=5 // pred_fallthru
      _
    %p136 = scmp.le.s32.totalorder 1, %s9
    %p137 = scmp.lt.s32.totalorder %s9, 3
    %p138 = pnand %p136, %p137
    %p139 = pneg %p138
    // Predicated region
    $region29: #{decoder_a_forward.6} parent=5 // pred_check
      _
    $region30: #{decoder_a_forward.6} parent=5 // pred_check_branch
      %141 = sbr.rel (%p138) target = $region32
    $region31: #{decoder_a_forward.6} parent=5 // pred_region
      %s142 = ssub.s32 %s9, 1
      %p143 = scmp.lt.s32.totalorder %s14, 1
      %s144 = scalar_select %p143, %s14, 1
      %s145 = smul.addr %s144, 36
      %s146 = smul.addr %s145, 4
      %s147 = scalar_lea.vmem %s0, %s146
      %p148 = pneg %p35
      %p149 = pneg %p32
      %p150 = pneg %p56
      %p151 = pneg %p53
      %p152 = pneg %p77
      %p153 = pneg %p74
      %p154 = pneg %p103
      %p155 = pneg %p100
      %p156 = scmp.lt.s32.totalorder %s14, 1
      %s157 = scalar_select %p156, %s14, 1
      %s158 = smul.addr %s157, 15
      %s159 = smul.addr %s158, 4
      %s160 = scalar_lea.vmem %s3, %s159
      %p161 = scmp.lt.s32.totalorder %s14, 1
      %s162 = scalar_select %p161, %s14, 1
      %s163 = smul.addr %s162, 36
      %s164 = smul.addr %s163, 4
      %s165 = scalar_lea.vmem %s0, %s164
      %p166 = scmp.lt.s32.totalorder %s14, 1
      %s167 = scalar_select %p166, %s14, 1
      %s168 = smul.addr %s167, 15
      %s169 = smul.addr %s168, 4
      %s170 = scalar_lea.vmem %s3, %s169
      %v172 = vld [vmem:[%s165] sm:$0xff]
      %v173 = vld [vmem:[%s165 + $0x8] sm:$0xff]
      %v174 = vld [vmem:[%s165 + $0x10] sm:$0xf]
      %v175 = vld [vmem:[%s165 + $0x18] sm:$0xff]
      %v176 = vld [vmem:[%s165 + $0x20] sm:$0xff]
      %v177 = vld [vmem:[%s165 + $0x28] sm:$0xf]
      %v178 = vld [vmem:[%s165 + $0x30] sm:$0xff]
      %v179 = vld [vmem:[%s165 + $0x38] sm:$0xff]
      %v180 = vld [vmem:[%s165 + $0x40] sm:$0xf]
      %v181 = vld [vmem:[%s165 + $0x48] sm:$0xff]
      %v182 = vld [vmem:[%s165 + $0x50] sm:$0xff]
      %v183 = vld [vmem:[%s165 + $0x58] sm:$0xf]
      %v184 = vld [vmem:[%s165 + $0x60] sm:$0xff]
      %v185 = vld [vmem:[%s165 + $0x68] sm:$0xff]
      %v186 = vld [vmem:[%s165 + $0x70] sm:$0xf]
      %v187 = vld [vmem:[%s165 + $0x78] sm:$0xff]
      %v188 = vld [vmem:[%s165 + $0x80] sm:$0xff]
      %v189 = vld [vmem:[%s165 + $0x88] sm:$0xf]
      %v190 = vld [vmem:[%s1] sm:$0xf]
      %v191 = vld [vmem:[%s1 + $0x4] sm:$0xf]
      %v192 = vld [vmem:[%s1 + $0x8] sm:$0xf]
      %v193 = vld [vmem:[%s1 + $0xc] sm:$0xf]
      %s194 = scalar_lea.vmem %s1, 16
      %v195 = vld [vmem:[%s194] sm:$0xf]
      %v196 = vld [vmem:[%s194 + $0x4] sm:$0xf]
      %v197 = vld [vmem:[%s194 + $0x8] sm:$0xf]
      %v198 = vld [vmem:[%s194 + $0xc] sm:$0xf]
      %v203 = vunpack.c.l.b16 %v195
      %v204 = vunpack.c.l.b16 %v196
      %v205 = vunpack.c.l.b16 %v197
      %v206 = vunpack.c.l.b16 %v198
      %v207 = vpack.c.b16 %v204, %v203
      %v208 = vpack.c.b16 %v206, %v205
      %v227 = vunpack.c.l.b16 %v172
      %v228 = vunpack.c.h.b16 %v172
      %v229 = vunpack.c.l.b16 %v173
      %v230 = vunpack.c.h.b16 %v173
      %v231 = vunpack.c.l.b16 %v174
      %v232 = vunpack.c.l.b16 %v175
      %v233 = vunpack.c.h.b16 %v175
      %v234 = vunpack.c.l.b16 %v176
      %v235 = vunpack.c.h.b16 %v176
      %v236 = vunpack.c.l.b16 %v177
      %v237 = vunpack.c.l.b16 %v178
      %v238 = vunpack.c.h.b16 %v178
      %v239 = vunpack.c.l.b16 %v179
      %v240 = vunpack.c.h.b16 %v179
      %v241 = vunpack.c.l.b16 %v180
      %v242 = vunpack.c.l.b16 %v181
      %v243 = vunpack.c.h.b16 %v181
      %v244 = vunpack.c.l.b16 %v182
      %v245 = vunpack.c.h.b16 %v182
      %v246 = vunpack.c.l.b16 %v183
      %v247 = vunpack.c.l.b16 %v184
      %v248 = vunpack.c.h.b16 %v184
      %v249 = vunpack.c.l.b16 %v185
      %v250 = vunpack.c.h.b16 %v185
      %v251 = vunpack.c.l.b16 %v186
      %v252 = vunpack.c.l.b16 %v187
      %v253 = vunpack.c.h.b16 %v187
      %v254 = vunpack.c.l.b16 %v188
      %v255 = vunpack.c.h.b16 %v188
      %v256 = vunpack.c.l.b16 %v189
      %v257 = vpack.c.b16 %v232, %v227
      %v258 = vpack.c.b16 %v233, %v228
      %v259 = vpack.c.b16 %v234, %v229
      %v260 = vpack.c.b16 %v235, %v230
      %v261 = vpack.c.b16 %v236, %v231
      %v262 = vpack.c.b16 %v242, %v237
      %v263 = vpack.c.b16 %v243, %v238
      %v264 = vpack.c.b16 %v244, %v239
      %v265 = vpack.c.b16 %v245, %v240
      %v266 = vpack.c.b16 %v246, %v241
      %v267 = vpack.c.b16 %v252, %v247
      %v268 = vpack.c.b16 %v253, %v248
      %v269 = vpack.c.b16 %v254, %v249
      %v270 = vpack.c.b16 %v255, %v250
      %v271 = vpack.c.b16 %v256, %v251
      %272 = vrot.lane.b32.xlu0 %v257, 110
      %v273 = vpop.permute.xlu0 %272
      %274 = vrot.lane.b32.xlu0 %v258, 110
      %v275 = vpop.permute.xlu0 %274
      %276 = vrot.lane.b32.xlu0 %v259, 110
      %v277 = vpop.permute.xlu0 %276
      %278 = vrot.lane.b32.xlu0 %v260, 110
      %v279 = vpop.permute.xlu0 %278
      %280 = vrot.lane.b32.xlu0 %v261, 110
      %v281 = vpop.permute.xlu0 %280
      %282 = vrot.lane.b32.xlu0 %v262, 110
      %v283 = vpop.permute.xlu0 %282
      %284 = vrot.lane.b32.xlu0 %v263, 110
      %v285 = vpop.permute.xlu0 %284
      %286 = vrot.lane.b32.xlu0 %v264, 110
      %v287 = vpop.permute.xlu0 %286
      %288 = vrot.lane.b32.xlu0 %v265, 110
      %v289 = vpop.permute.xlu0 %288
      %290 = vrot.lane.b32.xlu0 %v266, 110
      %v291 = vpop.permute.xlu0 %290
      %292 = vrot.lane.b32.xlu0 %v267, 110
      %v293 = vpop.permute.xlu0 %292
      %294 = vrot.lane.b32.xlu0 %v268, 110
      %v295 = vpop.permute.xlu0 %294
      %296 = vrot.lane.b32.xlu0 %v269, 110
      %v297 = vpop.permute.xlu0 %296
      %298 = vrot.lane.b32.xlu0 %v270, 110
      %v299 = vpop.permute.xlu0 %298
      %300 = vrot.lane.b32.xlu0 %v271, 110
      %v301 = vpop.permute.xlu0 %300
      %vm302 = vcmask 900096
      %v303 = vsel %vm302, %v273, %v275
      %v304 = vsel %vm302, %v275, %v277
      %v305 = vsel %vm302, %v277, %v279
      %v306 = vsel %vm302, %v279, %v281
      %v307 = vsel %vm302, %v283, %v285
      %v308 = vsel %vm302, %v285, %v287
      %v309 = vsel %vm302, %v287, %v289
      %v310 = vsel %vm302, %v289, %v291
      %v311 = vsel %vm302, %v293, %v295
      %v312 = vsel %vm302, %v295, %v297
      %v313 = vsel %vm302, %v297, %v299
      %v314 = vsel %vm302, %v299, %v301
      %vm330 = vcmask 392192
      %v332 = vsel %vm330, %v207, 0
      %v335 = vsel %vm330, %v208, 0
      %337 = vmatpush.bf16.msra.mxu0 0
      %338 = vmatpush.bf16.msra.mxu0 0
      %339 = vmatpush.bf16.msra.mxu0 0
      %340 = vmatpush.bf16.msra.mxu0 0
      %341 = vmatpush.bf16.msra.mxu0 0
      %342 = vmatpush.bf16.msra.mxu0 %v311
      %343 = vmatpush.bf16.msra.mxu0 %v307
      %344 = vmatpush.bf16.msra.mxu0 %v303
      %345 = vmatmul.bf16.gmra.mxu0 %v332
      %v346 = vpop.f32.mrf.mxu0
      %v347 = vadd.f32 0.0, %v346
      %v348 = vpop.f32.mrf.mxu0
      %v349 = vadd.f32 0.0, %v348
      %350 = vmatmul.bf16.gmra.mxu0 %v335
      %v351 = vpop.f32.mrf.mxu0
      %v352 = vadd.f32 0.0, %v351
      %v353 = vpop.f32.mrf.mxu0
      %354 = vdwg.mxu0
      %355 = vmatpush.bf16.msra.mxu0 0
      %356 = vmatpush.bf16.msra.mxu0 0
      %357 = vmatpush.bf16.msra.mxu0 0
      %358 = vmatpush.bf16.msra.mxu0 0
      %359 = vmatpush.bf16.msra.mxu0 0
      %360 = vmatpush.bf16.msra.mxu0 %v312
      %361 = vmatpush.bf16.msra.mxu0 %v308
      %362 = vmatpush.bf16.msra.mxu0 %v304
      %363 = vmatmul.bf16.gmra.mxu0 %v332
      %v364 = vpop.f32.mrf.mxu0
      %v365 = vadd.f32 0.0, %v364
      %v366 = vpop.f32.mrf.mxu0
      %v367 = vadd.f32 0.0, %v366
      %368 = vmatmul.bf16.gmra.mxu0 %v335
      %v369 = vpop.f32.mrf.mxu0
      %v370 = vadd.f32 0.0, %v369
      %v371 = vpop.f32.mrf.mxu0
      %372 = vdwg.mxu0
      %373 = vmatpush.bf16.msra.mxu0 0
      %374 = vmatpush.bf16.msra.mxu0 0
      %375 = vmatpush.bf16.msra.mxu0 0
      %376 = vmatpush.bf16.msra.mxu0 0
      %377 = vmatpush.bf16.msra.mxu0 0
      %378 = vmatpush.bf16.msra.mxu0 %v313
      %379 = vmatpush.bf16.msra.mxu0 %v309
      %380 = vmatpush.bf16.msra.mxu0 %v305
      %381 = vmatmul.bf16.gmra.mxu0 %v332
      %v382 = vpop.f32.mrf.mxu0
      %v383 = vadd.f32 0.0, %v382
      %v384 = vpop.f32.mrf.mxu0
      %v385 = vadd.f32 0.0, %v384
      %386 = vmatmul.bf16.gmra.mxu0 %v335
      %v387 = vpop.f32.mrf.mxu0
      %v388 = vadd.f32 0.0, %v387
      %v389 = vpop.f32.mrf.mxu0
      %390 = vdwg.mxu0
      %391 = vmatpush.bf16.msra.mxu0 0
      %392 = vmatpush.bf16.msra.mxu0 0
      %393 = vmatpush.bf16.msra.mxu0 0
      %394 = vmatpush.bf16.msra.mxu0 0
      %395 = vmatpush.bf16.msra.mxu0 0
      %396 = vmatpush.bf16.msra.mxu0 %v314
      %397 = vmatpush.bf16.msra.mxu0 %v310
      %398 = vmatpush.bf16.msra.mxu0 %v306
      %399 = vmatmul.bf16.gmra.mxu0 %v332
      %v400 = vpop.f32.mrf.mxu0
      %v401 = vadd.f32 0.0, %v400
      %v402 = vpop.f32.mrf.mxu0
      %v403 = vadd.f32 0.0, %v402
      %404 = vmatmul.bf16.gmra.mxu0 %v335
      %v405 = vpop.f32.mrf.mxu0
      %v406 = vadd.f32 0.0, %v405
      %v407 = vpop.f32.mrf.mxu0
      %408 = vdwg.mxu0
      %409 = vmatpush.bf16.msra.mxu0 0
      %410 = vmatpush.bf16.msra.mxu0 0
      %411 = vmatpush.bf16.msra.mxu0 0
      %412 = vmatpush.bf16.msra.mxu0 0
      %413 = vmatpush.bf16.msra.mxu0 0
      %414 = vmatpush.bf16.msra.mxu0 %v301
      %415 = vmatpush.bf16.msra.mxu0 %v291
      %416 = vmatpush.bf16.msra.mxu0 %v281
      %417 = vmatmul.bf16.gmra.mxu0 %v332
      %v418 = vpop.f32.mrf.mxu0
      %v419 = vadd.f32 0.0, %v418
      %v420 = vpop.f32.mrf.mxu0
      %v421 = vadd.f32 0.0, %v420
      %422 = vmatmul.bf16.gmra.mxu0 %v335
      %v423 = vpop.f32.mrf.mxu0
      %v424 = vadd.f32 0.0, %v423
      %v425 = vpop.f32.mrf.mxu0
      %426 = vdwg.mxu0
      %v431 = vunpack.c.l.b16 %v190
      %v432 = vunpack.c.l.b16 %v191
      %v433 = vunpack.c.l.b16 %v192
      %v434 = vunpack.c.l.b16 %v193
      %v435 = vpack.c.b16 %v432, %v431
      %v436 = vpack.c.b16 %v434, %v433
      %437 = vrot.lane.b32.xlu0 %v257, 111
      %v438 = vpop.permute.xlu0 %437
      %439 = vrot.lane.b32.xlu0 %v258, 111
      %v440 = vpop.permute.xlu0 %439
      %441 = vrot.lane.b32.xlu0 %v259, 111
      %v442 = vpop.permute.xlu0 %441
      %443 = vrot.lane.b32.xlu0 %v260, 111
      %v444 = vpop.permute.xlu0 %443
      %445 = vrot.lane.b32.xlu0 %v261, 111
      %v446 = vpop.permute.xlu0 %445
      %447 = vrot.lane.b32.xlu0 %v262, 111
      %v448 = vpop.permute.xlu0 %447
      %449 = vrot.lane.b32.xlu0 %v263, 111
      %v450 = vpop.permute.xlu0 %449
      %451 = vrot.lane.b32.xlu0 %v264, 111
      %v452 = vpop.permute.xlu0 %451
      %453 = vrot.lane.b32.xlu0 %v265, 111
      %v454 = vpop.permute.xlu0 %453
      %455 = vrot.lane.b32.xlu0 %v266, 111
      %v456 = vpop.permute.xlu0 %455
      %457 = vrot.lane.b32.xlu0 %v267, 111
      %v458 = vpop.permute.xlu0 %457
      %459 = vrot.lane.b32.xlu0 %v268, 111
      %v460 = vpop.permute.xlu0 %459
      %461 = vrot.lane.b32.xlu0 %v269, 111
      %v462 = vpop.permute.xlu0 %461
      %463 = vrot.lane.b32.xlu0 %v270, 111
      %v464 = vpop.permute.xlu0 %463
      %465 = vrot.lane.b32.xlu0 %v271, 111
      %v466 = vpop.permute.xlu0 %465
      %vm467 = vcmask 908288
      %v468 = vsel %vm467, %v438, %v440
      %v469 = vsel %vm467, %v440, %v442
      %v470 = vsel %vm467, %v442, %v444
      %v471 = vsel %vm467, %v444, %v446
      %v472 = vsel %vm467, %v448, %v450
      %v473 = vsel %vm467, %v450, %v452
      %v474 = vsel %vm467, %v452, %v454
      %v475 = vsel %vm467, %v454, %v456
      %v476 = vsel %vm467, %v458, %v460
      %v477 = vsel %vm467, %v460, %v462
      %v478 = vsel %vm467, %v462, %v464
      %v479 = vsel %vm467, %v464, %v466
      %v496 = vsel %vm330, %v435, 0
      %v499 = vsel %vm330, %v436, 0
      %501 = vmatpush.bf16.msra.mxu0 0
      %502 = vmatpush.bf16.msra.mxu0 0
      %503 = vmatpush.bf16.msra.mxu0 0
      %504 = vmatpush.bf16.msra.mxu0 0
      %505 = vmatpush.bf16.msra.mxu0 0
      %506 = vmatpush.bf16.msra.mxu0 %v476
      %507 = vmatpush.bf16.msra.mxu0 %v472
      %508 = vmatpush.bf16.msra.mxu0 %v468
      %509 = vmatmul.bf16.gmra.mxu0 %v496
      %v510 = vpop.f32.mrf.mxu0
      %v511 = vadd.f32 %v347, %v510
      %v512 = vpop.f32.mrf.mxu0
      %v513 = vadd.f32 %v349, %v512
      %514 = vmatmul.bf16.gmra.mxu0 %v499
      %v515 = vpop.f32.mrf.mxu0
      %v516 = vadd.f32 %v352, %v515
      %v517 = vpop.f32.mrf.mxu0
      %518 = vdwg.mxu0
      %519 = vmatpush.bf16.msra.mxu0 0
      %520 = vmatpush.bf16.msra.mxu0 0
      %521 = vmatpush.bf16.msra.mxu0 0
      %522 = vmatpush.bf16.msra.mxu0 0
      %523 = vmatpush.bf16.msra.mxu0 0
      %524 = vmatpush.bf16.msra.mxu0 %v477
      %525 = vmatpush.bf16.msra.mxu0 %v473
      %526 = vmatpush.bf16.msra.mxu0 %v469
      %527 = vmatmul.bf16.gmra.mxu0 %v496
      %v528 = vpop.f32.mrf.mxu0
      %v529 = vadd.f32 %v365, %v528
      %v530 = vpop.f32.mrf.mxu0
      %v531 = vadd.f32 %v367, %v530
      %532 = vmatmul.bf16.gmra.mxu0 %v499
      %v533 = vpop.f32.mrf.mxu0
      %v534 = vadd.f32 %v370, %v533
      %v535 = vpop.f32.mrf.mxu0
      %536 = vdwg.mxu0
      %537 = vmatpush.bf16.msra.mxu0 0
      %538 = vmatpush.bf16.msra.mxu0 0
      %539 = vmatpush.bf16.msra.mxu0 0
      %540 = vmatpush.bf16.msra.mxu0 0
      %541 = vmatpush.bf16.msra.mxu0 0
      %542 = vmatpush.bf16.msra.mxu0 %v478
      %543 = vmatpush.bf16.msra.mxu0 %v474
      %544 = vmatpush.bf16.msra.mxu0 %v470
      %545 = vmatmul.bf16.gmra.mxu0 %v496
      %v546 = vpop.f32.mrf.mxu0
      %v547 = vadd.f32 %v383, %v546
      %v548 = vpop.f32.mrf.mxu0
      %v549 = vadd.f32 %v385, %v548
      %550 = vmatmul.bf16.gmra.mxu0 %v499
      %v551 = vpop.f32.mrf.mxu0
      %v552 = vadd.f32 %v388, %v551
      %v553 = vpop.f32.mrf.mxu0
      %554 = vdwg.mxu0
      %555 = vmatpush.bf16.msra.mxu0 0
      %556 = vmatpush.bf16.msra.mxu0 0
      %557 = vmatpush.bf16.msra.mxu0 0
      %558 = vmatpush.bf16.msra.mxu0 0
      %559 = vmatpush.bf16.msra.mxu0 0
      %560 = vmatpush.bf16.msra.mxu0 %v479
      %561 = vmatpush.bf16.msra.mxu0 %v475
      %562 = vmatpush.bf16.msra.mxu0 %v471
      %563 = vmatmul.bf16.gmra.mxu0 %v496
      %v564 = vpop.f32.mrf.mxu0
      %v565 = vadd.f32 %v401, %v564
      %v566 = vpop.f32.mrf.mxu0
      %v567 = vadd.f32 %v403, %v566
      %568 = vmatmul.bf16.gmra.mxu0 %v499
      %v569 = vpop.f32.mrf.mxu0
      %v570 = vadd.f32 %v406, %v569
      %v571 = vpop.f32.mrf.mxu0
      %572 = vdwg.mxu0
      %573 = vmatpush.bf16.msra.mxu0 0
      %574 = vmatpush.bf16.msra.mxu0 0
      %575 = vmatpush.bf16.msra.mxu0 0
      %576 = vmatpush.bf16.msra.mxu0 0
      %577 = vmatpush.bf16.msra.mxu0 0
      %578 = vmatpush.bf16.msra.mxu0 %v466
      %579 = vmatpush.bf16.msra.mxu0 %v456
      %580 = vmatpush.bf16.msra.mxu0 %v446
      %581 = vmatmul.bf16.gmra.mxu0 %v496
      %v582 = vpop.f32.mrf.mxu0
      %v583 = vadd.f32 %v419, %v582
      %v584 = vpop.f32.mrf.mxu0
      %v585 = vadd.f32 %v421, %v584
      %586 = vmatmul.bf16.gmra.mxu0 %v499
      %v587 = vpop.f32.mrf.mxu0
      %v588 = vadd.f32 %v424, %v587
      %v589 = vpop.f32.mrf.mxu0
      %590 = vdwg.mxu0
      %s591 = scalar_lea.vmem %s1, 32
      %v592 = vld [vmem:[%s591] sm:$0xf]
      %v593 = vld [vmem:[%s591 + $0x4] sm:$0xf]
      %v594 = vld [vmem:[%s591 + $0x8] sm:$0xf]
      %v595 = vld [vmem:[%s591 + $0xc] sm:$0xf]
      %v600 = vunpack.c.l.b16 %v592
      %v601 = vunpack.c.l.b16 %v593
      %v602 = vunpack.c.l.b16 %v594
      %v603 = vunpack.c.l.b16 %v595
      %v604 = vpack.c.b16 %v601, %v600
      %v605 = vpack.c.b16 %v603, %v602
      %606 = vrot.lane.b32.xlu0 %v257, 109
      %v607 = vpop.permute.xlu0 %606
      %608 = vrot.lane.b32.xlu0 %v258, 109
      %v609 = vpop.permute.xlu0 %608
      %610 = vrot.lane.b32.xlu0 %v259, 109
      %v611 = vpop.permute.xlu0 %610
      %612 = vrot.lane.b32.xlu0 %v260, 109
      %v613 = vpop.permute.xlu0 %612
      %614 = vrot.lane.b32.xlu0 %v261, 109
      %v615 = vpop.permute.xlu0 %614
      %616 = vrot.lane.b32.xlu0 %v262, 109
      %v617 = vpop.permute.xlu0 %616
      %618 = vrot.lane.b32.xlu0 %v263, 109
      %v619 = vpop.permute.xlu0 %618
      %620 = vrot.lane.b32.xlu0 %v264, 109
      %v621 = vpop.permute.xlu0 %620
      %622 = vrot.lane.b32.xlu0 %v265, 109
      %v623 = vpop.permute.xlu0 %622
      %624 = vrot.lane.b32.xlu0 %v266, 109
      %v625 = vpop.permute.xlu0 %624
      %626 = vrot.lane.b32.xlu0 %v267, 109
      %v627 = vpop.permute.xlu0 %626
      %628 = vrot.lane.b32.xlu0 %v268, 109
      %v629 = vpop.permute.xlu0 %628
      %630 = vrot.lane.b32.xlu0 %v269, 109
      %v631 = vpop.permute.xlu0 %630
      %632 = vrot.lane.b32.xlu0 %v270, 109
      %v633 = vpop.permute.xlu0 %632
      %634 = vrot.lane.b32.xlu0 %v271, 109
      %v635 = vpop.permute.xlu0 %634
      %vm636 = vcmask 891904
      %v637 = vsel %vm636, %v607, %v609
      %v638 = vsel %vm636, %v609, %v611
      %v639 = vsel %vm636, %v611, %v613
      %v640 = vsel %vm636, %v613, %v615
      %v641 = vsel %vm636, %v617, %v619
      %v642 = vsel %vm636, %v619, %v621
      %v643 = vsel %vm636, %v621, %v623
      %v644 = vsel %vm636, %v623, %v625
      %v645 = vsel %vm636, %v627, %v629
      %v646 = vsel %vm636, %v629, %v631
      %v647 = vsel %vm636, %v631, %v633
      %v648 = vsel %vm636, %v633, %v635
      %v665 = vsel %vm330, %v604, 0
      %v668 = vsel %vm330, %v605, 0
      %670 = vmatpush.bf16.msra.mxu0 0
      %671 = vmatpush.bf16.msra.mxu0 0
      %672 = vmatpush.bf16.msra.mxu0 0
      %673 = vmatpush.bf16.msra.mxu0 0
      %674 = vmatpush.bf16.msra.mxu0 0
      %675 = vmatpush.bf16.msra.mxu0 %v645
      %676 = vmatpush.bf16.msra.mxu0 %v641
      %677 = vmatpush.bf16.msra.mxu0 %v637
      %678 = vmatmul.bf16.gmra.mxu0 %v665
      %v679 = vpop.f32.mrf.mxu0
      %v680 = vadd.f32 0.0, %v679
      %v681 = vpop.f32.mrf.mxu0
      %v682 = vadd.f32 0.0, %v681
      %683 = vmatmul.bf16.gmra.mxu0 %v668
      %v684 = vpop.f32.mrf.mxu0
      %v685 = vadd.f32 0.0, %v684
      %v686 = vpop.f32.mrf.mxu0
      %687 = vdwg.mxu0
      %688 = vmatpush.bf16.msra.mxu0 0
      %689 = vmatpush.bf16.msra.mxu0 0
      %690 = vmatpush.bf16.msra.mxu0 0
      %691 = vmatpush.bf16.msra.mxu0 0
      %692 = vmatpush.bf16.msra.mxu0 0
      %693 = vmatpush.bf16.msra.mxu0 %v646
      %694 = vmatpush.bf16.msra.mxu0 %v642
      %695 = vmatpush.bf16.msra.mxu0 %v638
      %696 = vmatmul.bf16.gmra.mxu0 %v665
      %v697 = vpop.f32.mrf.mxu0
      %v698 = vadd.f32 0.0, %v697
      %v699 = vpop.f32.mrf.mxu0
      %v700 = vadd.f32 0.0, %v699
      %701 = vmatmul.bf16.gmra.mxu0 %v668
      %v702 = vpop.f32.mrf.mxu0
      %v703 = vadd.f32 0.0, %v702
      %v704 = vpop.f32.mrf.mxu0
      %705 = vdwg.mxu0
      %706 = vmatpush.bf16.msra.mxu0 0
      %707 = vmatpush.bf16.msra.mxu0 0
      %708 = vmatpush.bf16.msra.mxu0 0
      %709 = vmatpush.bf16.msra.mxu0 0
      %710 = vmatpush.bf16.msra.mxu0 0
      %711 = vmatpush.bf16.msra.mxu0 %v647
      %712 = vmatpush.bf16.msra.mxu0 %v643
      %713 = vmatpush.bf16.msra.mxu0 %v639
      %714 = vmatmul.bf16.gmra.mxu0 %v665
      %v715 = vpop.f32.mrf.mxu0
      %v716 = vadd.f32 0.0, %v715
      %v717 = vpop.f32.mrf.mxu0
      %v718 = vadd.f32 0.0, %v717
      %719 = vmatmul.bf16.gmra.mxu0 %v668
      %v720 = vpop.f32.mrf.mxu0
      %v721 = vadd.f32 0.0, %v720
      %v722 = vpop.f32.mrf.mxu0
      %723 = vdwg.mxu0
      %724 = vmatpush.bf16.msra.mxu0 0
      %725 = vmatpush.bf16.msra.mxu0 0
      %726 = vmatpush.bf16.msra.mxu0 0
      %727 = vmatpush.bf16.msra.mxu0 0
      %728 = vmatpush.bf16.msra.mxu0 0
      %729 = vmatpush.bf16.msra.mxu0 %v648
      %730 = vmatpush.bf16.msra.mxu0 %v644
      %731 = vmatpush.bf16.msra.mxu0 %v640
      %732 = vmatmul.bf16.gmra.mxu0 %v665
      %v733 = vpop.f32.mrf.mxu0
      %v734 = vadd.f32 0.0, %v733
      %v735 = vpop.f32.mrf.mxu0
      %v736 = vadd.f32 0.0, %v735
      %737 = vmatmul.bf16.gmra.mxu0 %v668
      %v738 = vpop.f32.mrf.mxu0
      %v739 = vadd.f32 0.0, %v738
      %v740 = vpop.f32.mrf.mxu0
      %741 = vdwg.mxu0
      %742 = vmatpush.bf16.msra.mxu0 0
      %743 = vmatpush.bf16.msra.mxu0 0
      %744 = vmatpush.bf16.msra.mxu0 0
      %745 = vmatpush.bf16.msra.mxu0 0
      %746 = vmatpush.bf16.msra.mxu0 0
      %747 = vmatpush.bf16.msra.mxu0 %v635
      %748 = vmatpush.bf16.msra.mxu0 %v625
      %749 = vmatpush.bf16.msra.mxu0 %v615
      %750 = vmatmul.bf16.gmra.mxu0 %v665
      %v751 = vpop.f32.mrf.mxu0
      %v752 = vadd.f32 0.0, %v751
      %v753 = vpop.f32.mrf.mxu0
      %v754 = vadd.f32 0.0, %v753
      %755 = vmatmul.bf16.gmra.mxu0 %v668
      %v756 = vpop.f32.mrf.mxu0
      %v757 = vadd.f32 0.0, %v756
      %v758 = vpop.f32.mrf.mxu0
      %759 = vdwg.mxu0
      %v760 = vadd.f32 %v511, %v680
      %v761 = vadd.f32 %v529, %v698
      %v762 = vadd.f32 %v547, %v716
      %v763 = vadd.f32 %v565, %v734
      %v764 = vadd.f32 %v583, %v752
      %v765 = vadd.f32 %v513, %v682
      %v766 = vadd.f32 %v531, %v700
      %v767 = vadd.f32 %v549, %v718
      %v768 = vadd.f32 %v567, %v736
      %v769 = vadd.f32 %v585, %v754
      %v770 = vadd.f32 %v516, %v685
      %v771 = vadd.f32 %v534, %v703
      %v772 = vadd.f32 %v552, %v721
      %v773 = vadd.f32 %v570, %v739
      %v774 = vadd.f32 %v588, %v757
      %s775 = scalar_lea.vmem %s1, 48
      %v776 = vld [vmem:[%s775] sm:$0xf]
      %v777 = vld [vmem:[%s775 + $0x4] sm:$0xf]
      %v778 = vld [vmem:[%s775 + $0x8] sm:$0xf]
      %v779 = vld [vmem:[%s775 + $0xc] sm:$0xf]
      %v784 = vunpack.c.l.b16 %v776
      %v785 = vunpack.c.l.b16 %v777
      %v786 = vunpack.c.l.b16 %v778
      %v787 = vunpack.c.l.b16 %v779
      %v788 = vpack.c.b16 %v785, %v784
      %v789 = vpack.c.b16 %v787, %v786
      %790 = vrot.lane.b32.xlu0 %v257, 93
      %v791 = vpop.permute.xlu0 %790
      %792 = vrot.lane.b32.xlu0 %v258, 93
      %v793 = vpop.permute.xlu0 %792
      %794 = vrot.lane.b32.xlu0 %v259, 93
      %v795 = vpop.permute.xlu0 %794
      %796 = vrot.lane.b32.xlu0 %v260, 93
      %v797 = vpop.permute.xlu0 %796
      %798 = vrot.lane.b32.xlu0 %v261, 93
      %v799 = vpop.permute.xlu0 %798
      %800 = vrot.lane.b32.xlu0 %v262, 93
      %v801 = vpop.permute.xlu0 %800
      %802 = vrot.lane.b32.xlu0 %v263, 93
      %v803 = vpop.permute.xlu0 %802
      %804 = vrot.lane.b32.xlu0 %v264, 93
      %v805 = vpop.permute.xlu0 %804
      %806 = vrot.lane.b32.xlu0 %v265, 93
      %v807 = vpop.permute.xlu0 %806
      %808 = vrot.lane.b32.xlu0 %v266, 93
      %v809 = vpop.permute.xlu0 %808
      %810 = vrot.lane.b32.xlu0 %v267, 93
      %v811 = vpop.permute.xlu0 %810
      %812 = vrot.lane.b32.xlu0 %v268, 93
      %v813 = vpop.permute.xlu0 %812
      %814 = vrot.lane.b32.xlu0 %v269, 93
      %v815 = vpop.permute.xlu0 %814
      %816 = vrot.lane.b32.xlu0 %v270, 93
      %v817 = vpop.permute.xlu0 %816
      %818 = vrot.lane.b32.xlu0 %v271, 93
      %v819 = vpop.permute.xlu0 %818
      %vm820 = vcmask 760832
      %v821 = vsel %vm820, %v791, %v793
      %v822 = vsel %vm820, %v793, %v795
      %v823 = vsel %vm820, %v795, %v797
      %v824 = vsel %vm820, %v797, %v799
      %v825 = vsel %vm820, %v801, %v803
      %v826 = vsel %vm820, %v803, %v805
      %v827 = vsel %vm820, %v805, %v807
      %v828 = vsel %vm820, %v807, %v809
      %v829 = vsel %vm820, %v811, %v813
      %v830 = vsel %vm820, %v813, %v815
      %v831 = vsel %vm820, %v815, %v817
      %v832 = vsel %vm820, %v817, %v819
      %v849 = vsel %vm330, %v788, 0
      %v852 = vsel %vm330, %v789, 0
      %854 = vmatpush.bf16.msra.mxu0 0
      %855 = vmatpush.bf16.msra.mxu0 0
      %856 = vmatpush.bf16.msra.mxu0 0
      %857 = vmatpush.bf16.msra.mxu0 0
      %858 = vmatpush.bf16.msra.mxu0 0
      %859 = vmatpush.bf16.msra.mxu0 %v829
      %860 = vmatpush.bf16.msra.mxu0 %v825
      %861 = vmatpush.bf16.msra.mxu0 %v821
      %862 = vmatmul.bf16.gmra.mxu0 %v849
      %v863 = vpop.f32.mrf.mxu0
      %v864 = vadd.f32 0.0, %v863
      %v865 = vpop.f32.mrf.mxu0
      %v866 = vadd.f32 0.0, %v865
      %867 = vmatmul.bf16.gmra.mxu0 %v852
      %v868 = vpop.f32.mrf.mxu0
      %v869 = vadd.f32 0.0, %v868
      %v870 = vpop.f32.mrf.mxu0
      %871 = vdwg.mxu0
      %872 = vmatpush.bf16.msra.mxu0 0
      %873 = vmatpush.bf16.msra.mxu0 0
      %874 = vmatpush.bf16.msra.mxu0 0
      %875 = vmatpush.bf16.msra.mxu0 0
      %876 = vmatpush.bf16.msra.mxu0 0
      %877 = vmatpush.bf16.msra.mxu0 %v830
      %878 = vmatpush.bf16.msra.mxu0 %v826
      %879 = vmatpush.bf16.msra.mxu0 %v822
      %880 = vmatmul.bf16.gmra.mxu0 %v849
      %v881 = vpop.f32.mrf.mxu0
      %v882 = vadd.f32 0.0, %v881
      %v883 = vpop.f32.mrf.mxu0
      %v884 = vadd.f32 0.0, %v883
      %885 = vmatmul.bf16.gmra.mxu0 %v852
      %v886 = vpop.f32.mrf.mxu0
      %v887 = vadd.f32 0.0, %v886
      %v888 = vpop.f32.mrf.mxu0
      %889 = vdwg.mxu0
      %890 = vmatpush.bf16.msra.mxu0 0
      %891 = vmatpush.bf16.msra.mxu0 0
      %892 = vmatpush.bf16.msra.mxu0 0
      %893 = vmatpush.bf16.msra.mxu0 0
      %894 = vmatpush.bf16.msra.mxu0 0
      %895 = vmatpush.bf16.msra.mxu0 %v831
      %896 = vmatpush.bf16.msra.mxu0 %v827
      %897 = vmatpush.bf16.msra.mxu0 %v823
      %898 = vmatmul.bf16.gmra.mxu0 %v849
      %v899 = vpop.f32.mrf.mxu0
      %v900 = vadd.f32 0.0, %v899
      %v901 = vpop.f32.mrf.mxu0
      %v902 = vadd.f32 0.0, %v901
      %903 = vmatmul.bf16.gmra.mxu0 %v852
      %v904 = vpop.f32.mrf.mxu0
      %v905 = vadd.f32 0.0, %v904
      %v906 = vpop.f32.mrf.mxu0
      %907 = vdwg.mxu0
      %908 = vmatpush.bf16.msra.mxu0 0
      %909 = vmatpush.bf16.msra.mxu0 0
      %910 = vmatpush.bf16.msra.mxu0 0
      %911 = vmatpush.bf16.msra.mxu0 0
      %912 = vmatpush.bf16.msra.mxu0 0
      %913 = vmatpush.bf16.msra.mxu0 %v832
      %914 = vmatpush.bf16.msra.mxu0 %v828
      %915 = vmatpush.bf16.msra.mxu0 %v824
      %916 = vmatmul.bf16.gmra.mxu0 %v849
      %v917 = vpop.f32.mrf.mxu0
      %v918 = vadd.f32 0.0, %v917
      %v919 = vpop.f32.mrf.mxu0
      %v920 = vadd.f32 0.0, %v919
      %921 = vmatmul.bf16.gmra.mxu0 %v852
      %v922 = vpop.f32.mrf.mxu0
      %v923 = vadd.f32 0.0, %v922
      %v924 = vpop.f32.mrf.mxu0
      %925 = vdwg.mxu0
      %926 = vmatpush.bf16.msra.mxu0 0
      %927 = vmatpush.bf16.msra.mxu0 0
      %928 = vmatpush.bf16.msra.mxu0 0
      %929 = vmatpush.bf16.msra.mxu0 0
      %930 = vmatpush.bf16.msra.mxu0 0
      %931 = vmatpush.bf16.msra.mxu0 %v819
      %932 = vmatpush.bf16.msra.mxu0 %v809
      %933 = vmatpush.bf16.msra.mxu0 %v799
      %934 = vmatmul.bf16.gmra.mxu0 %v849
      %v935 = vpop.f32.mrf.mxu0
      %v936 = vadd.f32 0.0, %v935
      %v937 = vpop.f32.mrf.mxu0
      %v938 = vadd.f32 0.0, %v937
      %939 = vmatmul.bf16.gmra.mxu0 %v852
      %v940 = vpop.f32.mrf.mxu0
      %v941 = vadd.f32 0.0, %v940
      %v942 = vpop.f32.mrf.mxu0
      %943 = vdwg.mxu0
      %v944 = vadd.f32 %v760, %v864
      %v945 = vadd.f32 %v761, %v882
      %v946 = vadd.f32 %v762, %v900
      %v947 = vadd.f32 %v763, %v918
      %v948 = vadd.f32 %v764, %v936
      %v949 = vadd.f32 %v765, %v866
      %v950 = vadd.f32 %v766, %v884
      %v951 = vadd.f32 %v767, %v902
      %v952 = vadd.f32 %v768, %v920
      %v953 = vadd.f32 %v769, %v938
      %v954 = vadd.f32 %v770, %v869
      %v955 = vadd.f32 %v771, %v887
      %v956 = vadd.f32 %v772, %v905
      %v957 = vadd.f32 %v773, %v923
      %v958 = vadd.f32 %v774, %v941
      %s959 = scalar_lea.vmem %s1, 64
      %v960 = vld [vmem:[%s959] sm:$0xf]
      %v961 = vld [vmem:[%s959 + $0x4] sm:$0xf]
      %v962 = vld [vmem:[%s959 + $0x8] sm:$0xf]
      %v963 = vld [vmem:[%s959 + $0xc] sm:$0xf]
      %v968 = vunpack.c.l.b16 %v960
      %v969 = vunpack.c.l.b16 %v961
      %v970 = vunpack.c.l.b16 %v962
      %v971 = vunpack.c.l.b16 %v963
      %v972 = vpack.c.b16 %v969, %v968
      %v973 = vpack.c.b16 %v971, %v970
      %974 = vrot.lane.b32.xlu0 %v257, 92
      %v975 = vpop.permute.xlu0 %974
      %976 = vrot.lane.b32.xlu0 %v258, 92
      %v977 = vpop.permute.xlu0 %976
      %978 = vrot.lane.b32.xlu0 %v259, 92
      %v979 = vpop.permute.xlu0 %978
      %980 = vrot.lane.b32.xlu0 %v260, 92
      %v981 = vpop.permute.xlu0 %980
      %982 = vrot.lane.b32.xlu0 %v261, 92
      %v983 = vpop.permute.xlu0 %982
      %984 = vrot.lane.b32.xlu0 %v262, 92
      %v985 = vpop.permute.xlu0 %984
      %986 = vrot.lane.b32.xlu0 %v263, 92
      %v987 = vpop.permute.xlu0 %986
      %988 = vrot.lane.b32.xlu0 %v264, 92
      %v989 = vpop.permute.xlu0 %988
      %990 = vrot.lane.b32.xlu0 %v265, 92
      %v991 = vpop.permute.xlu0 %990
      %992 = vrot.lane.b32.xlu0 %v266, 92
      %v993 = vpop.permute.xlu0 %992
      %994 = vrot.lane.b32.xlu0 %v267, 92
      %v995 = vpop.permute.xlu0 %994
      %996 = vrot.lane.b32.xlu0 %v268, 92
      %v997 = vpop.permute.xlu0 %996
      %998 = vrot.lane.b32.xlu0 %v269, 92
      %v999 = vpop.permute.xlu0 %998
      %1000 = vrot.lane.b32.xlu0 %v270, 92
      %v1001 = vpop.permute.xlu0 %1000
      %1002 = vrot.lane.b32.xlu0 %v271, 92
      %v1003 = vpop.permute.xlu0 %1002
      %vm1004 = vcmask 752640
      %v1005 = vsel %vm1004, %v975, %v977
      %v1006 = vsel %vm1004, %v977, %v979
      %v1007 = vsel %vm1004, %v979, %v981
      %v1008 = vsel %vm1004, %v981, %v983
      %v1009 = vsel %vm1004, %v985, %v987
      %v1010 = vsel %vm1004, %v987, %v989
      %v1011 = vsel %vm1004, %v989, %v991
      %v1012 = vsel %vm1004, %v991, %v993
      %v1013 = vsel %vm1004, %v995, %v997
      %v1014 = vsel %vm1004, %v997, %v999
      %v1015 = vsel %vm1004, %v999, %v1001
      %v1016 = vsel %vm1004, %v1001, %v1003
      %v1033 = vsel %vm330, %v972, 0
      %v1036 = vsel %vm330, %v973, 0
      %1038 = vmatpush.bf16.msra.mxu0 0
      %1039 = vmatpush.bf16.msra.mxu0 0
      %1040 = vmatpush.bf16.msra.mxu0 0
      %1041 = vmatpush.bf16.msra.mxu0 0
      %1042 = vmatpush.bf16.msra.mxu0 0
      %1043 = vmatpush.bf16.msra.mxu0 %v1013
      %1044 = vmatpush.bf16.msra.mxu0 %v1009
      %1045 = vmatpush.bf16.msra.mxu0 %v1005
      %1046 = vmatmul.bf16.gmra.mxu0 %v1033
      %v1047 = vpop.f32.mrf.mxu0
      %v1048 = vadd.f32 0.0, %v1047
      %v1049 = vpop.f32.mrf.mxu0
      %v1050 = vadd.f32 0.0, %v1049
      %1051 = vmatmul.bf16.gmra.mxu0 %v1036
      %v1052 = vpop.f32.mrf.mxu0
      %v1053 = vadd.f32 0.0, %v1052
      %v1054 = vpop.f32.mrf.mxu0
      %1055 = vdwg.mxu0
      %1056 = vmatpush.bf16.msra.mxu0 0
      %1057 = vmatpush.bf16.msra.mxu0 0
      %1058 = vmatpush.bf16.msra.mxu0 0
      %1059 = vmatpush.bf16.msra.mxu0 0
      %1060 = vmatpush.bf16.msra.mxu0 0
      %1061 = vmatpush.bf16.msra.mxu0 %v1014
      %1062 = vmatpush.bf16.msra.mxu0 %v1010
      %1063 = vmatpush.bf16.msra.mxu0 %v1006
      %1064 = vmatmul.bf16.gmra.mxu0 %v1033
      %v1065 = vpop.f32.mrf.mxu0
      %v1066 = vadd.f32 0.0, %v1065
      %v1067 = vpop.f32.mrf.mxu0
      %v1068 = vadd.f32 0.0, %v1067
      %1069 = vmatmul.bf16.gmra.mxu0 %v1036
      %v1070 = vpop.f32.mrf.mxu0
      %v1071 = vadd.f32 0.0, %v1070
      %v1072 = vpop.f32.mrf.mxu0
      %1073 = vdwg.mxu0
      %1074 = vmatpush.bf16.msra.mxu0 0
      %1075 = vmatpush.bf16.msra.mxu0 0
      %1076 = vmatpush.bf16.msra.mxu0 0
      %1077 = vmatpush.bf16.msra.mxu0 0
      %1078 = vmatpush.bf16.msra.mxu0 0
      %1079 = vmatpush.bf16.msra.mxu0 %v1015
      %1080 = vmatpush.bf16.msra.mxu0 %v1011
      %1081 = vmatpush.bf16.msra.mxu0 %v1007
      %1082 = vmatmul.bf16.gmra.mxu0 %v1033
      %v1083 = vpop.f32.mrf.mxu0
      %v1084 = vadd.f32 0.0, %v1083
      %v1085 = vpop.f32.mrf.mxu0
      %v1086 = vadd.f32 0.0, %v1085
      %1087 = vmatmul.bf16.gmra.mxu0 %v1036
      %v1088 = vpop.f32.mrf.mxu0
      %v1089 = vadd.f32 0.0, %v1088
      %v1090 = vpop.f32.mrf.mxu0
      %1091 = vdwg.mxu0
      %1092 = vmatpush.bf16.msra.mxu0 0
      %1093 = vmatpush.bf16.msra.mxu0 0
      %1094 = vmatpush.bf16.msra.mxu0 0
      %1095 = vmatpush.bf16.msra.mxu0 0
      %1096 = vmatpush.bf16.msra.mxu0 0
      %1097 = vmatpush.bf16.msra.mxu0 %v1016
      %1098 = vmatpush.bf16.msra.mxu0 %v1012
      %1099 = vmatpush.bf16.msra.mxu0 %v1008
      %1100 = vmatmul.bf16.gmra.mxu0 %v1033
      %v1101 = vpop.f32.mrf.mxu0
      %v1102 = vadd.f32 0.0, %v1101
      %v1103 = vpop.f32.mrf.mxu0
      %v1104 = vadd.f32 0.0, %v1103
      %1105 = vmatmul.bf16.gmra.mxu0 %v1036
      %v1106 = vpop.f32.mrf.mxu0
      %v1107 = vadd.f32 0.0, %v1106
      %v1108 = vpop.f32.mrf.mxu0
      %1109 = vdwg.mxu0
      %1110 = vmatpush.bf16.msra.mxu0 0
      %1111 = vmatpush.bf16.msra.mxu0 0
      %1112 = vmatpush.bf16.msra.mxu0 0
      %1113 = vmatpush.bf16.msra.mxu0 0
      %1114 = vmatpush.bf16.msra.mxu0 0
      %1115 = vmatpush.bf16.msra.mxu0 %v1003
      %1116 = vmatpush.bf16.msra.mxu0 %v993
      %1117 = vmatpush.bf16.msra.mxu0 %v983
      %1118 = vmatmul.bf16.gmra.mxu0 %v1033
      %v1119 = vpop.f32.mrf.mxu0
      %v1120 = vadd.f32 0.0, %v1119
      %v1121 = vpop.f32.mrf.mxu0
      %v1122 = vadd.f32 0.0, %v1121
      %1123 = vmatmul.bf16.gmra.mxu0 %v1036
      %v1124 = vpop.f32.mrf.mxu0
      %v1125 = vadd.f32 0.0, %v1124
      %v1126 = vpop.f32.mrf.mxu0
      %1127 = vdwg.mxu0
      %v1128 = vadd.f32 %v944, %v1048
      %v1129 = vadd.f32 %v945, %v1066
      %v1130 = vadd.f32 %v946, %v1084
      %v1131 = vadd.f32 %v947, %v1102
      %v1132 = vadd.f32 %v948, %v1120
      %v1133 = vadd.f32 %v949, %v1050
      %v1134 = vadd.f32 %v950, %v1068
      %v1135 = vadd.f32 %v951, %v1086
      %v1136 = vadd.f32 %v952, %v1104
      %v1137 = vadd.f32 %v953, %v1122
      %v1138 = vadd.f32 %v954, %v1053
      %v1139 = vadd.f32 %v955, %v1071
      %v1140 = vadd.f32 %v956, %v1089
      %v1141 = vadd.f32 %v957, %v1107
      %v1142 = vadd.f32 %v958, %v1125
      %s1143 = scalar_lea.vmem %s1, 80
      %v1144 = vld [vmem:[%s1143] sm:$0xf]
      %v1145 = vld [vmem:[%s1143 + $0x4] sm:$0xf]
      %v1146 = vld [vmem:[%s1143 + $0x8] sm:$0xf]
      %v1147 = vld [vmem:[%s1143 + $0xc] sm:$0xf]
      %v1152 = vunpack.c.l.b16 %v1144
      %v1153 = vunpack.c.l.b16 %v1145
      %v1154 = vunpack.c.l.b16 %v1146
      %v1155 = vunpack.c.l.b16 %v1147
      %v1156 = vpack.c.b16 %v1153, %v1152
      %v1157 = vpack.c.b16 %v1155, %v1154
      %1158 = vrot.lane.b32.xlu0 %v257, 91
      %v1159 = vpop.permute.xlu0 %1158
      %1160 = vrot.lane.b32.xlu0 %v258, 91
      %v1161 = vpop.permute.xlu0 %1160
      %1162 = vrot.lane.b32.xlu0 %v259, 91
      %v1163 = vpop.permute.xlu0 %1162
      %1164 = vrot.lane.b32.xlu0 %v260, 91
      %v1165 = vpop.permute.xlu0 %1164
      %1166 = vrot.lane.b32.xlu0 %v261, 91
      %v1167 = vpop.permute.xlu0 %1166
      %1168 = vrot.lane.b32.xlu0 %v262, 91
      %v1169 = vpop.permute.xlu0 %1168
      %1170 = vrot.lane.b32.xlu0 %v263, 91
      %v1171 = vpop.permute.xlu0 %1170
      %1172 = vrot.lane.b32.xlu0 %v264, 91
      %v1173 = vpop.permute.xlu0 %1172
      %1174 = vrot.lane.b32.xlu0 %v265, 91
      %v1175 = vpop.permute.xlu0 %1174
      %1176 = vrot.lane.b32.xlu0 %v266, 91
      %v1177 = vpop.permute.xlu0 %1176
      %1178 = vrot.lane.b32.xlu0 %v267, 91
      %v1179 = vpop.permute.xlu0 %1178
      %1180 = vrot.lane.b32.xlu0 %v268, 91
      %v1181 = vpop.permute.xlu0 %1180
      %1182 = vrot.lane.b32.xlu0 %v269, 91
      %v1183 = vpop.permute.xlu0 %1182
      %1184 = vrot.lane.b32.xlu0 %v270, 91
      %v1185 = vpop.permute.xlu0 %1184
      %1186 = vrot.lane.b32.xlu0 %v271, 91
      %v1187 = vpop.permute.xlu0 %1186
      %vm1188 = vcmask 744448
      %v1189 = vsel %vm1188, %v1159, %v1161
      %v1190 = vsel %vm1188, %v1161, %v1163
      %v1191 = vsel %vm1188, %v1163, %v1165
      %v1192 = vsel %vm1188, %v1165, %v1167
      %v1193 = vsel %vm1188, %v1169, %v1171
      %v1194 = vsel %vm1188, %v1171, %v1173
      %v1195 = vsel %vm1188, %v1173, %v1175
      %v1196 = vsel %vm1188, %v1175, %v1177
      %v1197 = vsel %vm1188, %v1179, %v1181
      %v1198 = vsel %vm1188, %v1181, %v1183
      %v1199 = vsel %vm1188, %v1183, %v1185
      %v1200 = vsel %vm1188, %v1185, %v1187
      %v1217 = vsel %vm330, %v1156, 0
      %v1220 = vsel %vm330, %v1157, 0
      %1222 = vmatpush.bf16.msra.mxu0 0
      %1223 = vmatpush.bf16.msra.mxu0 0
      %1224 = vmatpush.bf16.msra.mxu0 0
      %1225 = vmatpush.bf16.msra.mxu0 0
      %1226 = vmatpush.bf16.msra.mxu0 0
      %1227 = vmatpush.bf16.msra.mxu0 %v1197
      %1228 = vmatpush.bf16.msra.mxu0 %v1193
      %1229 = vmatpush.bf16.msra.mxu0 %v1189
      %1230 = vmatmul.bf16.gmra.mxu0 %v1217
      %v1231 = vpop.f32.mrf.mxu0
      %v1232 = vadd.f32 0.0, %v1231
      %v1233 = vpop.f32.mrf.mxu0
      %v1234 = vadd.f32 0.0, %v1233
      %1235 = vmatmul.bf16.gmra.mxu0 %v1220
      %v1236 = vpop.f32.mrf.mxu0
      %v1237 = vadd.f32 0.0, %v1236
      %v1238 = vpop.f32.mrf.mxu0
      %1239 = vdwg.mxu0
      %1240 = vmatpush.bf16.msra.mxu0 0
      %1241 = vmatpush.bf16.msra.mxu0 0
      %1242 = vmatpush.bf16.msra.mxu0 0
      %1243 = vmatpush.bf16.msra.mxu0 0
      %1244 = vmatpush.bf16.msra.mxu0 0
      %1245 = vmatpush.bf16.msra.mxu0 %v1198
      %1246 = vmatpush.bf16.msra.mxu0 %v1194
      %1247 = vmatpush.bf16.msra.mxu0 %v1190
      %1248 = vmatmul.bf16.gmra.mxu0 %v1217
      %v1249 = vpop.f32.mrf.mxu0
      %v1250 = vadd.f32 0.0, %v1249
      %v1251 = vpop.f32.mrf.mxu0
      %v1252 = vadd.f32 0.0, %v1251
      %1253 = vmatmul.bf16.gmra.mxu0 %v1220
      %v1254 = vpop.f32.mrf.mxu0
      %v1255 = vadd.f32 0.0, %v1254
      %v1256 = vpop.f32.mrf.mxu0
      %1257 = vdwg.mxu0
      %1258 = vmatpush.bf16.msra.mxu0 0
      %1259 = vmatpush.bf16.msra.mxu0 0
      %1260 = vmatpush.bf16.msra.mxu0 0
      %1261 = vmatpush.bf16.msra.mxu0 0
      %1262 = vmatpush.bf16.msra.mxu0 0
      %1263 = vmatpush.bf16.msra.mxu0 %v1199
      %1264 = vmatpush.bf16.msra.mxu0 %v1195
      %1265 = vmatpush.bf16.msra.mxu0 %v1191
      %1266 = vmatmul.bf16.gmra.mxu0 %v1217
      %v1267 = vpop.f32.mrf.mxu0
      %v1268 = vadd.f32 0.0, %v1267
      %v1269 = vpop.f32.mrf.mxu0
      %v1270 = vadd.f32 0.0, %v1269
      %1271 = vmatmul.bf16.gmra.mxu0 %v1220
      %v1272 = vpop.f32.mrf.mxu0
      %v1273 = vadd.f32 0.0, %v1272
      %v1274 = vpop.f32.mrf.mxu0
      %1275 = vdwg.mxu0
      %1276 = vmatpush.bf16.msra.mxu0 0
      %1277 = vmatpush.bf16.msra.mxu0 0
      %1278 = vmatpush.bf16.msra.mxu0 0
      %1279 = vmatpush.bf16.msra.mxu0 0
      %1280 = vmatpush.bf16.msra.mxu0 0
      %1281 = vmatpush.bf16.msra.mxu0 %v1200
      %1282 = vmatpush.bf16.msra.mxu0 %v1196
      %1283 = vmatpush.bf16.msra.mxu0 %v1192
      %1284 = vmatmul.bf16.gmra.mxu0 %v1217
      %v1285 = vpop.f32.mrf.mxu0
      %v1286 = vadd.f32 0.0, %v1285
      %v1287 = vpop.f32.mrf.mxu0
      %v1288 = vadd.f32 0.0, %v1287
      %1289 = vmatmul.bf16.gmra.mxu0 %v1220
      %v1290 = vpop.f32.mrf.mxu0
      %v1291 = vadd.f32 0.0, %v1290
      %v1292 = vpop.f32.mrf.mxu0
      %1293 = vdwg.mxu0
      %1294 = vmatpush.bf16.msra.mxu0 0
      %1295 = vmatpush.bf16.msra.mxu0 0
      %1296 = vmatpush.bf16.msra.mxu0 0
      %1297 = vmatpush.bf16.msra.mxu0 0
      %1298 = vmatpush.bf16.msra.mxu0 0
      %1299 = vmatpush.bf16.msra.mxu0 %v1187
      %1300 = vmatpush.bf16.msra.mxu0 %v1177
      %1301 = vmatpush.bf16.msra.mxu0 %v1167
      %1302 = vmatmul.bf16.gmra.mxu0 %v1217
      %v1303 = vpop.f32.mrf.mxu0
      %v1304 = vadd.f32 0.0, %v1303
      %v1305 = vpop.f32.mrf.mxu0
      %v1306 = vadd.f32 0.0, %v1305
      %1307 = vmatmul.bf16.gmra.mxu0 %v1220
      %v1308 = vpop.f32.mrf.mxu0
      %v1309 = vadd.f32 0.0, %v1308
      %v1310 = vpop.f32.mrf.mxu0
      %1311 = vdwg.mxu0
      %v1312 = vadd.f32 %v1128, %v1232
      %v1313 = vadd.f32 %v1129, %v1250
      %v1314 = vadd.f32 %v1130, %v1268
      %v1315 = vadd.f32 %v1131, %v1286
      %v1316 = vadd.f32 %v1132, %v1304
      %v1317 = vadd.f32 %v1133, %v1234
      %v1318 = vadd.f32 %v1134, %v1252
      %v1319 = vadd.f32 %v1135, %v1270
      %v1320 = vadd.f32 %v1136, %v1288
      %v1321 = vadd.f32 %v1137, %v1306
      %v1322 = vadd.f32 %v1138, %v1237
      %v1323 = vadd.f32 %v1139, %v1255
      %v1324 = vadd.f32 %v1140, %v1273
      %v1325 = vadd.f32 %v1141, %v1291
      %v1326 = vadd.f32 %v1142, %v1309
      %s1327 = scalar_lea.vmem %s1, 96
      %v1328 = vld [vmem:[%s1327] sm:$0xf]
      %v1329 = vld [vmem:[%s1327 + $0x4] sm:$0xf]
      %v1330 = vld [vmem:[%s1327 + $0x8] sm:$0xf]
      %v1331 = vld [vmem:[%s1327 + $0xc] sm:$0xf]
      %v1336 = vunpack.c.l.b16 %v1328
      %v1337 = vunpack.c.l.b16 %v1329
      %v1338 = vunpack.c.l.b16 %v1330
      %v1339 = vunpack.c.l.b16 %v1331
      %v1340 = vpack.c.b16 %v1337, %v1336
      %v1341 = vpack.c.b16 %v1339, %v1338
      %1342 = vrot.lane.b32.xlu0 %v257, 75
      %v1343 = vpop.permute.xlu0 %1342
      %1344 = vrot.lane.b32.xlu0 %v258, 75
      %v1345 = vpop.permute.xlu0 %1344
      %1346 = vrot.lane.b32.xlu0 %v259, 75
      %v1347 = vpop.permute.xlu0 %1346
      %1348 = vrot.lane.b32.xlu0 %v260, 75
      %v1349 = vpop.permute.xlu0 %1348
      %1350 = vrot.lane.b32.xlu0 %v261, 75
      %v1351 = vpop.permute.xlu0 %1350
      %1352 = vrot.lane.b32.xlu0 %v262, 75
      %v1353 = vpop.permute.xlu0 %1352
      %1354 = vrot.lane.b32.xlu0 %v263, 75
      %v1355 = vpop.permute.xlu0 %1354
      %1356 = vrot.lane.b32.xlu0 %v264, 75
      %v1357 = vpop.permute.xlu0 %1356
      %1358 = vrot.lane.b32.xlu0 %v265, 75
      %v1359 = vpop.permute.xlu0 %1358
      %1360 = vrot.lane.b32.xlu0 %v266, 75
      %v1361 = vpop.permute.xlu0 %1360
      %1362 = vrot.lane.b32.xlu0 %v267, 75
      %v1363 = vpop.permute.xlu0 %1362
      %1364 = vrot.lane.b32.xlu0 %v268, 75
      %v1365 = vpop.permute.xlu0 %1364
      %1366 = vrot.lane.b32.xlu0 %v269, 75
      %v1367 = vpop.permute.xlu0 %1366
      %1368 = vrot.lane.b32.xlu0 %v270, 75
      %v1369 = vpop.permute.xlu0 %1368
      %1370 = vrot.lane.b32.xlu0 %v271, 75
      %v1371 = vpop.permute.xlu0 %1370
      %vm1372 = vcmask 613376
      %v1373 = vsel %vm1372, %v1343, %v1345
      %v1374 = vsel %vm1372, %v1345, %v1347
      %v1375 = vsel %vm1372, %v1347, %v1349
      %v1376 = vsel %vm1372, %v1349, %v1351
      %v1377 = vsel %vm1372, %v1353, %v1355
      %v1378 = vsel %vm1372, %v1355, %v1357
      %v1379 = vsel %vm1372, %v1357, %v1359
      %v1380 = vsel %vm1372, %v1359, %v1361
      %v1381 = vsel %vm1372, %v1363, %v1365
      %v1382 = vsel %vm1372, %v1365, %v1367
      %v1383 = vsel %vm1372, %v1367, %v1369
      %v1384 = vsel %vm1372, %v1369, %v1371
      %v1401 = vsel %vm330, %v1340, 0
      %v1404 = vsel %vm330, %v1341, 0
      %1406 = vmatpush.bf16.msra.mxu0 0
      %1407 = vmatpush.bf16.msra.mxu0 0
      %1408 = vmatpush.bf16.msra.mxu0 0
      %1409 = vmatpush.bf16.msra.mxu0 0
      %1410 = vmatpush.bf16.msra.mxu0 0
      %1411 = vmatpush.bf16.msra.mxu0 %v1381
      %1412 = vmatpush.bf16.msra.mxu0 %v1377
      %1413 = vmatpush.bf16.msra.mxu0 %v1373
      %1414 = vmatmul.bf16.gmra.mxu0 %v1401
      %v1415 = vpop.f32.mrf.mxu0
      %v1416 = vadd.f32 0.0, %v1415
      %v1417 = vpop.f32.mrf.mxu0
      %v1418 = vadd.f32 0.0, %v1417
      %1419 = vmatmul.bf16.gmra.mxu0 %v1404
      %v1420 = vpop.f32.mrf.mxu0
      %v1421 = vadd.f32 0.0, %v1420
      %v1422 = vpop.f32.mrf.mxu0
      %1423 = vdwg.mxu0
      %1424 = vmatpush.bf16.msra.mxu0 0
      %1425 = vmatpush.bf16.msra.mxu0 0
      %1426 = vmatpush.bf16.msra.mxu0 0
      %1427 = vmatpush.bf16.msra.mxu0 0
      %1428 = vmatpush.bf16.msra.mxu0 0
      %1429 = vmatpush.bf16.msra.mxu0 %v1382
      %1430 = vmatpush.bf16.msra.mxu0 %v1378
      %1431 = vmatpush.bf16.msra.mxu0 %v1374
      %1432 = vmatmul.bf16.gmra.mxu0 %v1401
      %v1433 = vpop.f32.mrf.mxu0
      %v1434 = vadd.f32 0.0, %v1433
      %v1435 = vpop.f32.mrf.mxu0
      %v1436 = vadd.f32 0.0, %v1435
      %1437 = vmatmul.bf16.gmra.mxu0 %v1404
      %v1438 = vpop.f32.mrf.mxu0
      %v1439 = vadd.f32 0.0, %v1438
      %v1440 = vpop.f32.mrf.mxu0
      %1441 = vdwg.mxu0
      %1442 = vmatpush.bf16.msra.mxu0 0
      %1443 = vmatpush.bf16.msra.mxu0 0
      %1444 = vmatpush.bf16.msra.mxu0 0
      %1445 = vmatpush.bf16.msra.mxu0 0
      %1446 = vmatpush.bf16.msra.mxu0 0
      %1447 = vmatpush.bf16.msra.mxu0 %v1383
      %1448 = vmatpush.bf16.msra.mxu0 %v1379
      %1449 = vmatpush.bf16.msra.mxu0 %v1375
      %1450 = vmatmul.bf16.gmra.mxu0 %v1401
      %v1451 = vpop.f32.mrf.mxu0
      %v1452 = vadd.f32 0.0, %v1451
      %v1453 = vpop.f32.mrf.mxu0
      %v1454 = vadd.f32 0.0, %v1453
      %1455 = vmatmul.bf16.gmra.mxu0 %v1404
      %v1456 = vpop.f32.mrf.mxu0
      %v1457 = vadd.f32 0.0, %v1456
      %v1458 = vpop.f32.mrf.mxu0
      %1459 = vdwg.mxu0
      %1460 = vmatpush.bf16.msra.mxu0 0
      %1461 = vmatpush.bf16.msra.mxu0 0
      %1462 = vmatpush.bf16.msra.mxu0 0
      %1463 = vmatpush.bf16.msra.mxu0 0
      %1464 = vmatpush.bf16.msra.mxu0 0
      %1465 = vmatpush.bf16.msra.mxu0 %v1384
      %1466 = vmatpush.bf16.msra.mxu0 %v1380
      %1467 = vmatpush.bf16.msra.mxu0 %v1376
      %1468 = vmatmul.bf16.gmra.mxu0 %v1401
      %v1469 = vpop.f32.mrf.mxu0
      %v1470 = vadd.f32 0.0, %v1469
      %v1471 = vpop.f32.mrf.mxu0
      %v1472 = vadd.f32 0.0, %v1471
      %1473 = vmatmul.bf16.gmra.mxu0 %v1404
      %v1474 = vpop.f32.mrf.mxu0
      %v1475 = vadd.f32 0.0, %v1474
      %v1476 = vpop.f32.mrf.mxu0
      %1477 = vdwg.mxu0
      %1478 = vmatpush.bf16.msra.mxu0 0
      %1479 = vmatpush.bf16.msra.mxu0 0
      %1480 = vmatpush.bf16.msra.mxu0 0
      %1481 = vmatpush.bf16.msra.mxu0 0
      %1482 = vmatpush.bf16.msra.mxu0 0
      %1483 = vmatpush.bf16.msra.mxu0 %v1371
      %1484 = vmatpush.bf16.msra.mxu0 %v1361
      %1485 = vmatpush.bf16.msra.mxu0 %v1351
      %1486 = vmatmul.bf16.gmra.mxu0 %v1401
      %v1487 = vpop.f32.mrf.mxu0
      %v1488 = vadd.f32 0.0, %v1487
      %v1489 = vpop.f32.mrf.mxu0
      %v1490 = vadd.f32 0.0, %v1489
      %1491 = vmatmul.bf16.gmra.mxu0 %v1404
      %v1492 = vpop.f32.mrf.mxu0
      %v1493 = vadd.f32 0.0, %v1492
      %v1494 = vpop.f32.mrf.mxu0
      %1495 = vdwg.mxu0
      %v1496 = vadd.f32 %v1312, %v1416
      %v1497 = vadd.f32 %v1313, %v1434
      %v1498 = vadd.f32 %v1314, %v1452
      %v1499 = vadd.f32 %v1315, %v1470
      %v1500 = vadd.f32 %v1316, %v1488
      %v1501 = vadd.f32 %v1317, %v1418
      %v1502 = vadd.f32 %v1318, %v1436
      %v1503 = vadd.f32 %v1319, %v1454
      %v1504 = vadd.f32 %v1320, %v1472
      %v1505 = vadd.f32 %v1321, %v1490
      %v1506 = vadd.f32 %v1322, %v1421
      %v1507 = vadd.f32 %v1323, %v1439
      %v1508 = vadd.f32 %v1324, %v1457
      %v1509 = vadd.f32 %v1325, %v1475
      %v1510 = vadd.f32 %v1326, %v1493
      %s1511 = scalar_lea.vmem %s1, 112
      %v1512 = vld [vmem:[%s1511] sm:$0xf]
      %v1513 = vld [vmem:[%s1511 + $0x4] sm:$0xf]
      %v1514 = vld [vmem:[%s1511 + $0x8] sm:$0xf]
      %v1515 = vld [vmem:[%s1511 + $0xc] sm:$0xf]
      %v1520 = vunpack.c.l.b16 %v1512
      %v1521 = vunpack.c.l.b16 %v1513
      %v1522 = vunpack.c.l.b16 %v1514
      %v1523 = vunpack.c.l.b16 %v1515
      %v1524 = vpack.c.b16 %v1521, %v1520
      %v1525 = vpack.c.b16 %v1523, %v1522
      %1526 = vrot.lane.b32.xlu0 %v257, 74
      %v1527 = vpop.permute.xlu0 %1526
      %1528 = vrot.lane.b32.xlu0 %v258, 74
      %v1529 = vpop.permute.xlu0 %1528
      %1530 = vrot.lane.b32.xlu0 %v259, 74
      %v1531 = vpop.permute.xlu0 %1530
      %1532 = vrot.lane.b32.xlu0 %v260, 74
      %v1533 = vpop.permute.xlu0 %1532
      %1534 = vrot.lane.b32.xlu0 %v261, 74
      %v1535 = vpop.permute.xlu0 %1534
      %1536 = vrot.lane.b32.xlu0 %v262, 74
      %v1537 = vpop.permute.xlu0 %1536
      %1538 = vrot.lane.b32.xlu0 %v263, 74
      %v1539 = vpop.permute.xlu0 %1538
      %1540 = vrot.lane.b32.xlu0 %v264, 74
      %v1541 = vpop.permute.xlu0 %1540
      %1542 = vrot.lane.b32.xlu0 %v265, 74
      %v1543 = vpop.permute.xlu0 %1542
      %1544 = vrot.lane.b32.xlu0 %v266, 74
      %v1545 = vpop.permute.xlu0 %1544
      %1546 = vrot.lane.b32.xlu0 %v267, 74
      %v1547 = vpop.permute.xlu0 %1546
      %1548 = vrot.lane.b32.xlu0 %v268, 74
      %v1549 = vpop.permute.xlu0 %1548
      %1550 = vrot.lane.b32.xlu0 %v269, 74
      %v1551 = vpop.permute.xlu0 %1550
      %1552 = vrot.lane.b32.xlu0 %v270, 74
      %v1553 = vpop.permute.xlu0 %1552
      %1554 = vrot.lane.b32.xlu0 %v271, 74
      %v1555 = vpop.permute.xlu0 %1554
      %vm1556 = vcmask 605184
      %v1557 = vsel %vm1556, %v1527, %v1529
      %v1558 = vsel %vm1556, %v1529, %v1531
      %v1559 = vsel %vm1556, %v1531, %v1533
      %v1560 = vsel %vm1556, %v1533, %v1535
      %v1561 = vsel %vm1556, %v1537, %v1539
      %v1562 = vsel %vm1556, %v1539, %v1541
      %v1563 = vsel %vm1556, %v1541, %v1543
      %v1564 = vsel %vm1556, %v1543, %v1545
      %v1565 = vsel %vm1556, %v1547, %v1549
      %v1566 = vsel %vm1556, %v1549, %v1551
      %v1567 = vsel %vm1556, %v1551, %v1553
      %v1568 = vsel %vm1556, %v1553, %v1555
      %v1585 = vsel %vm330, %v1524, 0
      %v1588 = vsel %vm330, %v1525, 0
      %1590 = vmatpush.bf16.msra.mxu0 0
      %1591 = vmatpush.bf16.msra.mxu0 0
      %1592 = vmatpush.bf16.msra.mxu0 0
      %1593 = vmatpush.bf16.msra.mxu0 0
      %1594 = vmatpush.bf16.msra.mxu0 0
      %1595 = vmatpush.bf16.msra.mxu0 %v1565
      %1596 = vmatpush.bf16.msra.mxu0 %v1561
      %1597 = vmatpush.bf16.msra.mxu0 %v1557
      %1598 = vmatmul.bf16.gmra.mxu0 %v1585
      %v1599 = vpop.f32.mrf.mxu0
      %v1600 = vadd.f32 0.0, %v1599
      %v1601 = vpop.f32.mrf.mxu0
      %v1602 = vadd.f32 0.0, %v1601
      %1603 = vmatmul.bf16.gmra.mxu0 %v1588
      %v1604 = vpop.f32.mrf.mxu0
      %v1605 = vadd.f32 0.0, %v1604
      %v1606 = vpop.f32.mrf.mxu0
      %1607 = vdwg.mxu0
      %1608 = vmatpush.bf16.msra.mxu0 0
      %1609 = vmatpush.bf16.msra.mxu0 0
      %1610 = vmatpush.bf16.msra.mxu0 0
      %1611 = vmatpush.bf16.msra.mxu0 0
      %1612 = vmatpush.bf16.msra.mxu0 0
      %1613 = vmatpush.bf16.msra.mxu0 %v1566
      %1614 = vmatpush.bf16.msra.mxu0 %v1562
      %1615 = vmatpush.bf16.msra.mxu0 %v1558
      %1616 = vmatmul.bf16.gmra.mxu0 %v1585
      %v1617 = vpop.f32.mrf.mxu0
      %v1618 = vadd.f32 0.0, %v1617
      %v1619 = vpop.f32.mrf.mxu0
      %v1620 = vadd.f32 0.0, %v1619
      %1621 = vmatmul.bf16.gmra.mxu0 %v1588
      %v1622 = vpop.f32.mrf.mxu0
      %v1623 = vadd.f32 0.0, %v1622
      %v1624 = vpop.f32.mrf.mxu0
      %1625 = vdwg.mxu0
      %1626 = vmatpush.bf16.msra.mxu0 0
      %1627 = vmatpush.bf16.msra.mxu0 0
      %1628 = vmatpush.bf16.msra.mxu0 0
      %1629 = vmatpush.bf16.msra.mxu0 0
      %1630 = vmatpush.bf16.msra.mxu0 0
      %1631 = vmatpush.bf16.msra.mxu0 %v1567
      %1632 = vmatpush.bf16.msra.mxu0 %v1563
      %1633 = vmatpush.bf16.msra.mxu0 %v1559
      %1634 = vmatmul.bf16.gmra.mxu0 %v1585
      %v1635 = vpop.f32.mrf.mxu0
      %v1636 = vadd.f32 0.0, %v1635
      %v1637 = vpop.f32.mrf.mxu0
      %v1638 = vadd.f32 0.0, %v1637
      %1639 = vmatmul.bf16.gmra.mxu0 %v1588
      %v1640 = vpop.f32.mrf.mxu0
      %v1641 = vadd.f32 0.0, %v1640
      %v1642 = vpop.f32.mrf.mxu0
      %1643 = vdwg.mxu0
      %1644 = vmatpush.bf16.msra.mxu0 0
      %1645 = vmatpush.bf16.msra.mxu0 0
      %1646 = vmatpush.bf16.msra.mxu0 0
      %1647 = vmatpush.bf16.msra.mxu0 0
      %1648 = vmatpush.bf16.msra.mxu0 0
      %1649 = vmatpush.bf16.msra.mxu0 %v1568
      %1650 = vmatpush.bf16.msra.mxu0 %v1564
      %1651 = vmatpush.bf16.msra.mxu0 %v1560
      %1652 = vmatmul.bf16.gmra.mxu0 %v1585
      %v1653 = vpop.f32.mrf.mxu0
      %v1654 = vadd.f32 0.0, %v1653
      %v1655 = vpop.f32.mrf.mxu0
      %v1656 = vadd.f32 0.0, %v1655
      %1657 = vmatmul.bf16.gmra.mxu0 %v1588
      %v1658 = vpop.f32.mrf.mxu0
      %v1659 = vadd.f32 0.0, %v1658
      %v1660 = vpop.f32.mrf.mxu0
      %1661 = vdwg.mxu0
      %1662 = vmatpush.bf16.msra.mxu0 0
      %1663 = vmatpush.bf16.msra.mxu0 0
      %1664 = vmatpush.bf16.msra.mxu0 0
      %1665 = vmatpush.bf16.msra.mxu0 0
      %1666 = vmatpush.bf16.msra.mxu0 0
      %1667 = vmatpush.bf16.msra.mxu0 %v1555
      %1668 = vmatpush.bf16.msra.mxu0 %v1545
      %1669 = vmatpush.bf16.msra.mxu0 %v1535
      %1670 = vmatmul.bf16.gmra.mxu0 %v1585
      %v1671 = vpop.f32.mrf.mxu0
      %v1672 = vadd.f32 0.0, %v1671
      %v1673 = vpop.f32.mrf.mxu0
      %v1674 = vadd.f32 0.0, %v1673
      %1675 = vmatmul.bf16.gmra.mxu0 %v1588
      %v1676 = vpop.f32.mrf.mxu0
      %v1677 = vadd.f32 0.0, %v1676
      %v1678 = vpop.f32.mrf.mxu0
      %1679 = vdwg.mxu0
      %v1680 = vadd.f32 %v1496, %v1600
      %v1681 = vadd.f32 %v1497, %v1618
      %v1682 = vadd.f32 %v1498, %v1636
      %v1683 = vadd.f32 %v1499, %v1654
      %v1684 = vadd.f32 %v1500, %v1672
      %v1685 = vadd.f32 %v1501, %v1602
      %v1686 = vadd.f32 %v1502, %v1620
      %v1687 = vadd.f32 %v1503, %v1638
      %v1688 = vadd.f32 %v1504, %v1656
      %v1689 = vadd.f32 %v1505, %v1674
      %v1690 = vadd.f32 %v1506, %v1605
      %v1691 = vadd.f32 %v1507, %v1623
      %v1692 = vadd.f32 %v1508, %v1641
      %v1693 = vadd.f32 %v1509, %v1659
      %v1694 = vadd.f32 %v1510, %v1677
      %s1695 = scalar_lea.vmem %s1, 128
      %v1696 = vld [vmem:[%s1695] sm:$0xf]
      %v1697 = vld [vmem:[%s1695 + $0x4] sm:$0xf]
      %v1698 = vld [vmem:[%s1695 + $0x8] sm:$0xf]
      %v1699 = vld [vmem:[%s1695 + $0xc] sm:$0xf]
      %v1704 = vunpack.c.l.b16 %v1696
      %v1705 = vunpack.c.l.b16 %v1697
      %v1706 = vunpack.c.l.b16 %v1698
      %v1707 = vunpack.c.l.b16 %v1699
      %v1708 = vpack.c.b16 %v1705, %v1704
      %v1709 = vpack.c.b16 %v1707, %v1706
      %1710 = vrot.lane.b32.xlu0 %v257, 73
      %v1711 = vpop.permute.xlu0 %1710
      %1712 = vrot.lane.b32.xlu0 %v258, 73
      %v1713 = vpop.permute.xlu0 %1712
      %1714 = vrot.lane.b32.xlu0 %v259, 73
      %v1715 = vpop.permute.xlu0 %1714
      %1716 = vrot.lane.b32.xlu0 %v260, 73
      %v1717 = vpop.permute.xlu0 %1716
      %1718 = vrot.lane.b32.xlu0 %v261, 73
      %v1719 = vpop.permute.xlu0 %1718
      %1720 = vrot.lane.b32.xlu0 %v262, 73
      %v1721 = vpop.permute.xlu0 %1720
      %1722 = vrot.lane.b32.xlu0 %v263, 73
      %v1723 = vpop.permute.xlu0 %1722
      %1724 = vrot.lane.b32.xlu0 %v264, 73
      %v1725 = vpop.permute.xlu0 %1724
      %1726 = vrot.lane.b32.xlu0 %v265, 73
      %v1727 = vpop.permute.xlu0 %1726
      %1728 = vrot.lane.b32.xlu0 %v266, 73
      %v1729 = vpop.permute.xlu0 %1728
      %1730 = vrot.lane.b32.xlu0 %v267, 73
      %v1731 = vpop.permute.xlu0 %1730
      %1732 = vrot.lane.b32.xlu0 %v268, 73
      %v1733 = vpop.permute.xlu0 %1732
      %1734 = vrot.lane.b32.xlu0 %v269, 73
      %v1735 = vpop.permute.xlu0 %1734
      %1736 = vrot.lane.b32.xlu0 %v270, 73
      %v1737 = vpop.permute.xlu0 %1736
      %1738 = vrot.lane.b32.xlu0 %v271, 73
      %v1739 = vpop.permute.xlu0 %1738
      %vm1740 = vcmask 596992
      %v1741 = vsel %vm1740, %v1711, %v1713
      %v1742 = vsel %vm1740, %v1713, %v1715
      %v1743 = vsel %vm1740, %v1715, %v1717
      %v1744 = vsel %vm1740, %v1717, %v1719
      %v1745 = vsel %vm1740, %v1721, %v1723
      %v1746 = vsel %vm1740, %v1723, %v1725
      %v1747 = vsel %vm1740, %v1725, %v1727
      %v1748 = vsel %vm1740, %v1727, %v1729
      %v1749 = vsel %vm1740, %v1731, %v1733
      %v1750 = vsel %vm1740, %v1733, %v1735
      %v1751 = vsel %vm1740, %v1735, %v1737
      %v1752 = vsel %vm1740, %v1737, %v1739
      %v1769 = vsel %vm330, %v1708, 0
      %v1772 = vsel %vm330, %v1709, 0
      %1774 = vmatpush.bf16.msra.mxu0 0
      %1775 = vmatpush.bf16.msra.mxu0 0
      %1776 = vmatpush.bf16.msra.mxu0 0
      %1777 = vmatpush.bf16.msra.mxu0 0
      %1778 = vmatpush.bf16.msra.mxu0 0
      %1779 = vmatpush.bf16.msra.mxu0 %v1749
      %1780 = vmatpush.bf16.msra.mxu0 %v1745
      %1781 = vmatpush.bf16.msra.mxu0 %v1741
      %1782 = vmatmul.bf16.gmra.mxu0 %v1769
      %v1783 = vpop.f32.mrf.mxu0
      %v1784 = vadd.f32 0.0, %v1783
      %v1785 = vpop.f32.mrf.mxu0
      %v1786 = vadd.f32 0.0, %v1785
      %1787 = vmatmul.bf16.gmra.mxu0 %v1772
      %v1788 = vpop.f32.mrf.mxu0
      %v1789 = vadd.f32 0.0, %v1788
      %v1790 = vpop.f32.mrf.mxu0
      %1791 = vdwg.mxu0
      %1792 = vmatpush.bf16.msra.mxu0 0
      %1793 = vmatpush.bf16.msra.mxu0 0
      %1794 = vmatpush.bf16.msra.mxu0 0
      %1795 = vmatpush.bf16.msra.mxu0 0
      %1796 = vmatpush.bf16.msra.mxu0 0
      %1797 = vmatpush.bf16.msra.mxu0 %v1750
      %1798 = vmatpush.bf16.msra.mxu0 %v1746
      %1799 = vmatpush.bf16.msra.mxu0 %v1742
      %1800 = vmatmul.bf16.gmra.mxu0 %v1769
      %v1801 = vpop.f32.mrf.mxu0
      %v1802 = vadd.f32 0.0, %v1801
      %v1803 = vpop.f32.mrf.mxu0
      %v1804 = vadd.f32 0.0, %v1803
      %1805 = vmatmul.bf16.gmra.mxu0 %v1772
      %v1806 = vpop.f32.mrf.mxu0
      %v1807 = vadd.f32 0.0, %v1806
      %v1808 = vpop.f32.mrf.mxu0
      %1809 = vdwg.mxu0
      %1810 = vmatpush.bf16.msra.mxu0 0
      %1811 = vmatpush.bf16.msra.mxu0 0
      %1812 = vmatpush.bf16.msra.mxu0 0
      %1813 = vmatpush.bf16.msra.mxu0 0
      %1814 = vmatpush.bf16.msra.mxu0 0
      %1815 = vmatpush.bf16.msra.mxu0 %v1751
      %1816 = vmatpush.bf16.msra.mxu0 %v1747
      %1817 = vmatpush.bf16.msra.mxu0 %v1743
      %1818 = vmatmul.bf16.gmra.mxu0 %v1769
      %v1819 = vpop.f32.mrf.mxu0
      %v1820 = vadd.f32 0.0, %v1819
      %v1821 = vpop.f32.mrf.mxu0
      %v1822 = vadd.f32 0.0, %v1821
      %1823 = vmatmul.bf16.gmra.mxu0 %v1772
      %v1824 = vpop.f32.mrf.mxu0
      %v1825 = vadd.f32 0.0, %v1824
      %v1826 = vpop.f32.mrf.mxu0
      %1827 = vdwg.mxu0
      %1828 = vmatpush.bf16.msra.mxu0 0
      %1829 = vmatpush.bf16.msra.mxu0 0
      %1830 = vmatpush.bf16.msra.mxu0 0
      %1831 = vmatpush.bf16.msra.mxu0 0
      %1832 = vmatpush.bf16.msra.mxu0 0
      %1833 = vmatpush.bf16.msra.mxu0 %v1752
      %1834 = vmatpush.bf16.msra.mxu0 %v1748
      %1835 = vmatpush.bf16.msra.mxu0 %v1744
      %1836 = vmatmul.bf16.gmra.mxu0 %v1769
      %v1837 = vpop.f32.mrf.mxu0
      %v1838 = vadd.f32 0.0, %v1837
      %v1839 = vpop.f32.mrf.mxu0
      %v1840 = vadd.f32 0.0, %v1839
      %1841 = vmatmul.bf16.gmra.mxu0 %v1772
      %v1842 = vpop.f32.mrf.mxu0
      %v1843 = vadd.f32 0.0, %v1842
      %v1844 = vpop.f32.mrf.mxu0
      %1845 = vdwg.mxu0
      %1846 = vmatpush.bf16.msra.mxu0 0
      %1847 = vmatpush.bf16.msra.mxu0 0
      %1848 = vmatpush.bf16.msra.mxu0 0
      %1849 = vmatpush.bf16.msra.mxu0 0
      %1850 = vmatpush.bf16.msra.mxu0 0
      %1851 = vmatpush.bf16.msra.mxu0 %v1739
      %1852 = vmatpush.bf16.msra.mxu0 %v1729
      %1853 = vmatpush.bf16.msra.mxu0 %v1719
      %1854 = vmatmul.bf16.gmra.mxu0 %v1769
      %v1855 = vpop.f32.mrf.mxu0
      %v1856 = vadd.f32 0.0, %v1855
      %v1857 = vpop.f32.mrf.mxu0
      %v1858 = vadd.f32 0.0, %v1857
      %1859 = vmatmul.bf16.gmra.mxu0 %v1772
      %v1860 = vpop.f32.mrf.mxu0
      %v1861 = vadd.f32 0.0, %v1860
      %v1862 = vpop.f32.mrf.mxu0
      %1863 = vdwg.mxu0
      %v1864 = vadd.f32 %v1680, %v1784
      %v1865 = vadd.f32 %v1681, %v1802
      %v1866 = vadd.f32 %v1682, %v1820
      %v1867 = vadd.f32 %v1683, %v1838
      %v1868 = vadd.f32 %v1684, %v1856
      %v1869 = vadd.f32 %v1685, %v1786
      %v1870 = vadd.f32 %v1686, %v1804
      %v1871 = vadd.f32 %v1687, %v1822
      %v1872 = vadd.f32 %v1688, %v1840
      %v1873 = vadd.f32 %v1689, %v1858
      %v1874 = vadd.f32 %v1690, %v1789
      %v1875 = vadd.f32 %v1691, %v1807
      %v1876 = vadd.f32 %v1692, %v1825
      %v1877 = vadd.f32 %v1693, %v1843
      %v1878 = vadd.f32 %v1694, %v1861
      %v1879 = vld [vmem:[%s2] sm:$0xff]
      %v1880 = vld [vmem:[%s2 + $0x8] sm:$0xff]
      %v1881 = vld [vmem:[%s2 + $0x10] sm:$0xff]
      %1883 = vset.pattern.permute.xlu0 0
      %1884 = vperm.xlu0 %1883, %v1879
      %v1885 = vpop.permute.xlu0 %1884
      %1888 = vset.pattern.permute.xlu0 0
      %1889 = vperm.xlu0 %1888, %v1880
      %v1890 = vpop.permute.xlu0 %1889
      %1893 = vset.pattern.permute.xlu0 0
      %1894 = vperm.xlu0 %1893, %v1881
      %v1895 = vpop.permute.xlu0 %1894
      %v1897 = vadd.f32 %v1864, %v1885
      %v1898 = vadd.f32 %v1865, %v1885
      %v1899 = vadd.f32 %v1866, %v1885
      %v1900 = vadd.f32 %v1867, %v1885
      %v1901 = vadd.f32 %v1868, %v1885
      %v1902 = vadd.f32 %v1869, %v1890
      %v1903 = vadd.f32 %v1870, %v1890
      %v1904 = vadd.f32 %v1871, %v1890
      %v1905 = vadd.f32 %v1872, %v1890
      %v1906 = vadd.f32 %v1873, %v1890
      %v1907 = vadd.f32 %v1874, %v1895
      %v1908 = vadd.f32 %v1875, %v1895
      %v1909 = vadd.f32 %v1876, %v1895
      %v1910 = vadd.f32 %v1877, %v1895
      %v1911 = vadd.f32 %v1878, %v1895
      %v1912 = vtanh.pop %v1897
      %v1913 = vtanh.pop %v1898
      %v1914 = vtanh.pop %v1899
      %v1915 = vtanh.pop %v1900
      %v1916 = vtanh.pop %v1901
      %v1917 = vtanh.pop %v1902
      %v1918 = vtanh.pop %v1903
      %v1919 = vtanh.pop %v1904
      %v1920 = vtanh.pop %v1905
      %v1921 = vtanh.pop %v1906
      %v1922 = vtanh.pop %v1907
      %v1923 = vtanh.pop %v1908
      %v1924 = vtanh.pop %v1909
      %v1925 = vtanh.pop %v1910
      %v1926 = vtanh.pop %v1911
      %v1927 = vpack.c.bf16 %v1913, %v1912
      %v1928 = vpack.c.bf16 %v1915, %v1914
      %v1929 = vpack.c.bf16 %v1916, %v1916
      %v1930 = vpack.c.bf16 %v1918, %v1917
      %v1931 = vpack.c.bf16 %v1920, %v1919
      %v1932 = vpack.c.bf16 %v1921, %v1921
      %v1933 = vpack.c.bf16 %v1923, %v1922
      %v1934 = vpack.c.bf16 %v1925, %v1924
      %v1935 = vpack.c.bf16 %v1926, %v1926
      %1936 = vst [vmem:[%s170] sm:$0xff] %v1927
      %1937 = vst [vmem:[%s170 + $0x8] sm:$0xff] %v1928
      %vm1938 = vcmask 519168
      %1939 = vst.msk [vmem:[%s170 + $0x10] sm:$0xf] %vm1938, %v1929
      %1940 = vst [vmem:[%s170 + $0x14] sm:$0xff] %v1930
      %1941 = vst [vmem:[%s170 + $0x1c] sm:$0xff] %v1931
      %1942 = vst.msk [vmem:[%s170 + $0x24] sm:$0xf] %vm1938, %v1932
      %1943 = vst [vmem:[%s170 + $0x28] sm:$0x33] %v1933
      %1944 = vst [vmem:[%s170 + $0x30] sm:$0x33] %v1934
      %vm1945 = vcmask 517120
      %1946 = vst.msk [vmem:[%s170 + $0x38] sm:$0x3] %vm1945, %v1935
      %p1947 = scmp.lt.s32.totalorder %s14, 1
      %s1948 = scalar_select %p1947, %s14, 1
      %s1949 = smul.addr %s1948, 15
      %s1950 = smul.addr %s1949, 4
      %s1951 = scalar_lea.vmem %s3, %s1950
      // Predicated region
      $region33: #{decoder_a_forward.6} parent=31 // pred_check
        %p1952 = pneg %p100
      $region34: #{decoder_a_forward.6} parent=31 // pred_check_branch
        %1954 = sbr.rel (%p1952) target = $region36
      $region35: #{decoder_a_forward.6} parent=31 // pred_region
        _
      $region36: #{decoder_a_forward.6} parent=31 // pred_fallthru
        _
    $region32: #{decoder_a_forward.6} parent=5 // pred_fallthru
      _
    %p1955 = scmp.le.s32.totalorder 2, %s9
    // Predicated region
    $region37: #{decoder_a_forward.6} parent=5 // pred_check
      %p1956 = pneg %p1955
    $region38: #{decoder_a_forward.6} parent=5 // pred_check_branch
      %1958 = sbr.rel (%p1956) target = $region40
    $region39: #{decoder_a_forward.6} parent=5 // pred_region
      %s1959 = ssub.s32 %s9, 2
      // Predicated region
      $region41: #{decoder_a_forward.6} parent=39 // pred_check
        %p1960 = pneg %p106
      $region42: #{decoder_a_forward.6} parent=39 // pred_check_branch
        %1962 = sbr.rel (%p1960) target = $region44
      $region43: #{decoder_a_forward.6} parent=39 // pred_region
        %p1963 = scmp.lt.s32.totalorder %s15, 1
        %s1964 = scalar_select %p1963, %s15, 1
        %s1965 = smul.addr %s1964, 15
        %s1966 = smul.addr %s1965, 4
        %s1967 = scalar_lea.vmem %s3, %s1966
      $region44: #{decoder_a_forward.6} parent=39 // pred_fallthru
        _
    $region40: #{decoder_a_forward.6} parent=5 // pred_fallthru
      _
  $region6: #{decoder_a_forward.6} parent=0 // loop_footer
    %s13 = sadd.s32 1, %s9
  $region7: #{decoder_a_forward.6} parent=0 // loop_footer_branch
    %8 = sbr.rel target = $region3
  $region8: #{decoder_a_forward.6} parent=0 // loop_exit
    _

// kernel: decoder_a_forward.7
$region0: #{decoder_a_forward.7}
  #allocation0 [shape = 'u32[]', space=smem, size = 0x4, offset = 0x4, fixed_abs, tag = 'smem constant byte address 0x4 - core index']
  #allocation1 [shape = 'u32[72,128]{1,0:T(1,128)}', space=vmem, size = 0x9000, scoped, tag = 'internal scratch']
  %s0 = inlined_call_operand.vmem [shape: bf16[2,32,2312], index: 0, kind: input, shape index: {}]
  %s1 = inlined_call_operand.vmem [shape: bf16[9,16,32], index: 1, kind: input, shape index: {}]
  %s2 = inlined_call_operand.vmem [shape: f32[16,1], index: 2, kind: input, shape index: {}]
  %s3 = inlined_call_operand.vmem [shape: f32[2,1,2176], index: 3, kind: output, shape index: {}]
  %s4 = sld [smem:[#allocation0]]
  $region45: #{decoder_a_forward.7} parent=0
    _
  %s6 = ssub.s32 1, %s4
  %s7 = scalar_select 0, %s6, %s4
  loop: start=0, step=1, limit=4
  $region2: #{decoder_a_forward.7} parent=0 // loop_pre_header
    _
  $region3: #{decoder_a_forward.7} parent=0 // loop_header
    %s9 = sphi 0, %s13
    %p10 = scmp.ge.s32.totalorder %s9, 4
    %s19 = sphi 0, %s21
    %s22 = sphi 0, %s19
    %s23 = sphi 0, %s22
    %s39 = sphi 0, %s23
    %s43 = sphi 0, %s43
    %s45 = sphi 0, %s43
    %s46 = sphi 0, %s45
    %s60 = sphi 0, %s46
    %s64 = sphi 0, %s64
    %s66 = sphi 0, %s64
    %s67 = sphi 0, %s66
    %s81 = sphi 0, %s67
    %s87 = sphi 0, %s89
    %s90 = sphi 0, %s87
    %s91 = sphi 0, %s90
    %s107 = sphi 0, %s91
  $region4: #{decoder_a_forward.7} parent=0 // loop_header_branch
    %12 = sbr.rel (%p10) target = $region8
  $region5: #{decoder_a_forward.7} parent=0 // loop_body
    %s14 = ssub.s32 %s9, 1
    %s15 = ssub.s32 %s9, 2
    %s16 = sadd.s32 %s9, 1
    %s17 = ssub.s32 %s9, %s16
    %p18 = scmp.eq.s32.totalorder %s17, 0
    %s20 = sadd.s32 %s19, 1
    %s21 = scalar_select %p18, %s19, %s20
    %p24 = pneg %p18
    %p25 = scmp.eq.s32.totalorder %s9, 1
    %p26 = por %p24, %p25
    %p27 = scmp.ne.s32.totalorder %s19, %s22
    %p28 = scmp.eq.s32.totalorder %s9, 0
    %p29 = por %p27, %p28
    %p30 = scmp.ne.s32.totalorder %s19, %s22
    %p31 = scmp.eq.s32.totalorder %s14, 1
    %p32 = por %p30, %p31
    %p33 = scmp.ne.s32.totalorder %s22, %s23
    %p34 = scmp.eq.s32.totalorder %s14, 0
    %p35 = por %p33, %p34
    %p36 = scmp.ne.s32.totalorder %s22, %s23
    %p37 = scmp.eq.s32.totalorder %s15, 1
    %p38 = por %p36, %p37
    %p40 = scmp.ne.s32.totalorder %s23, %s39
    %p41 = scmp.eq.s32.totalorder %s15, 0
    %p42 = por %p40, %p41
    %s44 = sadd.s32 %s43, 1
    %p47 = scmp.eq.s32.totalorder %s9, 1
    %p48 = scmp.ne.s32.totalorder %s43, %s45
    %p49 = scmp.eq.s32.totalorder %s9, 0
    %p50 = por %p48, %p49
    %p51 = scmp.ne.s32.totalorder %s43, %s45
    %p52 = scmp.eq.s32.totalorder %s14, 1
    %p53 = por %p51, %p52
    %p54 = scmp.ne.s32.totalorder %s45, %s46
    %p55 = scmp.eq.s32.totalorder %s14, 0
    %p56 = por %p54, %p55
    %p57 = scmp.ne.s32.totalorder %s45, %s46
    %p58 = scmp.eq.s32.totalorder %s15, 1
    %p59 = por %p57, %p58
    %p61 = scmp.ne.s32.totalorder %s46, %s60
    %p62 = scmp.eq.s32.totalorder %s15, 0
    %p63 = por %p61, %p62
    %s65 = sadd.s32 %s64, 1
    %p68 = scmp.eq.s32.totalorder %s9, 1
    %p69 = scmp.ne.s32.totalorder %s64, %s66
    %p70 = scmp.eq.s32.totalorder %s9, 0
    %p71 = por %p69, %p70
    %p72 = scmp.ne.s32.totalorder %s64, %s66
    %p73 = scmp.eq.s32.totalorder %s14, 1
    %p74 = por %p72, %p73
    %p75 = scmp.ne.s32.totalorder %s66, %s67
    %p76 = scmp.eq.s32.totalorder %s14, 0
    %p77 = por %p75, %p76
    %p78 = scmp.ne.s32.totalorder %s66, %s67
    %p79 = scmp.eq.s32.totalorder %s15, 1
    %p80 = por %p78, %p79
    %p82 = scmp.ne.s32.totalorder %s67, %s81
    %p83 = scmp.eq.s32.totalorder %s15, 0
    %p84 = por %p82, %p83
    %s85 = ssub.s32 %s9, %s16
    %p86 = scmp.eq.s32.totalorder %s85, 0
    %s88 = sadd.s32 %s87, 1
    %s89 = scalar_select %p86, %s87, %s88
    %p92 = pneg %p86
    %p93 = scmp.eq.s32.totalorder %s9, 1
    %p94 = por %p92, %p93
    %p95 = scmp.ne.s32.totalorder %s87, %s90
    %p96 = scmp.eq.s32.totalorder %s9, 0
    %p97 = por %p95, %p96
    %p98 = scmp.ne.s32.totalorder %s87, %s90
    %p99 = scmp.eq.s32.totalorder %s14, 1
    %p100 = por %p98, %p99
    %p101 = scmp.ne.s32.totalorder %s90, %s91
    %p102 = scmp.eq.s32.totalorder %s14, 0
    %p103 = por %p101, %p102
    %p104 = scmp.ne.s32.totalorder %s90, %s91
    %p105 = scmp.eq.s32.totalorder %s15, 1
    %p106 = por %p104, %p105
    %p108 = scmp.ne.s32.totalorder %s91, %s107
    %p109 = scmp.eq.s32.totalorder %s15, 0
    %p110 = por %p108, %p109
    %p111 = scmp.le.s32.totalorder 1, %s9
    %p112 = scmp.lt.s32.totalorder %s9, 3
    %p113 = pnand %p111, %p112
    %p114 = pneg %p113
    // Predicated region
    $region9: #{decoder_a_forward.7} parent=5 // pred_check
      _
    $region10: #{decoder_a_forward.7} parent=5 // pred_check_branch
      %116 = sbr.rel (%p113) target = $region12
    $region11: #{decoder_a_forward.7} parent=5 // pred_region
      %s117 = ssub.s32 %s9, 1
      // Predicated region
      $region13: #{decoder_a_forward.7} parent=11 // pred_check
        %p118 = pneg %p56
      $region14: #{decoder_a_forward.7} parent=11 // pred_check_branch
        %120 = sbr.rel (%p118) target = $region16
      $region15: #{decoder_a_forward.7} parent=11 // pred_region
        _
      $region16: #{decoder_a_forward.7} parent=11 // pred_fallthru
        _
      // Predicated region
      $region17: #{decoder_a_forward.7} parent=11 // pred_check
        %p121 = pneg %p77
      $region18: #{decoder_a_forward.7} parent=11 // pred_check_branch
        %123 = sbr.rel (%p121) target = $region20
      $region19: #{decoder_a_forward.7} parent=11 // pred_region
        _
      $region20: #{decoder_a_forward.7} parent=11 // pred_fallthru
        _
    $region12: #{decoder_a_forward.7} parent=5 // pred_fallthru
      _
    %p124 = scmp.lt.s32.totalorder %s9, 2
    // Predicated region
    $region21: #{decoder_a_forward.7} parent=5 // pred_check
      %p125 = pneg %p124
    $region22: #{decoder_a_forward.7} parent=5 // pred_check_branch
      %127 = sbr.rel (%p125) target = $region24
    $region23: #{decoder_a_forward.7} parent=5 // pred_region
      // Predicated region
      $region25: #{decoder_a_forward.7} parent=23 // pred_check
        %p128 = pneg %p29
      $region26: #{decoder_a_forward.7} parent=23 // pred_check_branch
        %130 = sbr.rel (%p128) target = $region28
      $region27: #{decoder_a_forward.7} parent=23 // pred_region
        %p131 = scmp.lt.s32.totalorder %s9, 1
        %s132 = scalar_select %p131, %s9, 1
        %s133 = smul.addr %s132, 76
        %s134 = smul.addr %s133, 4
        %s135 = scalar_lea.vmem %s0, %s134
      $region28: #{decoder_a_forward.7} parent=23 // pred_fallthru
        _
    $region24: #{decoder_a_forward.7} parent=5 // pred_fallthru
      _
    %p136 = scmp.le.s32.totalorder 1, %s9
    %p137 = scmp.lt.s32.totalorder %s9, 3
    %p138 = pnand %p136, %p137
    %p139 = pneg %p138
    // Predicated region
    $region29: #{decoder_a_forward.7} parent=5 // pred_check
      _
    $region30: #{decoder_a_forward.7} parent=5 // pred_check_branch
      %141 = sbr.rel (%p138) target = $region32
    $region31: #{decoder_a_forward.7} parent=5 // pred_region
      %s142 = ssub.s32 %s9, 1
      %p143 = scmp.lt.s32.totalorder %s14, 1
      %s144 = scalar_select %p143, %s14, 1
      %s145 = smul.addr %s144, 76
      %s146 = smul.addr %s145, 4
      %s147 = scalar_lea.vmem %s0, %s146
      %p148 = pneg %p35
      %p149 = pneg %p32
      %p150 = pneg %p56
      %p151 = pneg %p53
      %p152 = pneg %p77
      %p153 = pneg %p74
      %p154 = pneg %p103
      %p155 = pneg %p100
      %p156 = scmp.lt.s32.totalorder %s14, 1
      %s157 = scalar_select %p156, %s14, 1
      %s158 = smul.addr %s157, 17
      %s159 = scalar_lea.vmem %s3, %s158
      %p160 = scmp.lt.s32.totalorder %s14, 1
      %s161 = scalar_select %p160, %s14, 1
      %s162 = smul.addr %s161, 76
      %s163 = smul.addr %s162, 4
      %s164 = scalar_lea.vmem %s0, %s163
      %p165 = scmp.lt.s32.totalorder %s14, 1
      %s166 = scalar_select %p165, %s14, 1
      %s167 = smul.addr %s166, 17
      %s168 = scalar_lea.vmem %s3, %s167
      %v170 = vld [vmem:[%s164] sm:$0xff]
      %v171 = vld [vmem:[%s164 + $0x8] sm:$0xff]
      %v172 = vld [vmem:[%s164 + $0x10] sm:$0xff]
      %v173 = vld [vmem:[%s164 + $0x18] sm:$0xff]
      %v174 = vld [vmem:[%s164 + $0x20] sm:$0xff]
      %v175 = vld [vmem:[%s164 + $0x28] sm:$0xff]
      %v176 = vld [vmem:[%s164 + $0x30] sm:$0xff]
      %v177 = vld [vmem:[%s164 + $0x38] sm:$0xff]
      %v178 = vld [vmem:[%s164 + $0x40] sm:$0xff]
      %v179 = vld [vmem:[%s164 + $0x4c] sm:$0xff]
      %v180 = vld [vmem:[%s164 + $0x54] sm:$0xff]
      %v181 = vld [vmem:[%s164 + $0x5c] sm:$0xff]
      %v182 = vld [vmem:[%s164 + $0x64] sm:$0xff]
      %v183 = vld [vmem:[%s164 + $0x6c] sm:$0xff]
      %v184 = vld [vmem:[%s164 + $0x74] sm:$0xff]
      %v185 = vld [vmem:[%s164 + $0x7c] sm:$0xff]
      %v186 = vld [vmem:[%s164 + $0x84] sm:$0xff]
      %v187 = vld [vmem:[%s164 + $0x8c] sm:$0xff]
      %v188 = vld [vmem:[%s164 + $0x98] sm:$0xff]
      %v189 = vld [vmem:[%s164 + $0xa0] sm:$0xff]
      %v190 = vld [vmem:[%s164 + $0xa8] sm:$0xff]
      %v191 = vld [vmem:[%s164 + $0xb0] sm:$0xff]
      %v192 = vld [vmem:[%s164 + $0xb8] sm:$0xff]
      %v193 = vld [vmem:[%s164 + $0xc0] sm:$0xff]
      %v194 = vld [vmem:[%s164 + $0xc8] sm:$0xff]
      %v195 = vld [vmem:[%s164 + $0xd0] sm:$0xff]
      %v196 = vld [vmem:[%s164 + $0xd8] sm:$0xff]
      %v197 = vld [vmem:[%s164 + $0xe4] sm:$0xff]
      %v198 = vld [vmem:[%s164 + $0xec] sm:$0xff]
      %v199 = vld [vmem:[%s164 + $0xf4] sm:$0xff]
      %v200 = vld [vmem:[%s164 + $0xfc] sm:$0xff]
      %v201 = vld [vmem:[%s164 + $0x104] sm:$0xff]
      %v202 = vld [vmem:[%s164 + $0x10c] sm:$0xff]
      %v203 = vld [vmem:[%s164 + $0x114] sm:$0xff]
      %v204 = vld [vmem:[%s164 + $0x11c] sm:$0xff]
      %v205 = vld [vmem:[%s164 + $0x124] sm:$0xff]
      %v206 = vld [vmem:[%s1] sm:$0xf]
      %v207 = vld [vmem:[%s1 + $0x4] sm:$0xf]
      %s208 = scalar_lea.vmem %s1, 8
      %v209 = vld [vmem:[%s208] sm:$0xf]
      %v210 = vld [vmem:[%s208 + $0x4] sm:$0xf]
      %v213 = vunpack.c.l.b16 %v209
      %v214 = vunpack.c.l.b16 %v210
      %v215 = vpack.c.b16 %v214, %v213
      %v252 = vunpack.c.l.b16 %v170
      %v253 = vunpack.c.h.b16 %v170
      %v254 = vunpack.c.l.b16 %v171
      %v255 = vunpack.c.h.b16 %v171
      %v256 = vunpack.c.l.b16 %v172
      %v257 = vunpack.c.h.b16 %v172
      %v258 = vunpack.c.l.b16 %v173
      %v259 = vunpack.c.h.b16 %v173
      %v260 = vunpack.c.l.b16 %v174
      %v261 = vunpack.c.h.b16 %v174
      %v262 = vunpack.c.l.b16 %v175
      %v263 = vunpack.c.h.b16 %v175
      %v264 = vunpack.c.l.b16 %v176
      %v265 = vunpack.c.h.b16 %v176
      %v266 = vunpack.c.l.b16 %v177
      %v267 = vunpack.c.h.b16 %v177
      %v268 = vunpack.c.l.b16 %v178
      %v269 = vunpack.c.h.b16 %v178
      %v270 = vunpack.c.l.b16 %v179
      %v271 = vunpack.c.h.b16 %v179
      %v272 = vunpack.c.l.b16 %v180
      %v273 = vunpack.c.h.b16 %v180
      %v274 = vunpack.c.l.b16 %v181
      %v275 = vunpack.c.h.b16 %v181
      %v276 = vunpack.c.l.b16 %v182
      %v277 = vunpack.c.h.b16 %v182
      %v278 = vunpack.c.l.b16 %v183
      %v279 = vunpack.c.h.b16 %v183
      %v280 = vunpack.c.l.b16 %v184
      %v281 = vunpack.c.h.b16 %v184
      %v282 = vunpack.c.l.b16 %v185
      %v283 = vunpack.c.h.b16 %v185
      %v284 = vunpack.c.l.b16 %v186
      %v285 = vunpack.c.h.b16 %v186
      %v286 = vunpack.c.l.b16 %v187
      %v287 = vunpack.c.h.b16 %v187
      %v288 = vunpack.c.l.b16 %v188
      %v289 = vunpack.c.h.b16 %v188
      %v290 = vunpack.c.l.b16 %v189
      %v291 = vunpack.c.h.b16 %v189
      %v292 = vunpack.c.l.b16 %v190
      %v293 = vunpack.c.h.b16 %v190
      %v294 = vunpack.c.l.b16 %v191
      %v295 = vunpack.c.h.b16 %v191
      %v296 = vunpack.c.l.b16 %v192
      %v297 = vunpack.c.h.b16 %v192
      %v298 = vunpack.c.l.b16 %v193
      %v299 = vunpack.c.h.b16 %v193
      %v300 = vunpack.c.l.b16 %v194
      %v301 = vunpack.c.h.b16 %v194
      %v302 = vunpack.c.l.b16 %v195
      %v303 = vunpack.c.h.b16 %v195
      %v304 = vunpack.c.l.b16 %v196
      %v305 = vunpack.c.h.b16 %v196
      %v306 = vunpack.c.l.b16 %v197
      %v307 = vunpack.c.h.b16 %v197
      %v308 = vunpack.c.l.b16 %v198
      %v309 = vunpack.c.h.b16 %v198
      %v310 = vunpack.c.l.b16 %v199
      %v311 = vunpack.c.h.b16 %v199
      %v312 = vunpack.c.l.b16 %v200
      %v313 = vunpack.c.h.b16 %v200
      %v314 = vunpack.c.l.b16 %v201
      %v315 = vunpack.c.h.b16 %v201
      %v316 = vunpack.c.l.b16 %v202
      %v317 = vunpack.c.h.b16 %v202
      %v318 = vunpack.c.l.b16 %v203
      %v319 = vunpack.c.h.b16 %v203
      %v320 = vunpack.c.l.b16 %v204
      %v321 = vunpack.c.h.b16 %v204
      %v322 = vunpack.c.l.b16 %v205
      %v323 = vunpack.c.h.b16 %v205
      %v324 = vpack.c.b16 %v270, %v252
      %v325 = vpack.c.b16 %v271, %v253
      %v326 = vpack.c.b16 %v272, %v254
      %v327 = vpack.c.b16 %v273, %v255
      %v328 = vpack.c.b16 %v274, %v256
      %v329 = vpack.c.b16 %v275, %v257
      %v330 = vpack.c.b16 %v276, %v258
      %v331 = vpack.c.b16 %v277, %v259
      %v332 = vpack.c.b16 %v278, %v260
      %v333 = vpack.c.b16 %v279, %v261
      %v334 = vpack.c.b16 %v280, %v262
      %v335 = vpack.c.b16 %v281, %v263
      %v336 = vpack.c.b16 %v282, %v264
      %v337 = vpack.c.b16 %v283, %v265
      %v338 = vpack.c.b16 %v284, %v266
      %v339 = vpack.c.b16 %v285, %v267
      %v340 = vpack.c.b16 %v286, %v268
      %v341 = vpack.c.b16 %v287, %v269
      %v342 = vpack.c.b16 %v306, %v288
      %v343 = vpack.c.b16 %v307, %v289
      %v344 = vpack.c.b16 %v308, %v290
      %v345 = vpack.c.b16 %v309, %v291
      %v346 = vpack.c.b16 %v310, %v292
      %v347 = vpack.c.b16 %v311, %v293
      %v348 = vpack.c.b16 %v312, %v294
      %v349 = vpack.c.b16 %v313, %v295
      %v350 = vpack.c.b16 %v314, %v296
      %v351 = vpack.c.b16 %v315, %v297
      %v352 = vpack.c.b16 %v316, %v298
      %v353 = vpack.c.b16 %v317, %v299
      %v354 = vpack.c.b16 %v318, %v300
      %v355 = vpack.c.b16 %v319, %v301
      %v356 = vpack.c.b16 %v320, %v302
      %v357 = vpack.c.b16 %v321, %v303
      %v358 = vpack.c.b16 %v322, %v304
      %v359 = vpack.c.b16 %v323, %v305
      %360 = vrot.lane.b32.xlu0 %v324, 94
      %v361 = vpop.permute.xlu0 %360
      %362 = vrot.lane.b32.xlu0 %v325, 94
      %v363 = vpop.permute.xlu0 %362
      %364 = vrot.lane.b32.xlu0 %v326, 94
      %v365 = vpop.permute.xlu0 %364
      %366 = vrot.lane.b32.xlu0 %v327, 94
      %v367 = vpop.permute.xlu0 %366
      %368 = vrot.lane.b32.xlu0 %v328, 94
      %v369 = vpop.permute.xlu0 %368
      %370 = vrot.lane.b32.xlu0 %v329, 94
      %v371 = vpop.permute.xlu0 %370
      %372 = vrot.lane.b32.xlu0 %v330, 94
      %v373 = vpop.permute.xlu0 %372
      %374 = vrot.lane.b32.xlu0 %v331, 94
      %v375 = vpop.permute.xlu0 %374
      %376 = vrot.lane.b32.xlu0 %v332, 94
      %v377 = vpop.permute.xlu0 %376
      %378 = vrot.lane.b32.xlu0 %v333, 94
      %v379 = vpop.permute.xlu0 %378
      %380 = vrot.lane.b32.xlu0 %v334, 94
      %v381 = vpop.permute.xlu0 %380
      %382 = vrot.lane.b32.xlu0 %v335, 94
      %v383 = vpop.permute.xlu0 %382
      %384 = vrot.lane.b32.xlu0 %v336, 94
      %v385 = vpop.permute.xlu0 %384
      %386 = vrot.lane.b32.xlu0 %v337, 94
      %v387 = vpop.permute.xlu0 %386
      %388 = vrot.lane.b32.xlu0 %v338, 94
      %v389 = vpop.permute.xlu0 %388
      %390 = vrot.lane.b32.xlu0 %v339, 94
      %v391 = vpop.permute.xlu0 %390
      %392 = vrot.lane.b32.xlu0 %v340, 94
      %v393 = vpop.permute.xlu0 %392
      %394 = vrot.lane.b32.xlu0 %v341, 94
      %v395 = vpop.permute.xlu0 %394
      %396 = vrot.lane.b32.xlu0 %v342, 94
      %v397 = vpop.permute.xlu0 %396
      %398 = vrot.lane.b32.xlu0 %v343, 94
      %v399 = vpop.permute.xlu0 %398
      %400 = vrot.lane.b32.xlu0 %v344, 94
      %v401 = vpop.permute.xlu0 %400
      %402 = vrot.lane.b32.xlu0 %v345, 94
      %v403 = vpop.permute.xlu0 %402
      %404 = vrot.lane.b32.xlu0 %v346, 94
      %v405 = vpop.permute.xlu0 %404
      %406 = vrot.lane.b32.xlu0 %v347, 94
      %v407 = vpop.permute.xlu0 %406
      %408 = vrot.lane.b32.xlu0 %v348, 94
      %v409 = vpop.permute.xlu0 %408
      %410 = vrot.lane.b32.xlu0 %v349, 94
      %v411 = vpop.permute.xlu0 %410
      %412 = vrot.lane.b32.xlu0 %v350, 94
      %v413 = vpop.permute.xlu0 %412
      %414 = vrot.lane.b32.xlu0 %v351, 94
      %v415 = vpop.permute.xlu0 %414
      %416 = vrot.lane.b32.xlu0 %v352, 94
      %v417 = vpop.permute.xlu0 %416
      %418 = vrot.lane.b32.xlu0 %v353, 94
      %v419 = vpop.permute.xlu0 %418
      %420 = vrot.lane.b32.xlu0 %v354, 94
      %v421 = vpop.permute.xlu0 %420
      %422 = vrot.lane.b32.xlu0 %v355, 94
      %v423 = vpop.permute.xlu0 %422
      %424 = vrot.lane.b32.xlu0 %v356, 94
      %v425 = vpop.permute.xlu0 %424
      %426 = vrot.lane.b32.xlu0 %v357, 94
      %v427 = vpop.permute.xlu0 %426
      %428 = vrot.lane.b32.xlu0 %v358, 94
      %v429 = vpop.permute.xlu0 %428
      %430 = vrot.lane.b32.xlu0 %v359, 94
      %v431 = vpop.permute.xlu0 %430
      %vm432 = vcmask 769024
      %v433 = vsel %vm432, %v361, %v363
      %v434 = vsel %vm432, %v363, %v365
      %v435 = vsel %vm432, %v365, %v367
      %v436 = vsel %vm432, %v367, %v369
      %v437 = vsel %vm432, %v369, %v371
      %v438 = vsel %vm432, %v371, %v373
      %v439 = vsel %vm432, %v373, %v375
      %v440 = vsel %vm432, %v375, %v377
      %v441 = vsel %vm432, %v377, %v379
      %v442 = vsel %vm432, %v379, %v381
      %v443 = vsel %vm432, %v381, %v383
      %v444 = vsel %vm432, %v383, %v385
      %v445 = vsel %vm432, %v385, %v387
      %v446 = vsel %vm432, %v387, %v389
      %v447 = vsel %vm432, %v389, %v391
      %v448 = vsel %vm432, %v391, %v393
      %v449 = vsel %vm432, %v393, %v395
      %v450 = vsel %vm432, %v397, %v399
      %v451 = vsel %vm432, %v399, %v401
      %v452 = vsel %vm432, %v401, %v403
      %v453 = vsel %vm432, %v403, %v405
      %v454 = vsel %vm432, %v405, %v407
      %v455 = vsel %vm432, %v407, %v409
      %v456 = vsel %vm432, %v409, %v411
      %v457 = vsel %vm432, %v411, %v413
      %v458 = vsel %vm432, %v413, %v415
      %v459 = vsel %vm432, %v415, %v417
      %v460 = vsel %vm432, %v417, %v419
      %v461 = vsel %vm432, %v419, %v421
      %v462 = vsel %vm432, %v421, %v423
      %v463 = vsel %vm432, %v423, %v425
      %v464 = vsel %vm432, %v425, %v427
      %v465 = vsel %vm432, %v427, %v429
      %v466 = vsel %vm432, %v429, %v431
      %vm501 = vcmask 261120
      %v503 = vsel %vm501, %v215, 0
      %505 = vmatpush.bf16.msra.mxu0 0
      %506 = vmatpush.bf16.msra.mxu0 0
      %507 = vmatpush.bf16.msra.mxu0 0
      %508 = vmatpush.bf16.msra.mxu0 0
      %509 = vmatpush.bf16.msra.mxu0 0
      %510 = vmatpush.bf16.msra.mxu0 0
      %511 = vmatpush.bf16.msra.mxu0 %v450
      %512 = vmatpush.bf16.msra.mxu0 %v433
      %513 = vmatmul.bf16.gmra.mxu0 %v503
      %v514 = vpop.f32.mrf.mxu0
      %v515 = vadd.f32 0.0, %v514
      %v516 = vpop.f32.mrf.mxu0
      %517 = vdwg.mxu0
      %518 = vmatpush.bf16.msra.mxu0 0
      %519 = vmatpush.bf16.msra.mxu0 0
      %520 = vmatpush.bf16.msra.mxu0 0
      %521 = vmatpush.bf16.msra.mxu0 0
      %522 = vmatpush.bf16.msra.mxu0 0
      %523 = vmatpush.bf16.msra.mxu0 0
      %524 = vmatpush.bf16.msra.mxu0 %v451
      %525 = vmatpush.bf16.msra.mxu0 %v434
      %526 = vmatmul.bf16.gmra.mxu0 %v503
      %v527 = vpop.f32.mrf.mxu0
      %v528 = vadd.f32 0.0, %v527
      %v529 = vpop.f32.mrf.mxu0
      %530 = vdwg.mxu0
      %531 = vmatpush.bf16.msra.mxu0 0
      %532 = vmatpush.bf16.msra.mxu0 0
      %533 = vmatpush.bf16.msra.mxu0 0
      %534 = vmatpush.bf16.msra.mxu0 0
      %535 = vmatpush.bf16.msra.mxu0 0
      %536 = vmatpush.bf16.msra.mxu0 0
      %537 = vmatpush.bf16.msra.mxu0 %v452
      %538 = vmatpush.bf16.msra.mxu0 %v435
      %539 = vmatmul.bf16.gmra.mxu0 %v503
      %v540 = vpop.f32.mrf.mxu0
      %v541 = vadd.f32 0.0, %v540
      %v542 = vpop.f32.mrf.mxu0
      %543 = vdwg.mxu0
      %544 = vmatpush.bf16.msra.mxu0 0
      %545 = vmatpush.bf16.msra.mxu0 0
      %546 = vmatpush.bf16.msra.mxu0 0
      %547 = vmatpush.bf16.msra.mxu0 0
      %548 = vmatpush.bf16.msra.mxu0 0
      %549 = vmatpush.bf16.msra.mxu0 0
      %550 = vmatpush.bf16.msra.mxu0 %v453
      %551 = vmatpush.bf16.msra.mxu0 %v436
      %552 = vmatmul.bf16.gmra.mxu0 %v503
      %v553 = vpop.f32.mrf.mxu0
      %v554 = vadd.f32 0.0, %v553
      %v555 = vpop.f32.mrf.mxu0
      %556 = vdwg.mxu0
      %557 = vmatpush.bf16.msra.mxu0 0
      %558 = vmatpush.bf16.msra.mxu0 0
      %559 = vmatpush.bf16.msra.mxu0 0
      %560 = vmatpush.bf16.msra.mxu0 0
      %561 = vmatpush.bf16.msra.mxu0 0
      %562 = vmatpush.bf16.msra.mxu0 0
      %563 = vmatpush.bf16.msra.mxu0 %v454
      %564 = vmatpush.bf16.msra.mxu0 %v437
      %565 = vmatmul.bf16.gmra.mxu0 %v503
      %v566 = vpop.f32.mrf.mxu0
      %v567 = vadd.f32 0.0, %v566
      %v568 = vpop.f32.mrf.mxu0
      %569 = vdwg.mxu0
      %570 = vmatpush.bf16.msra.mxu0 0
      %571 = vmatpush.bf16.msra.mxu0 0
      %572 = vmatpush.bf16.msra.mxu0 0
      %573 = vmatpush.bf16.msra.mxu0 0
      %574 = vmatpush.bf16.msra.mxu0 0
      %575 = vmatpush.bf16.msra.mxu0 0
      %576 = vmatpush.bf16.msra.mxu0 %v455
      %577 = vmatpush.bf16.msra.mxu0 %v438
      %578 = vmatmul.bf16.gmra.mxu0 %v503
      %v579 = vpop.f32.mrf.mxu0
      %v580 = vadd.f32 0.0, %v579
      %v581 = vpop.f32.mrf.mxu0
      %582 = vdwg.mxu0
      %583 = vmatpush.bf16.msra.mxu0 0
      %584 = vmatpush.bf16.msra.mxu0 0
      %585 = vmatpush.bf16.msra.mxu0 0
      %586 = vmatpush.bf16.msra.mxu0 0
      %587 = vmatpush.bf16.msra.mxu0 0
      %588 = vmatpush.bf16.msra.mxu0 0
      %589 = vmatpush.bf16.msra.mxu0 %v456
      %590 = vmatpush.bf16.msra.mxu0 %v439
      %591 = vmatmul.bf16.gmra.mxu0 %v503
      %v592 = vpop.f32.mrf.mxu0
      %v593 = vadd.f32 0.0, %v592
      %v594 = vpop.f32.mrf.mxu0
      %595 = vdwg.mxu0
      %596 = vmatpush.bf16.msra.mxu0 0
      %597 = vmatpush.bf16.msra.mxu0 0
      %598 = vmatpush.bf16.msra.mxu0 0
      %599 = vmatpush.bf16.msra.mxu0 0
      %600 = vmatpush.bf16.msra.mxu0 0
      %601 = vmatpush.bf16.msra.mxu0 0
      %602 = vmatpush.bf16.msra.mxu0 %v457
      %603 = vmatpush.bf16.msra.mxu0 %v440
      %604 = vmatmul.bf16.gmra.mxu0 %v503
      %v605 = vpop.f32.mrf.mxu0
      %v606 = vadd.f32 0.0, %v605
      %v607 = vpop.f32.mrf.mxu0
      %608 = vdwg.mxu0
      %609 = vmatpush.bf16.msra.mxu0 0
      %610 = vmatpush.bf16.msra.mxu0 0
      %611 = vmatpush.bf16.msra.mxu0 0
      %612 = vmatpush.bf16.msra.mxu0 0
      %613 = vmatpush.bf16.msra.mxu0 0
      %614 = vmatpush.bf16.msra.mxu0 0
      %615 = vmatpush.bf16.msra.mxu0 %v458
      %616 = vmatpush.bf16.msra.mxu0 %v441
      %617 = vmatmul.bf16.gmra.mxu0 %v503
      %v618 = vpop.f32.mrf.mxu0
      %v619 = vadd.f32 0.0, %v618
      %v620 = vpop.f32.mrf.mxu0
      %621 = vdwg.mxu0
      %622 = vmatpush.bf16.msra.mxu0 0
      %623 = vmatpush.bf16.msra.mxu0 0
      %624 = vmatpush.bf16.msra.mxu0 0
      %625 = vmatpush.bf16.msra.mxu0 0
      %626 = vmatpush.bf16.msra.mxu0 0
      %627 = vmatpush.bf16.msra.mxu0 0
      %628 = vmatpush.bf16.msra.mxu0 %v459
      %629 = vmatpush.bf16.msra.mxu0 %v442
      %630 = vmatmul.bf16.gmra.mxu0 %v503
      %v631 = vpop.f32.mrf.mxu0
      %v632 = vadd.f32 0.0, %v631
      %v633 = vpop.f32.mrf.mxu0
      %634 = vdwg.mxu0
      %635 = vmatpush.bf16.msra.mxu0 0
      %636 = vmatpush.bf16.msra.mxu0 0
      %637 = vmatpush.bf16.msra.mxu0 0
      %638 = vmatpush.bf16.msra.mxu0 0
      %639 = vmatpush.bf16.msra.mxu0 0
      %640 = vmatpush.bf16.msra.mxu0 0
      %641 = vmatpush.bf16.msra.mxu0 %v460
      %642 = vmatpush.bf16.msra.mxu0 %v443
      %643 = vmatmul.bf16.gmra.mxu0 %v503
      %v644 = vpop.f32.mrf.mxu0
      %v645 = vadd.f32 0.0, %v644
      %v646 = vpop.f32.mrf.mxu0
      %647 = vdwg.mxu0
      %648 = vmatpush.bf16.msra.mxu0 0
      %649 = vmatpush.bf16.msra.mxu0 0
      %650 = vmatpush.bf16.msra.mxu0 0
      %651 = vmatpush.bf16.msra.mxu0 0
      %652 = vmatpush.bf16.msra.mxu0 0
      %653 = vmatpush.bf16.msra.mxu0 0
      %654 = vmatpush.bf16.msra.mxu0 %v461
      %655 = vmatpush.bf16.msra.mxu0 %v444
      %656 = vmatmul.bf16.gmra.mxu0 %v503
      %v657 = vpop.f32.mrf.mxu0
      %v658 = vadd.f32 0.0, %v657
      %v659 = vpop.f32.mrf.mxu0
      %660 = vdwg.mxu0
      %661 = vmatpush.bf16.msra.mxu0 0
      %662 = vmatpush.bf16.msra.mxu0 0
      %663 = vmatpush.bf16.msra.mxu0 0
      %664 = vmatpush.bf16.msra.mxu0 0
      %665 = vmatpush.bf16.msra.mxu0 0
      %666 = vmatpush.bf16.msra.mxu0 0
      %667 = vmatpush.bf16.msra.mxu0 %v462
      %668 = vmatpush.bf16.msra.mxu0 %v445
      %669 = vmatmul.bf16.gmra.mxu0 %v503
      %v670 = vpop.f32.mrf.mxu0
      %v671 = vadd.f32 0.0, %v670
      %v672 = vpop.f32.mrf.mxu0
      %673 = vdwg.mxu0
      %674 = vmatpush.bf16.msra.mxu0 0
      %675 = vmatpush.bf16.msra.mxu0 0
      %676 = vmatpush.bf16.msra.mxu0 0
      %677 = vmatpush.bf16.msra.mxu0 0
      %678 = vmatpush.bf16.msra.mxu0 0
      %679 = vmatpush.bf16.msra.mxu0 0
      %680 = vmatpush.bf16.msra.mxu0 %v463
      %681 = vmatpush.bf16.msra.mxu0 %v446
      %682 = vmatmul.bf16.gmra.mxu0 %v503
      %v683 = vpop.f32.mrf.mxu0
      %v684 = vadd.f32 0.0, %v683
      %v685 = vpop.f32.mrf.mxu0
      %686 = vdwg.mxu0
      %687 = vmatpush.bf16.msra.mxu0 0
      %688 = vmatpush.bf16.msra.mxu0 0
      %689 = vmatpush.bf16.msra.mxu0 0
      %690 = vmatpush.bf16.msra.mxu0 0
      %691 = vmatpush.bf16.msra.mxu0 0
      %692 = vmatpush.bf16.msra.mxu0 0
      %693 = vmatpush.bf16.msra.mxu0 %v464
      %694 = vmatpush.bf16.msra.mxu0 %v447
      %695 = vmatmul.bf16.gmra.mxu0 %v503
      %v696 = vpop.f32.mrf.mxu0
      %v697 = vadd.f32 0.0, %v696
      %v698 = vpop.f32.mrf.mxu0
      %699 = vdwg.mxu0
      %700 = vmatpush.bf16.msra.mxu0 0
      %701 = vmatpush.bf16.msra.mxu0 0
      %702 = vmatpush.bf16.msra.mxu0 0
      %703 = vmatpush.bf16.msra.mxu0 0
      %704 = vmatpush.bf16.msra.mxu0 0
      %705 = vmatpush.bf16.msra.mxu0 0
      %706 = vmatpush.bf16.msra.mxu0 %v465
      %707 = vmatpush.bf16.msra.mxu0 %v448
      %708 = vmatmul.bf16.gmra.mxu0 %v503
      %v709 = vpop.f32.mrf.mxu0
      %v710 = vadd.f32 0.0, %v709
      %v711 = vpop.f32.mrf.mxu0
      %712 = vdwg.mxu0
      %713 = vmatpush.bf16.msra.mxu0 0
      %714 = vmatpush.bf16.msra.mxu0 0
      %715 = vmatpush.bf16.msra.mxu0 0
      %716 = vmatpush.bf16.msra.mxu0 0
      %717 = vmatpush.bf16.msra.mxu0 0
      %718 = vmatpush.bf16.msra.mxu0 0
      %719 = vmatpush.bf16.msra.mxu0 %v466
      %720 = vmatpush.bf16.msra.mxu0 %v449
      %721 = vmatmul.bf16.gmra.mxu0 %v503
      %v722 = vpop.f32.mrf.mxu0
      %v723 = vadd.f32 0.0, %v722
      %v724 = vpop.f32.mrf.mxu0
      %725 = vdwg.mxu0
      %v728 = vunpack.c.l.b16 %v206
      %v729 = vunpack.c.l.b16 %v207
      %v730 = vpack.c.b16 %v729, %v728
      %731 = vrot.lane.b32.xlu0 %v324, 95
      %v732 = vpop.permute.xlu0 %731
      %733 = vrot.lane.b32.xlu0 %v325, 95
      %v734 = vpop.permute.xlu0 %733
      %735 = vrot.lane.b32.xlu0 %v326, 95
      %v736 = vpop.permute.xlu0 %735
      %737 = vrot.lane.b32.xlu0 %v327, 95
      %v738 = vpop.permute.xlu0 %737
      %739 = vrot.lane.b32.xlu0 %v328, 95
      %v740 = vpop.permute.xlu0 %739
      %741 = vrot.lane.b32.xlu0 %v329, 95
      %v742 = vpop.permute.xlu0 %741
      %743 = vrot.lane.b32.xlu0 %v330, 95
      %v744 = vpop.permute.xlu0 %743
      %745 = vrot.lane.b32.xlu0 %v331, 95
      %v746 = vpop.permute.xlu0 %745
      %747 = vrot.lane.b32.xlu0 %v332, 95
      %v748 = vpop.permute.xlu0 %747
      %749 = vrot.lane.b32.xlu0 %v333, 95
      %v750 = vpop.permute.xlu0 %749
      %751 = vrot.lane.b32.xlu0 %v334, 95
      %v752 = vpop.permute.xlu0 %751
      %753 = vrot.lane.b32.xlu0 %v335, 95
      %v754 = vpop.permute.xlu0 %753
      %755 = vrot.lane.b32.xlu0 %v336, 95
      %v756 = vpop.permute.xlu0 %755
      %757 = vrot.lane.b32.xlu0 %v337, 95
      %v758 = vpop.permute.xlu0 %757
      %759 = vrot.lane.b32.xlu0 %v338, 95
      %v760 = vpop.permute.xlu0 %759
      %761 = vrot.lane.b32.xlu0 %v339, 95
      %v762 = vpop.permute.xlu0 %761
      %763 = vrot.lane.b32.xlu0 %v340, 95
      %v764 = vpop.permute.xlu0 %763
      %765 = vrot.lane.b32.xlu0 %v341, 95
      %v766 = vpop.permute.xlu0 %765
      %767 = vrot.lane.b32.xlu0 %v342, 95
      %v768 = vpop.permute.xlu0 %767
      %769 = vrot.lane.b32.xlu0 %v343, 95
      %v770 = vpop.permute.xlu0 %769
      %771 = vrot.lane.b32.xlu0 %v344, 95
      %v772 = vpop.permute.xlu0 %771
      %773 = vrot.lane.b32.xlu0 %v345, 95
      %v774 = vpop.permute.xlu0 %773
      %775 = vrot.lane.b32.xlu0 %v346, 95
      %v776 = vpop.permute.xlu0 %775
      %777 = vrot.lane.b32.xlu0 %v347, 95
      %v778 = vpop.permute.xlu0 %777
      %779 = vrot.lane.b32.xlu0 %v348, 95
      %v780 = vpop.permute.xlu0 %779
      %781 = vrot.lane.b32.xlu0 %v349, 95
      %v782 = vpop.permute.xlu0 %781
      %783 = vrot.lane.b32.xlu0 %v350, 95
      %v784 = vpop.permute.xlu0 %783
      %785 = vrot.lane.b32.xlu0 %v351, 95
      %v786 = vpop.permute.xlu0 %785
      %787 = vrot.lane.b32.xlu0 %v352, 95
      %v788 = vpop.permute.xlu0 %787
      %789 = vrot.lane.b32.xlu0 %v353, 95
      %v790 = vpop.permute.xlu0 %789
      %791 = vrot.lane.b32.xlu0 %v354, 95
      %v792 = vpop.permute.xlu0 %791
      %793 = vrot.lane.b32.xlu0 %v355, 95
      %v794 = vpop.permute.xlu0 %793
      %795 = vrot.lane.b32.xlu0 %v356, 95
      %v796 = vpop.permute.xlu0 %795
      %797 = vrot.lane.b32.xlu0 %v357, 95
      %v798 = vpop.permute.xlu0 %797
      %799 = vrot.lane.b32.xlu0 %v358, 95
      %v800 = vpop.permute.xlu0 %799
      %801 = vrot.lane.b32.xlu0 %v359, 95
      %v802 = vpop.permute.xlu0 %801
      %vm803 = vcmask 777216
      %v804 = vsel %vm803, %v732, %v734
      %v805 = vsel %vm803, %v734, %v736
      %v806 = vsel %vm803, %v736, %v738
      %v807 = vsel %vm803, %v738, %v740
      %v808 = vsel %vm803, %v740, %v742
      %v809 = vsel %vm803, %v742, %v744
      %v810 = vsel %vm803, %v744, %v746
      %v811 = vsel %vm803, %v746, %v748
      %v812 = vsel %vm803, %v748, %v750
      %v813 = vsel %vm803, %v750, %v752
      %v814 = vsel %vm803, %v752, %v754
      %v815 = vsel %vm803, %v754, %v756
      %v816 = vsel %vm803, %v756, %v758
      %v817 = vsel %vm803, %v758, %v760
      %v818 = vsel %vm803, %v760, %v762
      %v819 = vsel %vm803, %v762, %v764
      %v820 = vsel %vm803, %v764, %v766
      %v821 = vsel %vm803, %v768, %v770
      %v822 = vsel %vm803, %v770, %v772
      %v823 = vsel %vm803, %v772, %v774
      %v824 = vsel %vm803, %v774, %v776
      %v825 = vsel %vm803, %v776, %v778
      %v826 = vsel %vm803, %v778, %v780
      %v827 = vsel %vm803, %v780, %v782
      %v828 = vsel %vm803, %v782, %v784
      %v829 = vsel %vm803, %v784, %v786
      %v830 = vsel %vm803, %v786, %v788
      %v831 = vsel %vm803, %v788, %v790
      %v832 = vsel %vm803, %v790, %v792
      %v833 = vsel %vm803, %v792, %v794
      %v834 = vsel %vm803, %v794, %v796
      %v835 = vsel %vm803, %v796, %v798
      %v836 = vsel %vm803, %v798, %v800
      %v837 = vsel %vm803, %v800, %v802
      %v873 = vsel %vm501, %v730, 0
      %875 = vmatpush.bf16.msra.mxu0 0
      %876 = vmatpush.bf16.msra.mxu0 0
      %877 = vmatpush.bf16.msra.mxu0 0
      %878 = vmatpush.bf16.msra.mxu0 0
      %879 = vmatpush.bf16.msra.mxu0 0
      %880 = vmatpush.bf16.msra.mxu0 0
      %881 = vmatpush.bf16.msra.mxu0 %v821
      %882 = vmatpush.bf16.msra.mxu0 %v804
      %883 = vmatmul.bf16.gmra.mxu0 %v873
      %v884 = vpop.f32.mrf.mxu0
      %v885 = vadd.f32 %v515, %v884
      %v886 = vpop.f32.mrf.mxu0
      %887 = vdwg.mxu0
      %888 = vmatpush.bf16.msra.mxu0 0
      %889 = vmatpush.bf16.msra.mxu0 0
      %890 = vmatpush.bf16.msra.mxu0 0
      %891 = vmatpush.bf16.msra.mxu0 0
      %892 = vmatpush.bf16.msra.mxu0 0
      %893 = vmatpush.bf16.msra.mxu0 0
      %894 = vmatpush.bf16.msra.mxu0 %v822
      %895 = vmatpush.bf16.msra.mxu0 %v805
      %896 = vmatmul.bf16.gmra.mxu0 %v873
      %v897 = vpop.f32.mrf.mxu0
      %v898 = vadd.f32 %v528, %v897
      %v899 = vpop.f32.mrf.mxu0
      %900 = vdwg.mxu0
      %901 = vmatpush.bf16.msra.mxu0 0
      %902 = vmatpush.bf16.msra.mxu0 0
      %903 = vmatpush.bf16.msra.mxu0 0
      %904 = vmatpush.bf16.msra.mxu0 0
      %905 = vmatpush.bf16.msra.mxu0 0
      %906 = vmatpush.bf16.msra.mxu0 0
      %907 = vmatpush.bf16.msra.mxu0 %v823
      %908 = vmatpush.bf16.msra.mxu0 %v806
      %909 = vmatmul.bf16.gmra.mxu0 %v873
      %v910 = vpop.f32.mrf.mxu0
      %v911 = vadd.f32 %v541, %v910
      %v912 = vpop.f32.mrf.mxu0
      %913 = vdwg.mxu0
      %914 = vmatpush.bf16.msra.mxu0 0
      %915 = vmatpush.bf16.msra.mxu0 0
      %916 = vmatpush.bf16.msra.mxu0 0
      %917 = vmatpush.bf16.msra.mxu0 0
      %918 = vmatpush.bf16.msra.mxu0 0
      %919 = vmatpush.bf16.msra.mxu0 0
      %920 = vmatpush.bf16.msra.mxu0 %v824
      %921 = vmatpush.bf16.msra.mxu0 %v807
      %922 = vmatmul.bf16.gmra.mxu0 %v873
      %v923 = vpop.f32.mrf.mxu0
      %v924 = vadd.f32 %v554, %v923
      %v925 = vpop.f32.mrf.mxu0
      %926 = vdwg.mxu0
      %927 = vmatpush.bf16.msra.mxu0 0
      %928 = vmatpush.bf16.msra.mxu0 0
      %929 = vmatpush.bf16.msra.mxu0 0
      %930 = vmatpush.bf16.msra.mxu0 0
      %931 = vmatpush.bf16.msra.mxu0 0
      %932 = vmatpush.bf16.msra.mxu0 0
      %933 = vmatpush.bf16.msra.mxu0 %v825
      %934 = vmatpush.bf16.msra.mxu0 %v808
      %935 = vmatmul.bf16.gmra.mxu0 %v873
      %v936 = vpop.f32.mrf.mxu0
      %v937 = vadd.f32 %v567, %v936
      %v938 = vpop.f32.mrf.mxu0
      %939 = vdwg.mxu0
      %940 = vmatpush.bf16.msra.mxu0 0
      %941 = vmatpush.bf16.msra.mxu0 0
      %942 = vmatpush.bf16.msra.mxu0 0
      %943 = vmatpush.bf16.msra.mxu0 0
      %944 = vmatpush.bf16.msra.mxu0 0
      %945 = vmatpush.bf16.msra.mxu0 0
      %946 = vmatpush.bf16.msra.mxu0 %v826
      %947 = vmatpush.bf16.msra.mxu0 %v809
      %948 = vmatmul.bf16.gmra.mxu0 %v873
      %v949 = vpop.f32.mrf.mxu0
      %v950 = vadd.f32 %v580, %v949
      %v951 = vpop.f32.mrf.mxu0
      %952 = vdwg.mxu0
      %953 = vmatpush.bf16.msra.mxu0 0
      %954 = vmatpush.bf16.msra.mxu0 0
      %955 = vmatpush.bf16.msra.mxu0 0
      %956 = vmatpush.bf16.msra.mxu0 0
      %957 = vmatpush.bf16.msra.mxu0 0
      %958 = vmatpush.bf16.msra.mxu0 0
      %959 = vmatpush.bf16.msra.mxu0 %v827
      %960 = vmatpush.bf16.msra.mxu0 %v810
      %961 = vmatmul.bf16.gmra.mxu0 %v873
      %v962 = vpop.f32.mrf.mxu0
      %v963 = vadd.f32 %v593, %v962
      %v964 = vpop.f32.mrf.mxu0
      %965 = vdwg.mxu0
      %966 = vmatpush.bf16.msra.mxu0 0
      %967 = vmatpush.bf16.msra.mxu0 0
      %968 = vmatpush.bf16.msra.mxu0 0
      %969 = vmatpush.bf16.msra.mxu0 0
      %970 = vmatpush.bf16.msra.mxu0 0
      %971 = vmatpush.bf16.msra.mxu0 0
      %972 = vmatpush.bf16.msra.mxu0 %v828
      %973 = vmatpush.bf16.msra.mxu0 %v811
      %974 = vmatmul.bf16.gmra.mxu0 %v873
      %v975 = vpop.f32.mrf.mxu0
      %v976 = vadd.f32 %v606, %v975
      %v977 = vpop.f32.mrf.mxu0
      %978 = vdwg.mxu0
      %979 = vmatpush.bf16.msra.mxu0 0
      %980 = vmatpush.bf16.msra.mxu0 0
      %981 = vmatpush.bf16.msra.mxu0 0
      %982 = vmatpush.bf16.msra.mxu0 0
      %983 = vmatpush.bf16.msra.mxu0 0
      %984 = vmatpush.bf16.msra.mxu0 0
      %985 = vmatpush.bf16.msra.mxu0 %v829
      %986 = vmatpush.bf16.msra.mxu0 %v812
      %987 = vmatmul.bf16.gmra.mxu0 %v873
      %v988 = vpop.f32.mrf.mxu0
      %v989 = vadd.f32 %v619, %v988
      %v990 = vpop.f32.mrf.mxu0
      %991 = vdwg.mxu0
      %992 = vmatpush.bf16.msra.mxu0 0
      %993 = vmatpush.bf16.msra.mxu0 0
      %994 = vmatpush.bf16.msra.mxu0 0
      %995 = vmatpush.bf16.msra.mxu0 0
      %996 = vmatpush.bf16.msra.mxu0 0
      %997 = vmatpush.bf16.msra.mxu0 0
      %998 = vmatpush.bf16.msra.mxu0 %v830
      %999 = vmatpush.bf16.msra.mxu0 %v813
      %1000 = vmatmul.bf16.gmra.mxu0 %v873
      %v1001 = vpop.f32.mrf.mxu0
      %v1002 = vadd.f32 %v632, %v1001
      %v1003 = vpop.f32.mrf.mxu0
      %1004 = vdwg.mxu0
      %1005 = vmatpush.bf16.msra.mxu0 0
      %1006 = vmatpush.bf16.msra.mxu0 0
      %1007 = vmatpush.bf16.msra.mxu0 0
      %1008 = vmatpush.bf16.msra.mxu0 0
      %1009 = vmatpush.bf16.msra.mxu0 0
      %1010 = vmatpush.bf16.msra.mxu0 0
      %1011 = vmatpush.bf16.msra.mxu0 %v831
      %1012 = vmatpush.bf16.msra.mxu0 %v814
      %1013 = vmatmul.bf16.gmra.mxu0 %v873
      %v1014 = vpop.f32.mrf.mxu0
      %v1015 = vadd.f32 %v645, %v1014
      %v1016 = vpop.f32.mrf.mxu0
      %1017 = vdwg.mxu0
      %1018 = vmatpush.bf16.msra.mxu0 0
      %1019 = vmatpush.bf16.msra.mxu0 0
      %1020 = vmatpush.bf16.msra.mxu0 0
      %1021 = vmatpush.bf16.msra.mxu0 0
      %1022 = vmatpush.bf16.msra.mxu0 0
      %1023 = vmatpush.bf16.msra.mxu0 0
      %1024 = vmatpush.bf16.msra.mxu0 %v832
      %1025 = vmatpush.bf16.msra.mxu0 %v815
      %1026 = vmatmul.bf16.gmra.mxu0 %v873
      %v1027 = vpop.f32.mrf.mxu0
      %v1028 = vadd.f32 %v658, %v1027
      %v1029 = vpop.f32.mrf.mxu0
      %1030 = vdwg.mxu0
      %1031 = vmatpush.bf16.msra.mxu0 0
      %1032 = vmatpush.bf16.msra.mxu0 0
      %1033 = vmatpush.bf16.msra.mxu0 0
      %1034 = vmatpush.bf16.msra.mxu0 0
      %1035 = vmatpush.bf16.msra.mxu0 0
      %1036 = vmatpush.bf16.msra.mxu0 0
      %1037 = vmatpush.bf16.msra.mxu0 %v833
      %1038 = vmatpush.bf16.msra.mxu0 %v816
      %1039 = vmatmul.bf16.gmra.mxu0 %v873
      %v1040 = vpop.f32.mrf.mxu0
      %v1041 = vadd.f32 %v671, %v1040
      %v1042 = vpop.f32.mrf.mxu0
      %1043 = vdwg.mxu0
      %1044 = vmatpush.bf16.msra.mxu0 0
      %1045 = vmatpush.bf16.msra.mxu0 0
      %1046 = vmatpush.bf16.msra.mxu0 0
      %1047 = vmatpush.bf16.msra.mxu0 0
      %1048 = vmatpush.bf16.msra.mxu0 0
      %1049 = vmatpush.bf16.msra.mxu0 0
      %1050 = vmatpush.bf16.msra.mxu0 %v834
      %1051 = vmatpush.bf16.msra.mxu0 %v817
      %1052 = vmatmul.bf16.gmra.mxu0 %v873
      %v1053 = vpop.f32.mrf.mxu0
      %v1054 = vadd.f32 %v684, %v1053
      %v1055 = vpop.f32.mrf.mxu0
      %1056 = vdwg.mxu0
      %1057 = vmatpush.bf16.msra.mxu0 0
      %1058 = vmatpush.bf16.msra.mxu0 0
      %1059 = vmatpush.bf16.msra.mxu0 0
      %1060 = vmatpush.bf16.msra.mxu0 0
      %1061 = vmatpush.bf16.msra.mxu0 0
      %1062 = vmatpush.bf16.msra.mxu0 0
      %1063 = vmatpush.bf16.msra.mxu0 %v835
      %1064 = vmatpush.bf16.msra.mxu0 %v818
      %1065 = vmatmul.bf16.gmra.mxu0 %v873
      %v1066 = vpop.f32.mrf.mxu0
      %v1067 = vadd.f32 %v697, %v1066
      %v1068 = vpop.f32.mrf.mxu0
      %1069 = vdwg.mxu0
      %1070 = vmatpush.bf16.msra.mxu0 0
      %1071 = vmatpush.bf16.msra.mxu0 0
      %1072 = vmatpush.bf16.msra.mxu0 0
      %1073 = vmatpush.bf16.msra.mxu0 0
      %1074 = vmatpush.bf16.msra.mxu0 0
      %1075 = vmatpush.bf16.msra.mxu0 0
      %1076 = vmatpush.bf16.msra.mxu0 %v836
      %1077 = vmatpush.bf16.msra.mxu0 %v819
      %1078 = vmatmul.bf16.gmra.mxu0 %v873
      %v1079 = vpop.f32.mrf.mxu0
      %v1080 = vadd.f32 %v710, %v1079
      %v1081 = vpop.f32.mrf.mxu0
      %1082 = vdwg.mxu0
      %1083 = vmatpush.bf16.msra.mxu0 0
      %1084 = vmatpush.bf16.msra.mxu0 0
      %1085 = vmatpush.bf16.msra.mxu0 0
      %1086 = vmatpush.bf16.msra.mxu0 0
      %1087 = vmatpush.bf16.msra.mxu0 0
      %1088 = vmatpush.bf16.msra.mxu0 0
      %1089 = vmatpush.bf16.msra.mxu0 %v837
      %1090 = vmatpush.bf16.msra.mxu0 %v820
      %1091 = vmatmul.bf16.gmra.mxu0 %v873
      %v1092 = vpop.f32.mrf.mxu0
      %v1093 = vadd.f32 %v723, %v1092
      %v1094 = vpop.f32.mrf.mxu0
      %1095 = vdwg.mxu0
      %s1096 = scalar_lea.vmem %s1, 16
      %v1097 = vld [vmem:[%s1096] sm:$0xf]
      %v1098 = vld [vmem:[%s1096 + $0x4] sm:$0xf]
      %v1101 = vunpack.c.l.b16 %v1097
      %v1102 = vunpack.c.l.b16 %v1098
      %v1103 = vpack.c.b16 %v1102, %v1101
      %1104 = vrot.lane.b32.xlu0 %v324, 93
      %v1105 = vpop.permute.xlu0 %1104
      %1106 = vrot.lane.b32.xlu0 %v325, 93
      %v1107 = vpop.permute.xlu0 %1106
      %1108 = vrot.lane.b32.xlu0 %v326, 93
      %v1109 = vpop.permute.xlu0 %1108
      %1110 = vrot.lane.b32.xlu0 %v327, 93
      %v1111 = vpop.permute.xlu0 %1110
      %1112 = vrot.lane.b32.xlu0 %v328, 93
      %v1113 = vpop.permute.xlu0 %1112
      %1114 = vrot.lane.b32.xlu0 %v329, 93
      %v1115 = vpop.permute.xlu0 %1114
      %1116 = vrot.lane.b32.xlu0 %v330, 93
      %v1117 = vpop.permute.xlu0 %1116
      %1118 = vrot.lane.b32.xlu0 %v331, 93
      %v1119 = vpop.permute.xlu0 %1118
      %1120 = vrot.lane.b32.xlu0 %v332, 93
      %v1121 = vpop.permute.xlu0 %1120
      %1122 = vrot.lane.b32.xlu0 %v333, 93
      %v1123 = vpop.permute.xlu0 %1122
      %1124 = vrot.lane.b32.xlu0 %v334, 93
      %v1125 = vpop.permute.xlu0 %1124
      %1126 = vrot.lane.b32.xlu0 %v335, 93
      %v1127 = vpop.permute.xlu0 %1126
      %1128 = vrot.lane.b32.xlu0 %v336, 93
      %v1129 = vpop.permute.xlu0 %1128
      %1130 = vrot.lane.b32.xlu0 %v337, 93
      %v1131 = vpop.permute.xlu0 %1130
      %1132 = vrot.lane.b32.xlu0 %v338, 93
      %v1133 = vpop.permute.xlu0 %1132
      %1134 = vrot.lane.b32.xlu0 %v339, 93
      %v1135 = vpop.permute.xlu0 %1134
      %1136 = vrot.lane.b32.xlu0 %v340, 93
      %v1137 = vpop.permute.xlu0 %1136
      %1138 = vrot.lane.b32.xlu0 %v341, 93
      %v1139 = vpop.permute.xlu0 %1138
      %1140 = vrot.lane.b32.xlu0 %v342, 93
      %v1141 = vpop.permute.xlu0 %1140
      %1142 = vrot.lane.b32.xlu0 %v343, 93
      %v1143 = vpop.permute.xlu0 %1142
      %1144 = vrot.lane.b32.xlu0 %v344, 93
      %v1145 = vpop.permute.xlu0 %1144
      %1146 = vrot.lane.b32.xlu0 %v345, 93
      %v1147 = vpop.permute.xlu0 %1146
      %1148 = vrot.lane.b32.xlu0 %v346, 93
      %v1149 = vpop.permute.xlu0 %1148
      %1150 = vrot.lane.b32.xlu0 %v347, 93
      %v1151 = vpop.permute.xlu0 %1150
      %1152 = vrot.lane.b32.xlu0 %v348, 93
      %v1153 = vpop.permute.xlu0 %1152
      %1154 = vrot.lane.b32.xlu0 %v349, 93
      %v1155 = vpop.permute.xlu0 %1154
      %1156 = vrot.lane.b32.xlu0 %v350, 93
      %v1157 = vpop.permute.xlu0 %1156
      %1158 = vrot.lane.b32.xlu0 %v351, 93
      %v1159 = vpop.permute.xlu0 %1158
      %1160 = vrot.lane.b32.xlu0 %v352, 93
      %v1161 = vpop.permute.xlu0 %1160
      %1162 = vrot.lane.b32.xlu0 %v353, 93
      %v1163 = vpop.permute.xlu0 %1162
      %1164 = vrot.lane.b32.xlu0 %v354, 93
      %v1165 = vpop.permute.xlu0 %1164
      %1166 = vrot.lane.b32.xlu0 %v355, 93
      %v1167 = vpop.permute.xlu0 %1166
      %1168 = vrot.lane.b32.xlu0 %v356, 93
      %v1169 = vpop.permute.xlu0 %1168
      %1170 = vrot.lane.b32.xlu0 %v357, 93
      %v1171 = vpop.permute.xlu0 %1170
      %1172 = vrot.lane.b32.xlu0 %v358, 93
      %v1173 = vpop.permute.xlu0 %1172
      %1174 = vrot.lane.b32.xlu0 %v359, 93
      %v1175 = vpop.permute.xlu0 %1174
      %vm1176 = vcmask 760832
      %v1177 = vsel %vm1176, %v1105, %v1107
      %v1178 = vsel %vm1176, %v1107, %v1109
      %v1179 = vsel %vm1176, %v1109, %v1111
      %v1180 = vsel %vm1176, %v1111, %v1113
      %v1181 = vsel %vm1176, %v1113, %v1115
      %v1182 = vsel %vm1176, %v1115, %v1117
      %v1183 = vsel %vm1176, %v1117, %v1119
      %v1184 = vsel %vm1176, %v1119, %v1121
      %v1185 = vsel %vm1176, %v1121, %v1123
      %v1186 = vsel %vm1176, %v1123, %v1125
      %v1187 = vsel %vm1176, %v1125, %v1127
      %v1188 = vsel %vm1176, %v1127, %v1129
      %v1189 = vsel %vm1176, %v1129, %v1131
      %v1190 = vsel %vm1176, %v1131, %v1133
      %v1191 = vsel %vm1176, %v1133, %v1135
      %v1192 = vsel %vm1176, %v1135, %v1137
      %v1193 = vsel %vm1176, %v1137, %v1139
      %v1194 = vsel %vm1176, %v1141, %v1143
      %v1195 = vsel %vm1176, %v1143, %v1145
      %v1196 = vsel %vm1176, %v1145, %v1147
      %v1197 = vsel %vm1176, %v1147, %v1149
      %v1198 = vsel %vm1176, %v1149, %v1151
      %v1199 = vsel %vm1176, %v1151, %v1153
      %v1200 = vsel %vm1176, %v1153, %v1155
      %v1201 = vsel %vm1176, %v1155, %v1157
      %v1202 = vsel %vm1176, %v1157, %v1159
      %v1203 = vsel %vm1176, %v1159, %v1161
      %v1204 = vsel %vm1176, %v1161, %v1163
      %v1205 = vsel %vm1176, %v1163, %v1165
      %v1206 = vsel %vm1176, %v1165, %v1167
      %v1207 = vsel %vm1176, %v1167, %v1169
      %v1208 = vsel %vm1176, %v1169, %v1171
      %v1209 = vsel %vm1176, %v1171, %v1173
      %v1210 = vsel %vm1176, %v1173, %v1175
      %v1246 = vsel %vm501, %v1103, 0
      %1248 = vmatpush.bf16.msra.mxu0 0
      %1249 = vmatpush.bf16.msra.mxu0 0
      %1250 = vmatpush.bf16.msra.mxu0 0
      %1251 = vmatpush.bf16.msra.mxu0 0
      %1252 = vmatpush.bf16.msra.mxu0 0
      %1253 = vmatpush.bf16.msra.mxu0 0
      %1254 = vmatpush.bf16.msra.mxu0 %v1194
      %1255 = vmatpush.bf16.msra.mxu0 %v1177
      %1256 = vmatmul.bf16.gmra.mxu0 %v1246
      %v1257 = vpop.f32.mrf.mxu0
      %v1258 = vadd.f32 0.0, %v1257
      %v1259 = vpop.f32.mrf.mxu0
      %1260 = vdwg.mxu0
      %1261 = vmatpush.bf16.msra.mxu0 0
      %1262 = vmatpush.bf16.msra.mxu0 0
      %1263 = vmatpush.bf16.msra.mxu0 0
      %1264 = vmatpush.bf16.msra.mxu0 0
      %1265 = vmatpush.bf16.msra.mxu0 0
      %1266 = vmatpush.bf16.msra.mxu0 0
      %1267 = vmatpush.bf16.msra.mxu0 %v1195
      %1268 = vmatpush.bf16.msra.mxu0 %v1178
      %1269 = vmatmul.bf16.gmra.mxu0 %v1246
      %v1270 = vpop.f32.mrf.mxu0
      %v1271 = vadd.f32 0.0, %v1270
      %v1272 = vpop.f32.mrf.mxu0
      %1273 = vdwg.mxu0
      %1274 = vmatpush.bf16.msra.mxu0 0
      %1275 = vmatpush.bf16.msra.mxu0 0
      %1276 = vmatpush.bf16.msra.mxu0 0
      %1277 = vmatpush.bf16.msra.mxu0 0
      %1278 = vmatpush.bf16.msra.mxu0 0
      %1279 = vmatpush.bf16.msra.mxu0 0
      %1280 = vmatpush.bf16.msra.mxu0 %v1196
      %1281 = vmatpush.bf16.msra.mxu0 %v1179
      %1282 = vmatmul.bf16.gmra.mxu0 %v1246
      %v1283 = vpop.f32.mrf.mxu0
      %v1284 = vadd.f32 0.0, %v1283
      %v1285 = vpop.f32.mrf.mxu0
      %1286 = vdwg.mxu0
      %1287 = vmatpush.bf16.msra.mxu0 0
      %1288 = vmatpush.bf16.msra.mxu0 0
      %1289 = vmatpush.bf16.msra.mxu0 0
      %1290 = vmatpush.bf16.msra.mxu0 0
      %1291 = vmatpush.bf16.msra.mxu0 0
      %1292 = vmatpush.bf16.msra.mxu0 0
      %1293 = vmatpush.bf16.msra.mxu0 %v1197
      %1294 = vmatpush.bf16.msra.mxu0 %v1180
      %1295 = vmatmul.bf16.gmra.mxu0 %v1246
      %v1296 = vpop.f32.mrf.mxu0
      %v1297 = vadd.f32 0.0, %v1296
      %v1298 = vpop.f32.mrf.mxu0
      %1299 = vdwg.mxu0
      %1300 = vmatpush.bf16.msra.mxu0 0
      %1301 = vmatpush.bf16.msra.mxu0 0
      %1302 = vmatpush.bf16.msra.mxu0 0
      %1303 = vmatpush.bf16.msra.mxu0 0
      %1304 = vmatpush.bf16.msra.mxu0 0
      %1305 = vmatpush.bf16.msra.mxu0 0
      %1306 = vmatpush.bf16.msra.mxu0 %v1198
      %1307 = vmatpush.bf16.msra.mxu0 %v1181
      %1308 = vmatmul.bf16.gmra.mxu0 %v1246
      %v1309 = vpop.f32.mrf.mxu0
      %v1310 = vadd.f32 0.0, %v1309
      %v1311 = vpop.f32.mrf.mxu0
      %1312 = vdwg.mxu0
      %1313 = vmatpush.bf16.msra.mxu0 0
      %1314 = vmatpush.bf16.msra.mxu0 0
      %1315 = vmatpush.bf16.msra.mxu0 0
      %1316 = vmatpush.bf16.msra.mxu0 0
      %1317 = vmatpush.bf16.msra.mxu0 0
      %1318 = vmatpush.bf16.msra.mxu0 0
      %1319 = vmatpush.bf16.msra.mxu0 %v1199
      %1320 = vmatpush.bf16.msra.mxu0 %v1182
      %1321 = vmatmul.bf16.gmra.mxu0 %v1246
      %v1322 = vpop.f32.mrf.mxu0
      %v1323 = vadd.f32 0.0, %v1322
      %v1324 = vpop.f32.mrf.mxu0
      %1325 = vdwg.mxu0
      %1326 = vmatpush.bf16.msra.mxu0 0
      %1327 = vmatpush.bf16.msra.mxu0 0
      %1328 = vmatpush.bf16.msra.mxu0 0
      %1329 = vmatpush.bf16.msra.mxu0 0
      %1330 = vmatpush.bf16.msra.mxu0 0
      %1331 = vmatpush.bf16.msra.mxu0 0
      %1332 = vmatpush.bf16.msra.mxu0 %v1200
      %1333 = vmatpush.bf16.msra.mxu0 %v1183
      %1334 = vmatmul.bf16.gmra.mxu0 %v1246
      %v1335 = vpop.f32.mrf.mxu0
      %v1336 = vadd.f32 0.0, %v1335
      %v1337 = vpop.f32.mrf.mxu0
      %1338 = vdwg.mxu0
      %1339 = vmatpush.bf16.msra.mxu0 0
      %1340 = vmatpush.bf16.msra.mxu0 0
      %1341 = vmatpush.bf16.msra.mxu0 0
      %1342 = vmatpush.bf16.msra.mxu0 0
      %1343 = vmatpush.bf16.msra.mxu0 0
      %1344 = vmatpush.bf16.msra.mxu0 0
      %1345 = vmatpush.bf16.msra.mxu0 %v1201
      %1346 = vmatpush.bf16.msra.mxu0 %v1184
      %1347 = vmatmul.bf16.gmra.mxu0 %v1246
      %v1348 = vpop.f32.mrf.mxu0
      %v1349 = vadd.f32 0.0, %v1348
      %v1350 = vpop.f32.mrf.mxu0
      %1351 = vdwg.mxu0
      %1352 = vmatpush.bf16.msra.mxu0 0
      %1353 = vmatpush.bf16.msra.mxu0 0
      %1354 = vmatpush.bf16.msra.mxu0 0
      %1355 = vmatpush.bf16.msra.mxu0 0
      %1356 = vmatpush.bf16.msra.mxu0 0
      %1357 = vmatpush.bf16.msra.mxu0 0
      %1358 = vmatpush.bf16.msra.mxu0 %v1202
      %1359 = vmatpush.bf16.msra.mxu0 %v1185
      %1360 = vmatmul.bf16.gmra.mxu0 %v1246
      %v1361 = vpop.f32.mrf.mxu0
      %v1362 = vadd.f32 0.0, %v1361
      %v1363 = vpop.f32.mrf.mxu0
      %1364 = vdwg.mxu0
      %1365 = vmatpush.bf16.msra.mxu0 0
      %1366 = vmatpush.bf16.msra.mxu0 0
      %1367 = vmatpush.bf16.msra.mxu0 0
      %1368 = vmatpush.bf16.msra.mxu0 0
      %1369 = vmatpush.bf16.msra.mxu0 0
      %1370 = vmatpush.bf16.msra.mxu0 0
      %1371 = vmatpush.bf16.msra.mxu0 %v1203
      %1372 = vmatpush.bf16.msra.mxu0 %v1186
      %1373 = vmatmul.bf16.gmra.mxu0 %v1246
      %v1374 = vpop.f32.mrf.mxu0
      %v1375 = vadd.f32 0.0, %v1374
      %v1376 = vpop.f32.mrf.mxu0
      %1377 = vdwg.mxu0
      %1378 = vmatpush.bf16.msra.mxu0 0
      %1379 = vmatpush.bf16.msra.mxu0 0
      %1380 = vmatpush.bf16.msra.mxu0 0
      %1381 = vmatpush.bf16.msra.mxu0 0
      %1382 = vmatpush.bf16.msra.mxu0 0
      %1383 = vmatpush.bf16.msra.mxu0 0
      %1384 = vmatpush.bf16.msra.mxu0 %v1204
      %1385 = vmatpush.bf16.msra.mxu0 %v1187
      %1386 = vmatmul.bf16.gmra.mxu0 %v1246
      %v1387 = vpop.f32.mrf.mxu0
      %v1388 = vadd.f32 0.0, %v1387
      %v1389 = vpop.f32.mrf.mxu0
      %1390 = vdwg.mxu0
      %1391 = vmatpush.bf16.msra.mxu0 0
      %1392 = vmatpush.bf16.msra.mxu0 0
      %1393 = vmatpush.bf16.msra.mxu0 0
      %1394 = vmatpush.bf16.msra.mxu0 0
      %1395 = vmatpush.bf16.msra.mxu0 0
      %1396 = vmatpush.bf16.msra.mxu0 0
      %1397 = vmatpush.bf16.msra.mxu0 %v1205
      %1398 = vmatpush.bf16.msra.mxu0 %v1188
      %1399 = vmatmul.bf16.gmra.mxu0 %v1246
      %v1400 = vpop.f32.mrf.mxu0
      %v1401 = vadd.f32 0.0, %v1400
      %v1402 = vpop.f32.mrf.mxu0
      %1403 = vdwg.mxu0
      %1404 = vmatpush.bf16.msra.mxu0 0
      %1405 = vmatpush.bf16.msra.mxu0 0
      %1406 = vmatpush.bf16.msra.mxu0 0
      %1407 = vmatpush.bf16.msra.mxu0 0
      %1408 = vmatpush.bf16.msra.mxu0 0
      %1409 = vmatpush.bf16.msra.mxu0 0
      %1410 = vmatpush.bf16.msra.mxu0 %v1206
      %1411 = vmatpush.bf16.msra.mxu0 %v1189
      %1412 = vmatmul.bf16.gmra.mxu0 %v1246
      %v1413 = vpop.f32.mrf.mxu0
      %v1414 = vadd.f32 0.0, %v1413
      %v1415 = vpop.f32.mrf.mxu0
      %1416 = vdwg.mxu0
      %1417 = vmatpush.bf16.msra.mxu0 0
      %1418 = vmatpush.bf16.msra.mxu0 0
      %1419 = vmatpush.bf16.msra.mxu0 0
      %1420 = vmatpush.bf16.msra.mxu0 0
      %1421 = vmatpush.bf16.msra.mxu0 0
      %1422 = vmatpush.bf16.msra.mxu0 0
      %1423 = vmatpush.bf16.msra.mxu0 %v1207
      %1424 = vmatpush.bf16.msra.mxu0 %v1190
      %1425 = vmatmul.bf16.gmra.mxu0 %v1246
      %v1426 = vpop.f32.mrf.mxu0
      %v1427 = vadd.f32 0.0, %v1426
      %v1428 = vpop.f32.mrf.mxu0
      %1429 = vdwg.mxu0
      %1430 = vmatpush.bf16.msra.mxu0 0
      %1431 = vmatpush.bf16.msra.mxu0 0
      %1432 = vmatpush.bf16.msra.mxu0 0
      %1433 = vmatpush.bf16.msra.mxu0 0
      %1434 = vmatpush.bf16.msra.mxu0 0
      %1435 = vmatpush.bf16.msra.mxu0 0
      %1436 = vmatpush.bf16.msra.mxu0 %v1208
      %1437 = vmatpush.bf16.msra.mxu0 %v1191
      %1438 = vmatmul.bf16.gmra.mxu0 %v1246
      %v1439 = vpop.f32.mrf.mxu0
      %v1440 = vadd.f32 0.0, %v1439
      %v1441 = vpop.f32.mrf.mxu0
      %1442 = vdwg.mxu0
      %1443 = vmatpush.bf16.msra.mxu0 0
      %1444 = vmatpush.bf16.msra.mxu0 0
      %1445 = vmatpush.bf16.msra.mxu0 0
      %1446 = vmatpush.bf16.msra.mxu0 0
      %1447 = vmatpush.bf16.msra.mxu0 0
      %1448 = vmatpush.bf16.msra.mxu0 0
      %1449 = vmatpush.bf16.msra.mxu0 %v1209
      %1450 = vmatpush.bf16.msra.mxu0 %v1192
      %1451 = vmatmul.bf16.gmra.mxu0 %v1246
      %v1452 = vpop.f32.mrf.mxu0
      %v1453 = vadd.f32 0.0, %v1452
      %v1454 = vpop.f32.mrf.mxu0
      %1455 = vdwg.mxu0
      %1456 = vmatpush.bf16.msra.mxu0 0
      %1457 = vmatpush.bf16.msra.mxu0 0
      %1458 = vmatpush.bf16.msra.mxu0 0
      %1459 = vmatpush.bf16.msra.mxu0 0
      %1460 = vmatpush.bf16.msra.mxu0 0
      %1461 = vmatpush.bf16.msra.mxu0 0
      %1462 = vmatpush.bf16.msra.mxu0 %v1210
      %1463 = vmatpush.bf16.msra.mxu0 %v1193
      %1464 = vmatmul.bf16.gmra.mxu0 %v1246
      %v1465 = vpop.f32.mrf.mxu0
      %v1466 = vadd.f32 0.0, %v1465
      %v1467 = vpop.f32.mrf.mxu0
      %1468 = vdwg.mxu0
      %v1469 = vadd.f32 %v885, %v1258
      %v1470 = vadd.f32 %v898, %v1271
      %v1471 = vadd.f32 %v911, %v1284
      %v1472 = vadd.f32 %v924, %v1297
      %v1473 = vadd.f32 %v937, %v1310
      %v1474 = vadd.f32 %v950, %v1323
      %v1475 = vadd.f32 %v963, %v1336
      %v1476 = vadd.f32 %v976, %v1349
      %v1477 = vadd.f32 %v989, %v1362
      %v1478 = vadd.f32 %v1002, %v1375
      %v1479 = vadd.f32 %v1015, %v1388
      %v1480 = vadd.f32 %v1028, %v1401
      %v1481 = vadd.f32 %v1041, %v1414
      %v1482 = vadd.f32 %v1054, %v1427
      %v1483 = vadd.f32 %v1067, %v1440
      %v1484 = vadd.f32 %v1080, %v1453
      %v1485 = vadd.f32 %v1093, %v1466
      %s1486 = scalar_lea.vmem %s1, 24
      %v1487 = vld [vmem:[%s1486] sm:$0xf]
      %v1488 = vld [vmem:[%s1486 + $0x4] sm:$0xf]
      %v1491 = vunpack.c.l.b16 %v1487
      %v1492 = vunpack.c.l.b16 %v1488
      %v1493 = vpack.c.b16 %v1492, %v1491
      %1494 = vrot.lane.b32.xlu0 %v324, 61
      %v1495 = vpop.permute.xlu0 %1494
      %1496 = vrot.lane.b32.xlu0 %v325, 61
      %v1497 = vpop.permute.xlu0 %1496
      %1498 = vrot.lane.b32.xlu0 %v326, 61
      %v1499 = vpop.permute.xlu0 %1498
      %1500 = vrot.lane.b32.xlu0 %v327, 61
      %v1501 = vpop.permute.xlu0 %1500
      %1502 = vrot.lane.b32.xlu0 %v328, 61
      %v1503 = vpop.permute.xlu0 %1502
      %1504 = vrot.lane.b32.xlu0 %v329, 61
      %v1505 = vpop.permute.xlu0 %1504
      %1506 = vrot.lane.b32.xlu0 %v330, 61
      %v1507 = vpop.permute.xlu0 %1506
      %1508 = vrot.lane.b32.xlu0 %v331, 61
      %v1509 = vpop.permute.xlu0 %1508
      %1510 = vrot.lane.b32.xlu0 %v332, 61
      %v1511 = vpop.permute.xlu0 %1510
      %1512 = vrot.lane.b32.xlu0 %v333, 61
      %v1513 = vpop.permute.xlu0 %1512
      %1514 = vrot.lane.b32.xlu0 %v334, 61
      %v1515 = vpop.permute.xlu0 %1514
      %1516 = vrot.lane.b32.xlu0 %v335, 61
      %v1517 = vpop.permute.xlu0 %1516
      %1518 = vrot.lane.b32.xlu0 %v336, 61
      %v1519 = vpop.permute.xlu0 %1518
      %1520 = vrot.lane.b32.xlu0 %v337, 61
      %v1521 = vpop.permute.xlu0 %1520
      %1522 = vrot.lane.b32.xlu0 %v338, 61
      %v1523 = vpop.permute.xlu0 %1522
      %1524 = vrot.lane.b32.xlu0 %v339, 61
      %v1525 = vpop.permute.xlu0 %1524
      %1526 = vrot.lane.b32.xlu0 %v340, 61
      %v1527 = vpop.permute.xlu0 %1526
      %1528 = vrot.lane.b32.xlu0 %v341, 61
      %v1529 = vpop.permute.xlu0 %1528
      %1530 = vrot.lane.b32.xlu0 %v342, 61
      %v1531 = vpop.permute.xlu0 %1530
      %1532 = vrot.lane.b32.xlu0 %v343, 61
      %v1533 = vpop.permute.xlu0 %1532
      %1534 = vrot.lane.b32.xlu0 %v344, 61
      %v1535 = vpop.permute.xlu0 %1534
      %1536 = vrot.lane.b32.xlu0 %v345, 61
      %v1537 = vpop.permute.xlu0 %1536
      %1538 = vrot.lane.b32.xlu0 %v346, 61
      %v1539 = vpop.permute.xlu0 %1538
      %1540 = vrot.lane.b32.xlu0 %v347, 61
      %v1541 = vpop.permute.xlu0 %1540
      %1542 = vrot.lane.b32.xlu0 %v348, 61
      %v1543 = vpop.permute.xlu0 %1542
      %1544 = vrot.lane.b32.xlu0 %v349, 61
      %v1545 = vpop.permute.xlu0 %1544
      %1546 = vrot.lane.b32.xlu0 %v350, 61
      %v1547 = vpop.permute.xlu0 %1546
      %1548 = vrot.lane.b32.xlu0 %v351, 61
      %v1549 = vpop.permute.xlu0 %1548
      %1550 = vrot.lane.b32.xlu0 %v352, 61
      %v1551 = vpop.permute.xlu0 %1550
      %1552 = vrot.lane.b32.xlu0 %v353, 61
      %v1553 = vpop.permute.xlu0 %1552
      %1554 = vrot.lane.b32.xlu0 %v354, 61
      %v1555 = vpop.permute.xlu0 %1554
      %1556 = vrot.lane.b32.xlu0 %v355, 61
      %v1557 = vpop.permute.xlu0 %1556
      %1558 = vrot.lane.b32.xlu0 %v356, 61
      %v1559 = vpop.permute.xlu0 %1558
      %1560 = vrot.lane.b32.xlu0 %v357, 61
      %v1561 = vpop.permute.xlu0 %1560
      %1562 = vrot.lane.b32.xlu0 %v358, 61
      %v1563 = vpop.permute.xlu0 %1562
      %1564 = vrot.lane.b32.xlu0 %v359, 61
      %v1565 = vpop.permute.xlu0 %1564
      %vm1566 = vcmask 498688
      %v1567 = vsel %vm1566, %v1495, %v1497
      %v1568 = vsel %vm1566, %v1497, %v1499
      %v1569 = vsel %vm1566, %v1499, %v1501
      %v1570 = vsel %vm1566, %v1501, %v1503
      %v1571 = vsel %vm1566, %v1503, %v1505
      %v1572 = vsel %vm1566, %v1505, %v1507
      %v1573 = vsel %vm1566, %v1507, %v1509
      %v1574 = vsel %vm1566, %v1509, %v1511
      %v1575 = vsel %vm1566, %v1511, %v1513
      %v1576 = vsel %vm1566, %v1513, %v1515
      %v1577 = vsel %vm1566, %v1515, %v1517
      %v1578 = vsel %vm1566, %v1517, %v1519
      %v1579 = vsel %vm1566, %v1519, %v1521
      %v1580 = vsel %vm1566, %v1521, %v1523
      %v1581 = vsel %vm1566, %v1523, %v1525
      %v1582 = vsel %vm1566, %v1525, %v1527
      %v1583 = vsel %vm1566, %v1527, %v1529
      %v1584 = vsel %vm1566, %v1531, %v1533
      %v1585 = vsel %vm1566, %v1533, %v1535
      %v1586 = vsel %vm1566, %v1535, %v1537
      %v1587 = vsel %vm1566, %v1537, %v1539
      %v1588 = vsel %vm1566, %v1539, %v1541
      %v1589 = vsel %vm1566, %v1541, %v1543
      %v1590 = vsel %vm1566, %v1543, %v1545
      %v1591 = vsel %vm1566, %v1545, %v1547
      %v1592 = vsel %vm1566, %v1547, %v1549
      %v1593 = vsel %vm1566, %v1549, %v1551
      %v1594 = vsel %vm1566, %v1551, %v1553
      %v1595 = vsel %vm1566, %v1553, %v1555
      %v1596 = vsel %vm1566, %v1555, %v1557
      %v1597 = vsel %vm1566, %v1557, %v1559
      %v1598 = vsel %vm1566, %v1559, %v1561
      %v1599 = vsel %vm1566, %v1561, %v1563
      %v1600 = vsel %vm1566, %v1563, %v1565
      %v1636 = vsel %vm501, %v1493, 0
      %1638 = vmatpush.bf16.msra.mxu0 0
      %1639 = vmatpush.bf16.msra.mxu0 0
      %1640 = vmatpush.bf16.msra.mxu0 0
      %1641 = vmatpush.bf16.msra.mxu0 0
      %1642 = vmatpush.bf16.msra.mxu0 0
      %1643 = vmatpush.bf16.msra.mxu0 0
      %1644 = vmatpush.bf16.msra.mxu0 %v1584
      %1645 = vmatpush.bf16.msra.mxu0 %v1567
      %1646 = vmatmul.bf16.gmra.mxu0 %v1636
      %v1647 = vpop.f32.mrf.mxu0
      %v1648 = vadd.f32 0.0, %v1647
      %v1649 = vpop.f32.mrf.mxu0
      %1650 = vdwg.mxu0
      %1651 = vmatpush.bf16.msra.mxu0 0
      %1652 = vmatpush.bf16.msra.mxu0 0
      %1653 = vmatpush.bf16.msra.mxu0 0
      %1654 = vmatpush.bf16.msra.mxu0 0
      %1655 = vmatpush.bf16.msra.mxu0 0
      %1656 = vmatpush.bf16.msra.mxu0 0
      %1657 = vmatpush.bf16.msra.mxu0 %v1585
      %1658 = vmatpush.bf16.msra.mxu0 %v1568
      %1659 = vmatmul.bf16.gmra.mxu0 %v1636
      %v1660 = vpop.f32.mrf.mxu0
      %v1661 = vadd.f32 0.0, %v1660
      %v1662 = vpop.f32.mrf.mxu0
      %1663 = vdwg.mxu0
      %1664 = vmatpush.bf16.msra.mxu0 0
      %1665 = vmatpush.bf16.msra.mxu0 0
      %1666 = vmatpush.bf16.msra.mxu0 0
      %1667 = vmatpush.bf16.msra.mxu0 0
      %1668 = vmatpush.bf16.msra.mxu0 0
      %1669 = vmatpush.bf16.msra.mxu0 0
      %1670 = vmatpush.bf16.msra.mxu0 %v1586
      %1671 = vmatpush.bf16.msra.mxu0 %v1569
      %1672 = vmatmul.bf16.gmra.mxu0 %v1636
      %v1673 = vpop.f32.mrf.mxu0
      %v1674 = vadd.f32 0.0, %v1673
      %v1675 = vpop.f32.mrf.mxu0
      %1676 = vdwg.mxu0
      %1677 = vmatpush.bf16.msra.mxu0 0
      %1678 = vmatpush.bf16.msra.mxu0 0
      %1679 = vmatpush.bf16.msra.mxu0 0
      %1680 = vmatpush.bf16.msra.mxu0 0
      %1681 = vmatpush.bf16.msra.mxu0 0
      %1682 = vmatpush.bf16.msra.mxu0 0
      %1683 = vmatpush.bf16.msra.mxu0 %v1587
      %1684 = vmatpush.bf16.msra.mxu0 %v1570
      %1685 = vmatmul.bf16.gmra.mxu0 %v1636
      %v1686 = vpop.f32.mrf.mxu0
      %v1687 = vadd.f32 0.0, %v1686
      %v1688 = vpop.f32.mrf.mxu0
      %1689 = vdwg.mxu0
      %1690 = vmatpush.bf16.msra.mxu0 0
      %1691 = vmatpush.bf16.msra.mxu0 0
      %1692 = vmatpush.bf16.msra.mxu0 0
      %1693 = vmatpush.bf16.msra.mxu0 0
      %1694 = vmatpush.bf16.msra.mxu0 0
      %1695 = vmatpush.bf16.msra.mxu0 0
      %1696 = vmatpush.bf16.msra.mxu0 %v1588
      %1697 = vmatpush.bf16.msra.mxu0 %v1571
      %1698 = vmatmul.bf16.gmra.mxu0 %v1636
      %v1699 = vpop.f32.mrf.mxu0
      %v1700 = vadd.f32 0.0, %v1699
      %v1701 = vpop.f32.mrf.mxu0
      %1702 = vdwg.mxu0
      %1703 = vmatpush.bf16.msra.mxu0 0
      %1704 = vmatpush.bf16.msra.mxu0 0
      %1705 = vmatpush.bf16.msra.mxu0 0
      %1706 = vmatpush.bf16.msra.mxu0 0
      %1707 = vmatpush.bf16.msra.mxu0 0
      %1708 = vmatpush.bf16.msra.mxu0 0
      %1709 = vmatpush.bf16.msra.mxu0 %v1589
      %1710 = vmatpush.bf16.msra.mxu0 %v1572
      %1711 = vmatmul.bf16.gmra.mxu0 %v1636
      %v1712 = vpop.f32.mrf.mxu0
      %v1713 = vadd.f32 0.0, %v1712
      %v1714 = vpop.f32.mrf.mxu0
      %1715 = vdwg.mxu0
      %1716 = vmatpush.bf16.msra.mxu0 0
      %1717 = vmatpush.bf16.msra.mxu0 0
      %1718 = vmatpush.bf16.msra.mxu0 0
      %1719 = vmatpush.bf16.msra.mxu0 0
      %1720 = vmatpush.bf16.msra.mxu0 0
      %1721 = vmatpush.bf16.msra.mxu0 0
      %1722 = vmatpush.bf16.msra.mxu0 %v1590
      %1723 = vmatpush.bf16.msra.mxu0 %v1573
      %1724 = vmatmul.bf16.gmra.mxu0 %v1636
      %v1725 = vpop.f32.mrf.mxu0
      %v1726 = vadd.f32 0.0, %v1725
      %v1727 = vpop.f32.mrf.mxu0
      %1728 = vdwg.mxu0
      %1729 = vmatpush.bf16.msra.mxu0 0
      %1730 = vmatpush.bf16.msra.mxu0 0
      %1731 = vmatpush.bf16.msra.mxu0 0
      %1732 = vmatpush.bf16.msra.mxu0 0
      %1733 = vmatpush.bf16.msra.mxu0 0
      %1734 = vmatpush.bf16.msra.mxu0 0
      %1735 = vmatpush.bf16.msra.mxu0 %v1591
      %1736 = vmatpush.bf16.msra.mxu0 %v1574
      %1737 = vmatmul.bf16.gmra.mxu0 %v1636
      %v1738 = vpop.f32.mrf.mxu0
      %v1739 = vadd.f32 0.0, %v1738
      %v1740 = vpop.f32.mrf.mxu0
      %1741 = vdwg.mxu0
      %1742 = vmatpush.bf16.msra.mxu0 0
      %1743 = vmatpush.bf16.msra.mxu0 0
      %1744 = vmatpush.bf16.msra.mxu0 0
      %1745 = vmatpush.bf16.msra.mxu0 0
      %1746 = vmatpush.bf16.msra.mxu0 0
      %1747 = vmatpush.bf16.msra.mxu0 0
      %1748 = vmatpush.bf16.msra.mxu0 %v1592
      %1749 = vmatpush.bf16.msra.mxu0 %v1575
      %1750 = vmatmul.bf16.gmra.mxu0 %v1636
      %v1751 = vpop.f32.mrf.mxu0
      %v1752 = vadd.f32 0.0, %v1751
      %v1753 = vpop.f32.mrf.mxu0
      %1754 = vdwg.mxu0
      %1755 = vmatpush.bf16.msra.mxu0 0
      %1756 = vmatpush.bf16.msra.mxu0 0
      %1757 = vmatpush.bf16.msra.mxu0 0
      %1758 = vmatpush.bf16.msra.mxu0 0
      %1759 = vmatpush.bf16.msra.mxu0 0
      %1760 = vmatpush.bf16.msra.mxu0 0
      %1761 = vmatpush.bf16.msra.mxu0 %v1593
      %1762 = vmatpush.bf16.msra.mxu0 %v1576
      %1763 = vmatmul.bf16.gmra.mxu0 %v1636
      %v1764 = vpop.f32.mrf.mxu0
      %v1765 = vadd.f32 0.0, %v1764
      %v1766 = vpop.f32.mrf.mxu0
      %1767 = vdwg.mxu0
      %1768 = vmatpush.bf16.msra.mxu0 0
      %1769 = vmatpush.bf16.msra.mxu0 0
      %1770 = vmatpush.bf16.msra.mxu0 0
      %1771 = vmatpush.bf16.msra.mxu0 0
      %1772 = vmatpush.bf16.msra.mxu0 0
      %1773 = vmatpush.bf16.msra.mxu0 0
      %1774 = vmatpush.bf16.msra.mxu0 %v1594
      %1775 = vmatpush.bf16.msra.mxu0 %v1577
      %1776 = vmatmul.bf16.gmra.mxu0 %v1636
      %v1777 = vpop.f32.mrf.mxu0
      %v1778 = vadd.f32 0.0, %v1777
      %v1779 = vpop.f32.mrf.mxu0
      %1780 = vdwg.mxu0
      %1781 = vmatpush.bf16.msra.mxu0 0
      %1782 = vmatpush.bf16.msra.mxu0 0
      %1783 = vmatpush.bf16.msra.mxu0 0
      %1784 = vmatpush.bf16.msra.mxu0 0
      %1785 = vmatpush.bf16.msra.mxu0 0
      %1786 = vmatpush.bf16.msra.mxu0 0
      %1787 = vmatpush.bf16.msra.mxu0 %v1595
      %1788 = vmatpush.bf16.msra.mxu0 %v1578
      %1789 = vmatmul.bf16.gmra.mxu0 %v1636
      %v1790 = vpop.f32.mrf.mxu0
      %v1791 = vadd.f32 0.0, %v1790
      %v1792 = vpop.f32.mrf.mxu0
      %1793 = vdwg.mxu0
      %1794 = vmatpush.bf16.msra.mxu0 0
      %1795 = vmatpush.bf16.msra.mxu0 0
      %1796 = vmatpush.bf16.msra.mxu0 0
      %1797 = vmatpush.bf16.msra.mxu0 0
      %1798 = vmatpush.bf16.msra.mxu0 0
      %1799 = vmatpush.bf16.msra.mxu0 0
      %1800 = vmatpush.bf16.msra.mxu0 %v1596
      %1801 = vmatpush.bf16.msra.mxu0 %v1579
      %1802 = vmatmul.bf16.gmra.mxu0 %v1636
      %v1803 = vpop.f32.mrf.mxu0
      %v1804 = vadd.f32 0.0, %v1803
      %v1805 = vpop.f32.mrf.mxu0
      %1806 = vdwg.mxu0
      %1807 = vmatpush.bf16.msra.mxu0 0
      %1808 = vmatpush.bf16.msra.mxu0 0
      %1809 = vmatpush.bf16.msra.mxu0 0
      %1810 = vmatpush.bf16.msra.mxu0 0
      %1811 = vmatpush.bf16.msra.mxu0 0
      %1812 = vmatpush.bf16.msra.mxu0 0
      %1813 = vmatpush.bf16.msra.mxu0 %v1597
      %1814 = vmatpush.bf16.msra.mxu0 %v1580
      %1815 = vmatmul.bf16.gmra.mxu0 %v1636
      %v1816 = vpop.f32.mrf.mxu0
      %v1817 = vadd.f32 0.0, %v1816
      %v1818 = vpop.f32.mrf.mxu0
      %1819 = vdwg.mxu0
      %1820 = vmatpush.bf16.msra.mxu0 0
      %1821 = vmatpush.bf16.msra.mxu0 0
      %1822 = vmatpush.bf16.msra.mxu0 0
      %1823 = vmatpush.bf16.msra.mxu0 0
      %1824 = vmatpush.bf16.msra.mxu0 0
      %1825 = vmatpush.bf16.msra.mxu0 0
      %1826 = vmatpush.bf16.msra.mxu0 %v1598
      %1827 = vmatpush.bf16.msra.mxu0 %v1581
      %1828 = vmatmul.bf16.gmra.mxu0 %v1636
      %v1829 = vpop.f32.mrf.mxu0
      %v1830 = vadd.f32 0.0, %v1829
      %v1831 = vpop.f32.mrf.mxu0
      %1832 = vdwg.mxu0
      %1833 = vmatpush.bf16.msra.mxu0 0
      %1834 = vmatpush.bf16.msra.mxu0 0
      %1835 = vmatpush.bf16.msra.mxu0 0
      %1836 = vmatpush.bf16.msra.mxu0 0
      %1837 = vmatpush.bf16.msra.mxu0 0
      %1838 = vmatpush.bf16.msra.mxu0 0
      %1839 = vmatpush.bf16.msra.mxu0 %v1599
      %1840 = vmatpush.bf16.msra.mxu0 %v1582
      %1841 = vmatmul.bf16.gmra.mxu0 %v1636
      %v1842 = vpop.f32.mrf.mxu0
      %v1843 = vadd.f32 0.0, %v1842
      %v1844 = vpop.f32.mrf.mxu0
      %1845 = vdwg.mxu0
      %1846 = vmatpush.bf16.msra.mxu0 0
      %1847 = vmatpush.bf16.msra.mxu0 0
      %1848 = vmatpush.bf16.msra.mxu0 0
      %1849 = vmatpush.bf16.msra.mxu0 0
      %1850 = vmatpush.bf16.msra.mxu0 0
      %1851 = vmatpush.bf16.msra.mxu0 0
      %1852 = vmatpush.bf16.msra.mxu0 %v1600
      %1853 = vmatpush.bf16.msra.mxu0 %v1583
      %1854 = vmatmul.bf16.gmra.mxu0 %v1636
      %v1855 = vpop.f32.mrf.mxu0
      %v1856 = vadd.f32 0.0, %v1855
      %v1857 = vpop.f32.mrf.mxu0
      %1858 = vdwg.mxu0
      %v1859 = vadd.f32 %v1469, %v1648
      %v1860 = vadd.f32 %v1470, %v1661
      %v1861 = vadd.f32 %v1471, %v1674
      %v1862 = vadd.f32 %v1472, %v1687
      %v1863 = vadd.f32 %v1473, %v1700
      %v1864 = vadd.f32 %v1474, %v1713
      %v1865 = vadd.f32 %v1475, %v1726
      %v1866 = vadd.f32 %v1476, %v1739
      %v1867 = vadd.f32 %v1477, %v1752
      %v1868 = vadd.f32 %v1478, %v1765
      %v1869 = vadd.f32 %v1479, %v1778
      %v1870 = vadd.f32 %v1480, %v1791
      %v1871 = vadd.f32 %v1481, %v1804
      %v1872 = vadd.f32 %v1482, %v1817
      %v1873 = vadd.f32 %v1483, %v1830
      %v1874 = vadd.f32 %v1484, %v1843
      %v1875 = vadd.f32 %v1485, %v1856
      %s1876 = scalar_lea.vmem %s1, 32
      %v1877 = vld [vmem:[%s1876] sm:$0xf]
      %v1878 = vld [vmem:[%s1876 + $0x4] sm:$0xf]
      %v1881 = vunpack.c.l.b16 %v1877
      %v1882 = vunpack.c.l.b16 %v1878
      %v1883 = vpack.c.b16 %v1882, %v1881
      %1884 = vrot.lane.b32.xlu0 %v324, 60
      %v1885 = vpop.permute.xlu0 %1884
      %1886 = vrot.lane.b32.xlu0 %v325, 60
      %v1887 = vpop.permute.xlu0 %1886
      %1888 = vrot.lane.b32.xlu0 %v326, 60
      %v1889 = vpop.permute.xlu0 %1888
      %1890 = vrot.lane.b32.xlu0 %v327, 60
      %v1891 = vpop.permute.xlu0 %1890
      %1892 = vrot.lane.b32.xlu0 %v328, 60
      %v1893 = vpop.permute.xlu0 %1892
      %1894 = vrot.lane.b32.xlu0 %v329, 60
      %v1895 = vpop.permute.xlu0 %1894
      %1896 = vrot.lane.b32.xlu0 %v330, 60
      %v1897 = vpop.permute.xlu0 %1896
      %1898 = vrot.lane.b32.xlu0 %v331, 60
      %v1899 = vpop.permute.xlu0 %1898
      %1900 = vrot.lane.b32.xlu0 %v332, 60
      %v1901 = vpop.permute.xlu0 %1900
      %1902 = vrot.lane.b32.xlu0 %v333, 60
      %v1903 = vpop.permute.xlu0 %1902
      %1904 = vrot.lane.b32.xlu0 %v334, 60
      %v1905 = vpop.permute.xlu0 %1904
      %1906 = vrot.lane.b32.xlu0 %v335, 60
      %v1907 = vpop.permute.xlu0 %1906
      %1908 = vrot.lane.b32.xlu0 %v336, 60
      %v1909 = vpop.permute.xlu0 %1908
      %1910 = vrot.lane.b32.xlu0 %v337, 60
      %v1911 = vpop.permute.xlu0 %1910
      %1912 = vrot.lane.b32.xlu0 %v338, 60
      %v1913 = vpop.permute.xlu0 %1912
      %1914 = vrot.lane.b32.xlu0 %v339, 60
      %v1915 = vpop.permute.xlu0 %1914
      %1916 = vrot.lane.b32.xlu0 %v340, 60
      %v1917 = vpop.permute.xlu0 %1916
      %1918 = vrot.lane.b32.xlu0 %v341, 60
      %v1919 = vpop.permute.xlu0 %1918
      %1920 = vrot.lane.b32.xlu0 %v342, 60
      %v1921 = vpop.permute.xlu0 %1920
      %1922 = vrot.lane.b32.xlu0 %v343, 60
      %v1923 = vpop.permute.xlu0 %1922
      %1924 = vrot.lane.b32.xlu0 %v344, 60
      %v1925 = vpop.permute.xlu0 %1924
      %1926 = vrot.lane.b32.xlu0 %v345, 60
      %v1927 = vpop.permute.xlu0 %1926
      %1928 = vrot.lane.b32.xlu0 %v346, 60
      %v1929 = vpop.permute.xlu0 %1928
      %1930 = vrot.lane.b32.xlu0 %v347, 60
      %v1931 = vpop.permute.xlu0 %1930
      %1932 = vrot.lane.b32.xlu0 %v348, 60
      %v1933 = vpop.permute.xlu0 %1932
      %1934 = vrot.lane.b32.xlu0 %v349, 60
      %v1935 = vpop.permute.xlu0 %1934
      %1936 = vrot.lane.b32.xlu0 %v350, 60
      %v1937 = vpop.permute.xlu0 %1936
      %1938 = vrot.lane.b32.xlu0 %v351, 60
      %v1939 = vpop.permute.xlu0 %1938
      %1940 = vrot.lane.b32.xlu0 %v352, 60
      %v1941 = vpop.permute.xlu0 %1940
      %1942 = vrot.lane.b32.xlu0 %v353, 60
      %v1943 = vpop.permute.xlu0 %1942
      %1944 = vrot.lane.b32.xlu0 %v354, 60
      %v1945 = vpop.permute.xlu0 %1944
      %1946 = vrot.lane.b32.xlu0 %v355, 60
      %v1947 = vpop.permute.xlu0 %1946
      %1948 = vrot.lane.b32.xlu0 %v356, 60
      %v1949 = vpop.permute.xlu0 %1948
      %1950 = vrot.lane.b32.xlu0 %v357, 60
      %v1951 = vpop.permute.xlu0 %1950
      %1952 = vrot.lane.b32.xlu0 %v358, 60
      %v1953 = vpop.permute.xlu0 %1952
      %1954 = vrot.lane.b32.xlu0 %v359, 60
      %v1955 = vpop.permute.xlu0 %1954
      %vm1956 = vcmask 490496
      %v1957 = vsel %vm1956, %v1885, %v1887
      %v1958 = vsel %vm1956, %v1887, %v1889
      %v1959 = vsel %vm1956, %v1889, %v1891
      %v1960 = vsel %vm1956, %v1891, %v1893
      %v1961 = vsel %vm1956, %v1893, %v1895
      %v1962 = vsel %vm1956, %v1895, %v1897
      %v1963 = vsel %vm1956, %v1897, %v1899
      %v1964 = vsel %vm1956, %v1899, %v1901
      %v1965 = vsel %vm1956, %v1901, %v1903
      %v1966 = vsel %vm1956, %v1903, %v1905
      %v1967 = vsel %vm1956, %v1905, %v1907
      %v1968 = vsel %vm1956, %v1907, %v1909
      %v1969 = vsel %vm1956, %v1909, %v1911
      %v1970 = vsel %vm1956, %v1911, %v1913
      %v1971 = vsel %vm1956, %v1913, %v1915
      %v1972 = vsel %vm1956, %v1915, %v1917
      %v1973 = vsel %vm1956, %v1917, %v1919
      %v1974 = vsel %vm1956, %v1921, %v1923
      %v1975 = vsel %vm1956, %v1923, %v1925
      %v1976 = vsel %vm1956, %v1925, %v1927
      %v1977 = vsel %vm1956, %v1927, %v1929
      %v1978 = vsel %vm1956, %v1929, %v1931
      %v1979 = vsel %vm1956, %v1931, %v1933
      %v1980 = vsel %vm1956, %v1933, %v1935
      %v1981 = vsel %vm1956, %v1935, %v1937
      %v1982 = vsel %vm1956, %v1937, %v1939
      %v1983 = vsel %vm1956, %v1939, %v1941
      %v1984 = vsel %vm1956, %v1941, %v1943
      %v1985 = vsel %vm1956, %v1943, %v1945
      %v1986 = vsel %vm1956, %v1945, %v1947
      %v1987 = vsel %vm1956, %v1947, %v1949
      %v1988 = vsel %vm1956, %v1949, %v1951
      %v1989 = vsel %vm1956, %v1951, %v1953
      %v1990 = vsel %vm1956, %v1953, %v1955
      %v2026 = vsel %vm501, %v1883, 0
      %2028 = vmatpush.bf16.msra.mxu0 0
      %2029 = vmatpush.bf16.msra.mxu0 0
      %2030 = vmatpush.bf16.msra.mxu0 0
      %2031 = vmatpush.bf16.msra.mxu0 0
      %2032 = vmatpush.bf16.msra.mxu0 0
      %2033 = vmatpush.bf16.msra.mxu0 0
      %2034 = vmatpush.bf16.msra.mxu0 %v1974
      %2035 = vmatpush.bf16.msra.mxu0 %v1957
      %2036 = vmatmul.bf16.gmra.mxu0 %v2026
      %v2037 = vpop.f32.mrf.mxu0
      %v2038 = vadd.f32 0.0, %v2037
      %v2039 = vpop.f32.mrf.mxu0
      %2040 = vdwg.mxu0
      %2041 = vmatpush.bf16.msra.mxu0 0
      %2042 = vmatpush.bf16.msra.mxu0 0
      %2043 = vmatpush.bf16.msra.mxu0 0
      %2044 = vmatpush.bf16.msra.mxu0 0
      %2045 = vmatpush.bf16.msra.mxu0 0
      %2046 = vmatpush.bf16.msra.mxu0 0
      %2047 = vmatpush.bf16.msra.mxu0 %v1975
      %2048 = vmatpush.bf16.msra.mxu0 %v1958
      %2049 = vmatmul.bf16.gmra.mxu0 %v2026
      %v2050 = vpop.f32.mrf.mxu0
      %v2051 = vadd.f32 0.0, %v2050
      %v2052 = vpop.f32.mrf.mxu0
      %2053 = vdwg.mxu0
      %2054 = vmatpush.bf16.msra.mxu0 0
      %2055 = vmatpush.bf16.msra.mxu0 0
      %2056 = vmatpush.bf16.msra.mxu0 0
      %2057 = vmatpush.bf16.msra.mxu0 0
      %2058 = vmatpush.bf16.msra.mxu0 0
      %2059 = vmatpush.bf16.msra.mxu0 0
      %2060 = vmatpush.bf16.msra.mxu0 %v1976
      %2061 = vmatpush.bf16.msra.mxu0 %v1959
      %2062 = vmatmul.bf16.gmra.mxu0 %v2026
      %v2063 = vpop.f32.mrf.mxu0
      %v2064 = vadd.f32 0.0, %v2063
      %v2065 = vpop.f32.mrf.mxu0
      %2066 = vdwg.mxu0
      %2067 = vmatpush.bf16.msra.mxu0 0
      %2068 = vmatpush.bf16.msra.mxu0 0
      %2069 = vmatpush.bf16.msra.mxu0 0
      %2070 = vmatpush.bf16.msra.mxu0 0
      %2071 = vmatpush.bf16.msra.mxu0 0
      %2072 = vmatpush.bf16.msra.mxu0 0
      %2073 = vmatpush.bf16.msra.mxu0 %v1977
      %2074 = vmatpush.bf16.msra.mxu0 %v1960
      %2075 = vmatmul.bf16.gmra.mxu0 %v2026
      %v2076 = vpop.f32.mrf.mxu0
      %v2077 = vadd.f32 0.0, %v2076
      %v2078 = vpop.f32.mrf.mxu0
      %2079 = vdwg.mxu0
      %2080 = vmatpush.bf16.msra.mxu0 0
      %2081 = vmatpush.bf16.msra.mxu0 0
      %2082 = vmatpush.bf16.msra.mxu0 0
      %2083 = vmatpush.bf16.msra.mxu0 0
      %2084 = vmatpush.bf16.msra.mxu0 0
      %2085 = vmatpush.bf16.msra.mxu0 0
      %2086 = vmatpush.bf16.msra.mxu0 %v1978
      %2087 = vmatpush.bf16.msra.mxu0 %v1961
      %2088 = vmatmul.bf16.gmra.mxu0 %v2026
      %v2089 = vpop.f32.mrf.mxu0
      %v2090 = vadd.f32 0.0, %v2089
      %v2091 = vpop.f32.mrf.mxu0
      %2092 = vdwg.mxu0
      %2093 = vmatpush.bf16.msra.mxu0 0
      %2094 = vmatpush.bf16.msra.mxu0 0
      %2095 = vmatpush.bf16.msra.mxu0 0
      %2096 = vmatpush.bf16.msra.mxu0 0
      %2097 = vmatpush.bf16.msra.mxu0 0
      %2098 = vmatpush.bf16.msra.mxu0 0
      %2099 = vmatpush.bf16.msra.mxu0 %v1979
      %2100 = vmatpush.bf16.msra.mxu0 %v1962
      %2101 = vmatmul.bf16.gmra.mxu0 %v2026
      %v2102 = vpop.f32.mrf.mxu0
      %v2103 = vadd.f32 0.0, %v2102
      %v2104 = vpop.f32.mrf.mxu0
      %2105 = vdwg.mxu0
      %2106 = vmatpush.bf16.msra.mxu0 0
      %2107 = vmatpush.bf16.msra.mxu0 0
      %2108 = vmatpush.bf16.msra.mxu0 0
      %2109 = vmatpush.bf16.msra.mxu0 0
      %2110 = vmatpush.bf16.msra.mxu0 0
      %2111 = vmatpush.bf16.msra.mxu0 0
      %2112 = vmatpush.bf16.msra.mxu0 %v1980
      %2113 = vmatpush.bf16.msra.mxu0 %v1963
      %2114 = vmatmul.bf16.gmra.mxu0 %v2026
      %v2115 = vpop.f32.mrf.mxu0
      %v2116 = vadd.f32 0.0, %v2115
      %v2117 = vpop.f32.mrf.mxu0
      %2118 = vdwg.mxu0
      %2119 = vmatpush.bf16.msra.mxu0 0
      %2120 = vmatpush.bf16.msra.mxu0 0
      %2121 = vmatpush.bf16.msra.mxu0 0
      %2122 = vmatpush.bf16.msra.mxu0 0
      %2123 = vmatpush.bf16.msra.mxu0 0
      %2124 = vmatpush.bf16.msra.mxu0 0
      %2125 = vmatpush.bf16.msra.mxu0 %v1981
      %2126 = vmatpush.bf16.msra.mxu0 %v1964
      %2127 = vmatmul.bf16.gmra.mxu0 %v2026
      %v2128 = vpop.f32.mrf.mxu0
      %v2129 = vadd.f32 0.0, %v2128
      %v2130 = vpop.f32.mrf.mxu0
      %2131 = vdwg.mxu0
      %2132 = vmatpush.bf16.msra.mxu0 0
      %2133 = vmatpush.bf16.msra.mxu0 0
      %2134 = vmatpush.bf16.msra.mxu0 0
      %2135 = vmatpush.bf16.msra.mxu0 0
      %2136 = vmatpush.bf16.msra.mxu0 0
      %2137 = vmatpush.bf16.msra.mxu0 0
      %2138 = vmatpush.bf16.msra.mxu0 %v1982
      %2139 = vmatpush.bf16.msra.mxu0 %v1965
      %2140 = vmatmul.bf16.gmra.mxu0 %v2026
      %v2141 = vpop.f32.mrf.mxu0
      %v2142 = vadd.f32 0.0, %v2141
      %v2143 = vpop.f32.mrf.mxu0
      %2144 = vdwg.mxu0
      %2145 = vmatpush.bf16.msra.mxu0 0
      %2146 = vmatpush.bf16.msra.mxu0 0
      %2147 = vmatpush.bf16.msra.mxu0 0
      %2148 = vmatpush.bf16.msra.mxu0 0
      %2149 = vmatpush.bf16.msra.mxu0 0
      %2150 = vmatpush.bf16.msra.mxu0 0
      %2151 = vmatpush.bf16.msra.mxu0 %v1983
      %2152 = vmatpush.bf16.msra.mxu0 %v1966
      %2153 = vmatmul.bf16.gmra.mxu0 %v2026
      %v2154 = vpop.f32.mrf.mxu0
      %v2155 = vadd.f32 0.0, %v2154
      %v2156 = vpop.f32.mrf.mxu0
      %2157 = vdwg.mxu0
      %2158 = vmatpush.bf16.msra.mxu0 0
      %2159 = vmatpush.bf16.msra.mxu0 0
      %2160 = vmatpush.bf16.msra.mxu0 0
      %2161 = vmatpush.bf16.msra.mxu0 0
      %2162 = vmatpush.bf16.msra.mxu0 0
      %2163 = vmatpush.bf16.msra.mxu0 0
      %2164 = vmatpush.bf16.msra.mxu0 %v1984
      %2165 = vmatpush.bf16.msra.mxu0 %v1967
      %2166 = vmatmul.bf16.gmra.mxu0 %v2026
      %v2167 = vpop.f32.mrf.mxu0
      %v2168 = vadd.f32 0.0, %v2167
      %v2169 = vpop.f32.mrf.mxu0
      %2170 = vdwg.mxu0
      %2171 = vmatpush.bf16.msra.mxu0 0
      %2172 = vmatpush.bf16.msra.mxu0 0
      %2173 = vmatpush.bf16.msra.mxu0 0
      %2174 = vmatpush.bf16.msra.mxu0 0
      %2175 = vmatpush.bf16.msra.mxu0 0
      %2176 = vmatpush.bf16.msra.mxu0 0
      %2177 = vmatpush.bf16.msra.mxu0 %v1985
      %2178 = vmatpush.bf16.msra.mxu0 %v1968
      %2179 = vmatmul.bf16.gmra.mxu0 %v2026
      %v2180 = vpop.f32.mrf.mxu0
      %v2181 = vadd.f32 0.0, %v2180
      %v2182 = vpop.f32.mrf.mxu0
      %2183 = vdwg.mxu0
      %2184 = vmatpush.bf16.msra.mxu0 0
      %2185 = vmatpush.bf16.msra.mxu0 0
      %2186 = vmatpush.bf16.msra.mxu0 0
      %2187 = vmatpush.bf16.msra.mxu0 0
      %2188 = vmatpush.bf16.msra.mxu0 0
      %2189 = vmatpush.bf16.msra.mxu0 0
      %2190 = vmatpush.bf16.msra.mxu0 %v1986
      %2191 = vmatpush.bf16.msra.mxu0 %v1969
      %2192 = vmatmul.bf16.gmra.mxu0 %v2026
      %v2193 = vpop.f32.mrf.mxu0
      %v2194 = vadd.f32 0.0, %v2193
      %v2195 = vpop.f32.mrf.mxu0
      %2196 = vdwg.mxu0
      %2197 = vmatpush.bf16.msra.mxu0 0
      %2198 = vmatpush.bf16.msra.mxu0 0
      %2199 = vmatpush.bf16.msra.mxu0 0
      %2200 = vmatpush.bf16.msra.mxu0 0
      %2201 = vmatpush.bf16.msra.mxu0 0
      %2202 = vmatpush.bf16.msra.mxu0 0
      %2203 = vmatpush.bf16.msra.mxu0 %v1987
      %2204 = vmatpush.bf16.msra.mxu0 %v1970
      %2205 = vmatmul.bf16.gmra.mxu0 %v2026
      %v2206 = vpop.f32.mrf.mxu0
      %v2207 = vadd.f32 0.0, %v2206
      %v2208 = vpop.f32.mrf.mxu0
      %2209 = vdwg.mxu0
      %2210 = vmatpush.bf16.msra.mxu0 0
      %2211 = vmatpush.bf16.msra.mxu0 0
      %2212 = vmatpush.bf16.msra.mxu0 0
      %2213 = vmatpush.bf16.msra.mxu0 0
      %2214 = vmatpush.bf16.msra.mxu0 0
      %2215 = vmatpush.bf16.msra.mxu0 0
      %2216 = vmatpush.bf16.msra.mxu0 %v1988
      %2217 = vmatpush.bf16.msra.mxu0 %v1971
      %2218 = vmatmul.bf16.gmra.mxu0 %v2026
      %v2219 = vpop.f32.mrf.mxu0
      %v2220 = vadd.f32 0.0, %v2219
      %v2221 = vpop.f32.mrf.mxu0
      %2222 = vdwg.mxu0
      %2223 = vmatpush.bf16.msra.mxu0 0
      %2224 = vmatpush.bf16.msra.mxu0 0
      %2225 = vmatpush.bf16.msra.mxu0 0
      %2226 = vmatpush.bf16.msra.mxu0 0
      %2227 = vmatpush.bf16.msra.mxu0 0
      %2228 = vmatpush.bf16.msra.mxu0 0
      %2229 = vmatpush.bf16.msra.mxu0 %v1989
      %2230 = vmatpush.bf16.msra.mxu0 %v1972
      %2231 = vmatmul.bf16.gmra.mxu0 %v2026
      %v2232 = vpop.f32.mrf.mxu0
      %v2233 = vadd.f32 0.0, %v2232
      %v2234 = vpop.f32.mrf.mxu0
      %2235 = vdwg.mxu0
      %2236 = vmatpush.bf16.msra.mxu0 0
      %2237 = vmatpush.bf16.msra.mxu0 0
      %2238 = vmatpush.bf16.msra.mxu0 0
      %2239 = vmatpush.bf16.msra.mxu0 0
      %2240 = vmatpush.bf16.msra.mxu0 0
      %2241 = vmatpush.bf16.msra.mxu0 0
      %2242 = vmatpush.bf16.msra.mxu0 %v1990
      %2243 = vmatpush.bf16.msra.mxu0 %v1973
      %2244 = vmatmul.bf16.gmra.mxu0 %v2026
      %v2245 = vpop.f32.mrf.mxu0
      %v2246 = vadd.f32 0.0, %v2245
      %v2247 = vpop.f32.mrf.mxu0
      %2248 = vdwg.mxu0
      %v2249 = vadd.f32 %v1859, %v2038
      %v2250 = vadd.f32 %v1860, %v2051
      %v2251 = vadd.f32 %v1861, %v2064
      %v2252 = vadd.f32 %v1862, %v2077
      %v2253 = vadd.f32 %v1863, %v2090
      %v2254 = vadd.f32 %v1864, %v2103
      %v2255 = vadd.f32 %v1865, %v2116
      %v2256 = vadd.f32 %v1866, %v2129
      %v2257 = vadd.f32 %v1867, %v2142
      %v2258 = vadd.f32 %v1868, %v2155
      %v2259 = vadd.f32 %v1869, %v2168
      %v2260 = vadd.f32 %v1870, %v2181
      %v2261 = vadd.f32 %v1871, %v2194
      %v2262 = vadd.f32 %v1872, %v2207
      %v2263 = vadd.f32 %v1873, %v2220
      %v2264 = vadd.f32 %v1874, %v2233
      %v2265 = vadd.f32 %v1875, %v2246
      %s2266 = scalar_lea.vmem %s1, 40
      %v2267 = vld [vmem:[%s2266] sm:$0xf]
      %v2268 = vld [vmem:[%s2266 + $0x4] sm:$0xf]
      %v2271 = vunpack.c.l.b16 %v2267
      %v2272 = vunpack.c.l.b16 %v2268
      %v2273 = vpack.c.b16 %v2272, %v2271
      %2274 = vrot.lane.b32.xlu0 %v324, 59
      %v2275 = vpop.permute.xlu0 %2274
      %2276 = vrot.lane.b32.xlu0 %v325, 59
      %v2277 = vpop.permute.xlu0 %2276
      %2278 = vrot.lane.b32.xlu0 %v326, 59
      %v2279 = vpop.permute.xlu0 %2278
      %2280 = vrot.lane.b32.xlu0 %v327, 59
      %v2281 = vpop.permute.xlu0 %2280
      %2282 = vrot.lane.b32.xlu0 %v328, 59
      %v2283 = vpop.permute.xlu0 %2282
      %2284 = vrot.lane.b32.xlu0 %v329, 59
      %v2285 = vpop.permute.xlu0 %2284
      %2286 = vrot.lane.b32.xlu0 %v330, 59
      %v2287 = vpop.permute.xlu0 %2286
      %2288 = vrot.lane.b32.xlu0 %v331, 59
      %v2289 = vpop.permute.xlu0 %2288
      %2290 = vrot.lane.b32.xlu0 %v332, 59
      %v2291 = vpop.permute.xlu0 %2290
      %2292 = vrot.lane.b32.xlu0 %v333, 59
      %v2293 = vpop.permute.xlu0 %2292
      %2294 = vrot.lane.b32.xlu0 %v334, 59
      %v2295 = vpop.permute.xlu0 %2294
      %2296 = vrot.lane.b32.xlu0 %v335, 59
      %v2297 = vpop.permute.xlu0 %2296
      %2298 = vrot.lane.b32.xlu0 %v336, 59
      %v2299 = vpop.permute.xlu0 %2298
      %2300 = vrot.lane.b32.xlu0 %v337, 59
      %v2301 = vpop.permute.xlu0 %2300
      %2302 = vrot.lane.b32.xlu0 %v338, 59
      %v2303 = vpop.permute.xlu0 %2302
      %2304 = vrot.lane.b32.xlu0 %v339, 59
      %v2305 = vpop.permute.xlu0 %2304
      %2306 = vrot.lane.b32.xlu0 %v340, 59
      %v2307 = vpop.permute.xlu0 %2306
      %2308 = vrot.lane.b32.xlu0 %v341, 59
      %v2309 = vpop.permute.xlu0 %2308
      %2310 = vrot.lane.b32.xlu0 %v342, 59
      %v2311 = vpop.permute.xlu0 %2310
      %2312 = vrot.lane.b32.xlu0 %v343, 59
      %v2313 = vpop.permute.xlu0 %2312
      %2314 = vrot.lane.b32.xlu0 %v344, 59
      %v2315 = vpop.permute.xlu0 %2314
      %2316 = vrot.lane.b32.xlu0 %v345, 59
      %v2317 = vpop.permute.xlu0 %2316
      %2318 = vrot.lane.b32.xlu0 %v346, 59
      %v2319 = vpop.permute.xlu0 %2318
      %2320 = vrot.lane.b32.xlu0 %v347, 59
      %v2321 = vpop.permute.xlu0 %2320
      %2322 = vrot.lane.b32.xlu0 %v348, 59
      %v2323 = vpop.permute.xlu0 %2322
      %2324 = vrot.lane.b32.xlu0 %v349, 59
      %v2325 = vpop.permute.xlu0 %2324
      %2326 = vrot.lane.b32.xlu0 %v350, 59
      %v2327 = vpop.permute.xlu0 %2326
      %2328 = vrot.lane.b32.xlu0 %v351, 59
      %v2329 = vpop.permute.xlu0 %2328
      %2330 = vrot.lane.b32.xlu0 %v352, 59
      %v2331 = vpop.permute.xlu0 %2330
      %2332 = vrot.lane.b32.xlu0 %v353, 59
      %v2333 = vpop.permute.xlu0 %2332
      %2334 = vrot.lane.b32.xlu0 %v354, 59
      %v2335 = vpop.permute.xlu0 %2334
      %2336 = vrot.lane.b32.xlu0 %v355, 59
      %v2337 = vpop.permute.xlu0 %2336
      %2338 = vrot.lane.b32.xlu0 %v356, 59
      %v2339 = vpop.permute.xlu0 %2338
      %2340 = vrot.lane.b32.xlu0 %v357, 59
      %v2341 = vpop.permute.xlu0 %2340
      %2342 = vrot.lane.b32.xlu0 %v358, 59
      %v2343 = vpop.permute.xlu0 %2342
      %2344 = vrot.lane.b32.xlu0 %v359, 59
      %v2345 = vpop.permute.xlu0 %2344
      %vm2346 = vcmask 482304
      %v2347 = vsel %vm2346, %v2275, %v2277
      %v2348 = vsel %vm2346, %v2277, %v2279
      %v2349 = vsel %vm2346, %v2279, %v2281
      %v2350 = vsel %vm2346, %v2281, %v2283
      %v2351 = vsel %vm2346, %v2283, %v2285
      %v2352 = vsel %vm2346, %v2285, %v2287
      %v2353 = vsel %vm2346, %v2287, %v2289
      %v2354 = vsel %vm2346, %v2289, %v2291
      %v2355 = vsel %vm2346, %v2291, %v2293
      %v2356 = vsel %vm2346, %v2293, %v2295
      %v2357 = vsel %vm2346, %v2295, %v2297
      %v2358 = vsel %vm2346, %v2297, %v2299
      %v2359 = vsel %vm2346, %v2299, %v2301
      %v2360 = vsel %vm2346, %v2301, %v2303
      %v2361 = vsel %vm2346, %v2303, %v2305
      %v2362 = vsel %vm2346, %v2305, %v2307
      %v2363 = vsel %vm2346, %v2307, %v2309
      %v2364 = vsel %vm2346, %v2311, %v2313
      %v2365 = vsel %vm2346, %v2313, %v2315
      %v2366 = vsel %vm2346, %v2315, %v2317
      %v2367 = vsel %vm2346, %v2317, %v2319
      %v2368 = vsel %vm2346, %v2319, %v2321
      %v2369 = vsel %vm2346, %v2321, %v2323
      %v2370 = vsel %vm2346, %v2323, %v2325
      %v2371 = vsel %vm2346, %v2325, %v2327
      %v2372 = vsel %vm2346, %v2327, %v2329
      %v2373 = vsel %vm2346, %v2329, %v2331
      %v2374 = vsel %vm2346, %v2331, %v2333
      %v2375 = vsel %vm2346, %v2333, %v2335
      %v2376 = vsel %vm2346, %v2335, %v2337
      %v2377 = vsel %vm2346, %v2337, %v2339
      %v2378 = vsel %vm2346, %v2339, %v2341
      %v2379 = vsel %vm2346, %v2341, %v2343
      %v2380 = vsel %vm2346, %v2343, %v2345
      %v2416 = vsel %vm501, %v2273, 0
      %2418 = vmatpush.bf16.msra.mxu0 0
      %2419 = vmatpush.bf16.msra.mxu0 0
      %2420 = vmatpush.bf16.msra.mxu0 0
      %2421 = vmatpush.bf16.msra.mxu0 0
      %2422 = vmatpush.bf16.msra.mxu0 0
      %2423 = vmatpush.bf16.msra.mxu0 0
      %2424 = vmatpush.bf16.msra.mxu0 %v2364
      %2425 = vmatpush.bf16.msra.mxu0 %v2347
      %2426 = vmatmul.bf16.gmra.mxu0 %v2416
      %v2427 = vpop.f32.mrf.mxu0
      %v2428 = vadd.f32 0.0, %v2427
      %v2429 = vpop.f32.mrf.mxu0
      %2430 = vdwg.mxu0
      %2431 = vmatpush.bf16.msra.mxu0 0
      %2432 = vmatpush.bf16.msra.mxu0 0
      %2433 = vmatpush.bf16.msra.mxu0 0
      %2434 = vmatpush.bf16.msra.mxu0 0
      %2435 = vmatpush.bf16.msra.mxu0 0
      %2436 = vmatpush.bf16.msra.mxu0 0
      %2437 = vmatpush.bf16.msra.mxu0 %v2365
      %2438 = vmatpush.bf16.msra.mxu0 %v2348
      %2439 = vmatmul.bf16.gmra.mxu0 %v2416
      %v2440 = vpop.f32.mrf.mxu0
      %v2441 = vadd.f32 0.0, %v2440
      %v2442 = vpop.f32.mrf.mxu0
      %2443 = vdwg.mxu0
      %2444 = vmatpush.bf16.msra.mxu0 0
      %2445 = vmatpush.bf16.msra.mxu0 0
      %2446 = vmatpush.bf16.msra.mxu0 0
      %2447 = vmatpush.bf16.msra.mxu0 0
      %2448 = vmatpush.bf16.msra.mxu0 0
      %2449 = vmatpush.bf16.msra.mxu0 0
      %2450 = vmatpush.bf16.msra.mxu0 %v2366
      %2451 = vmatpush.bf16.msra.mxu0 %v2349
      %2452 = vmatmul.bf16.gmra.mxu0 %v2416
      %v2453 = vpop.f32.mrf.mxu0
      %v2454 = vadd.f32 0.0, %v2453
      %v2455 = vpop.f32.mrf.mxu0
      %2456 = vdwg.mxu0
      %2457 = vmatpush.bf16.msra.mxu0 0
      %2458 = vmatpush.bf16.msra.mxu0 0
      %2459 = vmatpush.bf16.msra.mxu0 0
      %2460 = vmatpush.bf16.msra.mxu0 0
      %2461 = vmatpush.bf16.msra.mxu0 0
      %2462 = vmatpush.bf16.msra.mxu0 0
      %2463 = vmatpush.bf16.msra.mxu0 %v2367
      %2464 = vmatpush.bf16.msra.mxu0 %v2350
      %2465 = vmatmul.bf16.gmra.mxu0 %v2416
      %v2466 = vpop.f32.mrf.mxu0
      %v2467 = vadd.f32 0.0, %v2466
      %v2468 = vpop.f32.mrf.mxu0
      %2469 = vdwg.mxu0
      %2470 = vmatpush.bf16.msra.mxu0 0
      %2471 = vmatpush.bf16.msra.mxu0 0
      %2472 = vmatpush.bf16.msra.mxu0 0
      %2473 = vmatpush.bf16.msra.mxu0 0
      %2474 = vmatpush.bf16.msra.mxu0 0
      %2475 = vmatpush.bf16.msra.mxu0 0
      %2476 = vmatpush.bf16.msra.mxu0 %v2368
      %2477 = vmatpush.bf16.msra.mxu0 %v2351
      %2478 = vmatmul.bf16.gmra.mxu0 %v2416
      %v2479 = vpop.f32.mrf.mxu0
      %v2480 = vadd.f32 0.0, %v2479
      %v2481 = vpop.f32.mrf.mxu0
      %2482 = vdwg.mxu0
      %2483 = vmatpush.bf16.msra.mxu0 0
      %2484 = vmatpush.bf16.msra.mxu0 0
      %2485 = vmatpush.bf16.msra.mxu0 0
      %2486 = vmatpush.bf16.msra.mxu0 0
      %2487 = vmatpush.bf16.msra.mxu0 0
      %2488 = vmatpush.bf16.msra.mxu0 0
      %2489 = vmatpush.bf16.msra.mxu0 %v2369
      %2490 = vmatpush.bf16.msra.mxu0 %v2352
      %2491 = vmatmul.bf16.gmra.mxu0 %v2416
      %v2492 = vpop.f32.mrf.mxu0
      %v2493 = vadd.f32 0.0, %v2492
      %v2494 = vpop.f32.mrf.mxu0
      %2495 = vdwg.mxu0
      %2496 = vmatpush.bf16.msra.mxu0 0
      %2497 = vmatpush.bf16.msra.mxu0 0
      %2498 = vmatpush.bf16.msra.mxu0 0
      %2499 = vmatpush.bf16.msra.mxu0 0
      %2500 = vmatpush.bf16.msra.mxu0 0
      %2501 = vmatpush.bf16.msra.mxu0 0
      %2502 = vmatpush.bf16.msra.mxu0 %v2370
      %2503 = vmatpush.bf16.msra.mxu0 %v2353
      %2504 = vmatmul.bf16.gmra.mxu0 %v2416
      %v2505 = vpop.f32.mrf.mxu0
      %v2506 = vadd.f32 0.0, %v2505
      %v2507 = vpop.f32.mrf.mxu0
      %2508 = vdwg.mxu0
      %2509 = vmatpush.bf16.msra.mxu0 0
      %2510 = vmatpush.bf16.msra.mxu0 0
      %2511 = vmatpush.bf16.msra.mxu0 0
      %2512 = vmatpush.bf16.msra.mxu0 0
      %2513 = vmatpush.bf16.msra.mxu0 0
      %2514 = vmatpush.bf16.msra.mxu0 0
      %2515 = vmatpush.bf16.msra.mxu0 %v2371
      %2516 = vmatpush.bf16.msra.mxu0 %v2354
      %2517 = vmatmul.bf16.gmra.mxu0 %v2416
      %v2518 = vpop.f32.mrf.mxu0
      %v2519 = vadd.f32 0.0, %v2518
      %v2520 = vpop.f32.mrf.mxu0
      %2521 = vdwg.mxu0
      %2522 = vmatpush.bf16.msra.mxu0 0
      %2523 = vmatpush.bf16.msra.mxu0 0
      %2524 = vmatpush.bf16.msra.mxu0 0
      %2525 = vmatpush.bf16.msra.mxu0 0
      %2526 = vmatpush.bf16.msra.mxu0 0
      %2527 = vmatpush.bf16.msra.mxu0 0
      %2528 = vmatpush.bf16.msra.mxu0 %v2372
      %2529 = vmatpush.bf16.msra.mxu0 %v2355
      %2530 = vmatmul.bf16.gmra.mxu0 %v2416
      %v2531 = vpop.f32.mrf.mxu0
      %v2532 = vadd.f32 0.0, %v2531
      %v2533 = vpop.f32.mrf.mxu0
      %2534 = vdwg.mxu0
      %2535 = vmatpush.bf16.msra.mxu0 0
      %2536 = vmatpush.bf16.msra.mxu0 0
      %2537 = vmatpush.bf16.msra.mxu0 0
      %2538 = vmatpush.bf16.msra.mxu0 0
      %2539 = vmatpush.bf16.msra.mxu0 0
      %2540 = vmatpush.bf16.msra.mxu0 0
      %2541 = vmatpush.bf16.msra.mxu0 %v2373
      %2542 = vmatpush.bf16.msra.mxu0 %v2356
      %2543 = vmatmul.bf16.gmra.mxu0 %v2416
      %v2544 = vpop.f32.mrf.mxu0
      %v2545 = vadd.f32 0.0, %v2544
      %v2546 = vpop.f32.mrf.mxu0
      %2547 = vdwg.mxu0
      %2548 = vmatpush.bf16.msra.mxu0 0
      %2549 = vmatpush.bf16.msra.mxu0 0
      %2550 = vmatpush.bf16.msra.mxu0 0
      %2551 = vmatpush.bf16.msra.mxu0 0
      %2552 = vmatpush.bf16.msra.mxu0 0
      %2553 = vmatpush.bf16.msra.mxu0 0
      %2554 = vmatpush.bf16.msra.mxu0 %v2374
      %2555 = vmatpush.bf16.msra.mxu0 %v2357
      %2556 = vmatmul.bf16.gmra.mxu0 %v2416
      %v2557 = vpop.f32.mrf.mxu0
      %v2558 = vadd.f32 0.0, %v2557
      %v2559 = vpop.f32.mrf.mxu0
      %2560 = vdwg.mxu0
      %2561 = vmatpush.bf16.msra.mxu0 0
      %2562 = vmatpush.bf16.msra.mxu0 0
      %2563 = vmatpush.bf16.msra.mxu0 0
      %2564 = vmatpush.bf16.msra.mxu0 0
      %2565 = vmatpush.bf16.msra.mxu0 0
      %2566 = vmatpush.bf16.msra.mxu0 0
      %2567 = vmatpush.bf16.msra.mxu0 %v2375
      %2568 = vmatpush.bf16.msra.mxu0 %v2358
      %2569 = vmatmul.bf16.gmra.mxu0 %v2416
      %v2570 = vpop.f32.mrf.mxu0
      %v2571 = vadd.f32 0.0, %v2570
      %v2572 = vpop.f32.mrf.mxu0
      %2573 = vdwg.mxu0
      %2574 = vmatpush.bf16.msra.mxu0 0
      %2575 = vmatpush.bf16.msra.mxu0 0
      %2576 = vmatpush.bf16.msra.mxu0 0
      %2577 = vmatpush.bf16.msra.mxu0 0
      %2578 = vmatpush.bf16.msra.mxu0 0
      %2579 = vmatpush.bf16.msra.mxu0 0
      %2580 = vmatpush.bf16.msra.mxu0 %v2376
      %2581 = vmatpush.bf16.msra.mxu0 %v2359
      %2582 = vmatmul.bf16.gmra.mxu0 %v2416
      %v2583 = vpop.f32.mrf.mxu0
      %v2584 = vadd.f32 0.0, %v2583
      %v2585 = vpop.f32.mrf.mxu0
      %2586 = vdwg.mxu0
      %2587 = vmatpush.bf16.msra.mxu0 0
      %2588 = vmatpush.bf16.msra.mxu0 0
      %2589 = vmatpush.bf16.msra.mxu0 0
      %2590 = vmatpush.bf16.msra.mxu0 0
      %2591 = vmatpush.bf16.msra.mxu0 0
      %2592 = vmatpush.bf16.msra.mxu0 0
      %2593 = vmatpush.bf16.msra.mxu0 %v2377
      %2594 = vmatpush.bf16.msra.mxu0 %v2360
      %2595 = vmatmul.bf16.gmra.mxu0 %v2416
      %v2596 = vpop.f32.mrf.mxu0
      %v2597 = vadd.f32 0.0, %v2596
      %v2598 = vpop.f32.mrf.mxu0
      %2599 = vdwg.mxu0
      %2600 = vmatpush.bf16.msra.mxu0 0
      %2601 = vmatpush.bf16.msra.mxu0 0
      %2602 = vmatpush.bf16.msra.mxu0 0
      %2603 = vmatpush.bf16.msra.mxu0 0
      %2604 = vmatpush.bf16.msra.mxu0 0
      %2605 = vmatpush.bf16.msra.mxu0 0
      %2606 = vmatpush.bf16.msra.mxu0 %v2378
      %2607 = vmatpush.bf16.msra.mxu0 %v2361
      %2608 = vmatmul.bf16.gmra.mxu0 %v2416
      %v2609 = vpop.f32.mrf.mxu0
      %v2610 = vadd.f32 0.0, %v2609
      %v2611 = vpop.f32.mrf.mxu0
      %2612 = vdwg.mxu0
      %2613 = vmatpush.bf16.msra.mxu0 0
      %2614 = vmatpush.bf16.msra.mxu0 0
      %2615 = vmatpush.bf16.msra.mxu0 0
      %2616 = vmatpush.bf16.msra.mxu0 0
      %2617 = vmatpush.bf16.msra.mxu0 0
      %2618 = vmatpush.bf16.msra.mxu0 0
      %2619 = vmatpush.bf16.msra.mxu0 %v2379
      %2620 = vmatpush.bf16.msra.mxu0 %v2362
      %2621 = vmatmul.bf16.gmra.mxu0 %v2416
      %v2622 = vpop.f32.mrf.mxu0
      %v2623 = vadd.f32 0.0, %v2622
      %v2624 = vpop.f32.mrf.mxu0
      %2625 = vdwg.mxu0
      %2626 = vmatpush.bf16.msra.mxu0 0
      %2627 = vmatpush.bf16.msra.mxu0 0
      %2628 = vmatpush.bf16.msra.mxu0 0
      %2629 = vmatpush.bf16.msra.mxu0 0
      %2630 = vmatpush.bf16.msra.mxu0 0
      %2631 = vmatpush.bf16.msra.mxu0 0
      %2632 = vmatpush.bf16.msra.mxu0 %v2380
      %2633 = vmatpush.bf16.msra.mxu0 %v2363
      %2634 = vmatmul.bf16.gmra.mxu0 %v2416
      %v2635 = vpop.f32.mrf.mxu0
      %v2636 = vadd.f32 0.0, %v2635
      %v2637 = vpop.f32.mrf.mxu0
      %2638 = vdwg.mxu0
      %v2639 = vadd.f32 %v2249, %v2428
      %v2640 = vadd.f32 %v2250, %v2441
      %v2641 = vadd.f32 %v2251, %v2454
      %v2642 = vadd.f32 %v2252, %v2467
      %v2643 = vadd.f32 %v2253, %v2480
      %v2644 = vadd.f32 %v2254, %v2493
      %v2645 = vadd.f32 %v2255, %v2506
      %v2646 = vadd.f32 %v2256, %v2519
      %v2647 = vadd.f32 %v2257, %v2532
      %v2648 = vadd.f32 %v2258, %v2545
      %v2649 = vadd.f32 %v2259, %v2558
      %v2650 = vadd.f32 %v2260, %v2571
      %v2651 = vadd.f32 %v2261, %v2584
      %v2652 = vadd.f32 %v2262, %v2597
      %v2653 = vadd.f32 %v2263, %v2610
      %v2654 = vadd.f32 %v2264, %v2623
      %v2655 = vadd.f32 %v2265, %v2636
      %s2656 = scalar_lea.vmem %s1, 48
      %v2657 = vld [vmem:[%s2656] sm:$0xf]
      %v2658 = vld [vmem:[%s2656 + $0x4] sm:$0xf]
      %v2661 = vunpack.c.l.b16 %v2657
      %v2662 = vunpack.c.l.b16 %v2658
      %v2663 = vpack.c.b16 %v2662, %v2661
      %2664 = vrot.lane.b32.xlu0 %v324, 27
      %v2665 = vpop.permute.xlu0 %2664
      %2666 = vrot.lane.b32.xlu0 %v325, 27
      %v2667 = vpop.permute.xlu0 %2666
      %2668 = vrot.lane.b32.xlu0 %v326, 27
      %v2669 = vpop.permute.xlu0 %2668
      %2670 = vrot.lane.b32.xlu0 %v327, 27
      %v2671 = vpop.permute.xlu0 %2670
      %2672 = vrot.lane.b32.xlu0 %v328, 27
      %v2673 = vpop.permute.xlu0 %2672
      %2674 = vrot.lane.b32.xlu0 %v329, 27
      %v2675 = vpop.permute.xlu0 %2674
      %2676 = vrot.lane.b32.xlu0 %v330, 27
      %v2677 = vpop.permute.xlu0 %2676
      %2678 = vrot.lane.b32.xlu0 %v331, 27
      %v2679 = vpop.permute.xlu0 %2678
      %2680 = vrot.lane.b32.xlu0 %v332, 27
      %v2681 = vpop.permute.xlu0 %2680
      %2682 = vrot.lane.b32.xlu0 %v333, 27
      %v2683 = vpop.permute.xlu0 %2682
      %2684 = vrot.lane.b32.xlu0 %v334, 27
      %v2685 = vpop.permute.xlu0 %2684
      %2686 = vrot.lane.b32.xlu0 %v335, 27
      %v2687 = vpop.permute.xlu0 %2686
      %2688 = vrot.lane.b32.xlu0 %v336, 27
      %v2689 = vpop.permute.xlu0 %2688
      %2690 = vrot.lane.b32.xlu0 %v337, 27
      %v2691 = vpop.permute.xlu0 %2690
      %2692 = vrot.lane.b32.xlu0 %v338, 27
      %v2693 = vpop.permute.xlu0 %2692
      %2694 = vrot.lane.b32.xlu0 %v339, 27
      %v2695 = vpop.permute.xlu0 %2694
      %2696 = vrot.lane.b32.xlu0 %v340, 27
      %v2697 = vpop.permute.xlu0 %2696
      %2698 = vrot.lane.b32.xlu0 %v341, 27
      %v2699 = vpop.permute.xlu0 %2698
      %2700 = vrot.lane.b32.xlu0 %v342, 27
      %v2701 = vpop.permute.xlu0 %2700
      %2702 = vrot.lane.b32.xlu0 %v343, 27
      %v2703 = vpop.permute.xlu0 %2702
      %2704 = vrot.lane.b32.xlu0 %v344, 27
      %v2705 = vpop.permute.xlu0 %2704
      %2706 = vrot.lane.b32.xlu0 %v345, 27
      %v2707 = vpop.permute.xlu0 %2706
      %2708 = vrot.lane.b32.xlu0 %v346, 27
      %v2709 = vpop.permute.xlu0 %2708
      %2710 = vrot.lane.b32.xlu0 %v347, 27
      %v2711 = vpop.permute.xlu0 %2710
      %2712 = vrot.lane.b32.xlu0 %v348, 27
      %v2713 = vpop.permute.xlu0 %2712
      %2714 = vrot.lane.b32.xlu0 %v349, 27
      %v2715 = vpop.permute.xlu0 %2714
      %2716 = vrot.lane.b32.xlu0 %v350, 27
      %v2717 = vpop.permute.xlu0 %2716
      %2718 = vrot.lane.b32.xlu0 %v351, 27
      %v2719 = vpop.permute.xlu0 %2718
      %2720 = vrot.lane.b32.xlu0 %v352, 27
      %v2721 = vpop.permute.xlu0 %2720
      %2722 = vrot.lane.b32.xlu0 %v353, 27
      %v2723 = vpop.permute.xlu0 %2722
      %2724 = vrot.lane.b32.xlu0 %v354, 27
      %v2725 = vpop.permute.xlu0 %2724
      %2726 = vrot.lane.b32.xlu0 %v355, 27
      %v2727 = vpop.permute.xlu0 %2726
      %2728 = vrot.lane.b32.xlu0 %v356, 27
      %v2729 = vpop.permute.xlu0 %2728
      %2730 = vrot.lane.b32.xlu0 %v357, 27
      %v2731 = vpop.permute.xlu0 %2730
      %2732 = vrot.lane.b32.xlu0 %v358, 27
      %v2733 = vpop.permute.xlu0 %2732
      %2734 = vrot.lane.b32.xlu0 %v359, 27
      %v2735 = vpop.permute.xlu0 %2734
      %vm2736 = vcmask 220160
      %v2737 = vsel %vm2736, %v2665, %v2667
      %v2738 = vsel %vm2736, %v2667, %v2669
      %v2739 = vsel %vm2736, %v2669, %v2671
      %v2740 = vsel %vm2736, %v2671, %v2673
      %v2741 = vsel %vm2736, %v2673, %v2675
      %v2742 = vsel %vm2736, %v2675, %v2677
      %v2743 = vsel %vm2736, %v2677, %v2679
      %v2744 = vsel %vm2736, %v2679, %v2681
      %v2745 = vsel %vm2736, %v2681, %v2683
      %v2746 = vsel %vm2736, %v2683, %v2685
      %v2747 = vsel %vm2736, %v2685, %v2687
      %v2748 = vsel %vm2736, %v2687, %v2689
      %v2749 = vsel %vm2736, %v2689, %v2691
      %v2750 = vsel %vm2736, %v2691, %v2693
      %v2751 = vsel %vm2736, %v2693, %v2695
      %v2752 = vsel %vm2736, %v2695, %v2697
      %v2753 = vsel %vm2736, %v2697, %v2699
      %v2754 = vsel %vm2736, %v2701, %v2703
      %v2755 = vsel %vm2736, %v2703, %v2705
      %v2756 = vsel %vm2736, %v2705, %v2707
      %v2757 = vsel %vm2736, %v2707, %v2709
      %v2758 = vsel %vm2736, %v2709, %v2711
      %v2759 = vsel %vm2736, %v2711, %v2713
      %v2760 = vsel %vm2736, %v2713, %v2715
      %v2761 = vsel %vm2736, %v2715, %v2717
      %v2762 = vsel %vm2736, %v2717, %v2719
      %v2763 = vsel %vm2736, %v2719, %v2721
      %v2764 = vsel %vm2736, %v2721, %v2723
      %v2765 = vsel %vm2736, %v2723, %v2725
      %v2766 = vsel %vm2736, %v2725, %v2727
      %v2767 = vsel %vm2736, %v2727, %v2729
      %v2768 = vsel %vm2736, %v2729, %v2731
      %v2769 = vsel %vm2736, %v2731, %v2733
      %v2770 = vsel %vm2736, %v2733, %v2735
      %v2806 = vsel %vm501, %v2663, 0
      %2808 = vmatpush.bf16.msra.mxu0 0
      %2809 = vmatpush.bf16.msra.mxu0 0
      %2810 = vmatpush.bf16.msra.mxu0 0
      %2811 = vmatpush.bf16.msra.mxu0 0
      %2812 = vmatpush.bf16.msra.mxu0 0
      %2813 = vmatpush.bf16.msra.mxu0 0
      %2814 = vmatpush.bf16.msra.mxu0 %v2754
      %2815 = vmatpush.bf16.msra.mxu0 %v2737
      %2816 = vmatmul.bf16.gmra.mxu0 %v2806
      %v2817 = vpop.f32.mrf.mxu0
      %v2818 = vadd.f32 0.0, %v2817
      %v2819 = vpop.f32.mrf.mxu0
      %2820 = vdwg.mxu0
      %2821 = vmatpush.bf16.msra.mxu0 0
      %2822 = vmatpush.bf16.msra.mxu0 0
      %2823 = vmatpush.bf16.msra.mxu0 0
      %2824 = vmatpush.bf16.msra.mxu0 0
      %2825 = vmatpush.bf16.msra.mxu0 0
      %2826 = vmatpush.bf16.msra.mxu0 0
      %2827 = vmatpush.bf16.msra.mxu0 %v2755
      %2828 = vmatpush.bf16.msra.mxu0 %v2738
      %2829 = vmatmul.bf16.gmra.mxu0 %v2806
      %v2830 = vpop.f32.mrf.mxu0
      %v2831 = vadd.f32 0.0, %v2830
      %v2832 = vpop.f32.mrf.mxu0
      %2833 = vdwg.mxu0
      %2834 = vmatpush.bf16.msra.mxu0 0
      %2835 = vmatpush.bf16.msra.mxu0 0
      %2836 = vmatpush.bf16.msra.mxu0 0
      %2837 = vmatpush.bf16.msra.mxu0 0
      %2838 = vmatpush.bf16.msra.mxu0 0
      %2839 = vmatpush.bf16.msra.mxu0 0
      %2840 = vmatpush.bf16.msra.mxu0 %v2756
      %2841 = vmatpush.bf16.msra.mxu0 %v2739
      %2842 = vmatmul.bf16.gmra.mxu0 %v2806
      %v2843 = vpop.f32.mrf.mxu0
      %v2844 = vadd.f32 0.0, %v2843
      %v2845 = vpop.f32.mrf.mxu0
      %2846 = vdwg.mxu0
      %2847 = vmatpush.bf16.msra.mxu0 0
      %2848 = vmatpush.bf16.msra.mxu0 0
      %2849 = vmatpush.bf16.msra.mxu0 0
      %2850 = vmatpush.bf16.msra.mxu0 0
      %2851 = vmatpush.bf16.msra.mxu0 0
      %2852 = vmatpush.bf16.msra.mxu0 0
      %2853 = vmatpush.bf16.msra.mxu0 %v2757
      %2854 = vmatpush.bf16.msra.mxu0 %v2740
      %2855 = vmatmul.bf16.gmra.mxu0 %v2806
      %v2856 = vpop.f32.mrf.mxu0
      %v2857 = vadd.f32 0.0, %v2856
      %v2858 = vpop.f32.mrf.mxu0
      %2859 = vdwg.mxu0
      %2860 = vmatpush.bf16.msra.mxu0 0
      %2861 = vmatpush.bf16.msra.mxu0 0
      %2862 = vmatpush.bf16.msra.mxu0 0
      %2863 = vmatpush.bf16.msra.mxu0 0
      %2864 = vmatpush.bf16.msra.mxu0 0
      %2865 = vmatpush.bf16.msra.mxu0 0
      %2866 = vmatpush.bf16.msra.mxu0 %v2758
      %2867 = vmatpush.bf16.msra.mxu0 %v2741
      %2868 = vmatmul.bf16.gmra.mxu0 %v2806
      %v2869 = vpop.f32.mrf.mxu0
      %v2870 = vadd.f32 0.0, %v2869
      %v2871 = vpop.f32.mrf.mxu0
      %2872 = vdwg.mxu0
      %2873 = vmatpush.bf16.msra.mxu0 0
      %2874 = vmatpush.bf16.msra.mxu0 0
      %2875 = vmatpush.bf16.msra.mxu0 0
      %2876 = vmatpush.bf16.msra.mxu0 0
      %2877 = vmatpush.bf16.msra.mxu0 0
      %2878 = vmatpush.bf16.msra.mxu0 0
      %2879 = vmatpush.bf16.msra.mxu0 %v2759
      %2880 = vmatpush.bf16.msra.mxu0 %v2742
      %2881 = vmatmul.bf16.gmra.mxu0 %v2806
      %v2882 = vpop.f32.mrf.mxu0
      %v2883 = vadd.f32 0.0, %v2882
      %v2884 = vpop.f32.mrf.mxu0
      %2885 = vdwg.mxu0
      %2886 = vmatpush.bf16.msra.mxu0 0
      %2887 = vmatpush.bf16.msra.mxu0 0
      %2888 = vmatpush.bf16.msra.mxu0 0
      %2889 = vmatpush.bf16.msra.mxu0 0
      %2890 = vmatpush.bf16.msra.mxu0 0
      %2891 = vmatpush.bf16.msra.mxu0 0
      %2892 = vmatpush.bf16.msra.mxu0 %v2760
      %2893 = vmatpush.bf16.msra.mxu0 %v2743
      %2894 = vmatmul.bf16.gmra.mxu0 %v2806
      %v2895 = vpop.f32.mrf.mxu0
      %v2896 = vadd.f32 0.0, %v2895
      %v2897 = vpop.f32.mrf.mxu0
      %2898 = vdwg.mxu0
      %2899 = vmatpush.bf16.msra.mxu0 0
      %2900 = vmatpush.bf16.msra.mxu0 0
      %2901 = vmatpush.bf16.msra.mxu0 0
      %2902 = vmatpush.bf16.msra.mxu0 0
      %2903 = vmatpush.bf16.msra.mxu0 0
      %2904 = vmatpush.bf16.msra.mxu0 0
      %2905 = vmatpush.bf16.msra.mxu0 %v2761
      %2906 = vmatpush.bf16.msra.mxu0 %v2744
      %2907 = vmatmul.bf16.gmra.mxu0 %v2806
      %v2908 = vpop.f32.mrf.mxu0
      %v2909 = vadd.f32 0.0, %v2908
      %v2910 = vpop.f32.mrf.mxu0
      %2911 = vdwg.mxu0
      %2912 = vmatpush.bf16.msra.mxu0 0
      %2913 = vmatpush.bf16.msra.mxu0 0
      %2914 = vmatpush.bf16.msra.mxu0 0
      %2915 = vmatpush.bf16.msra.mxu0 0
      %2916 = vmatpush.bf16.msra.mxu0 0
      %2917 = vmatpush.bf16.msra.mxu0 0
      %2918 = vmatpush.bf16.msra.mxu0 %v2762
      %2919 = vmatpush.bf16.msra.mxu0 %v2745
      %2920 = vmatmul.bf16.gmra.mxu0 %v2806
      %v2921 = vpop.f32.mrf.mxu0
      %v2922 = vadd.f32 0.0, %v2921
      %v2923 = vpop.f32.mrf.mxu0
      %2924 = vdwg.mxu0
      %2925 = vmatpush.bf16.msra.mxu0 0
      %2926 = vmatpush.bf16.msra.mxu0 0
      %2927 = vmatpush.bf16.msra.mxu0 0
      %2928 = vmatpush.bf16.msra.mxu0 0
      %2929 = vmatpush.bf16.msra.mxu0 0
      %2930 = vmatpush.bf16.msra.mxu0 0
      %2931 = vmatpush.bf16.msra.mxu0 %v2763
      %2932 = vmatpush.bf16.msra.mxu0 %v2746
      %2933 = vmatmul.bf16.gmra.mxu0 %v2806
      %v2934 = vpop.f32.mrf.mxu0
      %v2935 = vadd.f32 0.0, %v2934
      %v2936 = vpop.f32.mrf.mxu0
      %2937 = vdwg.mxu0
      %2938 = vmatpush.bf16.msra.mxu0 0
      %2939 = vmatpush.bf16.msra.mxu0 0
      %2940 = vmatpush.bf16.msra.mxu0 0
      %2941 = vmatpush.bf16.msra.mxu0 0
      %2942 = vmatpush.bf16.msra.mxu0 0
      %2943 = vmatpush.bf16.msra.mxu0 0
      %2944 = vmatpush.bf16.msra.mxu0 %v2764
      %2945 = vmatpush.bf16.msra.mxu0 %v2747
      %2946 = vmatmul.bf16.gmra.mxu0 %v2806
      %v2947 = vpop.f32.mrf.mxu0
      %v2948 = vadd.f32 0.0, %v2947
      %v2949 = vpop.f32.mrf.mxu0
      %2950 = vdwg.mxu0
      %2951 = vmatpush.bf16.msra.mxu0 0
      %2952 = vmatpush.bf16.msra.mxu0 0
      %2953 = vmatpush.bf16.msra.mxu0 0
      %2954 = vmatpush.bf16.msra.mxu0 0
      %2955 = vmatpush.bf16.msra.mxu0 0
      %2956 = vmatpush.bf16.msra.mxu0 0
      %2957 = vmatpush.bf16.msra.mxu0 %v2765
      %2958 = vmatpush.bf16.msra.mxu0 %v2748
      %2959 = vmatmul.bf16.gmra.mxu0 %v2806
      %v2960 = vpop.f32.mrf.mxu0
      %v2961 = vadd.f32 0.0, %v2960
      %v2962 = vpop.f32.mrf.mxu0
      %2963 = vdwg.mxu0
      %2964 = vmatpush.bf16.msra.mxu0 0
      %2965 = vmatpush.bf16.msra.mxu0 0
      %2966 = vmatpush.bf16.msra.mxu0 0
      %2967 = vmatpush.bf16.msra.mxu0 0
      %2968 = vmatpush.bf16.msra.mxu0 0
      %2969 = vmatpush.bf16.msra.mxu0 0
      %2970 = vmatpush.bf16.msra.mxu0 %v2766
      %2971 = vmatpush.bf16.msra.mxu0 %v2749
      %2972 = vmatmul.bf16.gmra.mxu0 %v2806
      %v2973 = vpop.f32.mrf.mxu0
      %v2974 = vadd.f32 0.0, %v2973
      %v2975 = vpop.f32.mrf.mxu0
      %2976 = vdwg.mxu0
      %2977 = vmatpush.bf16.msra.mxu0 0
      %2978 = vmatpush.bf16.msra.mxu0 0
      %2979 = vmatpush.bf16.msra.mxu0 0
      %2980 = vmatpush.bf16.msra.mxu0 0
      %2981 = vmatpush.bf16.msra.mxu0 0
      %2982 = vmatpush.bf16.msra.mxu0 0
      %2983 = vmatpush.bf16.msra.mxu0 %v2767
      %2984 = vmatpush.bf16.msra.mxu0 %v2750
      %2985 = vmatmul.bf16.gmra.mxu0 %v2806
      %v2986 = vpop.f32.mrf.mxu0
      %v2987 = vadd.f32 0.0, %v2986
      %v2988 = vpop.f32.mrf.mxu0
      %2989 = vdwg.mxu0
      %2990 = vmatpush.bf16.msra.mxu0 0
      %2991 = vmatpush.bf16.msra.mxu0 0
      %2992 = vmatpush.bf16.msra.mxu0 0
      %2993 = vmatpush.bf16.msra.mxu0 0
      %2994 = vmatpush.bf16.msra.mxu0 0
      %2995 = vmatpush.bf16.msra.mxu0 0
      %2996 = vmatpush.bf16.msra.mxu0 %v2768
      %2997 = vmatpush.bf16.msra.mxu0 %v2751
      %2998 = vmatmul.bf16.gmra.mxu0 %v2806
      %v2999 = vpop.f32.mrf.mxu0
      %v3000 = vadd.f32 0.0, %v2999
      %v3001 = vpop.f32.mrf.mxu0
      %3002 = vdwg.mxu0
      %3003 = vmatpush.bf16.msra.mxu0 0
      %3004 = vmatpush.bf16.msra.mxu0 0
      %3005 = vmatpush.bf16.msra.mxu0 0
      %3006 = vmatpush.bf16.msra.mxu0 0
      %3007 = vmatpush.bf16.msra.mxu0 0
      %3008 = vmatpush.bf16.msra.mxu0 0
      %3009 = vmatpush.bf16.msra.mxu0 %v2769
      %3010 = vmatpush.bf16.msra.mxu0 %v2752
      %3011 = vmatmul.bf16.gmra.mxu0 %v2806
      %v3012 = vpop.f32.mrf.mxu0
      %v3013 = vadd.f32 0.0, %v3012
      %v3014 = vpop.f32.mrf.mxu0
      %3015 = vdwg.mxu0
      %3016 = vmatpush.bf16.msra.mxu0 0
      %3017 = vmatpush.bf16.msra.mxu0 0
      %3018 = vmatpush.bf16.msra.mxu0 0
      %3019 = vmatpush.bf16.msra.mxu0 0
      %3020 = vmatpush.bf16.msra.mxu0 0
      %3021 = vmatpush.bf16.msra.mxu0 0
      %3022 = vmatpush.bf16.msra.mxu0 %v2770
      %3023 = vmatpush.bf16.msra.mxu0 %v2753
      %3024 = vmatmul.bf16.gmra.mxu0 %v2806
      %v3025 = vpop.f32.mrf.mxu0
      %v3026 = vadd.f32 0.0, %v3025
      %v3027 = vpop.f32.mrf.mxu0
      %3028 = vdwg.mxu0
      %v3029 = vadd.f32 %v2639, %v2818
      %v3030 = vadd.f32 %v2640, %v2831
      %v3031 = vadd.f32 %v2641, %v2844
      %v3032 = vadd.f32 %v2642, %v2857
      %v3033 = vadd.f32 %v2643, %v2870
      %v3034 = vadd.f32 %v2644, %v2883
      %v3035 = vadd.f32 %v2645, %v2896
      %v3036 = vadd.f32 %v2646, %v2909
      %v3037 = vadd.f32 %v2647, %v2922
      %v3038 = vadd.f32 %v2648, %v2935
      %v3039 = vadd.f32 %v2649, %v2948
      %v3040 = vadd.f32 %v2650, %v2961
      %v3041 = vadd.f32 %v2651, %v2974
      %v3042 = vadd.f32 %v2652, %v2987
      %v3043 = vadd.f32 %v2653, %v3000
      %v3044 = vadd.f32 %v2654, %v3013
      %v3045 = vadd.f32 %v2655, %v3026
      %s3046 = scalar_lea.vmem %s1, 56
      %v3047 = vld [vmem:[%s3046] sm:$0xf]
      %v3048 = vld [vmem:[%s3046 + $0x4] sm:$0xf]
      %v3051 = vunpack.c.l.b16 %v3047
      %v3052 = vunpack.c.l.b16 %v3048
      %v3053 = vpack.c.b16 %v3052, %v3051
      %3054 = vrot.lane.b32.xlu0 %v324, 26
      %v3055 = vpop.permute.xlu0 %3054
      %3056 = vrot.lane.b32.xlu0 %v325, 26
      %v3057 = vpop.permute.xlu0 %3056
      %3058 = vrot.lane.b32.xlu0 %v326, 26
      %v3059 = vpop.permute.xlu0 %3058
      %3060 = vrot.lane.b32.xlu0 %v327, 26
      %v3061 = vpop.permute.xlu0 %3060
      %3062 = vrot.lane.b32.xlu0 %v328, 26
      %v3063 = vpop.permute.xlu0 %3062
      %3064 = vrot.lane.b32.xlu0 %v329, 26
      %v3065 = vpop.permute.xlu0 %3064
      %3066 = vrot.lane.b32.xlu0 %v330, 26
      %v3067 = vpop.permute.xlu0 %3066
      %3068 = vrot.lane.b32.xlu0 %v331, 26
      %v3069 = vpop.permute.xlu0 %3068
      %3070 = vrot.lane.b32.xlu0 %v332, 26
      %v3071 = vpop.permute.xlu0 %3070
      %3072 = vrot.lane.b32.xlu0 %v333, 26
      %v3073 = vpop.permute.xlu0 %3072
      %3074 = vrot.lane.b32.xlu0 %v334, 26
      %v3075 = vpop.permute.xlu0 %3074
      %3076 = vrot.lane.b32.xlu0 %v335, 26
      %v3077 = vpop.permute.xlu0 %3076
      %3078 = vrot.lane.b32.xlu0 %v336, 26
      %v3079 = vpop.permute.xlu0 %3078
      %3080 = vrot.lane.b32.xlu0 %v337, 26
      %v3081 = vpop.permute.xlu0 %3080
      %3082 = vrot.lane.b32.xlu0 %v338, 26
      %v3083 = vpop.permute.xlu0 %3082
      %3084 = vrot.lane.b32.xlu0 %v339, 26
      %v3085 = vpop.permute.xlu0 %3084
      %3086 = vrot.lane.b32.xlu0 %v340, 26
      %v3087 = vpop.permute.xlu0 %3086
      %3088 = vrot.lane.b32.xlu0 %v341, 26
      %v3089 = vpop.permute.xlu0 %3088
      %3090 = vrot.lane.b32.xlu0 %v342, 26
      %v3091 = vpop.permute.xlu0 %3090
      %3092 = vrot.lane.b32.xlu0 %v343, 26
      %v3093 = vpop.permute.xlu0 %3092
      %3094 = vrot.lane.b32.xlu0 %v344, 26
      %v3095 = vpop.permute.xlu0 %3094
      %3096 = vrot.lane.b32.xlu0 %v345, 26
      %v3097 = vpop.permute.xlu0 %3096
      %3098 = vrot.lane.b32.xlu0 %v346, 26
      %v3099 = vpop.permute.xlu0 %3098
      %3100 = vrot.lane.b32.xlu0 %v347, 26
      %v3101 = vpop.permute.xlu0 %3100
      %3102 = vrot.lane.b32.xlu0 %v348, 26
      %v3103 = vpop.permute.xlu0 %3102
      %3104 = vrot.lane.b32.xlu0 %v349, 26
      %v3105 = vpop.permute.xlu0 %3104
      %3106 = vrot.lane.b32.xlu0 %v350, 26
      %v3107 = vpop.permute.xlu0 %3106
      %3108 = vrot.lane.b32.xlu0 %v351, 26
      %v3109 = vpop.permute.xlu0 %3108
      %3110 = vrot.lane.b32.xlu0 %v352, 26
      %v3111 = vpop.permute.xlu0 %3110
      %3112 = vrot.lane.b32.xlu0 %v353, 26
      %v3113 = vpop.permute.xlu0 %3112
      %3114 = vrot.lane.b32.xlu0 %v354, 26
      %v3115 = vpop.permute.xlu0 %3114
      %3116 = vrot.lane.b32.xlu0 %v355, 26
      %v3117 = vpop.permute.xlu0 %3116
      %3118 = vrot.lane.b32.xlu0 %v356, 26
      %v3119 = vpop.permute.xlu0 %3118
      %3120 = vrot.lane.b32.xlu0 %v357, 26
      %v3121 = vpop.permute.xlu0 %3120
      %3122 = vrot.lane.b32.xlu0 %v358, 26
      %v3123 = vpop.permute.xlu0 %3122
      %3124 = vrot.lane.b32.xlu0 %v359, 26
      %v3125 = vpop.permute.xlu0 %3124
      %vm3126 = vcmask 211968
      %v3127 = vsel %vm3126, %v3055, %v3057
      %v3128 = vsel %vm3126, %v3057, %v3059
      %v3129 = vsel %vm3126, %v3059, %v3061
      %v3130 = vsel %vm3126, %v3061, %v3063
      %v3131 = vsel %vm3126, %v3063, %v3065
      %v3132 = vsel %vm3126, %v3065, %v3067
      %v3133 = vsel %vm3126, %v3067, %v3069
      %v3134 = vsel %vm3126, %v3069, %v3071
      %v3135 = vsel %vm3126, %v3071, %v3073
      %v3136 = vsel %vm3126, %v3073, %v3075
      %v3137 = vsel %vm3126, %v3075, %v3077
      %v3138 = vsel %vm3126, %v3077, %v3079
      %v3139 = vsel %vm3126, %v3079, %v3081
      %v3140 = vsel %vm3126, %v3081, %v3083
      %v3141 = vsel %vm3126, %v3083, %v3085
      %v3142 = vsel %vm3126, %v3085, %v3087
      %v3143 = vsel %vm3126, %v3087, %v3089
      %v3144 = vsel %vm3126, %v3091, %v3093
      %v3145 = vsel %vm3126, %v3093, %v3095
      %v3146 = vsel %vm3126, %v3095, %v3097
      %v3147 = vsel %vm3126, %v3097, %v3099
      %v3148 = vsel %vm3126, %v3099, %v3101
      %v3149 = vsel %vm3126, %v3101, %v3103
      %v3150 = vsel %vm3126, %v3103, %v3105
      %v3151 = vsel %vm3126, %v3105, %v3107
      %v3152 = vsel %vm3126, %v3107, %v3109
      %v3153 = vsel %vm3126, %v3109, %v3111
      %v3154 = vsel %vm3126, %v3111, %v3113
      %v3155 = vsel %vm3126, %v3113, %v3115
      %v3156 = vsel %vm3126, %v3115, %v3117
      %v3157 = vsel %vm3126, %v3117, %v3119
      %v3158 = vsel %vm3126, %v3119, %v3121
      %v3159 = vsel %vm3126, %v3121, %v3123
      %v3160 = vsel %vm3126, %v3123, %v3125
      %v3196 = vsel %vm501, %v3053, 0
      %3198 = vmatpush.bf16.msra.mxu0 0
      %3199 = vmatpush.bf16.msra.mxu0 0
      %3200 = vmatpush.bf16.msra.mxu0 0
      %3201 = vmatpush.bf16.msra.mxu0 0
      %3202 = vmatpush.bf16.msra.mxu0 0
      %3203 = vmatpush.bf16.msra.mxu0 0
      %3204 = vmatpush.bf16.msra.mxu0 %v3144
      %3205 = vmatpush.bf16.msra.mxu0 %v3127
      %3206 = vmatmul.bf16.gmra.mxu0 %v3196
      %v3207 = vpop.f32.mrf.mxu0
      %v3208 = vadd.f32 0.0, %v3207
      %v3209 = vpop.f32.mrf.mxu0
      %3210 = vdwg.mxu0
      %3211 = vmatpush.bf16.msra.mxu0 0
      %3212 = vmatpush.bf16.msra.mxu0 0
      %3213 = vmatpush.bf16.msra.mxu0 0
      %3214 = vmatpush.bf16.msra.mxu0 0
      %3215 = vmatpush.bf16.msra.mxu0 0
      %3216 = vmatpush.bf16.msra.mxu0 0
      %3217 = vmatpush.bf16.msra.mxu0 %v3145
      %3218 = vmatpush.bf16.msra.mxu0 %v3128
      %3219 = vmatmul.bf16.gmra.mxu0 %v3196
      %v3220 = vpop.f32.mrf.mxu0
      %v3221 = vadd.f32 0.0, %v3220
      %v3222 = vpop.f32.mrf.mxu0
      %3223 = vdwg.mxu0
      %3224 = vmatpush.bf16.msra.mxu0 0
      %3225 = vmatpush.bf16.msra.mxu0 0
      %3226 = vmatpush.bf16.msra.mxu0 0
      %3227 = vmatpush.bf16.msra.mxu0 0
      %3228 = vmatpush.bf16.msra.mxu0 0
      %3229 = vmatpush.bf16.msra.mxu0 0
      %3230 = vmatpush.bf16.msra.mxu0 %v3146
      %3231 = vmatpush.bf16.msra.mxu0 %v3129
      %3232 = vmatmul.bf16.gmra.mxu0 %v3196
      %v3233 = vpop.f32.mrf.mxu0
      %v3234 = vadd.f32 0.0, %v3233
      %v3235 = vpop.f32.mrf.mxu0
      %3236 = vdwg.mxu0
      %3237 = vmatpush.bf16.msra.mxu0 0
      %3238 = vmatpush.bf16.msra.mxu0 0
      %3239 = vmatpush.bf16.msra.mxu0 0
      %3240 = vmatpush.bf16.msra.mxu0 0
      %3241 = vmatpush.bf16.msra.mxu0 0
      %3242 = vmatpush.bf16.msra.mxu0 0
      %3243 = vmatpush.bf16.msra.mxu0 %v3147
      %3244 = vmatpush.bf16.msra.mxu0 %v3130
      %3245 = vmatmul.bf16.gmra.mxu0 %v3196
      %v3246 = vpop.f32.mrf.mxu0
      %v3247 = vadd.f32 0.0, %v3246
      %v3248 = vpop.f32.mrf.mxu0
      %3249 = vdwg.mxu0
      %3250 = vmatpush.bf16.msra.mxu0 0
      %3251 = vmatpush.bf16.msra.mxu0 0
      %3252 = vmatpush.bf16.msra.mxu0 0
      %3253 = vmatpush.bf16.msra.mxu0 0
      %3254 = vmatpush.bf16.msra.mxu0 0
      %3255 = vmatpush.bf16.msra.mxu0 0
      %3256 = vmatpush.bf16.msra.mxu0 %v3148
      %3257 = vmatpush.bf16.msra.mxu0 %v3131
      %3258 = vmatmul.bf16.gmra.mxu0 %v3196
      %v3259 = vpop.f32.mrf.mxu0
      %v3260 = vadd.f32 0.0, %v3259
      %v3261 = vpop.f32.mrf.mxu0
      %3262 = vdwg.mxu0
      %3263 = vmatpush.bf16.msra.mxu0 0
      %3264 = vmatpush.bf16.msra.mxu0 0
      %3265 = vmatpush.bf16.msra.mxu0 0
      %3266 = vmatpush.bf16.msra.mxu0 0
      %3267 = vmatpush.bf16.msra.mxu0 0
      %3268 = vmatpush.bf16.msra.mxu0 0
      %3269 = vmatpush.bf16.msra.mxu0 %v3149
      %3270 = vmatpush.bf16.msra.mxu0 %v3132
      %3271 = vmatmul.bf16.gmra.mxu0 %v3196
      %v3272 = vpop.f32.mrf.mxu0
      %v3273 = vadd.f32 0.0, %v3272
      %v3274 = vpop.f32.mrf.mxu0
      %3275 = vdwg.mxu0
      %3276 = vmatpush.bf16.msra.mxu0 0
      %3277 = vmatpush.bf16.msra.mxu0 0
      %3278 = vmatpush.bf16.msra.mxu0 0
      %3279 = vmatpush.bf16.msra.mxu0 0
      %3280 = vmatpush.bf16.msra.mxu0 0
      %3281 = vmatpush.bf16.msra.mxu0 0
      %3282 = vmatpush.bf16.msra.mxu0 %v3150
      %3283 = vmatpush.bf16.msra.mxu0 %v3133
      %3284 = vmatmul.bf16.gmra.mxu0 %v3196
      %v3285 = vpop.f32.mrf.mxu0
      %v3286 = vadd.f32 0.0, %v3285
      %v3287 = vpop.f32.mrf.mxu0
      %3288 = vdwg.mxu0
      %3289 = vmatpush.bf16.msra.mxu0 0
      %3290 = vmatpush.bf16.msra.mxu0 0
      %3291 = vmatpush.bf16.msra.mxu0 0
      %3292 = vmatpush.bf16.msra.mxu0 0
      %3293 = vmatpush.bf16.msra.mxu0 0
      %3294 = vmatpush.bf16.msra.mxu0 0
      %3295 = vmatpush.bf16.msra.mxu0 %v3151
      %3296 = vmatpush.bf16.msra.mxu0 %v3134
      %3297 = vmatmul.bf16.gmra.mxu0 %v3196
      %v3298 = vpop.f32.mrf.mxu0
      %v3299 = vadd.f32 0.0, %v3298
      %v3300 = vpop.f32.mrf.mxu0
      %3301 = vdwg.mxu0
      %3302 = vmatpush.bf16.msra.mxu0 0
      %3303 = vmatpush.bf16.msra.mxu0 0
      %3304 = vmatpush.bf16.msra.mxu0 0
      %3305 = vmatpush.bf16.msra.mxu0 0
      %3306 = vmatpush.bf16.msra.mxu0 0
      %3307 = vmatpush.bf16.msra.mxu0 0
      %3308 = vmatpush.bf16.msra.mxu0 %v3152
      %3309 = vmatpush.bf16.msra.mxu0 %v3135
      %3310 = vmatmul.bf16.gmra.mxu0 %v3196
      %v3311 = vpop.f32.mrf.mxu0
      %v3312 = vadd.f32 0.0, %v3311
      %v3313 = vpop.f32.mrf.mxu0
      %3314 = vdwg.mxu0
      %3315 = vmatpush.bf16.msra.mxu0 0
      %3316 = vmatpush.bf16.msra.mxu0 0
      %3317 = vmatpush.bf16.msra.mxu0 0
      %3318 = vmatpush.bf16.msra.mxu0 0
      %3319 = vmatpush.bf16.msra.mxu0 0
      %3320 = vmatpush.bf16.msra.mxu0 0
      %3321 = vmatpush.bf16.msra.mxu0 %v3153
      %3322 = vmatpush.bf16.msra.mxu0 %v3136
      %3323 = vmatmul.bf16.gmra.mxu0 %v3196
      %v3324 = vpop.f32.mrf.mxu0
      %v3325 = vadd.f32 0.0, %v3324
      %v3326 = vpop.f32.mrf.mxu0
      %3327 = vdwg.mxu0
      %3328 = vmatpush.bf16.msra.mxu0 0
      %3329 = vmatpush.bf16.msra.mxu0 0
      %3330 = vmatpush.bf16.msra.mxu0 0
      %3331 = vmatpush.bf16.msra.mxu0 0
      %3332 = vmatpush.bf16.msra.mxu0 0
      %3333 = vmatpush.bf16.msra.mxu0 0
      %3334 = vmatpush.bf16.msra.mxu0 %v3154
      %3335 = vmatpush.bf16.msra.mxu0 %v3137
      %3336 = vmatmul.bf16.gmra.mxu0 %v3196
      %v3337 = vpop.f32.mrf.mxu0
      %v3338 = vadd.f32 0.0, %v3337
      %v3339 = vpop.f32.mrf.mxu0
      %3340 = vdwg.mxu0
      %3341 = vmatpush.bf16.msra.mxu0 0
      %3342 = vmatpush.bf16.msra.mxu0 0
      %3343 = vmatpush.bf16.msra.mxu0 0
      %3344 = vmatpush.bf16.msra.mxu0 0
      %3345 = vmatpush.bf16.msra.mxu0 0
      %3346 = vmatpush.bf16.msra.mxu0 0
      %3347 = vmatpush.bf16.msra.mxu0 %v3155
      %3348 = vmatpush.bf16.msra.mxu0 %v3138
      %3349 = vmatmul.bf16.gmra.mxu0 %v3196
      %v3350 = vpop.f32.mrf.mxu0
      %v3351 = vadd.f32 0.0, %v3350
      %v3352 = vpop.f32.mrf.mxu0
      %3353 = vdwg.mxu0
      %3354 = vmatpush.bf16.msra.mxu0 0
      %3355 = vmatpush.bf16.msra.mxu0 0
      %3356 = vmatpush.bf16.msra.mxu0 0
      %3357 = vmatpush.bf16.msra.mxu0 0
      %3358 = vmatpush.bf16.msra.mxu0 0
      %3359 = vmatpush.bf16.msra.mxu0 0
      %3360 = vmatpush.bf16.msra.mxu0 %v3156
      %3361 = vmatpush.bf16.msra.mxu0 %v3139
      %3362 = vmatmul.bf16.gmra.mxu0 %v3196
      %v3363 = vpop.f32.mrf.mxu0
      %v3364 = vadd.f32 0.0, %v3363
      %v3365 = vpop.f32.mrf.mxu0
      %3366 = vdwg.mxu0
      %3367 = vmatpush.bf16.msra.mxu0 0
      %3368 = vmatpush.bf16.msra.mxu0 0
      %3369 = vmatpush.bf16.msra.mxu0 0
      %3370 = vmatpush.bf16.msra.mxu0 0
      %3371 = vmatpush.bf16.msra.mxu0 0
      %3372 = vmatpush.bf16.msra.mxu0 0
      %3373 = vmatpush.bf16.msra.mxu0 %v3157
      %3374 = vmatpush.bf16.msra.mxu0 %v3140
      %3375 = vmatmul.bf16.gmra.mxu0 %v3196
      %v3376 = vpop.f32.mrf.mxu0
      %v3377 = vadd.f32 0.0, %v3376
      %v3378 = vpop.f32.mrf.mxu0
      %3379 = vdwg.mxu0
      %3380 = vmatpush.bf16.msra.mxu0 0
      %3381 = vmatpush.bf16.msra.mxu0 0
      %3382 = vmatpush.bf16.msra.mxu0 0
      %3383 = vmatpush.bf16.msra.mxu0 0
      %3384 = vmatpush.bf16.msra.mxu0 0
      %3385 = vmatpush.bf16.msra.mxu0 0
      %3386 = vmatpush.bf16.msra.mxu0 %v3158
      %3387 = vmatpush.bf16.msra.mxu0 %v3141
      %3388 = vmatmul.bf16.gmra.mxu0 %v3196
      %v3389 = vpop.f32.mrf.mxu0
      %v3390 = vadd.f32 0.0, %v3389
      %v3391 = vpop.f32.mrf.mxu0
      %3392 = vdwg.mxu0
      %3393 = vmatpush.bf16.msra.mxu0 0
      %3394 = vmatpush.bf16.msra.mxu0 0
      %3395 = vmatpush.bf16.msra.mxu0 0
      %3396 = vmatpush.bf16.msra.mxu0 0
      %3397 = vmatpush.bf16.msra.mxu0 0
      %3398 = vmatpush.bf16.msra.mxu0 0
      %3399 = vmatpush.bf16.msra.mxu0 %v3159
      %3400 = vmatpush.bf16.msra.mxu0 %v3142
      %3401 = vmatmul.bf16.gmra.mxu0 %v3196
      %v3402 = vpop.f32.mrf.mxu0
      %v3403 = vadd.f32 0.0, %v3402
      %v3404 = vpop.f32.mrf.mxu0
      %3405 = vdwg.mxu0
      %3406 = vmatpush.bf16.msra.mxu0 0
      %3407 = vmatpush.bf16.msra.mxu0 0
      %3408 = vmatpush.bf16.msra.mxu0 0
      %3409 = vmatpush.bf16.msra.mxu0 0
      %3410 = vmatpush.bf16.msra.mxu0 0
      %3411 = vmatpush.bf16.msra.mxu0 0
      %3412 = vmatpush.bf16.msra.mxu0 %v3160
      %3413 = vmatpush.bf16.msra.mxu0 %v3143
      %3414 = vmatmul.bf16.gmra.mxu0 %v3196
      %v3415 = vpop.f32.mrf.mxu0
      %v3416 = vadd.f32 0.0, %v3415
      %v3417 = vpop.f32.mrf.mxu0
      %3418 = vdwg.mxu0
      %v3419 = vadd.f32 %v3029, %v3208
      %v3420 = vadd.f32 %v3030, %v3221
      %v3421 = vadd.f32 %v3031, %v3234
      %v3422 = vadd.f32 %v3032, %v3247
      %v3423 = vadd.f32 %v3033, %v3260
      %v3424 = vadd.f32 %v3034, %v3273
      %v3425 = vadd.f32 %v3035, %v3286
      %v3426 = vadd.f32 %v3036, %v3299
      %v3427 = vadd.f32 %v3037, %v3312
      %v3428 = vadd.f32 %v3038, %v3325
      %v3429 = vadd.f32 %v3039, %v3338
      %v3430 = vadd.f32 %v3040, %v3351
      %v3431 = vadd.f32 %v3041, %v3364
      %v3432 = vadd.f32 %v3042, %v3377
      %v3433 = vadd.f32 %v3043, %v3390
      %v3434 = vadd.f32 %v3044, %v3403
      %v3435 = vadd.f32 %v3045, %v3416
      %s3436 = scalar_lea.vmem %s1, 64
      %v3437 = vld [vmem:[%s3436] sm:$0xf]
      %v3438 = vld [vmem:[%s3436 + $0x4] sm:$0xf]
      %v3441 = vunpack.c.l.b16 %v3437
      %v3442 = vunpack.c.l.b16 %v3438
      %v3443 = vpack.c.b16 %v3442, %v3441
      %3444 = vrot.lane.b32.xlu0 %v324, 25
      %v3445 = vpop.permute.xlu0 %3444
      %3446 = vrot.lane.b32.xlu0 %v325, 25
      %v3447 = vpop.permute.xlu0 %3446
      %3448 = vrot.lane.b32.xlu0 %v326, 25
      %v3449 = vpop.permute.xlu0 %3448
      %3450 = vrot.lane.b32.xlu0 %v327, 25
      %v3451 = vpop.permute.xlu0 %3450
      %3452 = vrot.lane.b32.xlu0 %v328, 25
      %v3453 = vpop.permute.xlu0 %3452
      %3454 = vrot.lane.b32.xlu0 %v329, 25
      %v3455 = vpop.permute.xlu0 %3454
      %3456 = vrot.lane.b32.xlu0 %v330, 25
      %v3457 = vpop.permute.xlu0 %3456
      %3458 = vrot.lane.b32.xlu0 %v331, 25
      %v3459 = vpop.permute.xlu0 %3458
      %3460 = vrot.lane.b32.xlu0 %v332, 25
      %v3461 = vpop.permute.xlu0 %3460
      %3462 = vrot.lane.b32.xlu0 %v333, 25
      %v3463 = vpop.permute.xlu0 %3462
      %3464 = vrot.lane.b32.xlu0 %v334, 25
      %v3465 = vpop.permute.xlu0 %3464
      %3466 = vrot.lane.b32.xlu0 %v335, 25
      %v3467 = vpop.permute.xlu0 %3466
      %3468 = vrot.lane.b32.xlu0 %v336, 25
      %v3469 = vpop.permute.xlu0 %3468
      %3470 = vrot.lane.b32.xlu0 %v337, 25
      %v3471 = vpop.permute.xlu0 %3470
      %3472 = vrot.lane.b32.xlu0 %v338, 25
      %v3473 = vpop.permute.xlu0 %3472
      %3474 = vrot.lane.b32.xlu0 %v339, 25
      %v3475 = vpop.permute.xlu0 %3474
      %3476 = vrot.lane.b32.xlu0 %v340, 25
      %v3477 = vpop.permute.xlu0 %3476
      %3478 = vrot.lane.b32.xlu0 %v341, 25
      %v3479 = vpop.permute.xlu0 %3478
      %3480 = vrot.lane.b32.xlu0 %v342, 25
      %v3481 = vpop.permute.xlu0 %3480
      %3482 = vrot.lane.b32.xlu0 %v343, 25
      %v3483 = vpop.permute.xlu0 %3482
      %3484 = vrot.lane.b32.xlu0 %v344, 25
      %v3485 = vpop.permute.xlu0 %3484
      %3486 = vrot.lane.b32.xlu0 %v345, 25
      %v3487 = vpop.permute.xlu0 %3486
      %3488 = vrot.lane.b32.xlu0 %v346, 25
      %v3489 = vpop.permute.xlu0 %3488
      %3490 = vrot.lane.b32.xlu0 %v347, 25
      %v3491 = vpop.permute.xlu0 %3490
      %3492 = vrot.lane.b32.xlu0 %v348, 25
      %v3493 = vpop.permute.xlu0 %3492
      %3494 = vrot.lane.b32.xlu0 %v349, 25
      %v3495 = vpop.permute.xlu0 %3494
      %3496 = vrot.lane.b32.xlu0 %v350, 25
      %v3497 = vpop.permute.xlu0 %3496
      %3498 = vrot.lane.b32.xlu0 %v351, 25
      %v3499 = vpop.permute.xlu0 %3498
      %3500 = vrot.lane.b32.xlu0 %v352, 25
      %v3501 = vpop.permute.xlu0 %3500
      %3502 = vrot.lane.b32.xlu0 %v353, 25
      %v3503 = vpop.permute.xlu0 %3502
      %3504 = vrot.lane.b32.xlu0 %v354, 25
      %v3505 = vpop.permute.xlu0 %3504
      %3506 = vrot.lane.b32.xlu0 %v355, 25
      %v3507 = vpop.permute.xlu0 %3506
      %3508 = vrot.lane.b32.xlu0 %v356, 25
      %v3509 = vpop.permute.xlu0 %3508
      %3510 = vrot.lane.b32.xlu0 %v357, 25
      %v3511 = vpop.permute.xlu0 %3510
      %3512 = vrot.lane.b32.xlu0 %v358, 25
      %v3513 = vpop.permute.xlu0 %3512
      %3514 = vrot.lane.b32.xlu0 %v359, 25
      %v3515 = vpop.permute.xlu0 %3514
      %vm3516 = vcmask 203776
      %v3517 = vsel %vm3516, %v3445, %v3447
      %v3518 = vsel %vm3516, %v3447, %v3449
      %v3519 = vsel %vm3516, %v3449, %v3451
      %v3520 = vsel %vm3516, %v3451, %v3453
      %v3521 = vsel %vm3516, %v3453, %v3455
      %v3522 = vsel %vm3516, %v3455, %v3457
      %v3523 = vsel %vm3516, %v3457, %v3459
      %v3524 = vsel %vm3516, %v3459, %v3461
      %v3525 = vsel %vm3516, %v3461, %v3463
      %v3526 = vsel %vm3516, %v3463, %v3465
      %v3527 = vsel %vm3516, %v3465, %v3467
      %v3528 = vsel %vm3516, %v3467, %v3469
      %v3529 = vsel %vm3516, %v3469, %v3471
      %v3530 = vsel %vm3516, %v3471, %v3473
      %v3531 = vsel %vm3516, %v3473, %v3475
      %v3532 = vsel %vm3516, %v3475, %v3477
      %v3533 = vsel %vm3516, %v3477, %v3479
      %v3534 = vsel %vm3516, %v3481, %v3483
      %v3535 = vsel %vm3516, %v3483, %v3485
      %v3536 = vsel %vm3516, %v3485, %v3487
      %v3537 = vsel %vm3516, %v3487, %v3489
      %v3538 = vsel %vm3516, %v3489, %v3491
      %v3539 = vsel %vm3516, %v3491, %v3493
      %v3540 = vsel %vm3516, %v3493, %v3495
      %v3541 = vsel %vm3516, %v3495, %v3497
      %v3542 = vsel %vm3516, %v3497, %v3499
      %v3543 = vsel %vm3516, %v3499, %v3501
      %v3544 = vsel %vm3516, %v3501, %v3503
      %v3545 = vsel %vm3516, %v3503, %v3505
      %v3546 = vsel %vm3516, %v3505, %v3507
      %v3547 = vsel %vm3516, %v3507, %v3509
      %v3548 = vsel %vm3516, %v3509, %v3511
      %v3549 = vsel %vm3516, %v3511, %v3513
      %v3550 = vsel %vm3516, %v3513, %v3515
      %v3586 = vsel %vm501, %v3443, 0
      %3588 = vmatpush.bf16.msra.mxu0 0
      %3589 = vmatpush.bf16.msra.mxu0 0
      %3590 = vmatpush.bf16.msra.mxu0 0
      %3591 = vmatpush.bf16.msra.mxu0 0
      %3592 = vmatpush.bf16.msra.mxu0 0
      %3593 = vmatpush.bf16.msra.mxu0 0
      %3594 = vmatpush.bf16.msra.mxu0 %v3534
      %3595 = vmatpush.bf16.msra.mxu0 %v3517
      %3596 = vmatmul.bf16.gmra.mxu0 %v3586
      %v3597 = vpop.f32.mrf.mxu0
      %v3598 = vadd.f32 0.0, %v3597
      %v3599 = vpop.f32.mrf.mxu0
      %3600 = vdwg.mxu0
      %3601 = vmatpush.bf16.msra.mxu0 0
      %3602 = vmatpush.bf16.msra.mxu0 0
      %3603 = vmatpush.bf16.msra.mxu0 0
      %3604 = vmatpush.bf16.msra.mxu0 0
      %3605 = vmatpush.bf16.msra.mxu0 0
      %3606 = vmatpush.bf16.msra.mxu0 0
      %3607 = vmatpush.bf16.msra.mxu0 %v3535
      %3608 = vmatpush.bf16.msra.mxu0 %v3518
      %3609 = vmatmul.bf16.gmra.mxu0 %v3586
      %v3610 = vpop.f32.mrf.mxu0
      %v3611 = vadd.f32 0.0, %v3610
      %v3612 = vpop.f32.mrf.mxu0
      %3613 = vdwg.mxu0
      %3614 = vmatpush.bf16.msra.mxu0 0
      %3615 = vmatpush.bf16.msra.mxu0 0
      %3616 = vmatpush.bf16.msra.mxu0 0
      %3617 = vmatpush.bf16.msra.mxu0 0
      %3618 = vmatpush.bf16.msra.mxu0 0
      %3619 = vmatpush.bf16.msra.mxu0 0
      %3620 = vmatpush.bf16.msra.mxu0 %v3536
      %3621 = vmatpush.bf16.msra.mxu0 %v3519
      %3622 = vmatmul.bf16.gmra.mxu0 %v3586
      %v3623 = vpop.f32.mrf.mxu0
      %v3624 = vadd.f32 0.0, %v3623
      %v3625 = vpop.f32.mrf.mxu0
      %3626 = vdwg.mxu0
      %3627 = vmatpush.bf16.msra.mxu0 0
      %3628 = vmatpush.bf16.msra.mxu0 0
      %3629 = vmatpush.bf16.msra.mxu0 0
      %3630 = vmatpush.bf16.msra.mxu0 0
      %3631 = vmatpush.bf16.msra.mxu0 0
      %3632 = vmatpush.bf16.msra.mxu0 0
      %3633 = vmatpush.bf16.msra.mxu0 %v3537
      %3634 = vmatpush.bf16.msra.mxu0 %v3520
      %3635 = vmatmul.bf16.gmra.mxu0 %v3586
      %v3636 = vpop.f32.mrf.mxu0
      %v3637 = vadd.f32 0.0, %v3636
      %v3638 = vpop.f32.mrf.mxu0
      %3639 = vdwg.mxu0
      %3640 = vmatpush.bf16.msra.mxu0 0
      %3641 = vmatpush.bf16.msra.mxu0 0
      %3642 = vmatpush.bf16.msra.mxu0 0
      %3643 = vmatpush.bf16.msra.mxu0 0
      %3644 = vmatpush.bf16.msra.mxu0 0
      %3645 = vmatpush.bf16.msra.mxu0 0
      %3646 = vmatpush.bf16.msra.mxu0 %v3538
      %3647 = vmatpush.bf16.msra.mxu0 %v3521
      %3648 = vmatmul.bf16.gmra.mxu0 %v3586
      %v3649 = vpop.f32.mrf.mxu0
      %v3650 = vadd.f32 0.0, %v3649
      %v3651 = vpop.f32.mrf.mxu0
      %3652 = vdwg.mxu0
      %3653 = vmatpush.bf16.msra.mxu0 0
      %3654 = vmatpush.bf16.msra.mxu0 0
      %3655 = vmatpush.bf16.msra.mxu0 0
      %3656 = vmatpush.bf16.msra.mxu0 0
      %3657 = vmatpush.bf16.msra.mxu0 0
      %3658 = vmatpush.bf16.msra.mxu0 0
      %3659 = vmatpush.bf16.msra.mxu0 %v3539
      %3660 = vmatpush.bf16.msra.mxu0 %v3522
      %3661 = vmatmul.bf16.gmra.mxu0 %v3586
      %v3662 = vpop.f32.mrf.mxu0
      %v3663 = vadd.f32 0.0, %v3662
      %v3664 = vpop.f32.mrf.mxu0
      %3665 = vdwg.mxu0
      %3666 = vmatpush.bf16.msra.mxu0 0
      %3667 = vmatpush.bf16.msra.mxu0 0
      %3668 = vmatpush.bf16.msra.mxu0 0
      %3669 = vmatpush.bf16.msra.mxu0 0
      %3670 = vmatpush.bf16.msra.mxu0 0
      %3671 = vmatpush.bf16.msra.mxu0 0
      %3672 = vmatpush.bf16.msra.mxu0 %v3540
      %3673 = vmatpush.bf16.msra.mxu0 %v3523
      %3674 = vmatmul.bf16.gmra.mxu0 %v3586
      %v3675 = vpop.f32.mrf.mxu0
      %v3676 = vadd.f32 0.0, %v3675
      %v3677 = vpop.f32.mrf.mxu0
      %3678 = vdwg.mxu0
      %3679 = vmatpush.bf16.msra.mxu0 0
      %3680 = vmatpush.bf16.msra.mxu0 0
      %3681 = vmatpush.bf16.msra.mxu0 0
      %3682 = vmatpush.bf16.msra.mxu0 0
      %3683 = vmatpush.bf16.msra.mxu0 0
      %3684 = vmatpush.bf16.msra.mxu0 0
      %3685 = vmatpush.bf16.msra.mxu0 %v3541
      %3686 = vmatpush.bf16.msra.mxu0 %v3524
      %3687 = vmatmul.bf16.gmra.mxu0 %v3586
      %v3688 = vpop.f32.mrf.mxu0
      %v3689 = vadd.f32 0.0, %v3688
      %v3690 = vpop.f32.mrf.mxu0
      %3691 = vdwg.mxu0
      %3692 = vmatpush.bf16.msra.mxu0 0
      %3693 = vmatpush.bf16.msra.mxu0 0
      %3694 = vmatpush.bf16.msra.mxu0 0
      %3695 = vmatpush.bf16.msra.mxu0 0
      %3696 = vmatpush.bf16.msra.mxu0 0
      %3697 = vmatpush.bf16.msra.mxu0 0
      %3698 = vmatpush.bf16.msra.mxu0 %v3542
      %3699 = vmatpush.bf16.msra.mxu0 %v3525
      %3700 = vmatmul.bf16.gmra.mxu0 %v3586
      %v3701 = vpop.f32.mrf.mxu0
      %v3702 = vadd.f32 0.0, %v3701
      %v3703 = vpop.f32.mrf.mxu0
      %3704 = vdwg.mxu0
      %3705 = vmatpush.bf16.msra.mxu0 0
      %3706 = vmatpush.bf16.msra.mxu0 0
      %3707 = vmatpush.bf16.msra.mxu0 0
      %3708 = vmatpush.bf16.msra.mxu0 0
      %3709 = vmatpush.bf16.msra.mxu0 0
      %3710 = vmatpush.bf16.msra.mxu0 0
      %3711 = vmatpush.bf16.msra.mxu0 %v3543
      %3712 = vmatpush.bf16.msra.mxu0 %v3526
      %3713 = vmatmul.bf16.gmra.mxu0 %v3586
      %v3714 = vpop.f32.mrf.mxu0
      %v3715 = vadd.f32 0.0, %v3714
      %v3716 = vpop.f32.mrf.mxu0
      %3717 = vdwg.mxu0
      %3718 = vmatpush.bf16.msra.mxu0 0
      %3719 = vmatpush.bf16.msra.mxu0 0
      %3720 = vmatpush.bf16.msra.mxu0 0
      %3721 = vmatpush.bf16.msra.mxu0 0
      %3722 = vmatpush.bf16.msra.mxu0 0
      %3723 = vmatpush.bf16.msra.mxu0 0
      %3724 = vmatpush.bf16.msra.mxu0 %v3544
      %3725 = vmatpush.bf16.msra.mxu0 %v3527
      %3726 = vmatmul.bf16.gmra.mxu0 %v3586
      %v3727 = vpop.f32.mrf.mxu0
      %v3728 = vadd.f32 0.0, %v3727
      %v3729 = vpop.f32.mrf.mxu0
      %3730 = vdwg.mxu0
      %3731 = vmatpush.bf16.msra.mxu0 0
      %3732 = vmatpush.bf16.msra.mxu0 0
      %3733 = vmatpush.bf16.msra.mxu0 0
      %3734 = vmatpush.bf16.msra.mxu0 0
      %3735 = vmatpush.bf16.msra.mxu0 0
      %3736 = vmatpush.bf16.msra.mxu0 0
      %3737 = vmatpush.bf16.msra.mxu0 %v3545
      %3738 = vmatpush.bf16.msra.mxu0 %v3528
      %3739 = vmatmul.bf16.gmra.mxu0 %v3586
      %v3740 = vpop.f32.mrf.mxu0
      %v3741 = vadd.f32 0.0, %v3740
      %v3742 = vpop.f32.mrf.mxu0
      %3743 = vdwg.mxu0
      %3744 = vmatpush.bf16.msra.mxu0 0
      %3745 = vmatpush.bf16.msra.mxu0 0
      %3746 = vmatpush.bf16.msra.mxu0 0
      %3747 = vmatpush.bf16.msra.mxu0 0
      %3748 = vmatpush.bf16.msra.mxu0 0
      %3749 = vmatpush.bf16.msra.mxu0 0
      %3750 = vmatpush.bf16.msra.mxu0 %v3546
      %3751 = vmatpush.bf16.msra.mxu0 %v3529
      %3752 = vmatmul.bf16.gmra.mxu0 %v3586
      %v3753 = vpop.f32.mrf.mxu0
      %v3754 = vadd.f32 0.0, %v3753
      %v3755 = vpop.f32.mrf.mxu0
      %3756 = vdwg.mxu0
      %3757 = vmatpush.bf16.msra.mxu0 0
      %3758 = vmatpush.bf16.msra.mxu0 0
      %3759 = vmatpush.bf16.msra.mxu0 0
      %3760 = vmatpush.bf16.msra.mxu0 0
      %3761 = vmatpush.bf16.msra.mxu0 0
      %3762 = vmatpush.bf16.msra.mxu0 0
      %3763 = vmatpush.bf16.msra.mxu0 %v3547
      %3764 = vmatpush.bf16.msra.mxu0 %v3530
      %3765 = vmatmul.bf16.gmra.mxu0 %v3586
      %v3766 = vpop.f32.mrf.mxu0
      %v3767 = vadd.f32 0.0, %v3766
      %v3768 = vpop.f32.mrf.mxu0
      %3769 = vdwg.mxu0
      %3770 = vmatpush.bf16.msra.mxu0 0
      %3771 = vmatpush.bf16.msra.mxu0 0
      %3772 = vmatpush.bf16.msra.mxu0 0
      %3773 = vmatpush.bf16.msra.mxu0 0
      %3774 = vmatpush.bf16.msra.mxu0 0
      %3775 = vmatpush.bf16.msra.mxu0 0
      %3776 = vmatpush.bf16.msra.mxu0 %v3548
      %3777 = vmatpush.bf16.msra.mxu0 %v3531
      %3778 = vmatmul.bf16.gmra.mxu0 %v3586
      %v3779 = vpop.f32.mrf.mxu0
      %v3780 = vadd.f32 0.0, %v3779
      %v3781 = vpop.f32.mrf.mxu0
      %3782 = vdwg.mxu0
      %3783 = vmatpush.bf16.msra.mxu0 0
      %3784 = vmatpush.bf16.msra.mxu0 0
      %3785 = vmatpush.bf16.msra.mxu0 0
      %3786 = vmatpush.bf16.msra.mxu0 0
      %3787 = vmatpush.bf16.msra.mxu0 0
      %3788 = vmatpush.bf16.msra.mxu0 0
      %3789 = vmatpush.bf16.msra.mxu0 %v3549
      %3790 = vmatpush.bf16.msra.mxu0 %v3532
      %3791 = vmatmul.bf16.gmra.mxu0 %v3586
      %v3792 = vpop.f32.mrf.mxu0
      %v3793 = vadd.f32 0.0, %v3792
      %v3794 = vpop.f32.mrf.mxu0
      %3795 = vdwg.mxu0
      %3796 = vmatpush.bf16.msra.mxu0 0
      %3797 = vmatpush.bf16.msra.mxu0 0
      %3798 = vmatpush.bf16.msra.mxu0 0
      %3799 = vmatpush.bf16.msra.mxu0 0
      %3800 = vmatpush.bf16.msra.mxu0 0
      %3801 = vmatpush.bf16.msra.mxu0 0
      %3802 = vmatpush.bf16.msra.mxu0 %v3550
      %3803 = vmatpush.bf16.msra.mxu0 %v3533
      %3804 = vmatmul.bf16.gmra.mxu0 %v3586
      %v3805 = vpop.f32.mrf.mxu0
      %v3806 = vadd.f32 0.0, %v3805
      %v3807 = vpop.f32.mrf.mxu0
      %3808 = vdwg.mxu0
      %v3809 = vadd.f32 %v3419, %v3598
      %v3810 = vadd.f32 %v3420, %v3611
      %v3811 = vadd.f32 %v3421, %v3624
      %v3812 = vadd.f32 %v3422, %v3637
      %v3813 = vadd.f32 %v3423, %v3650
      %v3814 = vadd.f32 %v3424, %v3663
      %v3815 = vadd.f32 %v3425, %v3676
      %v3816 = vadd.f32 %v3426, %v3689
      %v3817 = vadd.f32 %v3427, %v3702
      %v3818 = vadd.f32 %v3428, %v3715
      %v3819 = vadd.f32 %v3429, %v3728
      %v3820 = vadd.f32 %v3430, %v3741
      %v3821 = vadd.f32 %v3431, %v3754
      %v3822 = vadd.f32 %v3432, %v3767
      %v3823 = vadd.f32 %v3433, %v3780
      %v3824 = vadd.f32 %v3434, %v3793
      %v3825 = vadd.f32 %v3435, %v3806
      %v3826 = vld [vmem:[%s2] sm:$0xff]
      %3828 = vset.pattern.permute.xlu0 0
      %3829 = vperm.xlu0 %3828, %v3826
      %v3830 = vpop.permute.xlu0 %3829
      %v3832 = vadd.f32 %v3809, %v3830
      %v3833 = vadd.f32 %v3810, %v3830
      %v3834 = vadd.f32 %v3811, %v3830
      %v3835 = vadd.f32 %v3812, %v3830
      %v3836 = vadd.f32 %v3813, %v3830
      %v3837 = vadd.f32 %v3814, %v3830
      %v3838 = vadd.f32 %v3815, %v3830
      %v3839 = vadd.f32 %v3816, %v3830
      %v3840 = vadd.f32 %v3817, %v3830
      %v3841 = vadd.f32 %v3818, %v3830
      %v3842 = vadd.f32 %v3819, %v3830
      %v3843 = vadd.f32 %v3820, %v3830
      %v3844 = vadd.f32 %v3821, %v3830
      %v3845 = vadd.f32 %v3822, %v3830
      %v3846 = vadd.f32 %v3823, %v3830
      %v3847 = vadd.f32 %v3824, %v3830
      %v3848 = vadd.f32 %v3825, %v3830
      %v3865 = vrot.slane %v3833, 7
      %v3866 = vrot.slane %v3834, 6
      %v3867 = vrot.slane %v3835, 5
      %v3868 = vrot.slane %v3836, 4
      %v3869 = vrot.slane %v3837, 3
      %v3870 = vrot.slane %v3838, 2
      %v3871 = vrot.slane %v3839, 1
      %v3872 = vrot.slane %v3841, 7
      %v3873 = vrot.slane %v3842, 6
      %v3874 = vrot.slane %v3843, 5
      %v3875 = vrot.slane %v3844, 4
      %v3876 = vrot.slane %v3845, 3
      %v3877 = vrot.slane %v3846, 2
      %v3878 = vrot.slane %v3847, 1
      %vm3879 = vcmask 1040384
      %v3880 = vsel %vm3879, %v3832, %v3865
      %vm3881 = vcmask 1042434
      %v3882 = vsel %vm3881, %v3866, %v3867
      %vm3883 = vcmask 1041408
      %v3884 = vsel %vm3883, %v3880, %v3882
      %vm3885 = vcmask 1044484
      %v3886 = vsel %vm3885, %v3868, %v3869
      %vm3887 = vcmask 1046534
      %v3888 = vsel %vm3887, %v3870, %v3871
      %vm3889 = vcmask 1045508
      %v3890 = vsel %vm3889, %v3886, %v3888
      %vm3891 = vcmask 1043456
      %v3892 = vsel %vm3891, %v3884, %v3890
      %v3893 = vsel %vm3879, %v3840, %v3872
      %v3894 = vsel %vm3881, %v3873, %v3874
      %v3895 = vsel %vm3883, %v3893, %v3894
      %v3896 = vsel %vm3885, %v3875, %v3876
      %v3897 = vsel %vm3887, %v3877, %v3878
      %v3898 = vsel %vm3889, %v3896, %v3897
      %v3899 = vsel %vm3891, %v3895, %v3898
      %3902 = vst [vmem:[%s168] sm:$0xff] %v3892
      %3903 = vst [vmem:[%s168 + $0x8] sm:$0xff] %v3899
      %v3904 = vlaneseq
      %vm3905 = vcmp.ge.s32.totalorder %v3904, 0
      %vm3906 = vcmp.lt.s32.totalorder %v3904, 128
      %vm3907 = vmand %vm3905, %vm3906
      %3908 = vst.msk [vmem:[%s168 + $0x10] sm:$0x1] %vm3907, %v3848
      %p3909 = scmp.lt.s32.totalorder %s14, 1
      %s3910 = scalar_select %p3909, %s14, 1
      %s3911 = smul.addr %s3910, 17
      %s3912 = scalar_lea.vmem %s3, %s3911
      // Predicated region
      $region33: #{decoder_a_forward.7} parent=31 // pred_check
        %p3913 = pneg %p100
      $region34: #{decoder_a_forward.7} parent=31 // pred_check_branch
        %3915 = sbr.rel (%p3913) target = $region36
      $region35: #{decoder_a_forward.7} parent=31 // pred_region
        _
      $region36: #{decoder_a_forward.7} parent=31 // pred_fallthru
        _
    $region32: #{decoder_a_forward.7} parent=5 // pred_fallthru
      _
    %p3916 = scmp.le.s32.totalorder 2, %s9
    // Predicated region
    $region37: #{decoder_a_forward.7} parent=5 // pred_check
      %p3917 = pneg %p3916
    $region38: #{decoder_a_forward.7} parent=5 // pred_check_branch
      %3919 = sbr.rel (%p3917) target = $region40
    $region39: #{decoder_a_forward.7} parent=5 // pred_region
      %s3920 = ssub.s32 %s9, 2
      // Predicated region
      $region41: #{decoder_a_forward.7} parent=39 // pred_check
        %p3921 = pneg %p106
      $region42: #{decoder_a_forward.7} parent=39 // pred_check_branch
        %3923 = sbr.rel (%p3921) target = $region44
      $region43: #{decoder_a_forward.7} parent=39 // pred_region
        %p3924 = scmp.lt.s32.totalorder %s15, 1
        %s3925 = scalar_select %p3924, %s15, 1
        %s3926 = smul.addr %s3925, 17
        %s3927 = scalar_lea.vmem %s3, %s3926
      $region44: #{decoder_a_forward.7} parent=39 // pred_fallthru
        _
    $region40: #{decoder_a_forward.7} parent=5 // pred_fallthru
      _
  $region6: #{decoder_a_forward.7} parent=0 // loop_footer
    %s13 = sadd.s32 1, %s9
  $region7: #{decoder_a_forward.7} parent=0 // loop_footer_branch
    %8 = sbr.rel target = $region3
  $region8: #{decoder_a_forward.7} parent=0 // loop_exit
    _

</llo_original>
